<compile_context>
chip_gen: v6e
topology: v6e:2x2x1
jax: 0.10.0
libtpu: 0.0.40
codegen_flags: <defaults>
</compile_context>

<pallas_src>
import jax
import jax.numpy as jnp
import numpy as np
from jax import lax
from jax.experimental import pallas as pl
from jax.experimental.pallas import tpu as pltpu

C_IN = 864
C_OUT = 144
C_OUT_PAD = 256      # lane-dense output stores (pad 144 -> 2 x 128 lanes)
KH = KW = 5
PAD = 2
EPS = 1e-5


# --------------------------- pass 1: depthwise + partial stats -------------
def _dw_stats_kernel(x_ref, wd_ref, dw_ref, stats_ref):
    """Depthwise 5x5 conv on one haloed (image, row-block) tile + partial stats.

    x_ref:     (HB+4, W+4, C)   zero-padded, haloed NHWC input tile
    wd_ref:    (25, C)          depthwise taps, row t = kh*KW + kw
    dw_ref:    (HB, W, C)       depthwise conv output tile
    stats_ref: (2, C)           row 0 = sum, row 1 = sum of squares (this tile)
    """
    Hp, Wp, C = x_ref.shape
    HB, W = Hp - 2 * PAD, Wp - 2 * PAD

    # Hoist all 25 tap reshapes out of the MAC loop (JAX does not CSE
    # broadcast_in_dim).
    wd = wd_ref[...]                                        # (25, C)
    taps = [wd[t].reshape(1, 1, C) for t in range(KH * KW)]

    # kw-outer / kh-inner: only one kw-shifted (sublane-axis) slab is live at a
    # time; kh slices hit the untiled leading axis and are free.
    acc = jnp.zeros((HB, W, C), jnp.float32)
    for kw in range(KW):
        slab = x_ref[:, kw:kw + W, :]                       # (HB+4, W, C)
        for kh in range(KH):
            acc = acc + slab[kh:kh + HB, :, :] * taps[kh * KW + kw]

    dw_ref[...] = acc

    # Per-tile partial BN stats (one pass: sum + sum-of-squares).  The tiny
    # cross-tile reduction happens in JAX so both grid axes stay "parallel".
    ssum = jnp.sum(acc, axis=(0, 1)).reshape(1, C)
    ssq = jnp.sum(acc * acc, axis=(0, 1)).reshape(1, C)
    stats_ref[...] = jnp.concatenate([ssum, ssq], axis=0)


# --------------------------- pass 2: BN affine + ReLU + 1x1 conv -----------
def _bn_relu_matmul_kernel(dw_ref, scale_ref, shift_ref, w2_ref, out_ref):
    """Folded BN affine + ReLU + 1x1 conv (bf16 MXU matmul) on a row block.

    dw_ref:    (RB, C)         depthwise activation rows (f32)
    scale_ref: (1, C)          gamma * rsqrt(var + eps)
    shift_ref: (1, C)          beta - mean * scale
    w2_ref:    (C, C_OUT_PAD)  bf16 1x1 conv weights (zero-padded out channels)
    out_ref:   (RB, C_OUT_PAD) f32
    """
    y = jnp.maximum(dw_ref[...] * scale_ref[...] + shift_ref[...], 0.0)
    out_ref[...] = jnp.dot(y.astype(jnp.bfloat16), w2_ref[...],
                           preferred_element_type=jnp.float32)


@jax.jit
def fused_forward(x_nchw, wd_oihw, gamma, beta, w2_oihw):
    """x_nchw: (N, 864, H, W) float32 -> (N, 144, H, W) float32."""
    N, C, H, W = x_nchw.shape
    assert C == C_IN

    # ---- glue: NCHW -> NHWC, spatial zero-pad for the 5x5 'same' conv ----
    # TODO(synk): fold the pad/transpose into the pass-1 DMA (masked halo
    # loads from the unpadded tensor) to drop these extra HBM passes.
    x_nhwc = jnp.transpose(x_nchw, (0, 2, 3, 1)).astype(jnp.float32)
    x_pad = jnp.pad(x_nhwc, ((0, 0), (PAD, PAD), (PAD, PAD), (0, 0)))
    Wp = W + 2 * PAD

    # Row-block size: largest divisor of H that is <= 16, so haloed pass-1
    # tiles stay small enough for v7x's 64 MiB VMEM as well as v5e/v6e's 128.
    HB = next(d for d in range(min(H, 16), 0, -1) if H % d == 0)
    nHB = H // HB
    # TODO(synk): in-kernel tail masking would allow non-divisor row blocks.

    # Overlapping (haloed) row blocks; for nHB == 1 this is just a reshape.
    if nHB == 1:
        x_blocks = x_pad[:, None]                            # (N,1,H+4,W+4,C)
    else:
        x_blocks = jnp.stack(
            [x_pad[:, hb * HB:hb * HB + HB + 2 * PAD] for hb in range(nHB)],
            axis=1)                                          # (N,nHB,HB+4,W+4,C)

    wd_flat = wd_oihw.reshape(C_IN, KH * KW).T.astype(jnp.float32)   # (25, C)

    # ---- pass 1: depthwise conv + per-tile partial BN stats ----
    dw, stats = pl.pallas_call(
        _dw_stats_kernel,
        grid=(N, nHB),
        in_specs=[
            pl.BlockSpec((None, None, HB + 2 * PAD, Wp, C_IN),
                         lambda n, hb: (n, hb, 0, 0, 0)),
            pl.BlockSpec((KH * KW, C_IN), lambda n, hb: (0, 0)),
        ],
        out_specs=(
            pl.BlockSpec((None, HB, W, C_IN), lambda n, hb: (n, hb, 0, 0)),
            pl.BlockSpec((None, None, 2, C_IN), lambda n, hb: (n, hb, 0, 0)),
        ),
        out_shape=(
            jax.ShapeDtypeStruct((N, H, W, C_IN), jnp.float32),
            jax.ShapeDtypeStruct((N, nHB, 2, C_IN), jnp.float32),
        ),
        compiler_params=pltpu.CompilerParams(
            dimension_semantics=("parallel", "parallel")),
    )(x_blocks, wd_flat)

    # ---- fold BN (tiny per-channel math; stays in plain JAX) ----
    cnt = float(N * H * W)
    s = jnp.sum(stats, axis=(0, 1))                          # (2, C)
    mean = s[0] * (1.0 / cnt)
    var = jnp.maximum(s[1] * (1.0 / cnt) - mean * mean, 0.0)
    inv = lax.rsqrt(var + EPS)
    scale_c = gamma.astype(jnp.float32) * inv
    shift_c = beta.astype(jnp.float32) - mean * scale_c
    scale2 = scale_c.reshape(1, C_IN)
    shift2 = shift_c.reshape(1, C_IN)

    # ---- pass 2: normalize + ReLU + 1x1 conv as lane-dense MXU matmul ----
    R = N * H * W
    dw_flat = dw.reshape(R, C_IN)                            # free (contiguous)
    RB = min(R, 512)
    R_pad = ((R + RB - 1) // RB) * RB
    if R_pad != R:
        dw_flat = jnp.pad(dw_flat, ((0, R_pad - R), (0, 0)))

    # bf16 weights, out-channel dim zero-padded 144 -> 256 for unmasked stores.
    w2_mat = jnp.zeros((C_IN, C_OUT_PAD), jnp.bfloat16)
    w2_mat = w2_mat.at[:, :C_OUT].set(w2_oihw[:, :, 0, 0].T.astype(jnp.bfloat16))

    out_flat = pl.pallas_call(
        _bn_relu_matmul_kernel,
        grid=(R_pad // RB,),
        in_specs=[
            pl.BlockSpec((RB, C_IN), lambda r: (r, 0)),
            pl.BlockSpec((1, C_IN), lambda r: (0, 0)),
            pl.BlockSpec((1, C_IN), lambda r: (0, 0)),
            pl.BlockSpec((C_IN, C_OUT_PAD), lambda r: (0, 0)),
        ],
        out_specs=pl.BlockSpec((RB, C_OUT_PAD), lambda r: (r, 0)),
        out_shape=jax.ShapeDtypeStruct((R_pad, C_OUT_PAD), jnp.float32),
        compiler_params=pltpu.CompilerParams(
            dimension_semantics=("parallel",)),
    )(dw_flat, scale2, shift2, w2_mat)

    out_nhwc = out_flat[:R, :C_OUT].reshape(N, H, W, C_OUT)
    return jnp.transpose(out_nhwc, (0, 3, 1, 2))             # back to NCHW


def reference_forward(x_nchw, wd_oihw, gamma, beta, w2_oihw):
    """Pure-JAX reference mirroring the PyTorch module (training-mode BN)."""
    y = lax.conv_general_dilated(
        x_nchw, wd_oihw, window_strides=(1, 1),
        padding=((PAD, PAD), (PAD, PAD)),
        dimension_numbers=("NCHW", "OIHW", "NCHW"),
        feature_group_count=C_IN)
    mean = y.mean(axis=(0, 2, 3), keepdims=True)
    var = ((y - mean) ** 2).mean(axis=(0, 2, 3), keepdims=True)
    yn = (y - mean) / jnp.sqrt(var + EPS)
    yn = yn * gamma.reshape(1, -1, 1, 1) + beta.reshape(1, -1, 1, 1)
    yn = jnp.maximum(yn, 0.0)
    out = lax.conv_general_dilated(
        yn, w2_oihw, window_strides=(1, 1), padding="VALID",
        dimension_numbers=("NCHW", "OIHW", "NCHW"))
    return out


if __name__ == "__main__":
    key = jax.random.PRNGKey(0)
    k_x, k_wd, k_w2, k_g, k_b = jax.random.split(key, 5)

    # small shapes consistent with the module (channels fixed by the weights)
    N, H, W = 2, 7, 7
    x = jax.random.normal(k_x, (N, C_IN, H, W), dtype=jnp.float32)

    # deterministic parameter init (shapes from the module's __init__)
    wd = jax.random.normal(k_wd, (C_IN, 1, KH, KW), dtype=jnp.float32) * 0.1     # depthwise
    w2 = jax.random.normal(k_w2, (C_OUT, C_IN, 1, 1), dtype=jnp.float32) * 0.05  # pointwise
    gamma = 1.0 + 0.1 * jax.random.normal(k_g, (C_IN,), dtype=jnp.float32)
    beta = 0.1 * jax.random.normal(k_b, (C_IN,), dtype=jnp.float32)

    out = jax.block_until_ready(fused_forward(x, wd, gamma, beta, w2))
    ref = jax.block_until_ready(reference_forward(x, wd, gamma, beta, w2))

    assert out.shape == (N, C_OUT, H, W), out.shape
    np.testing.assert_allclose(np.asarray(out), np.asarray(ref), rtol=2e-2, atol=2e-2)
    print("KERNEL_OK")
</pallas_src>

<mosaic_0001>
module attributes {stable_mosaic.version = 11 : i64} {
  func.func @_dw_stats_kernel(%arg0: i32, %arg1: i32, %arg2: memref<1x1x11x11x864xf32, #tpu.memory_space<vmem>>, %arg3: memref<25x864xf32, #tpu.memory_space<vmem>>, %arg4: memref<1x7x7x864xf32, #tpu.memory_space<vmem>>, %arg5: memref<1x1x2x864xf32, #tpu.memory_space<vmem>>) attributes {dimension_semantics = [#tpu.dimension_semantics<parallel>, #tpu.dimension_semantics<parallel>], iteration_bounds = array<i64: 2, 1>, scalar_prefetch = 0 : i64, scratch_operands = 0 : i64, tpu.core_type = #tpu.core_type<tc>, window_params = [{transform_indices = @transform_0, window_bounds = array<i64: 1, 1, 11, 11, 864>}, {pipeline_mode = #tpu.pipeline_mode<synchronous>, transform_indices = @transform_1, window_bounds = array<i64: 25, 864>}, {transform_indices = @transform_2, window_bounds = array<i64: 1, 7, 7, 864>}, {transform_indices = @transform_3, window_bounds = array<i64: 1, 1, 2, 864>}]} {
    %c0 = arith.constant 0 : index
    %c0_0 = arith.constant 0 : index
    %0 = vector.load %arg3[%c0, %c0_0] : memref<25x864xf32, #tpu.memory_space<vmem>>, vector<25x864xf32>
    %1 = vector.extract_strided_slice %0 {offsets = [0, 0], sizes = [1, 864], strides = [1, 1]} : vector<25x864xf32> to vector<1x864xf32>
    %2 = vector.shape_cast %1 : vector<1x864xf32> to vector<864xf32>
    %3 = vector.shape_cast %2 : vector<864xf32> to vector<1x1x864xf32>
    %4 = vector.extract_strided_slice %0 {offsets = [1, 0], sizes = [1, 864], strides = [1, 1]} : vector<25x864xf32> to vector<1x864xf32>
    %5 = vector.shape_cast %4 : vector<1x864xf32> to vector<864xf32>
    %6 = vector.shape_cast %5 : vector<864xf32> to vector<1x1x864xf32>
    %7 = vector.extract_strided_slice %0 {offsets = [2, 0], sizes = [1, 864], strides = [1, 1]} : vector<25x864xf32> to vector<1x864xf32>
    %8 = vector.shape_cast %7 : vector<1x864xf32> to vector<864xf32>
    %9 = vector.shape_cast %8 : vector<864xf32> to vector<1x1x864xf32>
    %10 = vector.extract_strided_slice %0 {offsets = [3, 0], sizes = [1, 864], strides = [1, 1]} : vector<25x864xf32> to vector<1x864xf32>
    %11 = vector.shape_cast %10 : vector<1x864xf32> to vector<864xf32>
    %12 = vector.shape_cast %11 : vector<864xf32> to vector<1x1x864xf32>
    %13 = vector.extract_strided_slice %0 {offsets = [4, 0], sizes = [1, 864], strides = [1, 1]} : vector<25x864xf32> to vector<1x864xf32>
    %14 = vector.shape_cast %13 : vector<1x864xf32> to vector<864xf32>
    %15 = vector.shape_cast %14 : vector<864xf32> to vector<1x1x864xf32>
    %16 = vector.extract_strided_slice %0 {offsets = [5, 0], sizes = [1, 864], strides = [1, 1]} : vector<25x864xf32> to vector<1x864xf32>
    %17 = vector.shape_cast %16 : vector<1x864xf32> to vector<864xf32>
    %18 = vector.shape_cast %17 : vector<864xf32> to vector<1x1x864xf32>
    %19 = vector.extract_strided_slice %0 {offsets = [6, 0], sizes = [1, 864], strides = [1, 1]} : vector<25x864xf32> to vector<1x864xf32>
    %20 = vector.shape_cast %19 : vector<1x864xf32> to vector<864xf32>
    %21 = vector.shape_cast %20 : vector<864xf32> to vector<1x1x864xf32>
    %22 = vector.extract_strided_slice %0 {offsets = [7, 0], sizes = [1, 864], strides = [1, 1]} : vector<25x864xf32> to vector<1x864xf32>
    %23 = vector.shape_cast %22 : vector<1x864xf32> to vector<864xf32>
    %24 = vector.shape_cast %23 : vector<864xf32> to vector<1x1x864xf32>
    %25 = vector.extract_strided_slice %0 {offsets = [8, 0], sizes = [1, 864], strides = [1, 1]} : vector<25x864xf32> to vector<1x864xf32>
    %26 = vector.shape_cast %25 : vector<1x864xf32> to vector<864xf32>
    %27 = vector.shape_cast %26 : vector<864xf32> to vector<1x1x864xf32>
    %28 = vector.extract_strided_slice %0 {offsets = [9, 0], sizes = [1, 864], strides = [1, 1]} : vector<25x864xf32> to vector<1x864xf32>
    %29 = vector.shape_cast %28 : vector<1x864xf32> to vector<864xf32>
    %30 = vector.shape_cast %29 : vector<864xf32> to vector<1x1x864xf32>
    %31 = vector.extract_strided_slice %0 {offsets = [10, 0], sizes = [1, 864], strides = [1, 1]} : vector<25x864xf32> to vector<1x864xf32>
    %32 = vector.shape_cast %31 : vector<1x864xf32> to vector<864xf32>
    %33 = vector.shape_cast %32 : vector<864xf32> to vector<1x1x864xf32>
    %34 = vector.extract_strided_slice %0 {offsets = [11, 0], sizes = [1, 864], strides = [1, 1]} : vector<25x864xf32> to vector<1x864xf32>
    %35 = vector.shape_cast %34 : vector<1x864xf32> to vector<864xf32>
    %36 = vector.shape_cast %35 : vector<864xf32> to vector<1x1x864xf32>
    %37 = vector.extract_strided_slice %0 {offsets = [12, 0], sizes = [1, 864], strides = [1, 1]} : vector<25x864xf32> to vector<1x864xf32>
    %38 = vector.shape_cast %37 : vector<1x864xf32> to vector<864xf32>
    %39 = vector.shape_cast %38 : vector<864xf32> to vector<1x1x864xf32>
    %40 = vector.extract_strided_slice %0 {offsets = [13, 0], sizes = [1, 864], strides = [1, 1]} : vector<25x864xf32> to vector<1x864xf32>
    %41 = vector.shape_cast %40 : vector<1x864xf32> to vector<864xf32>
    %42 = vector.shape_cast %41 : vector<864xf32> to vector<1x1x864xf32>
    %43 = vector.extract_strided_slice %0 {offsets = [14, 0], sizes = [1, 864], strides = [1, 1]} : vector<25x864xf32> to vector<1x864xf32>
    %44 = vector.shape_cast %43 : vector<1x864xf32> to vector<864xf32>
    %45 = vector.shape_cast %44 : vector<864xf32> to vector<1x1x864xf32>
    %46 = vector.extract_strided_slice %0 {offsets = [15, 0], sizes = [1, 864], strides = [1, 1]} : vector<25x864xf32> to vector<1x864xf32>
    %47 = vector.shape_cast %46 : vector<1x864xf32> to vector<864xf32>
    %48 = vector.shape_cast %47 : vector<864xf32> to vector<1x1x864xf32>
    %49 = vector.extract_strided_slice %0 {offsets = [16, 0], sizes = [1, 864], strides = [1, 1]} : vector<25x864xf32> to vector<1x864xf32>
    %50 = vector.shape_cast %49 : vector<1x864xf32> to vector<864xf32>
    %51 = vector.shape_cast %50 : vector<864xf32> to vector<1x1x864xf32>
    %52 = vector.extract_strided_slice %0 {offsets = [17, 0], sizes = [1, 864], strides = [1, 1]} : vector<25x864xf32> to vector<1x864xf32>
    %53 = vector.shape_cast %52 : vector<1x864xf32> to vector<864xf32>
    %54 = vector.shape_cast %53 : vector<864xf32> to vector<1x1x864xf32>
    %55 = vector.extract_strided_slice %0 {offsets = [18, 0], sizes = [1, 864], strides = [1, 1]} : vector<25x864xf32> to vector<1x864xf32>
    %56 = vector.shape_cast %55 : vector<1x864xf32> to vector<864xf32>
    %57 = vector.shape_cast %56 : vector<864xf32> to vector<1x1x864xf32>
    %58 = vector.extract_strided_slice %0 {offsets = [19, 0], sizes = [1, 864], strides = [1, 1]} : vector<25x864xf32> to vector<1x864xf32>
    %59 = vector.shape_cast %58 : vector<1x864xf32> to vector<864xf32>
    %60 = vector.shape_cast %59 : vector<864xf32> to vector<1x1x864xf32>
    %61 = vector.extract_strided_slice %0 {offsets = [20, 0], sizes = [1, 864], strides = [1, 1]} : vector<25x864xf32> to vector<1x864xf32>
    %62 = vector.shape_cast %61 : vector<1x864xf32> to vector<864xf32>
    %63 = vector.shape_cast %62 : vector<864xf32> to vector<1x1x864xf32>
    %64 = vector.extract_strided_slice %0 {offsets = [21, 0], sizes = [1, 864], strides = [1, 1]} : vector<25x864xf32> to vector<1x864xf32>
    %65 = vector.shape_cast %64 : vector<1x864xf32> to vector<864xf32>
    %66 = vector.shape_cast %65 : vector<864xf32> to vector<1x1x864xf32>
    %67 = vector.extract_strided_slice %0 {offsets = [22, 0], sizes = [1, 864], strides = [1, 1]} : vector<25x864xf32> to vector<1x864xf32>
    %68 = vector.shape_cast %67 : vector<1x864xf32> to vector<864xf32>
    %69 = vector.shape_cast %68 : vector<864xf32> to vector<1x1x864xf32>
    %70 = vector.extract_strided_slice %0 {offsets = [23, 0], sizes = [1, 864], strides = [1, 1]} : vector<25x864xf32> to vector<1x864xf32>
    %71 = vector.shape_cast %70 : vector<1x864xf32> to vector<864xf32>
    %72 = vector.shape_cast %71 : vector<864xf32> to vector<1x1x864xf32>
    %73 = vector.extract_strided_slice %0 {offsets = [24, 0], sizes = [1, 864], strides = [1, 1]} : vector<25x864xf32> to vector<1x864xf32>
    %74 = vector.shape_cast %73 : vector<1x864xf32> to vector<864xf32>
    %75 = vector.shape_cast %74 : vector<864xf32> to vector<1x1x864xf32>
    %cst = arith.constant 0.000000e+00 : f32
    %76 = vector.broadcast %cst : f32 to vector<7x7x864xf32>
    %c0_1 = arith.constant 0 : index
    %c0_2 = arith.constant 0 : index
    %c0_3 = arith.constant 0 : index
    %c0_4 = arith.constant 0 : index
    %c0_5 = arith.constant 0 : index
    %77 = vector.load %arg2[%c0_1, %c0_2, %c0_3, %c0_4, %c0_5] : memref<1x1x11x11x864xf32, #tpu.memory_space<vmem>>, vector<1x1x11x7x864xf32>
    %78 = vector.shape_cast %77 : vector<1x1x11x7x864xf32> to vector<11x7x864xf32>
    %79 = vector.extract_strided_slice %78 {offsets = [0, 0, 0], sizes = [7, 7, 864], strides = [1, 1, 1]} : vector<11x7x864xf32> to vector<7x7x864xf32>
    %80 = vector.broadcast %3 : vector<1x1x864xf32> to vector<7x7x864xf32>
    %81 = arith.mulf %79, %80 : vector<7x7x864xf32>
    %82 = arith.addf %76, %81 : vector<7x7x864xf32>
    %83 = vector.extract_strided_slice %78 {offsets = [1, 0, 0], sizes = [7, 7, 864], strides = [1, 1, 1]} : vector<11x7x864xf32> to vector<7x7x864xf32>
    %84 = vector.broadcast %18 : vector<1x1x864xf32> to vector<7x7x864xf32>
    %85 = arith.mulf %83, %84 : vector<7x7x864xf32>
    %86 = arith.addf %82, %85 : vector<7x7x864xf32>
    %87 = vector.extract_strided_slice %78 {offsets = [2, 0, 0], sizes = [7, 7, 864], strides = [1, 1, 1]} : vector<11x7x864xf32> to vector<7x7x864xf32>
    %88 = vector.broadcast %33 : vector<1x1x864xf32> to vector<7x7x864xf32>
    %89 = arith.mulf %87, %88 : vector<7x7x864xf32>
    %90 = arith.addf %86, %89 : vector<7x7x864xf32>
    %91 = vector.extract_strided_slice %78 {offsets = [3, 0, 0], sizes = [7, 7, 864], strides = [1, 1, 1]} : vector<11x7x864xf32> to vector<7x7x864xf32>
    %92 = vector.broadcast %48 : vector<1x1x864xf32> to vector<7x7x864xf32>
    %93 = arith.mulf %91, %92 : vector<7x7x864xf32>
    %94 = arith.addf %90, %93 : vector<7x7x864xf32>
    %95 = vector.extract_strided_slice %78 {offsets = [4, 0, 0], sizes = [7, 7, 864], strides = [1, 1, 1]} : vector<11x7x864xf32> to vector<7x7x864xf32>
    %96 = vector.broadcast %63 : vector<1x1x864xf32> to vector<7x7x864xf32>
    %97 = arith.mulf %95, %96 : vector<7x7x864xf32>
    %98 = arith.addf %94, %97 : vector<7x7x864xf32>
    %c0_6 = arith.constant 0 : index
    %c0_7 = arith.constant 0 : index
    %c0_8 = arith.constant 0 : index
    %c1 = arith.constant 1 : index
    %c0_9 = arith.constant 0 : index
    %99 = vector.load %arg2[%c0_6, %c0_7, %c0_8, %c1, %c0_9] : memref<1x1x11x11x864xf32, #tpu.memory_space<vmem>>, vector<1x1x11x7x864xf32>
    %100 = vector.shape_cast %99 : vector<1x1x11x7x864xf32> to vector<11x7x864xf32>
    %101 = vector.extract_strided_slice %100 {offsets = [0, 0, 0], sizes = [7, 7, 864], strides = [1, 1, 1]} : vector<11x7x864xf32> to vector<7x7x864xf32>
    %102 = vector.broadcast %6 : vector<1x1x864xf32> to vector<7x7x864xf32>
    %103 = arith.mulf %101, %102 : vector<7x7x864xf32>
    %104 = arith.addf %98, %103 : vector<7x7x864xf32>
    %105 = vector.extract_strided_slice %100 {offsets = [1, 0, 0], sizes = [7, 7, 864], strides = [1, 1, 1]} : vector<11x7x864xf32> to vector<7x7x864xf32>
    %106 = vector.broadcast %21 : vector<1x1x864xf32> to vector<7x7x864xf32>
    %107 = arith.mulf %105, %106 : vector<7x7x864xf32>
    %108 = arith.addf %104, %107 : vector<7x7x864xf32>
    %109 = vector.extract_strided_slice %100 {offsets = [2, 0, 0], sizes = [7, 7, 864], strides = [1, 1, 1]} : vector<11x7x864xf32> to vector<7x7x864xf32>
    %110 = vector.broadcast %36 : vector<1x1x864xf32> to vector<7x7x864xf32>
    %111 = arith.mulf %109, %110 : vector<7x7x864xf32>
    %112 = arith.addf %108, %111 : vector<7x7x864xf32>
    %113 = vector.extract_strided_slice %100 {offsets = [3, 0, 0], sizes = [7, 7, 864], strides = [1, 1, 1]} : vector<11x7x864xf32> to vector<7x7x864xf32>
    %114 = vector.broadcast %51 : vector<1x1x864xf32> to vector<7x7x864xf32>
    %115 = arith.mulf %113, %114 : vector<7x7x864xf32>
    %116 = arith.addf %112, %115 : vector<7x7x864xf32>
    %117 = vector.extract_strided_slice %100 {offsets = [4, 0, 0], sizes = [7, 7, 864], strides = [1, 1, 1]} : vector<11x7x864xf32> to vector<7x7x864xf32>
    %118 = vector.broadcast %66 : vector<1x1x864xf32> to vector<7x7x864xf32>
    %119 = arith.mulf %117, %118 : vector<7x7x864xf32>
    %120 = arith.addf %116, %119 : vector<7x7x864xf32>
    %c0_10 = arith.constant 0 : index
    %c0_11 = arith.constant 0 : index
    %c0_12 = arith.constant 0 : index
    %c2 = arith.constant 2 : index
    %c0_13 = arith.constant 0 : index
    %121 = vector.load %arg2[%c0_10, %c0_11, %c0_12, %c2, %c0_13] : memref<1x1x11x11x864xf32, #tpu.memory_space<vmem>>, vector<1x1x11x7x864xf32>
    %122 = vector.shape_cast %121 : vector<1x1x11x7x864xf32> to vector<11x7x864xf32>
    %123 = vector.extract_strided_slice %122 {offsets = [0, 0, 0], sizes = [7, 7, 864], strides = [1, 1, 1]} : vector<11x7x864xf32> to vector<7x7x864xf32>
    %124 = vector.broadcast %9 : vector<1x1x864xf32> to vector<7x7x864xf32>
    %125 = arith.mulf %123, %124 : vector<7x7x864xf32>
    %126 = arith.addf %120, %125 : vector<7x7x864xf32>
    %127 = vector.extract_strided_slice %122 {offsets = [1, 0, 0], sizes = [7, 7, 864], strides = [1, 1, 1]} : vector<11x7x864xf32> to vector<7x7x864xf32>
    %128 = vector.broadcast %24 : vector<1x1x864xf32> to vector<7x7x864xf32>
    %129 = arith.mulf %127, %128 : vector<7x7x864xf32>
    %130 = arith.addf %126, %129 : vector<7x7x864xf32>
    %131 = vector.extract_strided_slice %122 {offsets = [2, 0, 0], sizes = [7, 7, 864], strides = [1, 1, 1]} : vector<11x7x864xf32> to vector<7x7x864xf32>
    %132 = vector.broadcast %39 : vector<1x1x864xf32> to vector<7x7x864xf32>
    %133 = arith.mulf %131, %132 : vector<7x7x864xf32>
    %134 = arith.addf %130, %133 : vector<7x7x864xf32>
    %135 = vector.extract_strided_slice %122 {offsets = [3, 0, 0], sizes = [7, 7, 864], strides = [1, 1, 1]} : vector<11x7x864xf32> to vector<7x7x864xf32>
    %136 = vector.broadcast %54 : vector<1x1x864xf32> to vector<7x7x864xf32>
    %137 = arith.mulf %135, %136 : vector<7x7x864xf32>
    %138 = arith.addf %134, %137 : vector<7x7x864xf32>
    %139 = vector.extract_strided_slice %122 {offsets = [4, 0, 0], sizes = [7, 7, 864], strides = [1, 1, 1]} : vector<11x7x864xf32> to vector<7x7x864xf32>
    %140 = vector.broadcast %69 : vector<1x1x864xf32> to vector<7x7x864xf32>
    %141 = arith.mulf %139, %140 : vector<7x7x864xf32>
    %142 = arith.addf %138, %141 : vector<7x7x864xf32>
    %c0_14 = arith.constant 0 : index
    %c0_15 = arith.constant 0 : index
    %c0_16 = arith.constant 0 : index
    %c3 = arith.constant 3 : index
    %c0_17 = arith.constant 0 : index
    %143 = vector.load %arg2[%c0_14, %c0_15, %c0_16, %c3, %c0_17] : memref<1x1x11x11x864xf32, #tpu.memory_space<vmem>>, vector<1x1x11x7x864xf32>
    %144 = vector.shape_cast %143 : vector<1x1x11x7x864xf32> to vector<11x7x864xf32>
    %145 = vector.extract_strided_slice %144 {offsets = [0, 0, 0], sizes = [7, 7, 864], strides = [1, 1, 1]} : vector<11x7x864xf32> to vector<7x7x864xf32>
    %146 = vector.broadcast %12 : vector<1x1x864xf32> to vector<7x7x864xf32>
    %147 = arith.mulf %145, %146 : vector<7x7x864xf32>
    %148 = arith.addf %142, %147 : vector<7x7x864xf32>
    %149 = vector.extract_strided_slice %144 {offsets = [1, 0, 0], sizes = [7, 7, 864], strides = [1, 1, 1]} : vector<11x7x864xf32> to vector<7x7x864xf32>
    %150 = vector.broadcast %27 : vector<1x1x864xf32> to vector<7x7x864xf32>
    %151 = arith.mulf %149, %150 : vector<7x7x864xf32>
    %152 = arith.addf %148, %151 : vector<7x7x864xf32>
    %153 = vector.extract_strided_slice %144 {offsets = [2, 0, 0], sizes = [7, 7, 864], strides = [1, 1, 1]} : vector<11x7x864xf32> to vector<7x7x864xf32>
    %154 = vector.broadcast %42 : vector<1x1x864xf32> to vector<7x7x864xf32>
    %155 = arith.mulf %153, %154 : vector<7x7x864xf32>
    %156 = arith.addf %152, %155 : vector<7x7x864xf32>
    %157 = vector.extract_strided_slice %144 {offsets = [3, 0, 0], sizes = [7, 7, 864], strides = [1, 1, 1]} : vector<11x7x864xf32> to vector<7x7x864xf32>
    %158 = vector.broadcast %57 : vector<1x1x864xf32> to vector<7x7x864xf32>
    %159 = arith.mulf %157, %158 : vector<7x7x864xf32>
    %160 = arith.addf %156, %159 : vector<7x7x864xf32>
    %161 = vector.extract_strided_slice %144 {offsets = [4, 0, 0], sizes = [7, 7, 864], strides = [1, 1, 1]} : vector<11x7x864xf32> to vector<7x7x864xf32>
    %162 = vector.broadcast %72 : vector<1x1x864xf32> to vector<7x7x864xf32>
    %163 = arith.mulf %161, %162 : vector<7x7x864xf32>
    %164 = arith.addf %160, %163 : vector<7x7x864xf32>
    %c0_18 = arith.constant 0 : index
    %c0_19 = arith.constant 0 : index
    %c0_20 = arith.constant 0 : index
    %c4 = arith.constant 4 : index
    %c0_21 = arith.constant 0 : index
    %165 = vector.load %arg2[%c0_18, %c0_19, %c0_20, %c4, %c0_21] : memref<1x1x11x11x864xf32, #tpu.memory_space<vmem>>, vector<1x1x11x7x864xf32>
    %166 = vector.shape_cast %165 : vector<1x1x11x7x864xf32> to vector<11x7x864xf32>
    %167 = vector.extract_strided_slice %166 {offsets = [0, 0, 0], sizes = [7, 7, 864], strides = [1, 1, 1]} : vector<11x7x864xf32> to vector<7x7x864xf32>
    %168 = vector.broadcast %15 : vector<1x1x864xf32> to vector<7x7x864xf32>
    %169 = arith.mulf %167, %168 : vector<7x7x864xf32>
    %170 = arith.addf %164, %169 : vector<7x7x864xf32>
    %171 = vector.extract_strided_slice %166 {offsets = [1, 0, 0], sizes = [7, 7, 864], strides = [1, 1, 1]} : vector<11x7x864xf32> to vector<7x7x864xf32>
    %172 = vector.broadcast %30 : vector<1x1x864xf32> to vector<7x7x864xf32>
    %173 = arith.mulf %171, %172 : vector<7x7x864xf32>
    %174 = arith.addf %170, %173 : vector<7x7x864xf32>
    %175 = vector.extract_strided_slice %166 {offsets = [2, 0, 0], sizes = [7, 7, 864], strides = [1, 1, 1]} : vector<11x7x864xf32> to vector<7x7x864xf32>
    %176 = vector.broadcast %45 : vector<1x1x864xf32> to vector<7x7x864xf32>
    %177 = arith.mulf %175, %176 : vector<7x7x864xf32>
    %178 = arith.addf %174, %177 : vector<7x7x864xf32>
    %179 = vector.extract_strided_slice %166 {offsets = [3, 0, 0], sizes = [7, 7, 864], strides = [1, 1, 1]} : vector<11x7x864xf32> to vector<7x7x864xf32>
    %180 = vector.broadcast %60 : vector<1x1x864xf32> to vector<7x7x864xf32>
    %181 = arith.mulf %179, %180 : vector<7x7x864xf32>
    %182 = arith.addf %178, %181 : vector<7x7x864xf32>
    %183 = vector.extract_strided_slice %166 {offsets = [4, 0, 0], sizes = [7, 7, 864], strides = [1, 1, 1]} : vector<11x7x864xf32> to vector<7x7x864xf32>
    %184 = vector.broadcast %75 : vector<1x1x864xf32> to vector<7x7x864xf32>
    %185 = arith.mulf %183, %184 : vector<7x7x864xf32>
    %186 = arith.addf %182, %185 : vector<7x7x864xf32>
    %c0_22 = arith.constant 0 : index
    %c0_23 = arith.constant 0 : index
    %c0_24 = arith.constant 0 : index
    %c0_25 = arith.constant 0 : index
    %187 = vector.load %arg4[%c0_22, %c0_23, %c0_24, %c0_25] : memref<1x7x7x864xf32, #tpu.memory_space<vmem>>, vector<1x7x7x864xf32>
    %188 = vector.shape_cast %187 : vector<1x7x7x864xf32> to vector<7x7x864xf32>
    %189 = vector.shape_cast %186 : vector<7x7x864xf32> to vector<1x7x7x864xf32>
    tpu.vector_store %arg4[%c0_22, %c0_23, %c0_24, %c0_25], %189 {strides = array<i32>} : memref<1x7x7x864xf32, #tpu.memory_space<vmem>>, vector<1x7x7x864xf32>,
    %cst_26 = arith.constant dense<0.000000e+00> : vector<864xf32>
    %190 = vector.multi_reduction <add>, %186, %cst_26 [0, 1] : vector<7x7x864xf32> to vector<864xf32>
    %191 = vector.shape_cast %190 : vector<864xf32> to vector<1x864xf32>
    %192 = arith.mulf %186, %186 : vector<7x7x864xf32>
    %cst_27 = arith.constant dense<0.000000e+00> : vector<864xf32>
    %193 = vector.multi_reduction <add>, %192, %cst_27 [0, 1] : vector<7x7x864xf32> to vector<864xf32>
    %194 = vector.shape_cast %193 : vector<864xf32> to vector<1x864xf32>
    %195 = tpu.concatenate %191, %194 in 0 : vector<1x864xf32>, vector<1x864xf32> -> vector<2x864xf32>
    %c0_28 = arith.constant 0 : index
    %c0_29 = arith.constant 0 : index
    %c0_30 = arith.constant 0 : index
    %c0_31 = arith.constant 0 : index
    %196 = vector.load %arg5[%c0_28, %c0_29, %c0_30, %c0_31] : memref<1x1x2x864xf32, #tpu.memory_space<vmem>>, vector<1x1x2x864xf32>
    %197 = vector.shape_cast %196 : vector<1x1x2x864xf32> to vector<2x864xf32>
    %198 = vector.shape_cast %195 : vector<2x864xf32> to vector<1x1x2x864xf32>
    tpu.vector_store %arg5[%c0_28, %c0_29, %c0_30, %c0_31], %198 {strides = array<i32>} : memref<1x1x2x864xf32, #tpu.memory_space<vmem>>, vector<1x1x2x864xf32>,
    return
  }
  func.func @transform_0(%arg0: i32, %arg1: i32) -> (i32, i32, i32, i32, i32) {
    %c0_i32 = arith.constant 0 : i32
    %c0_i32_0 = arith.constant 0 : i32
    %c0_i32_1 = arith.constant 0 : i32
    %c0_i32_2 = arith.constant 0 : i32
    return %arg0, %arg1, %c0_i32, %c0_i32_0, %c0_i32_1 : i32, i32, i32, i32, i32
  }
  func.func @transform_1(%arg0: i32, %arg1: i32) -> (i32, i32) {
    %c0_i32 = arith.constant 0 : i32
    %c0_i32_0 = arith.constant 0 : i32
    %c0_i32_1 = arith.constant 0 : i32
    return %c0_i32, %c0_i32_0 : i32, i32
  }
  func.func @transform_2(%arg0: i32, %arg1: i32) -> (i32, i32, i32, i32) {
    %c0_i32 = arith.constant 0 : i32
    %c0_i32_0 = arith.constant 0 : i32
    %c0_i32_1 = arith.constant 0 : i32
    return %arg0, %arg1, %c0_i32, %c0_i32_0 : i32, i32, i32, i32
  }
  func.func @transform_3(%arg0: i32, %arg1: i32) -> (i32, i32, i32, i32) {
    %c0_i32 = arith.constant 0 : i32
    %c0_i32_0 = arith.constant 0 : i32
    %c0_i32_1 = arith.constant 0 : i32
    return %arg0, %arg1, %c0_i32, %c0_i32_0 : i32, i32, i32, i32
  }
}

module attributes {stable_mosaic.version = 11 : i64} {
  func.func @_bn_relu_matmul_kernel(%arg0: i32, %arg1: memref<98x864xf32, #tpu.memory_space<vmem>>, %arg2: memref<1x864xf32, #tpu.memory_space<vmem>>, %arg3: memref<1x864xf32, #tpu.memory_space<vmem>>, %arg4: memref<864x256xbf16, #tpu.memory_space<vmem>>, %arg5: memref<98x256xf32, #tpu.memory_space<vmem>>) attributes {dimension_semantics = [#tpu.dimension_semantics<parallel>], iteration_bounds = array<i64: 1>, scalar_prefetch = 0 : i64, scratch_operands = 0 : i64, tpu.core_type = #tpu.core_type<tc>, window_params = [{transform_indices = @transform_0, window_bounds = array<i64: 98, 864>}, {pipeline_mode = #tpu.pipeline_mode<synchronous>, transform_indices = @transform_1, window_bounds = array<i64: 1, 864>}, {pipeline_mode = #tpu.pipeline_mode<synchronous>, transform_indices = @transform_2, window_bounds = array<i64: 1, 864>}, {pipeline_mode = #tpu.pipeline_mode<synchronous>, transform_indices = @transform_3, window_bounds = array<i64: 864, 256>}, {transform_indices = @transform_4, window_bounds = array<i64: 98, 256>}]} {
    %c0 = arith.constant 0 : index
    %c0_0 = arith.constant 0 : index
    %0 = vector.load %arg1[%c0, %c0_0] : memref<98x864xf32, #tpu.memory_space<vmem>>, vector<98x864xf32>
    %c0_1 = arith.constant 0 : index
    %c0_2 = arith.constant 0 : index
    %1 = vector.load %arg2[%c0_1, %c0_2] : memref<1x864xf32, #tpu.memory_space<vmem>>, vector<1x864xf32>
    %2 = vector.broadcast %1 : vector<1x864xf32> to vector<98x864xf32>
    %3 = arith.mulf %0, %2 : vector<98x864xf32>
    %c0_3 = arith.constant 0 : index
    %c0_4 = arith.constant 0 : index
    %4 = vector.load %arg3[%c0_3, %c0_4] : memref<1x864xf32, #tpu.memory_space<vmem>>, vector<1x864xf32>
    %5 = vector.broadcast %4 : vector<1x864xf32> to vector<98x864xf32>
    %6 = arith.addf %3, %5 : vector<98x864xf32>
    %cst = arith.constant 0.000000e+00 : f32
    %7 = vector.broadcast %cst : f32 to vector<98x864xf32>
    %8 = arith.maximumf %6, %7 : vector<98x864xf32>
    %9 = arith.truncf %8 : vector<98x864xf32> to vector<98x864xbf16>
    %c0_5 = arith.constant 0 : index
    %c0_6 = arith.constant 0 : index
    %10 = vector.load %arg4[%c0_5, %c0_6] : memref<864x256xbf16, #tpu.memory_space<vmem>>, vector<864x256xbf16>
    %cst_7 = arith.constant dense<0.000000e+00> : vector<98x256xf32>
    %11 = tpu.matmul %9, %10, %cst_7 {dimension_numbers = #tpu.dot_dimension_numbers<[1], [0], [0], [1], [0, 0, 1, 1], [], []>} : vector<98x864xbf16>, vector<864x256xbf16>, vector<98x256xf32> -> vector<98x256xf32>
    %c0_8 = arith.constant 0 : index
    %c0_9 = arith.constant 0 : index
    %12 = vector.load %arg5[%c0_8, %c0_9] : memref<98x256xf32, #tpu.memory_space<vmem>>, vector<98x256xf32>
    tpu.vector_store %arg5[%c0_8, %c0_9], %11 {strides = array<i32>} : memref<98x256xf32, #tpu.memory_space<vmem>>, vector<98x256xf32>,
    return
  }
  func.func @transform_0(%arg0: i32) -> (i32, i32) {
    %c0_i32 = arith.constant 0 : i32
    %c0_i32_0 = arith.constant 0 : i32
    return %arg0, %c0_i32 : i32, i32
  }
  func.func @transform_1(%arg0: i32) -> (i32, i32) {
    %c0_i32 = arith.constant 0 : i32
    %c0_i32_0 = arith.constant 0 : i32
    %c0_i32_1 = arith.constant 0 : i32
    return %c0_i32, %c0_i32_0 : i32, i32
  }
  func.func @transform_2(%arg0: i32) -> (i32, i32) {
    %c0_i32 = arith.constant 0 : i32
    %c0_i32_0 = arith.constant 0 : i32
    %c0_i32_1 = arith.constant 0 : i32
    return %c0_i32, %c0_i32_0 : i32, i32
  }
  func.func @transform_3(%arg0: i32) -> (i32, i32) {
    %c0_i32 = arith.constant 0 : i32
    %c0_i32_0 = arith.constant 0 : i32
    %c0_i32_1 = arith.constant 0 : i32
    return %c0_i32, %c0_i32_0 : i32, i32
  }
  func.func @transform_4(%arg0: i32) -> (i32, i32) {
    %c0_i32 = arith.constant 0 : i32
    %c0_i32_0 = arith.constant 0 : i32
    return %arg0, %c0_i32 : i32, i32
  }
}

</mosaic_0001>

<llo_original>
// kernel: fused_forward.3
$region0: #{fused_forward.3}
  #allocation0 [shape = 'u32[]', space=smem, size = 0x4, offset = 0x4, fixed_abs, tag = 'smem constant byte address 0x4 - core index']
  #allocation1 [shape = 'u32[144,128]{1,0:T(1,128)}', space=vmem, size = 0x12000, scoped, tag = 'internal scratch']
  %s0 = inlined_call_operand.vmem [shape: f32[98,864], index: 0, kind: input, shape index: {}]
  %s1 = inlined_call_operand.vmem [shape: f32[1,864], index: 1, kind: input, shape index: {}]
  %s2 = inlined_call_operand.vmem [shape: f32[1,864], index: 2, kind: input, shape index: {}]
  %s3 = inlined_call_operand.vmem [shape: bf16[864,256], index: 3, kind: input, shape index: {}]
  %s4 = inlined_call_operand.vmem [shape: f32[98,256], index: 4, kind: output, shape index: {}]
  %s5 = sld [smem:[#allocation0]]
  $region26: #{fused_forward.3} parent=0
    _
  %s7 = ssub.s32 1, %s5
  %s8 = scalar_select 0, %s7, %s5
  // Predicated region
  $region2: #{fused_forward.3} parent=0 // pred_check
    _
  $region3: #{fused_forward.3} parent=0 // pred_check_branch
    %10 = sbr.rel (0) target = $region5
  $region4: #{fused_forward.3} parent=0 // pred_region
    _
  $region5: #{fused_forward.3} parent=0 // pred_fallthru
    _
  // Predicated region
  $region6: #{fused_forward.3} parent=0 // pred_check
    _
  $region7: #{fused_forward.3} parent=0 // pred_check_branch
    %12 = sbr.rel (0) target = $region9
  $region8: #{fused_forward.3} parent=0 // pred_region
    _
  $region9: #{fused_forward.3} parent=0 // pred_fallthru
    _
  // Predicated region
  $region10: #{fused_forward.3} parent=0 // pred_check
    _
  $region11: #{fused_forward.3} parent=0 // pred_check_branch
    %14 = sbr.rel (0) target = $region13
  $region12: #{fused_forward.3} parent=0 // pred_region
    _
  $region13: #{fused_forward.3} parent=0 // pred_fallthru
    _
  // Predicated region
  $region14: #{fused_forward.3} parent=0 // pred_check
    _
  $region15: #{fused_forward.3} parent=0 // pred_check_branch
    %16 = sbr.rel (0) target = $region17
  $region16: #{fused_forward.3} parent=0 // pred_region
    _
  $region17: #{fused_forward.3} parent=0 // pred_fallthru
    _
  %v18 = vld [vmem:[%s0] sm:$0xff]
  %v19 = vld [vmem:[%s0 + $0x8] sm:$0xff]
  %v20 = vld [vmem:[%s0 + $0x10] sm:$0xff]
  %v21 = vld [vmem:[%s0 + $0x18] sm:$0xff]
  %v22 = vld [vmem:[%s0 + $0x20] sm:$0xff]
  %v23 = vld [vmem:[%s0 + $0x28] sm:$0xff]
  %v24 = vld [vmem:[%s0 + $0x30] sm:$0xff]
  %v25 = vld [vmem:[%s0 + $0x38] sm:$0xff]
  %v26 = vld [vmem:[%s0 + $0x40] sm:$0xff]
  %v27 = vld [vmem:[%s0 + $0x48] sm:$0xff]
  %v28 = vld [vmem:[%s0 + $0x50] sm:$0xff]
  %v29 = vld [vmem:[%s0 + $0x58] sm:$0xff]
  %v30 = vld [vmem:[%s0 + $0x60] sm:$0xff]
  %v31 = vld [vmem:[%s0 + $0x68] sm:$0xff]
  %v32 = vld [vmem:[%s0 + $0x70] sm:$0xff]
  %v33 = vld [vmem:[%s0 + $0x78] sm:$0xff]
  %v34 = vld [vmem:[%s0 + $0x80] sm:$0xff]
  %v35 = vld [vmem:[%s0 + $0x88] sm:$0xff]
  %v36 = vld [vmem:[%s0 + $0x90] sm:$0xff]
  %v37 = vld [vmem:[%s0 + $0x98] sm:$0xff]
  %v38 = vld [vmem:[%s0 + $0xa0] sm:$0xff]
  %v39 = vld [vmem:[%s0 + $0xa8] sm:$0xff]
  %v40 = vld [vmem:[%s0 + $0xb0] sm:$0xff]
  %v41 = vld [vmem:[%s0 + $0xb8] sm:$0xff]
  %v42 = vld [vmem:[%s0 + $0xc0] sm:$0xff]
  %v43 = vld [vmem:[%s0 + $0xc8] sm:$0xff]
  %v44 = vld [vmem:[%s0 + $0xd0] sm:$0xff]
  %v45 = vld [vmem:[%s0 + $0xd8] sm:$0xff]
  %v46 = vld [vmem:[%s0 + $0xe0] sm:$0xff]
  %v47 = vld [vmem:[%s0 + $0xe8] sm:$0xff]
  %v48 = vld [vmem:[%s0 + $0xf0] sm:$0xff]
  %v49 = vld [vmem:[%s0 + $0xf8] sm:$0xff]
  %v50 = vld [vmem:[%s0 + $0x100] sm:$0xff]
  %v51 = vld [vmem:[%s0 + $0x108] sm:$0xff]
  %v52 = vld [vmem:[%s0 + $0x110] sm:$0xff]
  %v53 = vld [vmem:[%s0 + $0x118] sm:$0xff]
  %v54 = vld [vmem:[%s0 + $0x120] sm:$0xff]
  %v55 = vld [vmem:[%s0 + $0x128] sm:$0xff]
  %v56 = vld [vmem:[%s0 + $0x130] sm:$0xff]
  %v57 = vld [vmem:[%s0 + $0x138] sm:$0xff]
  %v58 = vld [vmem:[%s0 + $0x140] sm:$0xff]
  %v59 = vld [vmem:[%s0 + $0x148] sm:$0xff]
  %v60 = vld [vmem:[%s0 + $0x150] sm:$0xff]
  %v61 = vld [vmem:[%s0 + $0x158] sm:$0xff]
  %v62 = vld [vmem:[%s0 + $0x160] sm:$0xff]
  %v63 = vld [vmem:[%s0 + $0x168] sm:$0xff]
  %v64 = vld [vmem:[%s0 + $0x170] sm:$0xff]
  %v65 = vld [vmem:[%s0 + $0x178] sm:$0xff]
  %v66 = vld [vmem:[%s0 + $0x180] sm:$0xff]
  %v67 = vld [vmem:[%s0 + $0x188] sm:$0xff]
  %v68 = vld [vmem:[%s0 + $0x190] sm:$0xff]
  %v69 = vld [vmem:[%s0 + $0x198] sm:$0xff]
  %v70 = vld [vmem:[%s0 + $0x1a0] sm:$0xff]
  %v71 = vld [vmem:[%s0 + $0x1a8] sm:$0xff]
  %v72 = vld [vmem:[%s0 + $0x1b0] sm:$0xff]
  %v73 = vld [vmem:[%s0 + $0x1b8] sm:$0xff]
  %v74 = vld [vmem:[%s0 + $0x1c0] sm:$0xff]
  %v75 = vld [vmem:[%s0 + $0x1c8] sm:$0xff]
  %v76 = vld [vmem:[%s0 + $0x1d0] sm:$0xff]
  %v77 = vld [vmem:[%s0 + $0x1d8] sm:$0xff]
  %v78 = vld [vmem:[%s0 + $0x1e0] sm:$0xff]
  %v79 = vld [vmem:[%s0 + $0x1e8] sm:$0xff]
  %v80 = vld [vmem:[%s0 + $0x1f0] sm:$0xff]
  %v81 = vld [vmem:[%s0 + $0x1f8] sm:$0xff]
  %v82 = vld [vmem:[%s0 + $0x200] sm:$0xff]
  %v83 = vld [vmem:[%s0 + $0x208] sm:$0xff]
  %v84 = vld [vmem:[%s0 + $0x210] sm:$0xff]
  %v85 = vld [vmem:[%s0 + $0x218] sm:$0xff]
  %v86 = vld [vmem:[%s0 + $0x220] sm:$0xff]
  %v87 = vld [vmem:[%s0 + $0x228] sm:$0xff]
  %v88 = vld [vmem:[%s0 + $0x230] sm:$0xff]
  %v89 = vld [vmem:[%s0 + $0x238] sm:$0xff]
  %v90 = vld [vmem:[%s0 + $0x240] sm:$0xff]
  %v91 = vld [vmem:[%s0 + $0x248] sm:$0xff]
  %v92 = vld [vmem:[%s0 + $0x250] sm:$0xff]
  %v93 = vld [vmem:[%s0 + $0x258] sm:$0xff]
  %v94 = vld [vmem:[%s0 + $0x260] sm:$0xff]
  %v95 = vld [vmem:[%s0 + $0x268] sm:$0xff]
  %v96 = vld [vmem:[%s0 + $0x270] sm:$0xff]
  %v97 = vld [vmem:[%s0 + $0x278] sm:$0xff]
  %v98 = vld [vmem:[%s0 + $0x280] sm:$0xff]
  %v99 = vld [vmem:[%s0 + $0x288] sm:$0xff]
  %v100 = vld [vmem:[%s0 + $0x290] sm:$0xff]
  %v101 = vld [vmem:[%s0 + $0x298] sm:$0xff]
  %v102 = vld [vmem:[%s0 + $0x2a0] sm:$0x3]
  %v103 = vld [vmem:[%s0 + $0x2a8] sm:$0x3]
  %v104 = vld [vmem:[%s0 + $0x2b0] sm:$0x3]
  %v105 = vld [vmem:[%s0 + $0x2b8] sm:$0x3]
  %v106 = vld [vmem:[%s0 + $0x2c0] sm:$0x3]
  %v107 = vld [vmem:[%s0 + $0x2c8] sm:$0x3]
  %v108 = vld [vmem:[%s0 + $0x2d0] sm:$0x3]
  %v109 = vld [vmem:[%s1] sm:$0x7f]
  %v111 = vlaneseq
  %v112 = vshrl.u32 %v111, 7
  %v113 = vsub.s32 0, %v112
  %v114 = vrot.slane %v109, %v113
  %v115 = vlaneseq
  %v116 = vshrl.u32 %v115, 7
  %v117 = vsub.s32 1, %v116
  %v118 = vrot.slane %v109, %v117
  %v119 = vlaneseq
  %v120 = vshrl.u32 %v119, 7
  %v121 = vsub.s32 2, %v120
  %v122 = vrot.slane %v109, %v121
  %v123 = vlaneseq
  %v124 = vshrl.u32 %v123, 7
  %v125 = vsub.s32 3, %v124
  %v126 = vrot.slane %v109, %v125
  %v127 = vlaneseq
  %v128 = vshrl.u32 %v127, 7
  %v129 = vsub.s32 4, %v128
  %v130 = vrot.slane %v109, %v129
  %v131 = vlaneseq
  %v132 = vshrl.u32 %v131, 7
  %v133 = vsub.s32 5, %v132
  %v134 = vrot.slane %v109, %v133
  %v135 = vlaneseq
  %v136 = vshrl.u32 %v135, 7
  %v137 = vsub.s32 6, %v136
  %v138 = vrot.slane %v109, %v137
  %v146 = vmul.f32 %v18, %v114
  %v147 = vmul.f32 %v19, %v118
  %v148 = vmul.f32 %v20, %v122
  %v149 = vmul.f32 %v21, %v126
  %v150 = vmul.f32 %v22, %v130
  %v151 = vmul.f32 %v23, %v134
  %v152 = vmul.f32 %v24, %v138
  %v153 = vmul.f32 %v25, %v114
  %v154 = vmul.f32 %v26, %v118
  %v155 = vmul.f32 %v27, %v122
  %v156 = vmul.f32 %v28, %v126
  %v157 = vmul.f32 %v29, %v130
  %v158 = vmul.f32 %v30, %v134
  %v159 = vmul.f32 %v31, %v138
  %v160 = vmul.f32 %v32, %v114
  %v161 = vmul.f32 %v33, %v118
  %v162 = vmul.f32 %v34, %v122
  %v163 = vmul.f32 %v35, %v126
  %v164 = vmul.f32 %v36, %v130
  %v165 = vmul.f32 %v37, %v134
  %v166 = vmul.f32 %v38, %v138
  %v167 = vmul.f32 %v39, %v114
  %v168 = vmul.f32 %v40, %v118
  %v169 = vmul.f32 %v41, %v122
  %v170 = vmul.f32 %v42, %v126
  %v171 = vmul.f32 %v43, %v130
  %v172 = vmul.f32 %v44, %v134
  %v173 = vmul.f32 %v45, %v138
  %v174 = vmul.f32 %v46, %v114
  %v175 = vmul.f32 %v47, %v118
  %v176 = vmul.f32 %v48, %v122
  %v177 = vmul.f32 %v49, %v126
  %v178 = vmul.f32 %v50, %v130
  %v179 = vmul.f32 %v51, %v134
  %v180 = vmul.f32 %v52, %v138
  %v181 = vmul.f32 %v53, %v114
  %v182 = vmul.f32 %v54, %v118
  %v183 = vmul.f32 %v55, %v122
  %v184 = vmul.f32 %v56, %v126
  %v185 = vmul.f32 %v57, %v130
  %v186 = vmul.f32 %v58, %v134
  %v187 = vmul.f32 %v59, %v138
  %v188 = vmul.f32 %v60, %v114
  %v189 = vmul.f32 %v61, %v118
  %v190 = vmul.f32 %v62, %v122
  %v191 = vmul.f32 %v63, %v126
  %v192 = vmul.f32 %v64, %v130
  %v193 = vmul.f32 %v65, %v134
  %v194 = vmul.f32 %v66, %v138
  %v195 = vmul.f32 %v67, %v114
  %v196 = vmul.f32 %v68, %v118
  %v197 = vmul.f32 %v69, %v122
  %v198 = vmul.f32 %v70, %v126
  %v199 = vmul.f32 %v71, %v130
  %v200 = vmul.f32 %v72, %v134
  %v201 = vmul.f32 %v73, %v138
  %v202 = vmul.f32 %v74, %v114
  %v203 = vmul.f32 %v75, %v118
  %v204 = vmul.f32 %v76, %v122
  %v205 = vmul.f32 %v77, %v126
  %v206 = vmul.f32 %v78, %v130
  %v207 = vmul.f32 %v79, %v134
  %v208 = vmul.f32 %v80, %v138
  %v209 = vmul.f32 %v81, %v114
  %v210 = vmul.f32 %v82, %v118
  %v211 = vmul.f32 %v83, %v122
  %v212 = vmul.f32 %v84, %v126
  %v213 = vmul.f32 %v85, %v130
  %v214 = vmul.f32 %v86, %v134
  %v215 = vmul.f32 %v87, %v138
  %v216 = vmul.f32 %v88, %v114
  %v217 = vmul.f32 %v89, %v118
  %v218 = vmul.f32 %v90, %v122
  %v219 = vmul.f32 %v91, %v126
  %v220 = vmul.f32 %v92, %v130
  %v221 = vmul.f32 %v93, %v134
  %v222 = vmul.f32 %v94, %v138
  %v223 = vmul.f32 %v95, %v114
  %v224 = vmul.f32 %v96, %v118
  %v225 = vmul.f32 %v97, %v122
  %v226 = vmul.f32 %v98, %v126
  %v227 = vmul.f32 %v99, %v130
  %v228 = vmul.f32 %v100, %v134
  %v229 = vmul.f32 %v101, %v138
  %v230 = vmul.f32 %v102, %v114
  %v231 = vmul.f32 %v103, %v118
  %v232 = vmul.f32 %v104, %v122
  %v233 = vmul.f32 %v105, %v126
  %v234 = vmul.f32 %v106, %v130
  %v235 = vmul.f32 %v107, %v134
  %v236 = vmul.f32 %v108, %v138
  %v237 = vld [vmem:[%s2] sm:$0x7f]
  %v239 = vlaneseq
  %v240 = vshrl.u32 %v239, 7
  %v241 = vsub.s32 0, %v240
  %v242 = vrot.slane %v237, %v241
  %v243 = vlaneseq
  %v244 = vshrl.u32 %v243, 7
  %v245 = vsub.s32 1, %v244
  %v246 = vrot.slane %v237, %v245
  %v247 = vlaneseq
  %v248 = vshrl.u32 %v247, 7
  %v249 = vsub.s32 2, %v248
  %v250 = vrot.slane %v237, %v249
  %v251 = vlaneseq
  %v252 = vshrl.u32 %v251, 7
  %v253 = vsub.s32 3, %v252
  %v254 = vrot.slane %v237, %v253
  %v255 = vlaneseq
  %v256 = vshrl.u32 %v255, 7
  %v257 = vsub.s32 4, %v256
  %v258 = vrot.slane %v237, %v257
  %v259 = vlaneseq
  %v260 = vshrl.u32 %v259, 7
  %v261 = vsub.s32 5, %v260
  %v262 = vrot.slane %v237, %v261
  %v263 = vlaneseq
  %v264 = vshrl.u32 %v263, 7
  %v265 = vsub.s32 6, %v264
  %v266 = vrot.slane %v237, %v265
  %v274 = vadd.f32 %v146, %v242
  %v275 = vadd.f32 %v147, %v246
  %v276 = vadd.f32 %v148, %v250
  %v277 = vadd.f32 %v149, %v254
  %v278 = vadd.f32 %v150, %v258
  %v279 = vadd.f32 %v151, %v262
  %v280 = vadd.f32 %v152, %v266
  %v281 = vadd.f32 %v153, %v242
  %v282 = vadd.f32 %v154, %v246
  %v283 = vadd.f32 %v155, %v250
  %v284 = vadd.f32 %v156, %v254
  %v285 = vadd.f32 %v157, %v258
  %v286 = vadd.f32 %v158, %v262
  %v287 = vadd.f32 %v159, %v266
  %v288 = vadd.f32 %v160, %v242
  %v289 = vadd.f32 %v161, %v246
  %v290 = vadd.f32 %v162, %v250
  %v291 = vadd.f32 %v163, %v254
  %v292 = vadd.f32 %v164, %v258
  %v293 = vadd.f32 %v165, %v262
  %v294 = vadd.f32 %v166, %v266
  %v295 = vadd.f32 %v167, %v242
  %v296 = vadd.f32 %v168, %v246
  %v297 = vadd.f32 %v169, %v250
  %v298 = vadd.f32 %v170, %v254
  %v299 = vadd.f32 %v171, %v258
  %v300 = vadd.f32 %v172, %v262
  %v301 = vadd.f32 %v173, %v266
  %v302 = vadd.f32 %v174, %v242
  %v303 = vadd.f32 %v175, %v246
  %v304 = vadd.f32 %v176, %v250
  %v305 = vadd.f32 %v177, %v254
  %v306 = vadd.f32 %v178, %v258
  %v307 = vadd.f32 %v179, %v262
  %v308 = vadd.f32 %v180, %v266
  %v309 = vadd.f32 %v181, %v242
  %v310 = vadd.f32 %v182, %v246
  %v311 = vadd.f32 %v183, %v250
  %v312 = vadd.f32 %v184, %v254
  %v313 = vadd.f32 %v185, %v258
  %v314 = vadd.f32 %v186, %v262
  %v315 = vadd.f32 %v187, %v266
  %v316 = vadd.f32 %v188, %v242
  %v317 = vadd.f32 %v189, %v246
  %v318 = vadd.f32 %v190, %v250
  %v319 = vadd.f32 %v191, %v254
  %v320 = vadd.f32 %v192, %v258
  %v321 = vadd.f32 %v193, %v262
  %v322 = vadd.f32 %v194, %v266
  %v323 = vadd.f32 %v195, %v242
  %v324 = vadd.f32 %v196, %v246
  %v325 = vadd.f32 %v197, %v250
  %v326 = vadd.f32 %v198, %v254
  %v327 = vadd.f32 %v199, %v258
  %v328 = vadd.f32 %v200, %v262
  %v329 = vadd.f32 %v201, %v266
  %v330 = vadd.f32 %v202, %v242
  %v331 = vadd.f32 %v203, %v246
  %v332 = vadd.f32 %v204, %v250
  %v333 = vadd.f32 %v205, %v254
  %v334 = vadd.f32 %v206, %v258
  %v335 = vadd.f32 %v207, %v262
  %v336 = vadd.f32 %v208, %v266
  %v337 = vadd.f32 %v209, %v242
  %v338 = vadd.f32 %v210, %v246
  %v339 = vadd.f32 %v211, %v250
  %v340 = vadd.f32 %v212, %v254
  %v341 = vadd.f32 %v213, %v258
  %v342 = vadd.f32 %v214, %v262
  %v343 = vadd.f32 %v215, %v266
  %v344 = vadd.f32 %v216, %v242
  %v345 = vadd.f32 %v217, %v246
  %v346 = vadd.f32 %v218, %v250
  %v347 = vadd.f32 %v219, %v254
  %v348 = vadd.f32 %v220, %v258
  %v349 = vadd.f32 %v221, %v262
  %v350 = vadd.f32 %v222, %v266
  %v351 = vadd.f32 %v223, %v242
  %v352 = vadd.f32 %v224, %v246
  %v353 = vadd.f32 %v225, %v250
  %v354 = vadd.f32 %v226, %v254
  %v355 = vadd.f32 %v227, %v258
  %v356 = vadd.f32 %v228, %v262
  %v357 = vadd.f32 %v229, %v266
  %v358 = vadd.f32 %v230, %v242
  %v359 = vadd.f32 %v231, %v246
  %v360 = vadd.f32 %v232, %v250
  %v361 = vadd.f32 %v233, %v254
  %v362 = vadd.f32 %v234, %v258
  %v363 = vadd.f32 %v235, %v262
  %v364 = vadd.f32 %v236, %v266
  %v365 = vmax.f32 %v274, 0.0
  %v366 = vmax.f32 %v275, 0.0
  %v367 = vmax.f32 %v276, 0.0
  %v368 = vmax.f32 %v277, 0.0
  %v369 = vmax.f32 %v278, 0.0
  %v370 = vmax.f32 %v279, 0.0
  %v371 = vmax.f32 %v280, 0.0
  %v372 = vmax.f32 %v281, 0.0
  %v373 = vmax.f32 %v282, 0.0
  %v374 = vmax.f32 %v283, 0.0
  %v375 = vmax.f32 %v284, 0.0
  %v376 = vmax.f32 %v285, 0.0
  %v377 = vmax.f32 %v286, 0.0
  %v378 = vmax.f32 %v287, 0.0
  %v379 = vmax.f32 %v288, 0.0
  %v380 = vmax.f32 %v289, 0.0
  %v381 = vmax.f32 %v290, 0.0
  %v382 = vmax.f32 %v291, 0.0
  %v383 = vmax.f32 %v292, 0.0
  %v384 = vmax.f32 %v293, 0.0
  %v385 = vmax.f32 %v294, 0.0
  %v386 = vmax.f32 %v295, 0.0
  %v387 = vmax.f32 %v296, 0.0
  %v388 = vmax.f32 %v297, 0.0
  %v389 = vmax.f32 %v298, 0.0
  %v390 = vmax.f32 %v299, 0.0
  %v391 = vmax.f32 %v300, 0.0
  %v392 = vmax.f32 %v301, 0.0
  %v393 = vmax.f32 %v302, 0.0
  %v394 = vmax.f32 %v303, 0.0
  %v395 = vmax.f32 %v304, 0.0
  %v396 = vmax.f32 %v305, 0.0
  %v397 = vmax.f32 %v306, 0.0
  %v398 = vmax.f32 %v307, 0.0
  %v399 = vmax.f32 %v308, 0.0
  %v400 = vmax.f32 %v309, 0.0
  %v401 = vmax.f32 %v310, 0.0
  %v402 = vmax.f32 %v311, 0.0
  %v403 = vmax.f32 %v312, 0.0
  %v404 = vmax.f32 %v313, 0.0
  %v405 = vmax.f32 %v314, 0.0
  %v406 = vmax.f32 %v315, 0.0
  %v407 = vmax.f32 %v316, 0.0
  %v408 = vmax.f32 %v317, 0.0
  %v409 = vmax.f32 %v318, 0.0
  %v410 = vmax.f32 %v319, 0.0
  %v411 = vmax.f32 %v320, 0.0
  %v412 = vmax.f32 %v321, 0.0
  %v413 = vmax.f32 %v322, 0.0
  %v414 = vmax.f32 %v323, 0.0
  %v415 = vmax.f32 %v324, 0.0
  %v416 = vmax.f32 %v325, 0.0
  %v417 = vmax.f32 %v326, 0.0
  %v418 = vmax.f32 %v327, 0.0
  %v419 = vmax.f32 %v328, 0.0
  %v420 = vmax.f32 %v329, 0.0
  %v421 = vmax.f32 %v330, 0.0
  %v422 = vmax.f32 %v331, 0.0
  %v423 = vmax.f32 %v332, 0.0
  %v424 = vmax.f32 %v333, 0.0
  %v425 = vmax.f32 %v334, 0.0
  %v426 = vmax.f32 %v335, 0.0
  %v427 = vmax.f32 %v336, 0.0
  %v428 = vmax.f32 %v337, 0.0
  %v429 = vmax.f32 %v338, 0.0
  %v430 = vmax.f32 %v339, 0.0
  %v431 = vmax.f32 %v340, 0.0
  %v432 = vmax.f32 %v341, 0.0
  %v433 = vmax.f32 %v342, 0.0
  %v434 = vmax.f32 %v343, 0.0
  %v435 = vmax.f32 %v344, 0.0
  %v436 = vmax.f32 %v345, 0.0
  %v437 = vmax.f32 %v346, 0.0
  %v438 = vmax.f32 %v347, 0.0
  %v439 = vmax.f32 %v348, 0.0
  %v440 = vmax.f32 %v349, 0.0
  %v441 = vmax.f32 %v350, 0.0
  %v442 = vmax.f32 %v351, 0.0
  %v443 = vmax.f32 %v352, 0.0
  %v444 = vmax.f32 %v353, 0.0
  %v445 = vmax.f32 %v354, 0.0
  %v446 = vmax.f32 %v355, 0.0
  %v447 = vmax.f32 %v356, 0.0
  %v448 = vmax.f32 %v357, 0.0
  %v449 = vmax.f32 %v358, 0.0
  %v450 = vmax.f32 %v359, 0.0
  %v451 = vmax.f32 %v360, 0.0
  %v452 = vmax.f32 %v361, 0.0
  %v453 = vmax.f32 %v362, 0.0
  %v454 = vmax.f32 %v363, 0.0
  %v455 = vmax.f32 %v364, 0.0
  %v456 = vpack.c.bf16 %v372, %v365
  %v457 = vpack.c.bf16 %v373, %v366
  %v458 = vpack.c.bf16 %v374, %v367
  %v459 = vpack.c.bf16 %v375, %v368
  %v460 = vpack.c.bf16 %v376, %v369
  %v461 = vpack.c.bf16 %v377, %v370
  %v462 = vpack.c.bf16 %v378, %v371
  %v463 = vpack.c.bf16 %v386, %v379
  %v464 = vpack.c.bf16 %v387, %v380
  %v465 = vpack.c.bf16 %v388, %v381
  %v466 = vpack.c.bf16 %v389, %v382
  %v467 = vpack.c.bf16 %v390, %v383
  %v468 = vpack.c.bf16 %v391, %v384
  %v469 = vpack.c.bf16 %v392, %v385
  %v470 = vpack.c.bf16 %v400, %v393
  %v471 = vpack.c.bf16 %v401, %v394
  %v472 = vpack.c.bf16 %v402, %v395
  %v473 = vpack.c.bf16 %v403, %v396
  %v474 = vpack.c.bf16 %v404, %v397
  %v475 = vpack.c.bf16 %v405, %v398
  %v476 = vpack.c.bf16 %v406, %v399
  %v477 = vpack.c.bf16 %v414, %v407
  %v478 = vpack.c.bf16 %v415, %v408
  %v479 = vpack.c.bf16 %v416, %v409
  %v480 = vpack.c.bf16 %v417, %v410
  %v481 = vpack.c.bf16 %v418, %v411
  %v482 = vpack.c.bf16 %v419, %v412
  %v483 = vpack.c.bf16 %v420, %v413
  %v484 = vpack.c.bf16 %v428, %v421
  %v485 = vpack.c.bf16 %v429, %v422
  %v486 = vpack.c.bf16 %v430, %v423
  %v487 = vpack.c.bf16 %v431, %v424
  %v488 = vpack.c.bf16 %v432, %v425
  %v489 = vpack.c.bf16 %v433, %v426
  %v490 = vpack.c.bf16 %v434, %v427
  %v491 = vpack.c.bf16 %v442, %v435
  %v492 = vpack.c.bf16 %v443, %v436
  %v493 = vpack.c.bf16 %v444, %v437
  %v494 = vpack.c.bf16 %v445, %v438
  %v495 = vpack.c.bf16 %v446, %v439
  %v496 = vpack.c.bf16 %v447, %v440
  %v497 = vpack.c.bf16 %v448, %v441
  %v498 = vpack.c.bf16 %v449, %v449
  %v499 = vpack.c.bf16 %v450, %v450
  %v500 = vpack.c.bf16 %v451, %v451
  %v501 = vpack.c.bf16 %v452, %v452
  %v502 = vpack.c.bf16 %v453, %v453
  %v503 = vpack.c.bf16 %v454, %v454
  %v504 = vpack.c.bf16 %v455, %v455
  %v505 = vld [vmem:[%s3] sm:$0xff]
  %v506 = vld [vmem:[%s3 + $0x8] sm:$0xff]
  %v507 = vld [vmem:[%s3 + $0x10] sm:$0xff]
  %v508 = vld [vmem:[%s3 + $0x18] sm:$0xff]
  %v509 = vld [vmem:[%s3 + $0x20] sm:$0xff]
  %v510 = vld [vmem:[%s3 + $0x28] sm:$0xff]
  %v511 = vld [vmem:[%s3 + $0x30] sm:$0xff]
  %v512 = vld [vmem:[%s3 + $0x38] sm:$0xff]
  %v513 = vld [vmem:[%s3 + $0x40] sm:$0xff]
  %v514 = vld [vmem:[%s3 + $0x48] sm:$0xff]
  %v515 = vld [vmem:[%s3 + $0x50] sm:$0xff]
  %v516 = vld [vmem:[%s3 + $0x58] sm:$0xff]
  %v517 = vld [vmem:[%s3 + $0x60] sm:$0xff]
  %v518 = vld [vmem:[%s3 + $0x68] sm:$0xff]
  %v519 = vld [vmem:[%s3 + $0x70] sm:$0xff]
  %v520 = vld [vmem:[%s3 + $0x78] sm:$0xff]
  %v521 = vld [vmem:[%s3 + $0x80] sm:$0xff]
  %v522 = vld [vmem:[%s3 + $0x88] sm:$0xff]
  %v523 = vld [vmem:[%s3 + $0x90] sm:$0xff]
  %v524 = vld [vmem:[%s3 + $0x98] sm:$0xff]
  %v525 = vld [vmem:[%s3 + $0xa0] sm:$0xff]
  %v526 = vld [vmem:[%s3 + $0xa8] sm:$0xff]
  %v527 = vld [vmem:[%s3 + $0xb0] sm:$0xff]
  %v528 = vld [vmem:[%s3 + $0xb8] sm:$0xff]
  %v529 = vld [vmem:[%s3 + $0xc0] sm:$0xff]
  %v530 = vld [vmem:[%s3 + $0xc8] sm:$0xff]
  %v531 = vld [vmem:[%s3 + $0xd0] sm:$0xff]
  %v532 = vld [vmem:[%s3 + $0xd8] sm:$0xff]
  %v533 = vld [vmem:[%s3 + $0xe0] sm:$0xff]
  %v534 = vld [vmem:[%s3 + $0xe8] sm:$0xff]
  %v535 = vld [vmem:[%s3 + $0xf0] sm:$0xff]
  %v536 = vld [vmem:[%s3 + $0xf8] sm:$0xff]
  %v537 = vld [vmem:[%s3 + $0x100] sm:$0xff]
  %v538 = vld [vmem:[%s3 + $0x108] sm:$0xff]
  %v539 = vld [vmem:[%s3 + $0x110] sm:$0xff]
  %v540 = vld [vmem:[%s3 + $0x118] sm:$0xff]
  %v541 = vld [vmem:[%s3 + $0x120] sm:$0xff]
  %v542 = vld [vmem:[%s3 + $0x128] sm:$0xff]
  %v543 = vld [vmem:[%s3 + $0x130] sm:$0xff]
  %v544 = vld [vmem:[%s3 + $0x138] sm:$0xff]
  %v545 = vld [vmem:[%s3 + $0x140] sm:$0xff]
  %v546 = vld [vmem:[%s3 + $0x148] sm:$0xff]
  %v547 = vld [vmem:[%s3 + $0x150] sm:$0xff]
  %v548 = vld [vmem:[%s3 + $0x158] sm:$0xff]
  %v549 = vld [vmem:[%s3 + $0x160] sm:$0xff]
  %v550 = vld [vmem:[%s3 + $0x168] sm:$0xff]
  %v551 = vld [vmem:[%s3 + $0x170] sm:$0xff]
  %v552 = vld [vmem:[%s3 + $0x178] sm:$0xff]
  %v553 = vld [vmem:[%s3 + $0x180] sm:$0xff]
  %v554 = vld [vmem:[%s3 + $0x188] sm:$0xff]
  %v555 = vld [vmem:[%s3 + $0x190] sm:$0xff]
  %v556 = vld [vmem:[%s3 + $0x198] sm:$0xff]
  %v557 = vld [vmem:[%s3 + $0x1a0] sm:$0xff]
  %v558 = vld [vmem:[%s3 + $0x1a8] sm:$0xff]
  %v559 = vld [vmem:[%s3 + $0x1b0] sm:$0xff]
  %v560 = vld [vmem:[%s3 + $0x1b8] sm:$0xff]
  %v561 = vld [vmem:[%s3 + $0x1c0] sm:$0xff]
  %v562 = vld [vmem:[%s3 + $0x1c8] sm:$0xff]
  %v563 = vld [vmem:[%s3 + $0x1d0] sm:$0xff]
  %v564 = vld [vmem:[%s3 + $0x1d8] sm:$0xff]
  %v565 = vld [vmem:[%s3 + $0x1e0] sm:$0xff]
  %v566 = vld [vmem:[%s3 + $0x1e8] sm:$0xff]
  %v567 = vld [vmem:[%s3 + $0x1f0] sm:$0xff]
  %v568 = vld [vmem:[%s3 + $0x1f8] sm:$0xff]
  %v569 = vld [vmem:[%s3 + $0x200] sm:$0xff]
  %v570 = vld [vmem:[%s3 + $0x208] sm:$0xff]
  %v571 = vld [vmem:[%s3 + $0x210] sm:$0xff]
  %v572 = vld [vmem:[%s3 + $0x218] sm:$0xff]
  %v573 = vld [vmem:[%s3 + $0x220] sm:$0xff]
  %v574 = vld [vmem:[%s3 + $0x228] sm:$0xff]
  %v575 = vld [vmem:[%s3 + $0x230] sm:$0xff]
  %v576 = vld [vmem:[%s3 + $0x238] sm:$0xff]
  %v577 = vld [vmem:[%s3 + $0x240] sm:$0xff]
  %v578 = vld [vmem:[%s3 + $0x248] sm:$0xff]
  %v579 = vld [vmem:[%s3 + $0x250] sm:$0xff]
  %v580 = vld [vmem:[%s3 + $0x258] sm:$0xff]
  %v581 = vld [vmem:[%s3 + $0x260] sm:$0xff]
  %v582 = vld [vmem:[%s3 + $0x268] sm:$0xff]
  %v583 = vld [vmem:[%s3 + $0x270] sm:$0xff]
  %v584 = vld [vmem:[%s3 + $0x278] sm:$0xff]
  %v585 = vld [vmem:[%s3 + $0x280] sm:$0xff]
  %v586 = vld [vmem:[%s3 + $0x288] sm:$0xff]
  %v587 = vld [vmem:[%s3 + $0x290] sm:$0xff]
  %v588 = vld [vmem:[%s3 + $0x298] sm:$0xff]
  %v589 = vld [vmem:[%s3 + $0x2a0] sm:$0xff]
  %v590 = vld [vmem:[%s3 + $0x2a8] sm:$0xff]
  %v591 = vld [vmem:[%s3 + $0x2b0] sm:$0xff]
  %v592 = vld [vmem:[%s3 + $0x2b8] sm:$0xff]
  %v593 = vld [vmem:[%s3 + $0x2c0] sm:$0xff]
  %v594 = vld [vmem:[%s3 + $0x2c8] sm:$0xff]
  %v595 = vld [vmem:[%s3 + $0x2d0] sm:$0xff]
  %v596 = vld [vmem:[%s3 + $0x2d8] sm:$0xff]
  %v597 = vld [vmem:[%s3 + $0x2e0] sm:$0xff]
  %v598 = vld [vmem:[%s3 + $0x2e8] sm:$0xff]
  %v599 = vld [vmem:[%s3 + $0x2f0] sm:$0xff]
  %v600 = vld [vmem:[%s3 + $0x2f8] sm:$0xff]
  %v601 = vld [vmem:[%s3 + $0x300] sm:$0xff]
  %v602 = vld [vmem:[%s3 + $0x308] sm:$0xff]
  %v603 = vld [vmem:[%s3 + $0x310] sm:$0xff]
  %v604 = vld [vmem:[%s3 + $0x318] sm:$0xff]
  %v605 = vld [vmem:[%s3 + $0x320] sm:$0xff]
  %v606 = vld [vmem:[%s3 + $0x328] sm:$0xff]
  %v607 = vld [vmem:[%s3 + $0x330] sm:$0xff]
  %v608 = vld [vmem:[%s3 + $0x338] sm:$0xff]
  %v609 = vld [vmem:[%s3 + $0x340] sm:$0xff]
  %v610 = vld [vmem:[%s3 + $0x348] sm:$0xff]
  %v611 = vld [vmem:[%s3 + $0x350] sm:$0xff]
  %v612 = vld [vmem:[%s3 + $0x358] sm:$0xff]
  %v721 = vunpack.c.l.b16 %v505
  %v722 = vunpack.c.h.b16 %v505
  %v723 = vunpack.c.l.b16 %v506
  %v724 = vunpack.c.h.b16 %v506
  %v725 = vunpack.c.l.b16 %v507
  %v726 = vunpack.c.h.b16 %v507
  %v727 = vunpack.c.l.b16 %v508
  %v728 = vunpack.c.h.b16 %v508
  %v729 = vunpack.c.l.b16 %v509
  %v730 = vunpack.c.h.b16 %v509
  %v731 = vunpack.c.l.b16 %v510
  %v732 = vunpack.c.h.b16 %v510
  %v733 = vunpack.c.l.b16 %v511
  %v734 = vunpack.c.h.b16 %v511
  %v735 = vunpack.c.l.b16 %v512
  %v736 = vunpack.c.h.b16 %v512
  %v737 = vunpack.c.l.b16 %v513
  %v738 = vunpack.c.h.b16 %v513
  %v739 = vunpack.c.l.b16 %v514
  %v740 = vunpack.c.h.b16 %v514
  %v741 = vunpack.c.l.b16 %v515
  %v742 = vunpack.c.h.b16 %v515
  %v743 = vunpack.c.l.b16 %v516
  %v744 = vunpack.c.h.b16 %v516
  %v745 = vunpack.c.l.b16 %v517
  %v746 = vunpack.c.h.b16 %v517
  %v747 = vunpack.c.l.b16 %v518
  %v748 = vunpack.c.h.b16 %v518
  %v749 = vunpack.c.l.b16 %v519
  %v750 = vunpack.c.h.b16 %v519
  %v751 = vunpack.c.l.b16 %v520
  %v752 = vunpack.c.h.b16 %v520
  %v753 = vunpack.c.l.b16 %v521
  %v754 = vunpack.c.h.b16 %v521
  %v755 = vunpack.c.l.b16 %v522
  %v756 = vunpack.c.h.b16 %v522
  %v757 = vunpack.c.l.b16 %v523
  %v758 = vunpack.c.h.b16 %v523
  %v759 = vunpack.c.l.b16 %v524
  %v760 = vunpack.c.h.b16 %v524
  %v761 = vunpack.c.l.b16 %v525
  %v762 = vunpack.c.h.b16 %v525
  %v763 = vunpack.c.l.b16 %v526
  %v764 = vunpack.c.h.b16 %v526
  %v765 = vunpack.c.l.b16 %v527
  %v766 = vunpack.c.h.b16 %v527
  %v767 = vunpack.c.l.b16 %v528
  %v768 = vunpack.c.h.b16 %v528
  %v769 = vunpack.c.l.b16 %v529
  %v770 = vunpack.c.h.b16 %v529
  %v771 = vunpack.c.l.b16 %v530
  %v772 = vunpack.c.h.b16 %v530
  %v773 = vunpack.c.l.b16 %v531
  %v774 = vunpack.c.h.b16 %v531
  %v775 = vunpack.c.l.b16 %v532
  %v776 = vunpack.c.h.b16 %v532
  %v777 = vunpack.c.l.b16 %v533
  %v778 = vunpack.c.h.b16 %v533
  %v779 = vunpack.c.l.b16 %v534
  %v780 = vunpack.c.h.b16 %v534
  %v781 = vunpack.c.l.b16 %v535
  %v782 = vunpack.c.h.b16 %v535
  %v783 = vunpack.c.l.b16 %v536
  %v784 = vunpack.c.h.b16 %v536
  %v785 = vunpack.c.l.b16 %v537
  %v786 = vunpack.c.h.b16 %v537
  %v787 = vunpack.c.l.b16 %v538
  %v788 = vunpack.c.h.b16 %v538
  %v789 = vunpack.c.l.b16 %v539
  %v790 = vunpack.c.h.b16 %v539
  %v791 = vunpack.c.l.b16 %v540
  %v792 = vunpack.c.h.b16 %v540
  %v793 = vunpack.c.l.b16 %v541
  %v794 = vunpack.c.h.b16 %v541
  %v795 = vunpack.c.l.b16 %v542
  %v796 = vunpack.c.h.b16 %v542
  %v797 = vunpack.c.l.b16 %v543
  %v798 = vunpack.c.h.b16 %v543
  %v799 = vunpack.c.l.b16 %v544
  %v800 = vunpack.c.h.b16 %v544
  %v801 = vunpack.c.l.b16 %v545
  %v802 = vunpack.c.h.b16 %v545
  %v803 = vunpack.c.l.b16 %v546
  %v804 = vunpack.c.h.b16 %v546
  %v805 = vunpack.c.l.b16 %v547
  %v806 = vunpack.c.h.b16 %v547
  %v807 = vunpack.c.l.b16 %v548
  %v808 = vunpack.c.h.b16 %v548
  %v809 = vunpack.c.l.b16 %v549
  %v810 = vunpack.c.h.b16 %v549
  %v811 = vunpack.c.l.b16 %v550
  %v812 = vunpack.c.h.b16 %v550
  %v813 = vunpack.c.l.b16 %v551
  %v814 = vunpack.c.h.b16 %v551
  %v815 = vunpack.c.l.b16 %v552
  %v816 = vunpack.c.h.b16 %v552
  %v817 = vunpack.c.l.b16 %v553
  %v818 = vunpack.c.h.b16 %v553
  %v819 = vunpack.c.l.b16 %v554
  %v820 = vunpack.c.h.b16 %v554
  %v821 = vunpack.c.l.b16 %v555
  %v822 = vunpack.c.h.b16 %v555
  %v823 = vunpack.c.l.b16 %v556
  %v824 = vunpack.c.h.b16 %v556
  %v825 = vunpack.c.l.b16 %v557
  %v826 = vunpack.c.h.b16 %v557
  %v827 = vunpack.c.l.b16 %v558
  %v828 = vunpack.c.h.b16 %v558
  %v829 = vunpack.c.l.b16 %v559
  %v830 = vunpack.c.h.b16 %v559
  %v831 = vunpack.c.l.b16 %v560
  %v832 = vunpack.c.h.b16 %v560
  %v833 = vunpack.c.l.b16 %v561
  %v834 = vunpack.c.h.b16 %v561
  %v835 = vunpack.c.l.b16 %v562
  %v836 = vunpack.c.h.b16 %v562
  %v837 = vunpack.c.l.b16 %v563
  %v838 = vunpack.c.h.b16 %v563
  %v839 = vunpack.c.l.b16 %v564
  %v840 = vunpack.c.h.b16 %v564
  %v841 = vunpack.c.l.b16 %v565
  %v842 = vunpack.c.h.b16 %v565
  %v843 = vunpack.c.l.b16 %v566
  %v844 = vunpack.c.h.b16 %v566
  %v845 = vunpack.c.l.b16 %v567
  %v846 = vunpack.c.h.b16 %v567
  %v847 = vunpack.c.l.b16 %v568
  %v848 = vunpack.c.h.b16 %v568
  %v849 = vunpack.c.l.b16 %v569
  %v850 = vunpack.c.h.b16 %v569
  %v851 = vunpack.c.l.b16 %v570
  %v852 = vunpack.c.h.b16 %v570
  %v853 = vunpack.c.l.b16 %v571
  %v854 = vunpack.c.h.b16 %v571
  %v855 = vunpack.c.l.b16 %v572
  %v856 = vunpack.c.h.b16 %v572
  %v857 = vunpack.c.l.b16 %v573
  %v858 = vunpack.c.h.b16 %v573
  %v859 = vunpack.c.l.b16 %v574
  %v860 = vunpack.c.h.b16 %v574
  %v861 = vunpack.c.l.b16 %v575
  %v862 = vunpack.c.h.b16 %v575
  %v863 = vunpack.c.l.b16 %v576
  %v864 = vunpack.c.h.b16 %v576
  %v865 = vunpack.c.l.b16 %v577
  %v866 = vunpack.c.h.b16 %v577
  %v867 = vunpack.c.l.b16 %v578
  %v868 = vunpack.c.h.b16 %v578
  %v869 = vunpack.c.l.b16 %v579
  %v870 = vunpack.c.h.b16 %v579
  %v871 = vunpack.c.l.b16 %v580
  %v872 = vunpack.c.h.b16 %v580
  %v873 = vunpack.c.l.b16 %v581
  %v874 = vunpack.c.h.b16 %v581
  %v875 = vunpack.c.l.b16 %v582
  %v876 = vunpack.c.h.b16 %v582
  %v877 = vunpack.c.l.b16 %v583
  %v878 = vunpack.c.h.b16 %v583
  %v879 = vunpack.c.l.b16 %v584
  %v880 = vunpack.c.h.b16 %v584
  %v881 = vunpack.c.l.b16 %v585
  %v882 = vunpack.c.h.b16 %v585
  %v883 = vunpack.c.l.b16 %v586
  %v884 = vunpack.c.h.b16 %v586
  %v885 = vunpack.c.l.b16 %v587
  %v886 = vunpack.c.h.b16 %v587
  %v887 = vunpack.c.l.b16 %v588
  %v888 = vunpack.c.h.b16 %v588
  %v889 = vunpack.c.l.b16 %v589
  %v890 = vunpack.c.h.b16 %v589
  %v891 = vunpack.c.l.b16 %v590
  %v892 = vunpack.c.h.b16 %v590
  %v893 = vunpack.c.l.b16 %v591
  %v894 = vunpack.c.h.b16 %v591
  %v895 = vunpack.c.l.b16 %v592
  %v896 = vunpack.c.h.b16 %v592
  %v897 = vunpack.c.l.b16 %v593
  %v898 = vunpack.c.h.b16 %v593
  %v899 = vunpack.c.l.b16 %v594
  %v900 = vunpack.c.h.b16 %v594
  %v901 = vunpack.c.l.b16 %v595
  %v902 = vunpack.c.h.b16 %v595
  %v903 = vunpack.c.l.b16 %v596
  %v904 = vunpack.c.h.b16 %v596
  %v905 = vunpack.c.l.b16 %v597
  %v906 = vunpack.c.h.b16 %v597
  %v907 = vunpack.c.l.b16 %v598
  %v908 = vunpack.c.h.b16 %v598
  %v909 = vunpack.c.l.b16 %v599
  %v910 = vunpack.c.h.b16 %v599
  %v911 = vunpack.c.l.b16 %v600
  %v912 = vunpack.c.h.b16 %v600
  %v913 = vunpack.c.l.b16 %v601
  %v914 = vunpack.c.h.b16 %v601
  %v915 = vunpack.c.l.b16 %v602
  %v916 = vunpack.c.h.b16 %v602
  %v917 = vunpack.c.l.b16 %v603
  %v918 = vunpack.c.h.b16 %v603
  %v919 = vunpack.c.l.b16 %v604
  %v920 = vunpack.c.h.b16 %v604
  %v921 = vunpack.c.l.b16 %v605
  %v922 = vunpack.c.h.b16 %v605
  %v923 = vunpack.c.l.b16 %v606
  %v924 = vunpack.c.h.b16 %v606
  %v925 = vunpack.c.l.b16 %v607
  %v926 = vunpack.c.h.b16 %v607
  %v927 = vunpack.c.l.b16 %v608
  %v928 = vunpack.c.h.b16 %v608
  %v929 = vunpack.c.l.b16 %v609
  %v930 = vunpack.c.h.b16 %v609
  %v931 = vunpack.c.l.b16 %v610
  %v932 = vunpack.c.h.b16 %v610
  %v933 = vunpack.c.l.b16 %v611
  %v934 = vunpack.c.h.b16 %v611
  %v935 = vunpack.c.l.b16 %v612
  %v936 = vunpack.c.h.b16 %v612
  %v937 = vpack.c.b16 %v723, %v721
  %v938 = vpack.c.b16 %v724, %v722
  %v939 = vpack.c.b16 %v727, %v725
  %v940 = vpack.c.b16 %v728, %v726
  %v941 = vpack.c.b16 %v731, %v729
  %v942 = vpack.c.b16 %v732, %v730
  %v943 = vpack.c.b16 %v735, %v733
  %v944 = vpack.c.b16 %v736, %v734
  %v945 = vpack.c.b16 %v739, %v737
  %v946 = vpack.c.b16 %v740, %v738
  %v947 = vpack.c.b16 %v743, %v741
  %v948 = vpack.c.b16 %v744, %v742
  %v949 = vpack.c.b16 %v747, %v745
  %v950 = vpack.c.b16 %v748, %v746
  %v951 = vpack.c.b16 %v751, %v749
  %v952 = vpack.c.b16 %v752, %v750
  %v953 = vpack.c.b16 %v755, %v753
  %v954 = vpack.c.b16 %v756, %v754
  %v955 = vpack.c.b16 %v759, %v757
  %v956 = vpack.c.b16 %v760, %v758
  %v957 = vpack.c.b16 %v763, %v761
  %v958 = vpack.c.b16 %v764, %v762
  %v959 = vpack.c.b16 %v767, %v765
  %v960 = vpack.c.b16 %v768, %v766
  %v961 = vpack.c.b16 %v771, %v769
  %v962 = vpack.c.b16 %v772, %v770
  %v963 = vpack.c.b16 %v775, %v773
  %v964 = vpack.c.b16 %v776, %v774
  %v965 = vpack.c.b16 %v779, %v777
  %v966 = vpack.c.b16 %v780, %v778
  %v967 = vpack.c.b16 %v783, %v781
  %v968 = vpack.c.b16 %v784, %v782
  %v969 = vpack.c.b16 %v787, %v785
  %v970 = vpack.c.b16 %v788, %v786
  %v971 = vpack.c.b16 %v791, %v789
  %v972 = vpack.c.b16 %v792, %v790
  %v973 = vpack.c.b16 %v795, %v793
  %v974 = vpack.c.b16 %v796, %v794
  %v975 = vpack.c.b16 %v799, %v797
  %v976 = vpack.c.b16 %v800, %v798
  %v977 = vpack.c.b16 %v803, %v801
  %v978 = vpack.c.b16 %v804, %v802
  %v979 = vpack.c.b16 %v807, %v805
  %v980 = vpack.c.b16 %v808, %v806
  %v981 = vpack.c.b16 %v811, %v809
  %v982 = vpack.c.b16 %v812, %v810
  %v983 = vpack.c.b16 %v815, %v813
  %v984 = vpack.c.b16 %v816, %v814
  %v985 = vpack.c.b16 %v819, %v817
  %v986 = vpack.c.b16 %v820, %v818
  %v987 = vpack.c.b16 %v823, %v821
  %v988 = vpack.c.b16 %v824, %v822
  %v989 = vpack.c.b16 %v827, %v825
  %v990 = vpack.c.b16 %v828, %v826
  %v991 = vpack.c.b16 %v831, %v829
  %v992 = vpack.c.b16 %v832, %v830
  %v993 = vpack.c.b16 %v835, %v833
  %v994 = vpack.c.b16 %v836, %v834
  %v995 = vpack.c.b16 %v839, %v837
  %v996 = vpack.c.b16 %v840, %v838
  %v997 = vpack.c.b16 %v843, %v841
  %v998 = vpack.c.b16 %v844, %v842
  %v999 = vpack.c.b16 %v847, %v845
  %v1000 = vpack.c.b16 %v848, %v846
  %v1001 = vpack.c.b16 %v851, %v849
  %v1002 = vpack.c.b16 %v852, %v850
  %v1003 = vpack.c.b16 %v855, %v853
  %v1004 = vpack.c.b16 %v856, %v854
  %v1005 = vpack.c.b16 %v859, %v857
  %v1006 = vpack.c.b16 %v860, %v858
  %v1007 = vpack.c.b16 %v863, %v861
  %v1008 = vpack.c.b16 %v864, %v862
  %v1009 = vpack.c.b16 %v867, %v865
  %v1010 = vpack.c.b16 %v868, %v866
  %v1011 = vpack.c.b16 %v871, %v869
  %v1012 = vpack.c.b16 %v872, %v870
  %v1013 = vpack.c.b16 %v875, %v873
  %v1014 = vpack.c.b16 %v876, %v874
  %v1015 = vpack.c.b16 %v879, %v877
  %v1016 = vpack.c.b16 %v880, %v878
  %v1017 = vpack.c.b16 %v883, %v881
  %v1018 = vpack.c.b16 %v884, %v882
  %v1019 = vpack.c.b16 %v887, %v885
  %v1020 = vpack.c.b16 %v888, %v886
  %v1021 = vpack.c.b16 %v891, %v889
  %v1022 = vpack.c.b16 %v892, %v890
  %v1023 = vpack.c.b16 %v895, %v893
  %v1024 = vpack.c.b16 %v896, %v894
  %v1025 = vpack.c.b16 %v899, %v897
  %v1026 = vpack.c.b16 %v900, %v898
  %v1027 = vpack.c.b16 %v903, %v901
  %v1028 = vpack.c.b16 %v904, %v902
  %v1029 = vpack.c.b16 %v907, %v905
  %v1030 = vpack.c.b16 %v908, %v906
  %v1031 = vpack.c.b16 %v911, %v909
  %v1032 = vpack.c.b16 %v912, %v910
  %v1033 = vpack.c.b16 %v915, %v913
  %v1034 = vpack.c.b16 %v916, %v914
  %v1035 = vpack.c.b16 %v919, %v917
  %v1036 = vpack.c.b16 %v920, %v918
  %v1037 = vpack.c.b16 %v923, %v921
  %v1038 = vpack.c.b16 %v924, %v922
  %v1039 = vpack.c.b16 %v927, %v925
  %v1040 = vpack.c.b16 %v928, %v926
  %v1041 = vpack.c.b16 %v931, %v929
  %v1042 = vpack.c.b16 %v932, %v930
  %v1043 = vpack.c.b16 %v935, %v933
  %v1044 = vpack.c.b16 %v936, %v934
  %vm1153 = vcmask 785408
  %v1155 = vsel %vm1153, %v462, 0
  %v1158 = vsel %vm1153, %v469, 0
  %v1161 = vsel %vm1153, %v476, 0
  %v1164 = vsel %vm1153, %v483, 0
  %v1167 = vsel %vm1153, %v490, 0
  %v1170 = vsel %vm1153, %v497, 0
  %v1173 = vsel %vm1153, %v504, 0
  %1175 = vmatprep.subr.bf16.mxu0 %v952
  %1176 = vmatpush1.bf16.msra.mxu0 %v951
  %1177 = vmatprep.subr.bf16.mxu0 %v950
  %1178 = vmatpush1.bf16.msra.mxu0 %v949
  %1179 = vmatprep.subr.bf16.mxu0 %v948
  %1180 = vmatpush1.bf16.msra.mxu0 %v947
  %1181 = vmatprep.subr.bf16.mxu0 %v946
  %1182 = vmatpush1.bf16.msra.mxu0 %v945
  %1183 = vmatprep.subr.bf16.mxu0 %v944
  %1184 = vmatpush1.bf16.msra.mxu0 %v943
  %1185 = vmatprep.subr.bf16.mxu0 %v942
  %1186 = vmatpush1.bf16.msra.mxu0 %v941
  %1187 = vmatprep.subr.bf16.mxu0 %v940
  %1188 = vmatpush1.bf16.msra.mxu0 %v939
  %1189 = vmatprep.subr.bf16.mxu0 %v938
  %1190 = vmatpush1.bf16.msra.mxu0 %v937
  %1191 = vmatprep.subr.bf16.mxu0 %v968
  %1192 = vmatpush2.bf16.msra.mxu0 %v967
  %1193 = vmatprep.subr.bf16.mxu0 %v966
  %1194 = vmatpush2.bf16.msra.mxu0 %v965
  %1195 = vmatprep.subr.bf16.mxu0 %v964
  %1196 = vmatpush2.bf16.msra.mxu0 %v963
  %1197 = vmatprep.subr.bf16.mxu0 %v962
  %1198 = vmatpush2.bf16.msra.mxu0 %v961
  %1199 = vmatprep.subr.bf16.mxu0 %v960
  %1200 = vmatpush2.bf16.msra.mxu0 %v959
  %1201 = vmatprep.subr.bf16.mxu0 %v958
  %1202 = vmatpush2.bf16.msra.mxu0 %v957
  %1203 = vmatprep.subr.bf16.mxu0 %v956
  %1204 = vmatpush2.bf16.msra.mxu0 %v955
  %1205 = vmatprep.subr.bf16.mxu0 %v954
  %1206 = vmatpush2.bf16.msra.mxu0 %v953
  %1207 = vmatprep.mubr.bf16.mxu0 %v457
  %1208 = vmatmul.mubr.bf16.gmra.mxu0 %v456
  %v1209 = vpop.f32.mrf.mxu0
  %v1210 = vadd.f32 0.0, %v1209
  %v1211 = vpop.f32.mrf.mxu0
  %v1212 = vadd.f32 0.0, %v1211
  %v1213 = vpop.f32.mrf.mxu0
  %v1214 = vadd.f32 0.0, %v1213
  %v1215 = vpop.f32.mrf.mxu0
  %v1216 = vadd.f32 0.0, %v1215
  %1217 = vmatprep.mubr.bf16.mxu0 %v464
  %1218 = vmatmul.mubr.bf16.gmra.mxu0 %v463
  %v1219 = vpop.f32.mrf.mxu0
  %v1220 = vadd.f32 0.0, %v1219
  %v1221 = vpop.f32.mrf.mxu0
  %v1222 = vadd.f32 0.0, %v1221
  %v1223 = vpop.f32.mrf.mxu0
  %v1224 = vadd.f32 0.0, %v1223
  %v1225 = vpop.f32.mrf.mxu0
  %v1226 = vadd.f32 0.0, %v1225
  %1227 = vmatprep.mubr.bf16.mxu0 %v471
  %1228 = vmatmul.mubr.bf16.gmra.mxu0 %v470
  %v1229 = vpop.f32.mrf.mxu0
  %v1230 = vadd.f32 0.0, %v1229
  %v1231 = vpop.f32.mrf.mxu0
  %v1232 = vadd.f32 0.0, %v1231
  %v1233 = vpop.f32.mrf.mxu0
  %v1234 = vadd.f32 0.0, %v1233
  %v1235 = vpop.f32.mrf.mxu0
  %v1236 = vadd.f32 0.0, %v1235
  %1237 = vmatprep.mubr.bf16.mxu0 %v478
  %1238 = vmatmul.mubr.bf16.gmra.mxu0 %v477
  %v1239 = vpop.f32.mrf.mxu0
  %v1240 = vadd.f32 0.0, %v1239
  %v1241 = vpop.f32.mrf.mxu0
  %v1242 = vadd.f32 0.0, %v1241
  %v1243 = vpop.f32.mrf.mxu0
  %v1244 = vadd.f32 0.0, %v1243
  %v1245 = vpop.f32.mrf.mxu0
  %v1246 = vadd.f32 0.0, %v1245
  %1247 = vmatprep.mubr.bf16.mxu0 %v485
  %1248 = vmatmul.mubr.bf16.gmra.mxu0 %v484
  %v1249 = vpop.f32.mrf.mxu0
  %v1250 = vadd.f32 0.0, %v1249
  %v1251 = vpop.f32.mrf.mxu0
  %v1252 = vadd.f32 0.0, %v1251
  %v1253 = vpop.f32.mrf.mxu0
  %v1254 = vadd.f32 0.0, %v1253
  %v1255 = vpop.f32.mrf.mxu0
  %v1256 = vadd.f32 0.0, %v1255
  %1257 = vmatprep.mubr.bf16.mxu0 %v492
  %1258 = vmatmul.mubr.bf16.gmra.mxu0 %v491
  %v1259 = vpop.f32.mrf.mxu0
  %v1260 = vadd.f32 0.0, %v1259
  %v1261 = vpop.f32.mrf.mxu0
  %v1262 = vadd.f32 0.0, %v1261
  %v1263 = vpop.f32.mrf.mxu0
  %v1264 = vadd.f32 0.0, %v1263
  %v1265 = vpop.f32.mrf.mxu0
  %v1266 = vadd.f32 0.0, %v1265
  %1267 = vmatprep.mubr.bf16.mxu0 %v499
  %1268 = vmatmul.mubr.bf16.gmra.mxu0 %v498
  %v1269 = vpop.f32.mrf.mxu0
  %v1270 = vadd.f32 0.0, %v1269
  %v1271 = vpop.f32.mrf.mxu0
  %v1272 = vadd.f32 0.0, %v1271
  %v1273 = vpop.f32.mrf.mxu0
  %v1274 = vpop.f32.mrf.mxu0
  %1275 = vdwg.mxu0
  %1276 = vmatprep.subr.bf16.mxu0 %v984
  %1277 = vmatpush1.bf16.msra.mxu0 %v983
  %1278 = vmatprep.subr.bf16.mxu0 %v982
  %1279 = vmatpush1.bf16.msra.mxu0 %v981
  %1280 = vmatprep.subr.bf16.mxu0 %v980
  %1281 = vmatpush1.bf16.msra.mxu0 %v979
  %1282 = vmatprep.subr.bf16.mxu0 %v978
  %1283 = vmatpush1.bf16.msra.mxu0 %v977
  %1284 = vmatprep.subr.bf16.mxu0 %v976
  %1285 = vmatpush1.bf16.msra.mxu0 %v975
  %1286 = vmatprep.subr.bf16.mxu0 %v974
  %1287 = vmatpush1.bf16.msra.mxu0 %v973
  %1288 = vmatprep.subr.bf16.mxu0 %v972
  %1289 = vmatpush1.bf16.msra.mxu0 %v971
  %1290 = vmatprep.subr.bf16.mxu0 %v970
  %1291 = vmatpush1.bf16.msra.mxu0 %v969
  %1292 = vmatprep.subr.bf16.mxu0 %v1000
  %1293 = vmatpush2.bf16.msra.mxu0 %v999
  %1294 = vmatprep.subr.bf16.mxu0 %v998
  %1295 = vmatpush2.bf16.msra.mxu0 %v997
  %1296 = vmatprep.subr.bf16.mxu0 %v996
  %1297 = vmatpush2.bf16.msra.mxu0 %v995
  %1298 = vmatprep.subr.bf16.mxu0 %v994
  %1299 = vmatpush2.bf16.msra.mxu0 %v993
  %1300 = vmatprep.subr.bf16.mxu0 %v992
  %1301 = vmatpush2.bf16.msra.mxu0 %v991
  %1302 = vmatprep.subr.bf16.mxu0 %v990
  %1303 = vmatpush2.bf16.msra.mxu0 %v989
  %1304 = vmatprep.subr.bf16.mxu0 %v988
  %1305 = vmatpush2.bf16.msra.mxu0 %v987
  %1306 = vmatprep.subr.bf16.mxu0 %v986
  %1307 = vmatpush2.bf16.msra.mxu0 %v985
  %1308 = vmatprep.mubr.bf16.mxu0 %v459
  %1309 = vmatmul.mubr.bf16.gmra.mxu0 %v458
  %v1310 = vpop.f32.mrf.mxu0
  %v1311 = vadd.f32 %v1210, %v1310
  %v1312 = vpop.f32.mrf.mxu0
  %v1313 = vadd.f32 %v1212, %v1312
  %v1314 = vpop.f32.mrf.mxu0
  %v1315 = vadd.f32 %v1214, %v1314
  %v1316 = vpop.f32.mrf.mxu0
  %v1317 = vadd.f32 %v1216, %v1316
  %1318 = vmatprep.mubr.bf16.mxu0 %v466
  %1319 = vmatmul.mubr.bf16.gmra.mxu0 %v465
  %v1320 = vpop.f32.mrf.mxu0
  %v1321 = vadd.f32 %v1220, %v1320
  %v1322 = vpop.f32.mrf.mxu0
  %v1323 = vadd.f32 %v1222, %v1322
  %v1324 = vpop.f32.mrf.mxu0
  %v1325 = vadd.f32 %v1224, %v1324
  %v1326 = vpop.f32.mrf.mxu0
  %v1327 = vadd.f32 %v1226, %v1326
  %1328 = vmatprep.mubr.bf16.mxu0 %v473
  %1329 = vmatmul.mubr.bf16.gmra.mxu0 %v472
  %v1330 = vpop.f32.mrf.mxu0
  %v1331 = vadd.f32 %v1230, %v1330
  %v1332 = vpop.f32.mrf.mxu0
  %v1333 = vadd.f32 %v1232, %v1332
  %v1334 = vpop.f32.mrf.mxu0
  %v1335 = vadd.f32 %v1234, %v1334
  %v1336 = vpop.f32.mrf.mxu0
  %v1337 = vadd.f32 %v1236, %v1336
  %1338 = vmatprep.mubr.bf16.mxu0 %v480
  %1339 = vmatmul.mubr.bf16.gmra.mxu0 %v479
  %v1340 = vpop.f32.mrf.mxu0
  %v1341 = vadd.f32 %v1240, %v1340
  %v1342 = vpop.f32.mrf.mxu0
  %v1343 = vadd.f32 %v1242, %v1342
  %v1344 = vpop.f32.mrf.mxu0
  %v1345 = vadd.f32 %v1244, %v1344
  %v1346 = vpop.f32.mrf.mxu0
  %v1347 = vadd.f32 %v1246, %v1346
  %1348 = vmatprep.mubr.bf16.mxu0 %v487
  %1349 = vmatmul.mubr.bf16.gmra.mxu0 %v486
  %v1350 = vpop.f32.mrf.mxu0
  %v1351 = vadd.f32 %v1250, %v1350
  %v1352 = vpop.f32.mrf.mxu0
  %v1353 = vadd.f32 %v1252, %v1352
  %v1354 = vpop.f32.mrf.mxu0
  %v1355 = vadd.f32 %v1254, %v1354
  %v1356 = vpop.f32.mrf.mxu0
  %v1357 = vadd.f32 %v1256, %v1356
  %1358 = vmatprep.mubr.bf16.mxu0 %v494
  %1359 = vmatmul.mubr.bf16.gmra.mxu0 %v493
  %v1360 = vpop.f32.mrf.mxu0
  %v1361 = vadd.f32 %v1260, %v1360
  %v1362 = vpop.f32.mrf.mxu0
  %v1363 = vadd.f32 %v1262, %v1362
  %v1364 = vpop.f32.mrf.mxu0
  %v1365 = vadd.f32 %v1264, %v1364
  %v1366 = vpop.f32.mrf.mxu0
  %v1367 = vadd.f32 %v1266, %v1366
  %1368 = vmatprep.mubr.bf16.mxu0 %v501
  %1369 = vmatmul.mubr.bf16.gmra.mxu0 %v500
  %v1370 = vpop.f32.mrf.mxu0
  %v1371 = vadd.f32 %v1270, %v1370
  %v1372 = vpop.f32.mrf.mxu0
  %v1373 = vadd.f32 %v1272, %v1372
  %v1374 = vpop.f32.mrf.mxu0
  %v1375 = vpop.f32.mrf.mxu0
  %1376 = vdwg.mxu0
  %1377 = vmatprep.subr.bf16.mxu0 %v1016
  %1378 = vmatpush1.bf16.msra.mxu0 %v1015
  %1379 = vmatprep.subr.bf16.mxu0 %v1014
  %1380 = vmatpush1.bf16.msra.mxu0 %v1013
  %1381 = vmatprep.subr.bf16.mxu0 %v1012
  %1382 = vmatpush1.bf16.msra.mxu0 %v1011
  %1383 = vmatprep.subr.bf16.mxu0 %v1010
  %1384 = vmatpush1.bf16.msra.mxu0 %v1009
  %1385 = vmatprep.subr.bf16.mxu0 %v1008
  %1386 = vmatpush1.bf16.msra.mxu0 %v1007
  %1387 = vmatprep.subr.bf16.mxu0 %v1006
  %1388 = vmatpush1.bf16.msra.mxu0 %v1005
  %1389 = vmatprep.subr.bf16.mxu0 %v1004
  %1390 = vmatpush1.bf16.msra.mxu0 %v1003
  %1391 = vmatprep.subr.bf16.mxu0 %v1002
  %1392 = vmatpush1.bf16.msra.mxu0 %v1001
  %1393 = vmatprep.subr.bf16.mxu0 %v1032
  %1394 = vmatpush2.bf16.msra.mxu0 %v1031
  %1395 = vmatprep.subr.bf16.mxu0 %v1030
  %1396 = vmatpush2.bf16.msra.mxu0 %v1029
  %1397 = vmatprep.subr.bf16.mxu0 %v1028
  %1398 = vmatpush2.bf16.msra.mxu0 %v1027
  %1399 = vmatprep.subr.bf16.mxu0 %v1026
  %1400 = vmatpush2.bf16.msra.mxu0 %v1025
  %1401 = vmatprep.subr.bf16.mxu0 %v1024
  %1402 = vmatpush2.bf16.msra.mxu0 %v1023
  %1403 = vmatprep.subr.bf16.mxu0 %v1022
  %1404 = vmatpush2.bf16.msra.mxu0 %v1021
  %1405 = vmatprep.subr.bf16.mxu0 %v1020
  %1406 = vmatpush2.bf16.msra.mxu0 %v1019
  %1407 = vmatprep.subr.bf16.mxu0 %v1018
  %1408 = vmatpush2.bf16.msra.mxu0 %v1017
  %1409 = vmatprep.mubr.bf16.mxu0 %v461
  %1410 = vmatmul.mubr.bf16.gmra.mxu0 %v460
  %v1411 = vpop.f32.mrf.mxu0
  %v1412 = vadd.f32 %v1311, %v1411
  %v1413 = vpop.f32.mrf.mxu0
  %v1414 = vadd.f32 %v1313, %v1413
  %v1415 = vpop.f32.mrf.mxu0
  %v1416 = vadd.f32 %v1315, %v1415
  %v1417 = vpop.f32.mrf.mxu0
  %v1418 = vadd.f32 %v1317, %v1417
  %1419 = vmatprep.mubr.bf16.mxu0 %v468
  %1420 = vmatmul.mubr.bf16.gmra.mxu0 %v467
  %v1421 = vpop.f32.mrf.mxu0
  %v1422 = vadd.f32 %v1321, %v1421
  %v1423 = vpop.f32.mrf.mxu0
  %v1424 = vadd.f32 %v1323, %v1423
  %v1425 = vpop.f32.mrf.mxu0
  %v1426 = vadd.f32 %v1325, %v1425
  %v1427 = vpop.f32.mrf.mxu0
  %v1428 = vadd.f32 %v1327, %v1427
  %1429 = vmatprep.mubr.bf16.mxu0 %v475
  %1430 = vmatmul.mubr.bf16.gmra.mxu0 %v474
  %v1431 = vpop.f32.mrf.mxu0
  %v1432 = vadd.f32 %v1331, %v1431
  %v1433 = vpop.f32.mrf.mxu0
  %v1434 = vadd.f32 %v1333, %v1433
  %v1435 = vpop.f32.mrf.mxu0
  %v1436 = vadd.f32 %v1335, %v1435
  %v1437 = vpop.f32.mrf.mxu0
  %v1438 = vadd.f32 %v1337, %v1437
  %1439 = vmatprep.mubr.bf16.mxu0 %v482
  %1440 = vmatmul.mubr.bf16.gmra.mxu0 %v481
  %v1441 = vpop.f32.mrf.mxu0
  %v1442 = vadd.f32 %v1341, %v1441
  %v1443 = vpop.f32.mrf.mxu0
  %v1444 = vadd.f32 %v1343, %v1443
  %v1445 = vpop.f32.mrf.mxu0
  %v1446 = vadd.f32 %v1345, %v1445
  %v1447 = vpop.f32.mrf.mxu0
  %v1448 = vadd.f32 %v1347, %v1447
  %1449 = vmatprep.mubr.bf16.mxu0 %v489
  %1450 = vmatmul.mubr.bf16.gmra.mxu0 %v488
  %v1451 = vpop.f32.mrf.mxu0
  %v1452 = vadd.f32 %v1351, %v1451
  %v1453 = vpop.f32.mrf.mxu0
  %v1454 = vadd.f32 %v1353, %v1453
  %v1455 = vpop.f32.mrf.mxu0
  %v1456 = vadd.f32 %v1355, %v1455
  %v1457 = vpop.f32.mrf.mxu0
  %v1458 = vadd.f32 %v1357, %v1457
  %1459 = vmatprep.mubr.bf16.mxu0 %v496
  %1460 = vmatmul.mubr.bf16.gmra.mxu0 %v495
  %v1461 = vpop.f32.mrf.mxu0
  %v1462 = vadd.f32 %v1361, %v1461
  %v1463 = vpop.f32.mrf.mxu0
  %v1464 = vadd.f32 %v1363, %v1463
  %v1465 = vpop.f32.mrf.mxu0
  %v1466 = vadd.f32 %v1365, %v1465
  %v1467 = vpop.f32.mrf.mxu0
  %v1468 = vadd.f32 %v1367, %v1467
  %1469 = vmatprep.mubr.bf16.mxu0 %v503
  %1470 = vmatmul.mubr.bf16.gmra.mxu0 %v502
  %v1471 = vpop.f32.mrf.mxu0
  %v1472 = vadd.f32 %v1371, %v1471
  %v1473 = vpop.f32.mrf.mxu0
  %v1474 = vadd.f32 %v1373, %v1473
  %v1475 = vpop.f32.mrf.mxu0
  %v1476 = vpop.f32.mrf.mxu0
  %1477 = vdwg.mxu0
  %1478 = vmatprep.subr.bf16.mxu0 0
  %1479 = vmatpush1.bf16.msra.mxu0 0
  %1480 = vmatprep.subr.bf16.mxu0 0
  %1481 = vmatpush1.bf16.msra.mxu0 0
  %1482 = vmatprep.subr.bf16.mxu0 %v1044
  %1483 = vmatpush1.bf16.msra.mxu0 %v1043
  %1484 = vmatprep.subr.bf16.mxu0 %v1042
  %1485 = vmatpush1.bf16.msra.mxu0 %v1041
  %1486 = vmatprep.subr.bf16.mxu0 %v1040
  %1487 = vmatpush1.bf16.msra.mxu0 %v1039
  %1488 = vmatprep.subr.bf16.mxu0 %v1038
  %1489 = vmatpush1.bf16.msra.mxu0 %v1037
  %1490 = vmatprep.subr.bf16.mxu0 %v1036
  %1491 = vmatpush1.bf16.msra.mxu0 %v1035
  %1492 = vmatprep.subr.bf16.mxu0 %v1034
  %1493 = vmatpush1.bf16.msra.mxu0 %v1033
  %1494 = vmatprep.subr.bf16.mxu0 0
  %1495 = vmatpush2.bf16.msra.mxu0 0
  %1496 = vmatprep.subr.bf16.mxu0 0
  %1497 = vmatpush2.bf16.msra.mxu0 0
  %1498 = vmatprep.subr.bf16.mxu0 0
  %1499 = vmatpush2.bf16.msra.mxu0 0
  %1500 = vmatprep.subr.bf16.mxu0 0
  %1501 = vmatpush2.bf16.msra.mxu0 0
  %1502 = vmatprep.subr.bf16.mxu0 0
  %1503 = vmatpush2.bf16.msra.mxu0 0
  %1504 = vmatprep.subr.bf16.mxu0 0
  %1505 = vmatpush2.bf16.msra.mxu0 0
  %1506 = vmatprep.subr.bf16.mxu0 0
  %1507 = vmatpush2.bf16.msra.mxu0 0
  %1508 = vmatprep.subr.bf16.mxu0 0
  %1509 = vmatpush2.bf16.msra.mxu0 0
  %1510 = vmatprep.mubr.bf16.mxu0 0
  %1511 = vmatmul.mubr.bf16.gmra.mxu0 %v1155
  %v1512 = vpop.f32.mrf.mxu0
  %v1513 = vadd.f32 %v1412, %v1512
  %v1514 = vpop.f32.mrf.mxu0
  %v1515 = vadd.f32 %v1414, %v1514
  %v1516 = vpop.f32.mrf.mxu0
  %v1517 = vadd.f32 %v1416, %v1516
  %v1518 = vpop.f32.mrf.mxu0
  %v1519 = vadd.f32 %v1418, %v1518
  %1520 = vmatprep.mubr.bf16.mxu0 0
  %1521 = vmatmul.mubr.bf16.gmra.mxu0 %v1158
  %v1522 = vpop.f32.mrf.mxu0
  %v1523 = vadd.f32 %v1422, %v1522
  %v1524 = vpop.f32.mrf.mxu0
  %v1525 = vadd.f32 %v1424, %v1524
  %v1526 = vpop.f32.mrf.mxu0
  %v1527 = vadd.f32 %v1426, %v1526
  %v1528 = vpop.f32.mrf.mxu0
  %v1529 = vadd.f32 %v1428, %v1528
  %1530 = vmatprep.mubr.bf16.mxu0 0
  %1531 = vmatmul.mubr.bf16.gmra.mxu0 %v1161
  %v1532 = vpop.f32.mrf.mxu0
  %v1533 = vadd.f32 %v1432, %v1532
  %v1534 = vpop.f32.mrf.mxu0
  %v1535 = vadd.f32 %v1434, %v1534
  %v1536 = vpop.f32.mrf.mxu0
  %v1537 = vadd.f32 %v1436, %v1536
  %v1538 = vpop.f32.mrf.mxu0
  %v1539 = vadd.f32 %v1438, %v1538
  %1540 = vmatprep.mubr.bf16.mxu0 0
  %1541 = vmatmul.mubr.bf16.gmra.mxu0 %v1164
  %v1542 = vpop.f32.mrf.mxu0
  %v1543 = vadd.f32 %v1442, %v1542
  %v1544 = vpop.f32.mrf.mxu0
  %v1545 = vadd.f32 %v1444, %v1544
  %v1546 = vpop.f32.mrf.mxu0
  %v1547 = vadd.f32 %v1446, %v1546
  %v1548 = vpop.f32.mrf.mxu0
  %v1549 = vadd.f32 %v1448, %v1548
  %1550 = vmatprep.mubr.bf16.mxu0 0
  %1551 = vmatmul.mubr.bf16.gmra.mxu0 %v1167
  %v1552 = vpop.f32.mrf.mxu0
  %v1553 = vadd.f32 %v1452, %v1552
  %v1554 = vpop.f32.mrf.mxu0
  %v1555 = vadd.f32 %v1454, %v1554
  %v1556 = vpop.f32.mrf.mxu0
  %v1557 = vadd.f32 %v1456, %v1556
  %v1558 = vpop.f32.mrf.mxu0
  %v1559 = vadd.f32 %v1458, %v1558
  %1560 = vmatprep.mubr.bf16.mxu0 0
  %1561 = vmatmul.mubr.bf16.gmra.mxu0 %v1170
  %v1562 = vpop.f32.mrf.mxu0
  %v1563 = vadd.f32 %v1462, %v1562
  %v1564 = vpop.f32.mrf.mxu0
  %v1565 = vadd.f32 %v1464, %v1564
  %v1566 = vpop.f32.mrf.mxu0
  %v1567 = vadd.f32 %v1466, %v1566
  %v1568 = vpop.f32.mrf.mxu0
  %v1569 = vadd.f32 %v1468, %v1568
  %1570 = vmatprep.mubr.bf16.mxu0 0
  %1571 = vmatmul.mubr.bf16.gmra.mxu0 %v1173
  %v1572 = vpop.f32.mrf.mxu0
  %v1573 = vadd.f32 %v1472, %v1572
  %v1574 = vpop.f32.mrf.mxu0
  %v1575 = vadd.f32 %v1474, %v1574
  %v1576 = vpop.f32.mrf.mxu0
  %v1577 = vpop.f32.mrf.mxu0
  %1578 = vdwg.mxu0
  %1579 = vst [vmem:[%s4] sm:$0xff] %v1513
  %1580 = vst [vmem:[%s4 + $0x8] sm:$0xff] %v1515
  %1581 = vst [vmem:[%s4 + $0x10] sm:$0xff] %v1517
  %1582 = vst [vmem:[%s4 + $0x18] sm:$0xff] %v1519
  %1583 = vst [vmem:[%s4 + $0x20] sm:$0xff] %v1523
  %1584 = vst [vmem:[%s4 + $0x28] sm:$0xff] %v1525
  %1585 = vst [vmem:[%s4 + $0x30] sm:$0xff] %v1527
  %1586 = vst [vmem:[%s4 + $0x38] sm:$0xff] %v1529
  %1587 = vst [vmem:[%s4 + $0x40] sm:$0xff] %v1533
  %1588 = vst [vmem:[%s4 + $0x48] sm:$0xff] %v1535
  %1589 = vst [vmem:[%s4 + $0x50] sm:$0xff] %v1537
  %1590 = vst [vmem:[%s4 + $0x58] sm:$0xff] %v1539
  %1591 = vst [vmem:[%s4 + $0x60] sm:$0xff] %v1543
  %1592 = vst [vmem:[%s4 + $0x68] sm:$0xff] %v1545
  %1593 = vst [vmem:[%s4 + $0x70] sm:$0xff] %v1547
  %1594 = vst [vmem:[%s4 + $0x78] sm:$0xff] %v1549
  %1595 = vst [vmem:[%s4 + $0x80] sm:$0xff] %v1553
  %1596 = vst [vmem:[%s4 + $0x88] sm:$0xff] %v1555
  %1597 = vst [vmem:[%s4 + $0x90] sm:$0xff] %v1557
  %1598 = vst [vmem:[%s4 + $0x98] sm:$0xff] %v1559
  %1599 = vst [vmem:[%s4 + $0xa0] sm:$0xff] %v1563
  %1600 = vst [vmem:[%s4 + $0xa8] sm:$0xff] %v1565
  %1601 = vst [vmem:[%s4 + $0xb0] sm:$0xff] %v1567
  %1602 = vst [vmem:[%s4 + $0xb8] sm:$0xff] %v1569
  %1603 = vst [vmem:[%s4 + $0xc0] sm:$0x3] %v1573
  %1604 = vst [vmem:[%s4 + $0xc8] sm:$0x3] %v1575
  // Predicated region
  $region18: #{fused_forward.3} parent=0 // pred_check
    _
  $region19: #{fused_forward.3} parent=0 // pred_check_branch
    %1606 = sbr.rel (0) target = $region21
  $region20: #{fused_forward.3} parent=0 // pred_region
    _
  $region21: #{fused_forward.3} parent=0 // pred_fallthru
    _
  // Predicated region
  $region22: #{fused_forward.3} parent=0 // pred_check
    _
  $region23: #{fused_forward.3} parent=0 // pred_check_branch
    %1608 = sbr.rel (0) target = $region25
  $region24: #{fused_forward.3} parent=0 // pred_region
    _
  $region25: #{fused_forward.3} parent=0 // pred_fallthru
    _

// kernel: fused_forward.2
$region0: #{fused_forward.2}
  #allocation0 [shape = 'u32[]', space=smem, size = 0x4, offset = 0x4, fixed_abs, tag = 'smem constant byte address 0x4 - core index']
  #allocation1 [shape = 'u32[144,128]{1,0:T(1,128)}', space=vmem, size = 0x12000, scoped, tag = 'internal scratch']
  %s0 = inlined_call_operand.vmem [shape: f32[2,1,11,11,864], index: 0, kind: input, shape index: {}]
  %s1 = inlined_call_operand.vmem [shape: f32[25,864], index: 1, kind: input, shape index: {}]
  %s2 = inlined_call_operand.vmem [shape: f32[2,7,7,864], index: 2, kind: output, shape index: {0}]
  %s3 = inlined_call_operand.vmem [shape: f32[2,1,2,864], index: 3, kind: output, shape index: {1}]
  %4 = xla_tuple %s2, %s3
  %s5 = sld [smem:[#allocation0]]
  $region49: #{fused_forward.2} parent=0
    _
  %s7 = ssub.s32 1, %s5
  %s8 = scalar_select 0, %s7, %s5
  loop: start=0, step=1, limit=4
  $region2: #{fused_forward.2} parent=0 // loop_pre_header
    _
  $region3: #{fused_forward.2} parent=0 // loop_header
    %s10 = sphi 0, %s14
    %p11 = scmp.ge.s32.totalorder %s10, 4
    %s17 = sphi 0, %s29
    %s18 = sphi 0, %s25
    %s19 = sphi 0, %s17
    %s20 = sphi 0, %s18
    %s21 = sphi 0, %s19
    %s22 = sphi 0, %s20
    %s34 = sphi 0, %s36
    %s37 = sphi 0, %s34
    %s38 = sphi 0, %s37
    %s54 = sphi 0, %s38
    %s58 = sphi 0, %s58
    %s60 = sphi 0, %s58
    %s61 = sphi 0, %s60
    %s75 = sphi 0, %s61
    %s83 = sphi 0, %s85
    %s86 = sphi 0, %s83
    %s87 = sphi 0, %s86
    %s103 = sphi 0, %s87
    %s111 = sphi 0, %s113
    %s114 = sphi 0, %s111
    %s115 = sphi 0, %s114
    %s131 = sphi 0, %s115
  $region4: #{fused_forward.2} parent=0 // loop_header_branch
    %13 = sbr.rel (%p11) target = $region8
  $region5: #{fused_forward.2} parent=0 // loop_body
    %s15 = ssub.s32 %s10, 1
    %s16 = ssub.s32 %s10, 2
    %s23 = sadd.s32 1, %s18
    %p24 = scmp.ge.s32.totalorder %s23, 1
    %s25 = scalar_select %p24, 0, %s23
    %s26 = sadd.s32 1, %s17
    %s27 = scalar_select %p24, %s26, %s17
    %p28 = scmp.ge.s32.totalorder %s27, 2
    %s29 = scalar_select %p28, 0, %s27
    %s30 = ssub.s32 %s17, %s29
    %s31 = ssub.s32 %s18, %s25
    %s32 = sor.u32 %s30, %s31
    %p33 = scmp.eq.s32.totalorder %s32, 0
    %s35 = sadd.s32 %s34, 1
    %s36 = scalar_select %p33, %s34, %s35
    %p39 = pneg %p33
    %p40 = scmp.eq.s32.totalorder %s10, 1
    %p41 = por %p39, %p40
    %p42 = scmp.ne.s32.totalorder %s34, %s37
    %p43 = scmp.eq.s32.totalorder %s10, 0
    %p44 = por %p42, %p43
    %p45 = scmp.ne.s32.totalorder %s34, %s37
    %p46 = scmp.eq.s32.totalorder %s15, 1
    %p47 = por %p45, %p46
    %p48 = scmp.ne.s32.totalorder %s37, %s38
    %p49 = scmp.eq.s32.totalorder %s15, 0
    %p50 = por %p48, %p49
    %p51 = scmp.ne.s32.totalorder %s37, %s38
    %p52 = scmp.eq.s32.totalorder %s16, 1
    %p53 = por %p51, %p52
    %p55 = scmp.ne.s32.totalorder %s38, %s54
    %p56 = scmp.eq.s32.totalorder %s16, 0
    %p57 = por %p55, %p56
    %s59 = sadd.s32 %s58, 1
    %p62 = scmp.eq.s32.totalorder %s10, 1
    %p63 = scmp.ne.s32.totalorder %s58, %s60
    %p64 = scmp.eq.s32.totalorder %s10, 0
    %p65 = por %p63, %p64
    %p66 = scmp.ne.s32.totalorder %s58, %s60
    %p67 = scmp.eq.s32.totalorder %s15, 1
    %p68 = por %p66, %p67
    %p69 = scmp.ne.s32.totalorder %s60, %s61
    %p70 = scmp.eq.s32.totalorder %s15, 0
    %p71 = por %p69, %p70
    %p72 = scmp.ne.s32.totalorder %s60, %s61
    %p73 = scmp.eq.s32.totalorder %s16, 1
    %p74 = por %p72, %p73
    %p76 = scmp.ne.s32.totalorder %s61, %s75
    %p77 = scmp.eq.s32.totalorder %s16, 0
    %p78 = por %p76, %p77
    %s79 = ssub.s32 %s17, %s29
    %s80 = ssub.s32 %s18, %s25
    %s81 = sor.u32 %s79, %s80
    %p82 = scmp.eq.s32.totalorder %s81, 0
    %s84 = sadd.s32 %s83, 1
    %s85 = scalar_select %p82, %s83, %s84
    %p88 = pneg %p82
    %p89 = scmp.eq.s32.totalorder %s10, 1
    %p90 = por %p88, %p89
    %p91 = scmp.ne.s32.totalorder %s83, %s86
    %p92 = scmp.eq.s32.totalorder %s10, 0
    %p93 = por %p91, %p92
    %p94 = scmp.ne.s32.totalorder %s83, %s86
    %p95 = scmp.eq.s32.totalorder %s15, 1
    %p96 = por %p94, %p95
    %p97 = scmp.ne.s32.totalorder %s86, %s87
    %p98 = scmp.eq.s32.totalorder %s15, 0
    %p99 = por %p97, %p98
    %p100 = scmp.ne.s32.totalorder %s86, %s87
    %p101 = scmp.eq.s32.totalorder %s16, 1
    %p102 = por %p100, %p101
    %p104 = scmp.ne.s32.totalorder %s87, %s103
    %p105 = scmp.eq.s32.totalorder %s16, 0
    %p106 = por %p104, %p105
    %s107 = ssub.s32 %s17, %s29
    %s108 = ssub.s32 %s18, %s25
    %s109 = sor.u32 %s107, %s108
    %p110 = scmp.eq.s32.totalorder %s109, 0
    %s112 = sadd.s32 %s111, 1
    %s113 = scalar_select %p110, %s111, %s112
    %p116 = pneg %p110
    %p117 = scmp.eq.s32.totalorder %s10, 1
    %p118 = por %p116, %p117
    %p119 = scmp.ne.s32.totalorder %s111, %s114
    %p120 = scmp.eq.s32.totalorder %s10, 0
    %p121 = por %p119, %p120
    %p122 = scmp.ne.s32.totalorder %s111, %s114
    %p123 = scmp.eq.s32.totalorder %s15, 1
    %p124 = por %p122, %p123
    %p125 = scmp.ne.s32.totalorder %s114, %s115
    %p126 = scmp.eq.s32.totalorder %s15, 0
    %p127 = por %p125, %p126
    %p128 = scmp.ne.s32.totalorder %s114, %s115
    %p129 = scmp.eq.s32.totalorder %s16, 1
    %p130 = por %p128, %p129
    %p132 = scmp.ne.s32.totalorder %s115, %s131
    %p133 = scmp.eq.s32.totalorder %s16, 0
    %p134 = por %p132, %p133
    %p135 = scmp.le.s32.totalorder 1, %s10
    %p136 = scmp.lt.s32.totalorder %s10, 3
    %p137 = pnand %p135, %p136
    %p138 = pneg %p137
    // Predicated region
    $region9: #{fused_forward.2} parent=5 // pred_check
      _
    $region10: #{fused_forward.2} parent=5 // pred_check_branch
      %140 = sbr.rel (%p137) target = $region12
    $region11: #{fused_forward.2} parent=5 // pred_region
      %s141 = ssub.s32 %s10, 1
      // Predicated region
      $region13: #{fused_forward.2} parent=11 // pred_check
        %p142 = pneg %p71
      $region14: #{fused_forward.2} parent=11 // pred_check_branch
        %144 = sbr.rel (%p142) target = $region16
      $region15: #{fused_forward.2} parent=11 // pred_region
        _
      $region16: #{fused_forward.2} parent=11 // pred_fallthru
        _
    $region12: #{fused_forward.2} parent=5 // pred_fallthru
      _
    %p145 = scmp.lt.s32.totalorder %s10, 2
    // Predicated region
    $region17: #{fused_forward.2} parent=5 // pred_check
      %p146 = pneg %p145
    $region18: #{fused_forward.2} parent=5 // pred_check_branch
      %148 = sbr.rel (%p146) target = $region20
    $region19: #{fused_forward.2} parent=5 // pred_region
      // Predicated region
      $region21: #{fused_forward.2} parent=19 // pred_check
        %p149 = pneg %p44
      $region22: #{fused_forward.2} parent=19 // pred_check_branch
        %151 = sbr.rel (%p149) target = $region24
      $region23: #{fused_forward.2} parent=19 // pred_region
        %p152 = scmp.lt.s32.totalorder %s17, 1
        %s153 = scalar_select %p152, %s17, 1
        %p154 = scmp.lt.s32.totalorder %s18, 0
        %s155 = scalar_select %p154, %s18, 0
        %s156 = smul.addr %s155, 154
        %s157 = smul.addr %s153, 154
        %s158 = sadd.s32 %s156, %s157
        %s159 = smul.addr %s158, 8
        %s160 = scalar_lea.vmem %s0, %s159
      $region24: #{fused_forward.2} parent=19 // pred_fallthru
        _
    $region20: #{fused_forward.2} parent=5 // pred_fallthru
      _
    %p161 = scmp.le.s32.totalorder 1, %s10
    %p162 = scmp.lt.s32.totalorder %s10, 3
    %p163 = pnand %p161, %p162
    %p164 = pneg %p163
    // Predicated region
    $region25: #{fused_forward.2} parent=5 // pred_check
      _
    $region26: #{fused_forward.2} parent=5 // pred_check_branch
      %166 = sbr.rel (%p163) target = $region28
    $region27: #{fused_forward.2} parent=5 // pred_region
      %s167 = ssub.s32 %s10, 1
      %p168 = scmp.lt.s32.totalorder %s19, 1
      %s169 = scalar_select %p168, %s19, 1
      %p170 = scmp.lt.s32.totalorder %s20, 0
      %s171 = scalar_select %p170, %s20, 0
      %s172 = smul.addr %s171, 154
      %s173 = smul.addr %s169, 154
      %s174 = sadd.s32 %s172, %s173
      %s175 = smul.addr %s174, 8
      %s176 = scalar_lea.vmem %s0, %s175
      %p177 = pneg %p50
      %p178 = pneg %p47
      %p179 = pneg %p71
      %p180 = pneg %p68
      %p181 = pneg %p99
      %p182 = pneg %p96
      %s183 = smul.u32 7, %s20
      %p184 = scmp.lt.s32.totalorder %s19, 1
      %s185 = scalar_select %p184, %s19, 1
      %p186 = scmp.lt.s32.totalorder %s183, 6
      %s187 = scalar_select %p186, %s183, 6
      %s188 = smul.addr %s187, 7
      %s189 = smul.addr %s185, 49
      %s190 = sadd.s32 %s188, %s189
      %s191 = smul.addr %s190, 8
      %s192 = scalar_lea.vmem %s2, %s191
      %p193 = pneg %p127
      %p194 = pneg %p124
      %p195 = scmp.lt.s32.totalorder %s19, 1
      %s196 = scalar_select %p195, %s19, 1
      %p197 = scmp.lt.s32.totalorder %s20, 0
      %s198 = scalar_select %p197, %s20, 0
      %s199 = smul.addr %s198, 7
      %s200 = smul.addr %s196, 7
      %s201 = sadd.s32 %s199, %s200
      %s202 = smul.addr %s201, 2
      %s203 = scalar_lea.vmem %s3, %s202
      %p204 = scmp.lt.s32.totalorder %s19, 1
      %s205 = scalar_select %p204, %s19, 1
      %p206 = scmp.lt.s32.totalorder %s20, 0
      %s207 = scalar_select %p206, %s20, 0
      %s208 = smul.addr %s207, 154
      %s209 = smul.addr %s205, 154
      %s210 = sadd.s32 %s208, %s209
      %s211 = smul.addr %s210, 8
      %s212 = scalar_lea.vmem %s0, %s211
      %s213 = smul.u32 7, %s20
      %p214 = scmp.lt.s32.totalorder %s19, 1
      %s215 = scalar_select %p214, %s19, 1
      %p216 = scmp.lt.s32.totalorder %s213, 6
      %s217 = scalar_select %p216, %s213, 6
      %s218 = smul.addr %s217, 7
      %s219 = smul.addr %s215, 49
      %s220 = sadd.s32 %s218, %s219
      %s221 = smul.addr %s220, 8
      %s222 = scalar_lea.vmem %s2, %s221
      %s223 = smul.u32 7, %s20
      %p224 = scmp.lt.s32.totalorder %s19, 1
      %s225 = scalar_select %p224, %s19, 1
      %p226 = scmp.lt.s32.totalorder %s20, 0
      %s227 = scalar_select %p226, %s20, 0
      %s228 = smul.addr %s227, 7
      %s229 = smul.addr %s225, 7
      %s230 = sadd.s32 %s228, %s229
      %s231 = smul.addr %s230, 2
      %s232 = scalar_lea.vmem %s3, %s231
      %v233 = vld [vmem:[%s1] sm:$0xff]
      %v234 = vld [vmem:[%s1 + $0x8] sm:$0xff]
      %v235 = vld [vmem:[%s1 + $0x10] sm:$0xff]
      %v236 = vld [vmem:[%s1 + $0x18] sm:$0xff]
      %v237 = vld [vmem:[%s1 + $0x20] sm:$0xff]
      %v238 = vld [vmem:[%s1 + $0x28] sm:$0xff]
      %v239 = vld [vmem:[%s1 + $0x30] sm:$0xff]
      %v240 = vld [vmem:[%s1 + $0x38] sm:$0xff]
      %v241 = vld [vmem:[%s1 + $0x40] sm:$0xff]
      %v242 = vld [vmem:[%s1 + $0x48] sm:$0xff]
      %v243 = vld [vmem:[%s1 + $0x50] sm:$0xff]
      %v244 = vld [vmem:[%s1 + $0x58] sm:$0xff]
      %v245 = vld [vmem:[%s1 + $0x60] sm:$0xff]
      %v246 = vld [vmem:[%s1 + $0x68] sm:$0xff]
      %v247 = vld [vmem:[%s1 + $0x70] sm:$0xff]
      %v248 = vld [vmem:[%s1 + $0x78] sm:$0xff]
      %v249 = vld [vmem:[%s1 + $0x80] sm:$0xff]
      %v250 = vld [vmem:[%s1 + $0x88] sm:$0xff]
      %v251 = vld [vmem:[%s1 + $0x90] sm:$0xff]
      %v252 = vld [vmem:[%s1 + $0x98] sm:$0xff]
      %v253 = vld [vmem:[%s1 + $0xa0] sm:$0xff]
      %v254 = vld [vmem:[%s1 + $0xa8] sm:$0x1]
      %v255 = vld [vmem:[%s1 + $0xb0] sm:$0x1]
      %v256 = vld [vmem:[%s1 + $0xb8] sm:$0x1]
      %v257 = vld [vmem:[%s1 + $0xc0] sm:$0x1]
      %v258 = vld [vmem:[%s1 + $0xc8] sm:$0x1]
      %v259 = vld [vmem:[%s1 + $0xd0] sm:$0x1]
      %v260 = vld [vmem:[%s1 + $0xd8] sm:$0x1]
      %v261 = vld [vmem:[%s212] sm:$0x7f]
      %v262 = vld [vmem:[%s212 + $0x8] sm:$0x7f]
      %v263 = vld [vmem:[%s212 + $0x10] sm:$0x7f]
      %v264 = vld [vmem:[%s212 + $0x18] sm:$0x7f]
      %v265 = vld [vmem:[%s212 + $0x20] sm:$0x7f]
      %v266 = vld [vmem:[%s212 + $0x28] sm:$0x7f]
      %v267 = vld [vmem:[%s212 + $0x30] sm:$0x7f]
      %v268 = vld [vmem:[%s212 + $0x70] sm:$0x7f]
      %v269 = vld [vmem:[%s212 + $0x78] sm:$0x7f]
      %v270 = vld [vmem:[%s212 + $0x80] sm:$0x7f]
      %v271 = vld [vmem:[%s212 + $0x88] sm:$0x7f]
      %v272 = vld [vmem:[%s212 + $0x90] sm:$0x7f]
      %v273 = vld [vmem:[%s212 + $0x98] sm:$0x7f]
      %v274 = vld [vmem:[%s212 + $0xa0] sm:$0x7f]
      %v275 = vld [vmem:[%s212 + $0xe0] sm:$0x7f]
      %v276 = vld [vmem:[%s212 + $0xe8] sm:$0x7f]
      %v277 = vld [vmem:[%s212 + $0xf0] sm:$0x7f]
      %v278 = vld [vmem:[%s212 + $0xf8] sm:$0x7f]
      %v279 = vld [vmem:[%s212 + $0x100] sm:$0x7f]
      %v280 = vld [vmem:[%s212 + $0x108] sm:$0x7f]
      %v281 = vld [vmem:[%s212 + $0x110] sm:$0x7f]
      %v282 = vld [vmem:[%s212 + $0x150] sm:$0x7f]
      %v283 = vld [vmem:[%s212 + $0x158] sm:$0x7f]
      %v284 = vld [vmem:[%s212 + $0x160] sm:$0x7f]
      %v285 = vld [vmem:[%s212 + $0x168] sm:$0x7f]
      %v286 = vld [vmem:[%s212 + $0x170] sm:$0x7f]
      %v287 = vld [vmem:[%s212 + $0x178] sm:$0x7f]
      %v288 = vld [vmem:[%s212 + $0x180] sm:$0x7f]
      %v289 = vld [vmem:[%s212 + $0x1c0] sm:$0x7f]
      %v290 = vld [vmem:[%s212 + $0x1c8] sm:$0x7f]
      %v291 = vld [vmem:[%s212 + $0x1d0] sm:$0x7f]
      %v292 = vld [vmem:[%s212 + $0x1d8] sm:$0x7f]
      %v293 = vld [vmem:[%s212 + $0x1e0] sm:$0x7f]
      %v294 = vld [vmem:[%s212 + $0x1e8] sm:$0x7f]
      %v295 = vld [vmem:[%s212 + $0x1f0] sm:$0x7f]
      %v296 = vld [vmem:[%s212 + $0x230] sm:$0x7f]
      %v297 = vld [vmem:[%s212 + $0x238] sm:$0x7f]
      %v298 = vld [vmem:[%s212 + $0x240] sm:$0x7f]
      %v299 = vld [vmem:[%s212 + $0x248] sm:$0x7f]
      %v300 = vld [vmem:[%s212 + $0x250] sm:$0x7f]
      %v301 = vld [vmem:[%s212 + $0x258] sm:$0x7f]
      %v302 = vld [vmem:[%s212 + $0x260] sm:$0x7f]
      %v303 = vld [vmem:[%s212 + $0x2a0] sm:$0x7f]
      %v304 = vld [vmem:[%s212 + $0x2a8] sm:$0x7f]
      %v305 = vld [vmem:[%s212 + $0x2b0] sm:$0x7f]
      %v306 = vld [vmem:[%s212 + $0x2b8] sm:$0x7f]
      %v307 = vld [vmem:[%s212 + $0x2c0] sm:$0x7f]
      %v308 = vld [vmem:[%s212 + $0x2c8] sm:$0x7f]
      %v309 = vld [vmem:[%s212 + $0x2d0] sm:$0x7f]
      %v310 = vld [vmem:[%s212 + $0x310] sm:$0x7f]
      %v311 = vld [vmem:[%s212 + $0x318] sm:$0x7f]
      %v312 = vld [vmem:[%s212 + $0x320] sm:$0x7f]
      %v313 = vld [vmem:[%s212 + $0x328] sm:$0x7f]
      %v314 = vld [vmem:[%s212 + $0x330] sm:$0x7f]
      %v315 = vld [vmem:[%s212 + $0x338] sm:$0x7f]
      %v316 = vld [vmem:[%s212 + $0x340] sm:$0x7f]
      %v317 = vld [vmem:[%s212 + $0x380] sm:$0x7f]
      %v318 = vld [vmem:[%s212 + $0x388] sm:$0x7f]
      %v319 = vld [vmem:[%s212 + $0x390] sm:$0x7f]
      %v320 = vld [vmem:[%s212 + $0x398] sm:$0x7f]
      %v321 = vld [vmem:[%s212 + $0x3a0] sm:$0x7f]
      %v322 = vld [vmem:[%s212 + $0x3a8] sm:$0x7f]
      %v323 = vld [vmem:[%s212 + $0x3b0] sm:$0x7f]
      %v324 = vld [vmem:[%s212 + $0x3f0] sm:$0x7f]
      %v325 = vld [vmem:[%s212 + $0x3f8] sm:$0x7f]
      %v326 = vld [vmem:[%s212 + $0x400] sm:$0x7f]
      %v327 = vld [vmem:[%s212 + $0x408] sm:$0x7f]
      %v328 = vld [vmem:[%s212 + $0x410] sm:$0x7f]
      %v329 = vld [vmem:[%s212 + $0x418] sm:$0x7f]
      %v330 = vld [vmem:[%s212 + $0x420] sm:$0x7f]
      %v331 = vld [vmem:[%s212 + $0x460] sm:$0x7f]
      %v332 = vld [vmem:[%s212 + $0x468] sm:$0x7f]
      %v333 = vld [vmem:[%s212 + $0x470] sm:$0x7f]
      %v334 = vld [vmem:[%s212 + $0x478] sm:$0x7f]
      %v335 = vld [vmem:[%s212 + $0x480] sm:$0x7f]
      %v336 = vld [vmem:[%s212 + $0x488] sm:$0x7f]
      %v337 = vld [vmem:[%s212 + $0x490] sm:$0x7f]
      %v338 = vlaneseq
      %v339 = vshrl.u32 %v338, 7
      %v340 = vsub.s32 0, %v339
      %v341 = vrot.slane %v233, %v340
      %v342 = vlaneseq
      %v343 = vshrl.u32 %v342, 7
      %v344 = vsub.s32 0, %v343
      %v345 = vrot.slane %v234, %v344
      %v346 = vlaneseq
      %v347 = vshrl.u32 %v346, 7
      %v348 = vsub.s32 0, %v347
      %v349 = vrot.slane %v235, %v348
      %v350 = vlaneseq
      %v351 = vshrl.u32 %v350, 7
      %v352 = vsub.s32 0, %v351
      %v353 = vrot.slane %v236, %v352
      %v354 = vlaneseq
      %v355 = vshrl.u32 %v354, 7
      %v356 = vsub.s32 0, %v355
      %v357 = vrot.slane %v237, %v356
      %v358 = vlaneseq
      %v359 = vshrl.u32 %v358, 7
      %v360 = vsub.s32 0, %v359
      %v361 = vrot.slane %v238, %v360
      %v362 = vlaneseq
      %v363 = vshrl.u32 %v362, 7
      %v364 = vsub.s32 0, %v363
      %v365 = vrot.slane %v239, %v364
      %v366 = vmul.f32 %v261, %v341
      %v367 = vmul.f32 %v262, %v345
      %v368 = vmul.f32 %v263, %v349
      %v369 = vmul.f32 %v264, %v353
      %v370 = vmul.f32 %v265, %v357
      %v371 = vmul.f32 %v266, %v361
      %v372 = vmul.f32 %v267, %v365
      %v373 = vmul.f32 %v268, %v341
      %v374 = vmul.f32 %v269, %v345
      %v375 = vmul.f32 %v270, %v349
      %v376 = vmul.f32 %v271, %v353
      %v377 = vmul.f32 %v272, %v357
      %v378 = vmul.f32 %v273, %v361
      %v379 = vmul.f32 %v274, %v365
      %v380 = vmul.f32 %v275, %v341
      %v381 = vmul.f32 %v276, %v345
      %v382 = vmul.f32 %v277, %v349
      %v383 = vmul.f32 %v278, %v353
      %v384 = vmul.f32 %v279, %v357
      %v385 = vmul.f32 %v280, %v361
      %v386 = vmul.f32 %v281, %v365
      %v387 = vmul.f32 %v282, %v341
      %v388 = vmul.f32 %v283, %v345
      %v389 = vmul.f32 %v284, %v349
      %v390 = vmul.f32 %v285, %v353
      %v391 = vmul.f32 %v286, %v357
      %v392 = vmul.f32 %v287, %v361
      %v393 = vmul.f32 %v288, %v365
      %v394 = vmul.f32 %v289, %v341
      %v395 = vmul.f32 %v290, %v345
      %v396 = vmul.f32 %v291, %v349
      %v397 = vmul.f32 %v292, %v353
      %v398 = vmul.f32 %v293, %v357
      %v399 = vmul.f32 %v294, %v361
      %v400 = vmul.f32 %v295, %v365
      %v401 = vmul.f32 %v296, %v341
      %v402 = vmul.f32 %v297, %v345
      %v403 = vmul.f32 %v298, %v349
      %v404 = vmul.f32 %v299, %v353
      %v405 = vmul.f32 %v300, %v357
      %v406 = vmul.f32 %v301, %v361
      %v407 = vmul.f32 %v302, %v365
      %v408 = vmul.f32 %v303, %v341
      %v409 = vmul.f32 %v304, %v345
      %v410 = vmul.f32 %v305, %v349
      %v411 = vmul.f32 %v306, %v353
      %v412 = vmul.f32 %v307, %v357
      %v413 = vmul.f32 %v308, %v361
      %v414 = vmul.f32 %v309, %v365
      %v415 = vadd.f32 %v366, 0.0
      %v416 = vadd.f32 %v367, 0.0
      %v417 = vadd.f32 %v368, 0.0
      %v418 = vadd.f32 %v369, 0.0
      %v419 = vadd.f32 %v370, 0.0
      %v420 = vadd.f32 %v371, 0.0
      %v421 = vadd.f32 %v372, 0.0
      %v422 = vadd.f32 %v373, 0.0
      %v423 = vadd.f32 %v374, 0.0
      %v424 = vadd.f32 %v375, 0.0
      %v425 = vadd.f32 %v376, 0.0
      %v426 = vadd.f32 %v377, 0.0
      %v427 = vadd.f32 %v378, 0.0
      %v428 = vadd.f32 %v379, 0.0
      %v429 = vadd.f32 %v380, 0.0
      %v430 = vadd.f32 %v381, 0.0
      %v431 = vadd.f32 %v382, 0.0
      %v432 = vadd.f32 %v383, 0.0
      %v433 = vadd.f32 %v384, 0.0
      %v434 = vadd.f32 %v385, 0.0
      %v435 = vadd.f32 %v386, 0.0
      %v436 = vadd.f32 %v387, 0.0
      %v437 = vadd.f32 %v388, 0.0
      %v438 = vadd.f32 %v389, 0.0
      %v439 = vadd.f32 %v390, 0.0
      %v440 = vadd.f32 %v391, 0.0
      %v441 = vadd.f32 %v392, 0.0
      %v442 = vadd.f32 %v393, 0.0
      %v443 = vadd.f32 %v394, 0.0
      %v444 = vadd.f32 %v395, 0.0
      %v445 = vadd.f32 %v396, 0.0
      %v446 = vadd.f32 %v397, 0.0
      %v447 = vadd.f32 %v398, 0.0
      %v448 = vadd.f32 %v399, 0.0
      %v449 = vadd.f32 %v400, 0.0
      %v450 = vadd.f32 %v401, 0.0
      %v451 = vadd.f32 %v402, 0.0
      %v452 = vadd.f32 %v403, 0.0
      %v453 = vadd.f32 %v404, 0.0
      %v454 = vadd.f32 %v405, 0.0
      %v455 = vadd.f32 %v406, 0.0
      %v456 = vadd.f32 %v407, 0.0
      %v457 = vadd.f32 %v408, 0.0
      %v458 = vadd.f32 %v409, 0.0
      %v459 = vadd.f32 %v410, 0.0
      %v460 = vadd.f32 %v411, 0.0
      %v461 = vadd.f32 %v412, 0.0
      %v462 = vadd.f32 %v413, 0.0
      %v463 = vadd.f32 %v414, 0.0
      %v464 = vlaneseq
      %v465 = vshrl.u32 %v464, 7
      %v466 = vsub.s32 5, %v465
      %v467 = vrot.slane %v233, %v466
      %v468 = vlaneseq
      %v469 = vshrl.u32 %v468, 7
      %v470 = vsub.s32 5, %v469
      %v471 = vrot.slane %v234, %v470
      %v472 = vlaneseq
      %v473 = vshrl.u32 %v472, 7
      %v474 = vsub.s32 5, %v473
      %v475 = vrot.slane %v235, %v474
      %v476 = vlaneseq
      %v477 = vshrl.u32 %v476, 7
      %v478 = vsub.s32 5, %v477
      %v479 = vrot.slane %v236, %v478
      %v480 = vlaneseq
      %v481 = vshrl.u32 %v480, 7
      %v482 = vsub.s32 5, %v481
      %v483 = vrot.slane %v237, %v482
      %v484 = vlaneseq
      %v485 = vshrl.u32 %v484, 7
      %v486 = vsub.s32 5, %v485
      %v487 = vrot.slane %v238, %v486
      %v488 = vlaneseq
      %v489 = vshrl.u32 %v488, 7
      %v490 = vsub.s32 5, %v489
      %v491 = vrot.slane %v239, %v490
      %v492 = vmul.f32 %v268, %v467
      %v493 = vmul.f32 %v269, %v471
      %v494 = vmul.f32 %v270, %v475
      %v495 = vmul.f32 %v271, %v479
      %v496 = vmul.f32 %v272, %v483
      %v497 = vmul.f32 %v273, %v487
      %v498 = vmul.f32 %v274, %v491
      %v499 = vmul.f32 %v275, %v467
      %v500 = vmul.f32 %v276, %v471
      %v501 = vmul.f32 %v277, %v475
      %v502 = vmul.f32 %v278, %v479
      %v503 = vmul.f32 %v279, %v483
      %v504 = vmul.f32 %v280, %v487
      %v505 = vmul.f32 %v281, %v491
      %v506 = vmul.f32 %v282, %v467
      %v507 = vmul.f32 %v283, %v471
      %v508 = vmul.f32 %v284, %v475
      %v509 = vmul.f32 %v285, %v479
      %v510 = vmul.f32 %v286, %v483
      %v511 = vmul.f32 %v287, %v487
      %v512 = vmul.f32 %v288, %v491
      %v513 = vmul.f32 %v289, %v467
      %v514 = vmul.f32 %v290, %v471
      %v515 = vmul.f32 %v291, %v475
      %v516 = vmul.f32 %v292, %v479
      %v517 = vmul.f32 %v293, %v483
      %v518 = vmul.f32 %v294, %v487
      %v519 = vmul.f32 %v295, %v491
      %v520 = vmul.f32 %v296, %v467
      %v521 = vmul.f32 %v297, %v471
      %v522 = vmul.f32 %v298, %v475
      %v523 = vmul.f32 %v299, %v479
      %v524 = vmul.f32 %v300, %v483
      %v525 = vmul.f32 %v301, %v487
      %v526 = vmul.f32 %v302, %v491
      %v527 = vmul.f32 %v303, %v467
      %v528 = vmul.f32 %v304, %v471
      %v529 = vmul.f32 %v305, %v475
      %v530 = vmul.f32 %v306, %v479
      %v531 = vmul.f32 %v307, %v483
      %v532 = vmul.f32 %v308, %v487
      %v533 = vmul.f32 %v309, %v491
      %v534 = vmul.f32 %v310, %v467
      %v535 = vmul.f32 %v311, %v471
      %v536 = vmul.f32 %v312, %v475
      %v537 = vmul.f32 %v313, %v479
      %v538 = vmul.f32 %v314, %v483
      %v539 = vmul.f32 %v315, %v487
      %v540 = vmul.f32 %v316, %v491
      %v541 = vadd.f32 %v415, %v492
      %v542 = vadd.f32 %v416, %v493
      %v543 = vadd.f32 %v417, %v494
      %v544 = vadd.f32 %v418, %v495
      %v545 = vadd.f32 %v419, %v496
      %v546 = vadd.f32 %v420, %v497
      %v547 = vadd.f32 %v421, %v498
      %v548 = vadd.f32 %v422, %v499
      %v549 = vadd.f32 %v423, %v500
      %v550 = vadd.f32 %v424, %v501
      %v551 = vadd.f32 %v425, %v502
      %v552 = vadd.f32 %v426, %v503
      %v553 = vadd.f32 %v427, %v504
      %v554 = vadd.f32 %v428, %v505
      %v555 = vadd.f32 %v429, %v506
      %v556 = vadd.f32 %v430, %v507
      %v557 = vadd.f32 %v431, %v508
      %v558 = vadd.f32 %v432, %v509
      %v559 = vadd.f32 %v433, %v510
      %v560 = vadd.f32 %v434, %v511
      %v561 = vadd.f32 %v435, %v512
      %v562 = vadd.f32 %v436, %v513
      %v563 = vadd.f32 %v437, %v514
      %v564 = vadd.f32 %v438, %v515
      %v565 = vadd.f32 %v439, %v516
      %v566 = vadd.f32 %v440, %v517
      %v567 = vadd.f32 %v441, %v518
      %v568 = vadd.f32 %v442, %v519
      %v569 = vadd.f32 %v443, %v520
      %v570 = vadd.f32 %v444, %v521
      %v571 = vadd.f32 %v445, %v522
      %v572 = vadd.f32 %v446, %v523
      %v573 = vadd.f32 %v447, %v524
      %v574 = vadd.f32 %v448, %v525
      %v575 = vadd.f32 %v449, %v526
      %v576 = vadd.f32 %v450, %v527
      %v577 = vadd.f32 %v451, %v528
      %v578 = vadd.f32 %v452, %v529
      %v579 = vadd.f32 %v453, %v530
      %v580 = vadd.f32 %v454, %v531
      %v581 = vadd.f32 %v455, %v532
      %v582 = vadd.f32 %v456, %v533
      %v583 = vadd.f32 %v457, %v534
      %v584 = vadd.f32 %v458, %v535
      %v585 = vadd.f32 %v459, %v536
      %v586 = vadd.f32 %v460, %v537
      %v587 = vadd.f32 %v461, %v538
      %v588 = vadd.f32 %v462, %v539
      %v589 = vadd.f32 %v463, %v540
      %v590 = vlaneseq
      %v591 = vshrl.u32 %v590, 7
      %v592 = vsub.s32 2, %v591
      %v593 = vrot.slane %v240, %v592
      %v594 = vlaneseq
      %v595 = vshrl.u32 %v594, 7
      %v596 = vsub.s32 2, %v595
      %v597 = vrot.slane %v241, %v596
      %v598 = vlaneseq
      %v599 = vshrl.u32 %v598, 7
      %v600 = vsub.s32 2, %v599
      %v601 = vrot.slane %v242, %v600
      %v602 = vlaneseq
      %v603 = vshrl.u32 %v602, 7
      %v604 = vsub.s32 2, %v603
      %v605 = vrot.slane %v243, %v604
      %v606 = vlaneseq
      %v607 = vshrl.u32 %v606, 7
      %v608 = vsub.s32 2, %v607
      %v609 = vrot.slane %v244, %v608
      %v610 = vlaneseq
      %v611 = vshrl.u32 %v610, 7
      %v612 = vsub.s32 2, %v611
      %v613 = vrot.slane %v245, %v612
      %v614 = vlaneseq
      %v615 = vshrl.u32 %v614, 7
      %v616 = vsub.s32 2, %v615
      %v617 = vrot.slane %v246, %v616
      %v618 = vmul.f32 %v275, %v593
      %v619 = vmul.f32 %v276, %v597
      %v620 = vmul.f32 %v277, %v601
      %v621 = vmul.f32 %v278, %v605
      %v622 = vmul.f32 %v279, %v609
      %v623 = vmul.f32 %v280, %v613
      %v624 = vmul.f32 %v281, %v617
      %v625 = vmul.f32 %v282, %v593
      %v626 = vmul.f32 %v283, %v597
      %v627 = vmul.f32 %v284, %v601
      %v628 = vmul.f32 %v285, %v605
      %v629 = vmul.f32 %v286, %v609
      %v630 = vmul.f32 %v287, %v613
      %v631 = vmul.f32 %v288, %v617
      %v632 = vmul.f32 %v289, %v593
      %v633 = vmul.f32 %v290, %v597
      %v634 = vmul.f32 %v291, %v601
      %v635 = vmul.f32 %v292, %v605
      %v636 = vmul.f32 %v293, %v609
      %v637 = vmul.f32 %v294, %v613
      %v638 = vmul.f32 %v295, %v617
      %v639 = vmul.f32 %v296, %v593
      %v640 = vmul.f32 %v297, %v597
      %v641 = vmul.f32 %v298, %v601
      %v642 = vmul.f32 %v299, %v605
      %v643 = vmul.f32 %v300, %v609
      %v644 = vmul.f32 %v301, %v613
      %v645 = vmul.f32 %v302, %v617
      %v646 = vmul.f32 %v303, %v593
      %v647 = vmul.f32 %v304, %v597
      %v648 = vmul.f32 %v305, %v601
      %v649 = vmul.f32 %v306, %v605
      %v650 = vmul.f32 %v307, %v609
      %v651 = vmul.f32 %v308, %v613
      %v652 = vmul.f32 %v309, %v617
      %v653 = vmul.f32 %v310, %v593
      %v654 = vmul.f32 %v311, %v597
      %v655 = vmul.f32 %v312, %v601
      %v656 = vmul.f32 %v313, %v605
      %v657 = vmul.f32 %v314, %v609
      %v658 = vmul.f32 %v315, %v613
      %v659 = vmul.f32 %v316, %v617
      %v660 = vmul.f32 %v317, %v593
      %v661 = vmul.f32 %v318, %v597
      %v662 = vmul.f32 %v319, %v601
      %v663 = vmul.f32 %v320, %v605
      %v664 = vmul.f32 %v321, %v609
      %v665 = vmul.f32 %v322, %v613
      %v666 = vmul.f32 %v323, %v617
      %v667 = vadd.f32 %v541, %v618
      %v668 = vadd.f32 %v542, %v619
      %v669 = vadd.f32 %v543, %v620
      %v670 = vadd.f32 %v544, %v621
      %v671 = vadd.f32 %v545, %v622
      %v672 = vadd.f32 %v546, %v623
      %v673 = vadd.f32 %v547, %v624
      %v674 = vadd.f32 %v548, %v625
      %v675 = vadd.f32 %v549, %v626
      %v676 = vadd.f32 %v550, %v627
      %v677 = vadd.f32 %v551, %v628
      %v678 = vadd.f32 %v552, %v629
      %v679 = vadd.f32 %v553, %v630
      %v680 = vadd.f32 %v554, %v631
      %v681 = vadd.f32 %v555, %v632
      %v682 = vadd.f32 %v556, %v633
      %v683 = vadd.f32 %v557, %v634
      %v684 = vadd.f32 %v558, %v635
      %v685 = vadd.f32 %v559, %v636
      %v686 = vadd.f32 %v560, %v637
      %v687 = vadd.f32 %v561, %v638
      %v688 = vadd.f32 %v562, %v639
      %v689 = vadd.f32 %v563, %v640
      %v690 = vadd.f32 %v564, %v641
      %v691 = vadd.f32 %v565, %v642
      %v692 = vadd.f32 %v566, %v643
      %v693 = vadd.f32 %v567, %v644
      %v694 = vadd.f32 %v568, %v645
      %v695 = vadd.f32 %v569, %v646
      %v696 = vadd.f32 %v570, %v647
      %v697 = vadd.f32 %v571, %v648
      %v698 = vadd.f32 %v572, %v649
      %v699 = vadd.f32 %v573, %v650
      %v700 = vadd.f32 %v574, %v651
      %v701 = vadd.f32 %v575, %v652
      %v702 = vadd.f32 %v576, %v653
      %v703 = vadd.f32 %v577, %v654
      %v704 = vadd.f32 %v578, %v655
      %v705 = vadd.f32 %v579, %v656
      %v706 = vadd.f32 %v580, %v657
      %v707 = vadd.f32 %v581, %v658
      %v708 = vadd.f32 %v582, %v659
      %v709 = vadd.f32 %v583, %v660
      %v710 = vadd.f32 %v584, %v661
      %v711 = vadd.f32 %v585, %v662
      %v712 = vadd.f32 %v586, %v663
      %v713 = vadd.f32 %v587, %v664
      %v714 = vadd.f32 %v588, %v665
      %v715 = vadd.f32 %v589, %v666
      %v716 = vlaneseq
      %v717 = vshrl.u32 %v716, 7
      %v718 = vsub.s32 7, %v717
      %v719 = vrot.slane %v240, %v718
      %v720 = vlaneseq
      %v721 = vshrl.u32 %v720, 7
      %v722 = vsub.s32 7, %v721
      %v723 = vrot.slane %v241, %v722
      %v724 = vlaneseq
      %v725 = vshrl.u32 %v724, 7
      %v726 = vsub.s32 7, %v725
      %v727 = vrot.slane %v242, %v726
      %v728 = vlaneseq
      %v729 = vshrl.u32 %v728, 7
      %v730 = vsub.s32 7, %v729
      %v731 = vrot.slane %v243, %v730
      %v732 = vlaneseq
      %v733 = vshrl.u32 %v732, 7
      %v734 = vsub.s32 7, %v733
      %v735 = vrot.slane %v244, %v734
      %v736 = vlaneseq
      %v737 = vshrl.u32 %v736, 7
      %v738 = vsub.s32 7, %v737
      %v739 = vrot.slane %v245, %v738
      %v740 = vlaneseq
      %v741 = vshrl.u32 %v740, 7
      %v742 = vsub.s32 7, %v741
      %v743 = vrot.slane %v246, %v742
      %v744 = vmul.f32 %v282, %v719
      %v745 = vmul.f32 %v283, %v723
      %v746 = vmul.f32 %v284, %v727
      %v747 = vmul.f32 %v285, %v731
      %v748 = vmul.f32 %v286, %v735
      %v749 = vmul.f32 %v287, %v739
      %v750 = vmul.f32 %v288, %v743
      %v751 = vmul.f32 %v289, %v719
      %v752 = vmul.f32 %v290, %v723
      %v753 = vmul.f32 %v291, %v727
      %v754 = vmul.f32 %v292, %v731
      %v755 = vmul.f32 %v293, %v735
      %v756 = vmul.f32 %v294, %v739
      %v757 = vmul.f32 %v295, %v743
      %v758 = vmul.f32 %v296, %v719
      %v759 = vmul.f32 %v297, %v723
      %v760 = vmul.f32 %v298, %v727
      %v761 = vmul.f32 %v299, %v731
      %v762 = vmul.f32 %v300, %v735
      %v763 = vmul.f32 %v301, %v739
      %v764 = vmul.f32 %v302, %v743
      %v765 = vmul.f32 %v303, %v719
      %v766 = vmul.f32 %v304, %v723
      %v767 = vmul.f32 %v305, %v727
      %v768 = vmul.f32 %v306, %v731
      %v769 = vmul.f32 %v307, %v735
      %v770 = vmul.f32 %v308, %v739
      %v771 = vmul.f32 %v309, %v743
      %v772 = vmul.f32 %v310, %v719
      %v773 = vmul.f32 %v311, %v723
      %v774 = vmul.f32 %v312, %v727
      %v775 = vmul.f32 %v313, %v731
      %v776 = vmul.f32 %v314, %v735
      %v777 = vmul.f32 %v315, %v739
      %v778 = vmul.f32 %v316, %v743
      %v779 = vmul.f32 %v317, %v719
      %v780 = vmul.f32 %v318, %v723
      %v781 = vmul.f32 %v319, %v727
      %v782 = vmul.f32 %v320, %v731
      %v783 = vmul.f32 %v321, %v735
      %v784 = vmul.f32 %v322, %v739
      %v785 = vmul.f32 %v323, %v743
      %v786 = vmul.f32 %v324, %v719
      %v787 = vmul.f32 %v325, %v723
      %v788 = vmul.f32 %v326, %v727
      %v789 = vmul.f32 %v327, %v731
      %v790 = vmul.f32 %v328, %v735
      %v791 = vmul.f32 %v329, %v739
      %v792 = vmul.f32 %v330, %v743
      %v793 = vadd.f32 %v667, %v744
      %v794 = vadd.f32 %v668, %v745
      %v795 = vadd.f32 %v669, %v746
      %v796 = vadd.f32 %v670, %v747
      %v797 = vadd.f32 %v671, %v748
      %v798 = vadd.f32 %v672, %v749
      %v799 = vadd.f32 %v673, %v750
      %v800 = vadd.f32 %v674, %v751
      %v801 = vadd.f32 %v675, %v752
      %v802 = vadd.f32 %v676, %v753
      %v803 = vadd.f32 %v677, %v754
      %v804 = vadd.f32 %v678, %v755
      %v805 = vadd.f32 %v679, %v756
      %v806 = vadd.f32 %v680, %v757
      %v807 = vadd.f32 %v681, %v758
      %v808 = vadd.f32 %v682, %v759
      %v809 = vadd.f32 %v683, %v760
      %v810 = vadd.f32 %v684, %v761
      %v811 = vadd.f32 %v685, %v762
      %v812 = vadd.f32 %v686, %v763
      %v813 = vadd.f32 %v687, %v764
      %v814 = vadd.f32 %v688, %v765
      %v815 = vadd.f32 %v689, %v766
      %v816 = vadd.f32 %v690, %v767
      %v817 = vadd.f32 %v691, %v768
      %v818 = vadd.f32 %v692, %v769
      %v819 = vadd.f32 %v693, %v770
      %v820 = vadd.f32 %v694, %v771
      %v821 = vadd.f32 %v695, %v772
      %v822 = vadd.f32 %v696, %v773
      %v823 = vadd.f32 %v697, %v774
      %v824 = vadd.f32 %v698, %v775
      %v825 = vadd.f32 %v699, %v776
      %v826 = vadd.f32 %v700, %v777
      %v827 = vadd.f32 %v701, %v778
      %v828 = vadd.f32 %v702, %v779
      %v829 = vadd.f32 %v703, %v780
      %v830 = vadd.f32 %v704, %v781
      %v831 = vadd.f32 %v705, %v782
      %v832 = vadd.f32 %v706, %v783
      %v833 = vadd.f32 %v707, %v784
      %v834 = vadd.f32 %v708, %v785
      %v835 = vadd.f32 %v709, %v786
      %v836 = vadd.f32 %v710, %v787
      %v837 = vadd.f32 %v711, %v788
      %v838 = vadd.f32 %v712, %v789
      %v839 = vadd.f32 %v713, %v790
      %v840 = vadd.f32 %v714, %v791
      %v841 = vadd.f32 %v715, %v792
      %v842 = vlaneseq
      %v843 = vshrl.u32 %v842, 7
      %v844 = vsub.s32 4, %v843
      %v845 = vrot.slane %v247, %v844
      %v846 = vlaneseq
      %v847 = vshrl.u32 %v846, 7
      %v848 = vsub.s32 4, %v847
      %v849 = vrot.slane %v248, %v848
      %v850 = vlaneseq
      %v851 = vshrl.u32 %v850, 7
      %v852 = vsub.s32 4, %v851
      %v853 = vrot.slane %v249, %v852
      %v854 = vlaneseq
      %v855 = vshrl.u32 %v854, 7
      %v856 = vsub.s32 4, %v855
      %v857 = vrot.slane %v250, %v856
      %v858 = vlaneseq
      %v859 = vshrl.u32 %v858, 7
      %v860 = vsub.s32 4, %v859
      %v861 = vrot.slane %v251, %v860
      %v862 = vlaneseq
      %v863 = vshrl.u32 %v862, 7
      %v864 = vsub.s32 4, %v863
      %v865 = vrot.slane %v252, %v864
      %v866 = vlaneseq
      %v867 = vshrl.u32 %v866, 7
      %v868 = vsub.s32 4, %v867
      %v869 = vrot.slane %v253, %v868
      %v870 = vmul.f32 %v289, %v845
      %v871 = vmul.f32 %v290, %v849
      %v872 = vmul.f32 %v291, %v853
      %v873 = vmul.f32 %v292, %v857
      %v874 = vmul.f32 %v293, %v861
      %v875 = vmul.f32 %v294, %v865
      %v876 = vmul.f32 %v295, %v869
      %v877 = vmul.f32 %v296, %v845
      %v878 = vmul.f32 %v297, %v849
      %v879 = vmul.f32 %v298, %v853
      %v880 = vmul.f32 %v299, %v857
      %v881 = vmul.f32 %v300, %v861
      %v882 = vmul.f32 %v301, %v865
      %v883 = vmul.f32 %v302, %v869
      %v884 = vmul.f32 %v303, %v845
      %v885 = vmul.f32 %v304, %v849
      %v886 = vmul.f32 %v305, %v853
      %v887 = vmul.f32 %v306, %v857
      %v888 = vmul.f32 %v307, %v861
      %v889 = vmul.f32 %v308, %v865
      %v890 = vmul.f32 %v309, %v869
      %v891 = vmul.f32 %v310, %v845
      %v892 = vmul.f32 %v311, %v849
      %v893 = vmul.f32 %v312, %v853
      %v894 = vmul.f32 %v313, %v857
      %v895 = vmul.f32 %v314, %v861
      %v896 = vmul.f32 %v315, %v865
      %v897 = vmul.f32 %v316, %v869
      %v898 = vmul.f32 %v317, %v845
      %v899 = vmul.f32 %v318, %v849
      %v900 = vmul.f32 %v319, %v853
      %v901 = vmul.f32 %v320, %v857
      %v902 = vmul.f32 %v321, %v861
      %v903 = vmul.f32 %v322, %v865
      %v904 = vmul.f32 %v323, %v869
      %v905 = vmul.f32 %v324, %v845
      %v906 = vmul.f32 %v325, %v849
      %v907 = vmul.f32 %v326, %v853
      %v908 = vmul.f32 %v327, %v857
      %v909 = vmul.f32 %v328, %v861
      %v910 = vmul.f32 %v329, %v865
      %v911 = vmul.f32 %v330, %v869
      %v912 = vmul.f32 %v331, %v845
      %v913 = vmul.f32 %v332, %v849
      %v914 = vmul.f32 %v333, %v853
      %v915 = vmul.f32 %v334, %v857
      %v916 = vmul.f32 %v335, %v861
      %v917 = vmul.f32 %v336, %v865
      %v918 = vmul.f32 %v337, %v869
      %v919 = vadd.f32 %v793, %v870
      %v920 = vadd.f32 %v794, %v871
      %v921 = vadd.f32 %v795, %v872
      %v922 = vadd.f32 %v796, %v873
      %v923 = vadd.f32 %v797, %v874
      %v924 = vadd.f32 %v798, %v875
      %v925 = vadd.f32 %v799, %v876
      %v926 = vadd.f32 %v800, %v877
      %v927 = vadd.f32 %v801, %v878
      %v928 = vadd.f32 %v802, %v879
      %v929 = vadd.f32 %v803, %v880
      %v930 = vadd.f32 %v804, %v881
      %v931 = vadd.f32 %v805, %v882
      %v932 = vadd.f32 %v806, %v883
      %v933 = vadd.f32 %v807, %v884
      %v934 = vadd.f32 %v808, %v885
      %v935 = vadd.f32 %v809, %v886
      %v936 = vadd.f32 %v810, %v887
      %v937 = vadd.f32 %v811, %v888
      %v938 = vadd.f32 %v812, %v889
      %v939 = vadd.f32 %v813, %v890
      %v940 = vadd.f32 %v814, %v891
      %v941 = vadd.f32 %v815, %v892
      %v942 = vadd.f32 %v816, %v893
      %v943 = vadd.f32 %v817, %v894
      %v944 = vadd.f32 %v818, %v895
      %v945 = vadd.f32 %v819, %v896
      %v946 = vadd.f32 %v820, %v897
      %v947 = vadd.f32 %v821, %v898
      %v948 = vadd.f32 %v822, %v899
      %v949 = vadd.f32 %v823, %v900
      %v950 = vadd.f32 %v824, %v901
      %v951 = vadd.f32 %v825, %v902
      %v952 = vadd.f32 %v826, %v903
      %v953 = vadd.f32 %v827, %v904
      %v954 = vadd.f32 %v828, %v905
      %v955 = vadd.f32 %v829, %v906
      %v956 = vadd.f32 %v830, %v907
      %v957 = vadd.f32 %v831, %v908
      %v958 = vadd.f32 %v832, %v909
      %v959 = vadd.f32 %v833, %v910
      %v960 = vadd.f32 %v834, %v911
      %v961 = vadd.f32 %v835, %v912
      %v962 = vadd.f32 %v836, %v913
      %v963 = vadd.f32 %v837, %v914
      %v964 = vadd.f32 %v838, %v915
      %v965 = vadd.f32 %v839, %v916
      %v966 = vadd.f32 %v840, %v917
      %v967 = vadd.f32 %v841, %v918
      %v968 = vld [vmem:[%s212] sm:$0xfe]
      %v969 = vld [vmem:[%s212 + $0x8] sm:$0xfe]
      %v970 = vld [vmem:[%s212 + $0x10] sm:$0xfe]
      %v971 = vld [vmem:[%s212 + $0x18] sm:$0xfe]
      %v972 = vld [vmem:[%s212 + $0x20] sm:$0xfe]
      %v973 = vld [vmem:[%s212 + $0x28] sm:$0xfe]
      %v974 = vld [vmem:[%s212 + $0x30] sm:$0xfe]
      %v975 = vld [vmem:[%s212 + $0x70] sm:$0xfe]
      %v976 = vld [vmem:[%s212 + $0x78] sm:$0xfe]
      %v977 = vld [vmem:[%s212 + $0x80] sm:$0xfe]
      %v978 = vld [vmem:[%s212 + $0x88] sm:$0xfe]
      %v979 = vld [vmem:[%s212 + $0x90] sm:$0xfe]
      %v980 = vld [vmem:[%s212 + $0x98] sm:$0xfe]
      %v981 = vld [vmem:[%s212 + $0xa0] sm:$0xfe]
      %v982 = vld [vmem:[%s212 + $0xe0] sm:$0xfe]
      %v983 = vld [vmem:[%s212 + $0xe8] sm:$0xfe]
      %v984 = vld [vmem:[%s212 + $0xf0] sm:$0xfe]
      %v985 = vld [vmem:[%s212 + $0xf8] sm:$0xfe]
      %v986 = vld [vmem:[%s212 + $0x100] sm:$0xfe]
      %v987 = vld [vmem:[%s212 + $0x108] sm:$0xfe]
      %v988 = vld [vmem:[%s212 + $0x110] sm:$0xfe]
      %v989 = vld [vmem:[%s212 + $0x150] sm:$0xfe]
      %v990 = vld [vmem:[%s212 + $0x158] sm:$0xfe]
      %v991 = vld [vmem:[%s212 + $0x160] sm:$0xfe]
      %v992 = vld [vmem:[%s212 + $0x168] sm:$0xfe]
      %v993 = vld [vmem:[%s212 + $0x170] sm:$0xfe]
      %v994 = vld [vmem:[%s212 + $0x178] sm:$0xfe]
      %v995 = vld [vmem:[%s212 + $0x180] sm:$0xfe]
      %v996 = vld [vmem:[%s212 + $0x1c0] sm:$0xfe]
      %v997 = vld [vmem:[%s212 + $0x1c8] sm:$0xfe]
      %v998 = vld [vmem:[%s212 + $0x1d0] sm:$0xfe]
      %v999 = vld [vmem:[%s212 + $0x1d8] sm:$0xfe]
      %v1000 = vld [vmem:[%s212 + $0x1e0] sm:$0xfe]
      %v1001 = vld [vmem:[%s212 + $0x1e8] sm:$0xfe]
      %v1002 = vld [vmem:[%s212 + $0x1f0] sm:$0xfe]
      %v1003 = vld [vmem:[%s212 + $0x230] sm:$0xfe]
      %v1004 = vld [vmem:[%s212 + $0x238] sm:$0xfe]
      %v1005 = vld [vmem:[%s212 + $0x240] sm:$0xfe]
      %v1006 = vld [vmem:[%s212 + $0x248] sm:$0xfe]
      %v1007 = vld [vmem:[%s212 + $0x250] sm:$0xfe]
      %v1008 = vld [vmem:[%s212 + $0x258] sm:$0xfe]
      %v1009 = vld [vmem:[%s212 + $0x260] sm:$0xfe]
      %v1010 = vld [vmem:[%s212 + $0x2a0] sm:$0xfe]
      %v1011 = vld [vmem:[%s212 + $0x2a8] sm:$0xfe]
      %v1012 = vld [vmem:[%s212 + $0x2b0] sm:$0xfe]
      %v1013 = vld [vmem:[%s212 + $0x2b8] sm:$0xfe]
      %v1014 = vld [vmem:[%s212 + $0x2c0] sm:$0xfe]
      %v1015 = vld [vmem:[%s212 + $0x2c8] sm:$0xfe]
      %v1016 = vld [vmem:[%s212 + $0x2d0] sm:$0xfe]
      %v1017 = vld [vmem:[%s212 + $0x310] sm:$0xfe]
      %v1018 = vld [vmem:[%s212 + $0x318] sm:$0xfe]
      %v1019 = vld [vmem:[%s212 + $0x320] sm:$0xfe]
      %v1020 = vld [vmem:[%s212 + $0x328] sm:$0xfe]
      %v1021 = vld [vmem:[%s212 + $0x330] sm:$0xfe]
      %v1022 = vld [vmem:[%s212 + $0x338] sm:$0xfe]
      %v1023 = vld [vmem:[%s212 + $0x340] sm:$0xfe]
      %v1024 = vld [vmem:[%s212 + $0x380] sm:$0xfe]
      %v1025 = vld [vmem:[%s212 + $0x388] sm:$0xfe]
      %v1026 = vld [vmem:[%s212 + $0x390] sm:$0xfe]
      %v1027 = vld [vmem:[%s212 + $0x398] sm:$0xfe]
      %v1028 = vld [vmem:[%s212 + $0x3a0] sm:$0xfe]
      %v1029 = vld [vmem:[%s212 + $0x3a8] sm:$0xfe]
      %v1030 = vld [vmem:[%s212 + $0x3b0] sm:$0xfe]
      %v1031 = vld [vmem:[%s212 + $0x3f0] sm:$0xfe]
      %v1032 = vld [vmem:[%s212 + $0x3f8] sm:$0xfe]
      %v1033 = vld [vmem:[%s212 + $0x400] sm:$0xfe]
      %v1034 = vld [vmem:[%s212 + $0x408] sm:$0xfe]
      %v1035 = vld [vmem:[%s212 + $0x410] sm:$0xfe]
      %v1036 = vld [vmem:[%s212 + $0x418] sm:$0xfe]
      %v1037 = vld [vmem:[%s212 + $0x420] sm:$0xfe]
      %v1038 = vld [vmem:[%s212 + $0x460] sm:$0xfe]
      %v1039 = vld [vmem:[%s212 + $0x468] sm:$0xfe]
      %v1040 = vld [vmem:[%s212 + $0x470] sm:$0xfe]
      %v1041 = vld [vmem:[%s212 + $0x478] sm:$0xfe]
      %v1042 = vld [vmem:[%s212 + $0x480] sm:$0xfe]
      %v1043 = vld [vmem:[%s212 + $0x488] sm:$0xfe]
      %v1044 = vld [vmem:[%s212 + $0x490] sm:$0xfe]
      %v1045 = vlaneseq
      %v1046 = vshrl.u32 %v1045, 7
      %v1047 = vsub.s32 1, %v1046
      %v1048 = vrot.slane %v233, %v1047
      %v1049 = vlaneseq
      %v1050 = vshrl.u32 %v1049, 7
      %v1051 = vsub.s32 1, %v1050
      %v1052 = vrot.slane %v234, %v1051
      %v1053 = vlaneseq
      %v1054 = vshrl.u32 %v1053, 7
      %v1055 = vsub.s32 1, %v1054
      %v1056 = vrot.slane %v235, %v1055
      %v1057 = vlaneseq
      %v1058 = vshrl.u32 %v1057, 7
      %v1059 = vsub.s32 1, %v1058
      %v1060 = vrot.slane %v236, %v1059
      %v1061 = vlaneseq
      %v1062 = vshrl.u32 %v1061, 7
      %v1063 = vsub.s32 1, %v1062
      %v1064 = vrot.slane %v237, %v1063
      %v1065 = vlaneseq
      %v1066 = vshrl.u32 %v1065, 7
      %v1067 = vsub.s32 1, %v1066
      %v1068 = vrot.slane %v238, %v1067
      %v1069 = vlaneseq
      %v1070 = vshrl.u32 %v1069, 7
      %v1071 = vsub.s32 1, %v1070
      %v1072 = vrot.slane %v239, %v1071
      %v1073 = vmul.f32 %v968, %v1048
      %v1074 = vmul.f32 %v969, %v1052
      %v1075 = vmul.f32 %v970, %v1056
      %v1076 = vmul.f32 %v971, %v1060
      %v1077 = vmul.f32 %v972, %v1064
      %v1078 = vmul.f32 %v973, %v1068
      %v1079 = vmul.f32 %v974, %v1072
      %v1080 = vmul.f32 %v975, %v1048
      %v1081 = vmul.f32 %v976, %v1052
      %v1082 = vmul.f32 %v977, %v1056
      %v1083 = vmul.f32 %v978, %v1060
      %v1084 = vmul.f32 %v979, %v1064
      %v1085 = vmul.f32 %v980, %v1068
      %v1086 = vmul.f32 %v981, %v1072
      %v1087 = vmul.f32 %v982, %v1048
      %v1088 = vmul.f32 %v983, %v1052
      %v1089 = vmul.f32 %v984, %v1056
      %v1090 = vmul.f32 %v985, %v1060
      %v1091 = vmul.f32 %v986, %v1064
      %v1092 = vmul.f32 %v987, %v1068
      %v1093 = vmul.f32 %v988, %v1072
      %v1094 = vmul.f32 %v989, %v1048
      %v1095 = vmul.f32 %v990, %v1052
      %v1096 = vmul.f32 %v991, %v1056
      %v1097 = vmul.f32 %v992, %v1060
      %v1098 = vmul.f32 %v993, %v1064
      %v1099 = vmul.f32 %v994, %v1068
      %v1100 = vmul.f32 %v995, %v1072
      %v1101 = vmul.f32 %v996, %v1048
      %v1102 = vmul.f32 %v997, %v1052
      %v1103 = vmul.f32 %v998, %v1056
      %v1104 = vmul.f32 %v999, %v1060
      %v1105 = vmul.f32 %v1000, %v1064
      %v1106 = vmul.f32 %v1001, %v1068
      %v1107 = vmul.f32 %v1002, %v1072
      %v1108 = vmul.f32 %v1003, %v1048
      %v1109 = vmul.f32 %v1004, %v1052
      %v1110 = vmul.f32 %v1005, %v1056
      %v1111 = vmul.f32 %v1006, %v1060
      %v1112 = vmul.f32 %v1007, %v1064
      %v1113 = vmul.f32 %v1008, %v1068
      %v1114 = vmul.f32 %v1009, %v1072
      %v1115 = vmul.f32 %v1010, %v1048
      %v1116 = vmul.f32 %v1011, %v1052
      %v1117 = vmul.f32 %v1012, %v1056
      %v1118 = vmul.f32 %v1013, %v1060
      %v1119 = vmul.f32 %v1014, %v1064
      %v1120 = vmul.f32 %v1015, %v1068
      %v1121 = vmul.f32 %v1016, %v1072
      %v1171 = vrot.slane %v1073, 1
      %v1172 = vrot.slane %v1074, 1
      %v1173 = vrot.slane %v1075, 1
      %v1174 = vrot.slane %v1076, 1
      %v1175 = vrot.slane %v1077, 1
      %v1176 = vrot.slane %v1078, 1
      %v1177 = vrot.slane %v1079, 1
      %v1178 = vrot.slane %v1080, 1
      %v1179 = vrot.slane %v1081, 1
      %v1180 = vrot.slane %v1082, 1
      %v1181 = vrot.slane %v1083, 1
      %v1182 = vrot.slane %v1084, 1
      %v1183 = vrot.slane %v1085, 1
      %v1184 = vrot.slane %v1086, 1
      %v1185 = vrot.slane %v1087, 1
      %v1186 = vrot.slane %v1088, 1
      %v1187 = vrot.slane %v1089, 1
      %v1188 = vrot.slane %v1090, 1
      %v1189 = vrot.slane %v1091, 1
      %v1190 = vrot.slane %v1092, 1
      %v1191 = vrot.slane %v1093, 1
      %v1192 = vrot.slane %v1094, 1
      %v1193 = vrot.slane %v1095, 1
      %v1194 = vrot.slane %v1096, 1
      %v1195 = vrot.slane %v1097, 1
      %v1196 = vrot.slane %v1098, 1
      %v1197 = vrot.slane %v1099, 1
      %v1198 = vrot.slane %v1100, 1
      %v1199 = vrot.slane %v1101, 1
      %v1200 = vrot.slane %v1102, 1
      %v1201 = vrot.slane %v1103, 1
      %v1202 = vrot.slane %v1104, 1
      %v1203 = vrot.slane %v1105, 1
      %v1204 = vrot.slane %v1106, 1
      %v1205 = vrot.slane %v1107, 1
      %v1206 = vrot.slane %v1108, 1
      %v1207 = vrot.slane %v1109, 1
      %v1208 = vrot.slane %v1110, 1
      %v1209 = vrot.slane %v1111, 1
      %v1210 = vrot.slane %v1112, 1
      %v1211 = vrot.slane %v1113, 1
      %v1212 = vrot.slane %v1114, 1
      %v1213 = vrot.slane %v1115, 1
      %v1214 = vrot.slane %v1116, 1
      %v1215 = vrot.slane %v1117, 1
      %v1216 = vrot.slane %v1118, 1
      %v1217 = vrot.slane %v1119, 1
      %v1218 = vrot.slane %v1120, 1
      %v1219 = vrot.slane %v1121, 1
      %v1269 = vadd.f32 %v919, %v1171
      %v1270 = vadd.f32 %v920, %v1172
      %v1271 = vadd.f32 %v921, %v1173
      %v1272 = vadd.f32 %v922, %v1174
      %v1273 = vadd.f32 %v923, %v1175
      %v1274 = vadd.f32 %v924, %v1176
      %v1275 = vadd.f32 %v925, %v1177
      %v1276 = vadd.f32 %v926, %v1178
      %v1277 = vadd.f32 %v927, %v1179
      %v1278 = vadd.f32 %v928, %v1180
      %v1279 = vadd.f32 %v929, %v1181
      %v1280 = vadd.f32 %v930, %v1182
      %v1281 = vadd.f32 %v931, %v1183
      %v1282 = vadd.f32 %v932, %v1184
      %v1283 = vadd.f32 %v933, %v1185
      %v1284 = vadd.f32 %v934, %v1186
      %v1285 = vadd.f32 %v935, %v1187
      %v1286 = vadd.f32 %v936, %v1188
      %v1287 = vadd.f32 %v937, %v1189
      %v1288 = vadd.f32 %v938, %v1190
      %v1289 = vadd.f32 %v939, %v1191
      %v1290 = vadd.f32 %v940, %v1192
      %v1291 = vadd.f32 %v941, %v1193
      %v1292 = vadd.f32 %v942, %v1194
      %v1293 = vadd.f32 %v943, %v1195
      %v1294 = vadd.f32 %v944, %v1196
      %v1295 = vadd.f32 %v945, %v1197
      %v1296 = vadd.f32 %v946, %v1198
      %v1297 = vadd.f32 %v947, %v1199
      %v1298 = vadd.f32 %v948, %v1200
      %v1299 = vadd.f32 %v949, %v1201
      %v1300 = vadd.f32 %v950, %v1202
      %v1301 = vadd.f32 %v951, %v1203
      %v1302 = vadd.f32 %v952, %v1204
      %v1303 = vadd.f32 %v953, %v1205
      %v1304 = vadd.f32 %v954, %v1206
      %v1305 = vadd.f32 %v955, %v1207
      %v1306 = vadd.f32 %v956, %v1208
      %v1307 = vadd.f32 %v957, %v1209
      %v1308 = vadd.f32 %v958, %v1210
      %v1309 = vadd.f32 %v959, %v1211
      %v1310 = vadd.f32 %v960, %v1212
      %v1311 = vadd.f32 %v961, %v1213
      %v1312 = vadd.f32 %v962, %v1214
      %v1313 = vadd.f32 %v963, %v1215
      %v1314 = vadd.f32 %v964, %v1216
      %v1315 = vadd.f32 %v965, %v1217
      %v1316 = vadd.f32 %v966, %v1218
      %v1317 = vadd.f32 %v967, %v1219
      %v1318 = vlaneseq
      %v1319 = vshrl.u32 %v1318, 7
      %v1320 = vsub.s32 6, %v1319
      %v1321 = vrot.slane %v233, %v1320
      %v1322 = vlaneseq
      %v1323 = vshrl.u32 %v1322, 7
      %v1324 = vsub.s32 6, %v1323
      %v1325 = vrot.slane %v234, %v1324
      %v1326 = vlaneseq
      %v1327 = vshrl.u32 %v1326, 7
      %v1328 = vsub.s32 6, %v1327
      %v1329 = vrot.slane %v235, %v1328
      %v1330 = vlaneseq
      %v1331 = vshrl.u32 %v1330, 7
      %v1332 = vsub.s32 6, %v1331
      %v1333 = vrot.slane %v236, %v1332
      %v1334 = vlaneseq
      %v1335 = vshrl.u32 %v1334, 7
      %v1336 = vsub.s32 6, %v1335
      %v1337 = vrot.slane %v237, %v1336
      %v1338 = vlaneseq
      %v1339 = vshrl.u32 %v1338, 7
      %v1340 = vsub.s32 6, %v1339
      %v1341 = vrot.slane %v238, %v1340
      %v1342 = vlaneseq
      %v1343 = vshrl.u32 %v1342, 7
      %v1344 = vsub.s32 6, %v1343
      %v1345 = vrot.slane %v239, %v1344
      %v1346 = vmul.f32 %v975, %v1321
      %v1347 = vmul.f32 %v976, %v1325
      %v1348 = vmul.f32 %v977, %v1329
      %v1349 = vmul.f32 %v978, %v1333
      %v1350 = vmul.f32 %v979, %v1337
      %v1351 = vmul.f32 %v980, %v1341
      %v1352 = vmul.f32 %v981, %v1345
      %v1353 = vmul.f32 %v982, %v1321
      %v1354 = vmul.f32 %v983, %v1325
      %v1355 = vmul.f32 %v984, %v1329
      %v1356 = vmul.f32 %v985, %v1333
      %v1357 = vmul.f32 %v986, %v1337
      %v1358 = vmul.f32 %v987, %v1341
      %v1359 = vmul.f32 %v988, %v1345
      %v1360 = vmul.f32 %v989, %v1321
      %v1361 = vmul.f32 %v990, %v1325
      %v1362 = vmul.f32 %v991, %v1329
      %v1363 = vmul.f32 %v992, %v1333
      %v1364 = vmul.f32 %v993, %v1337
      %v1365 = vmul.f32 %v994, %v1341
      %v1366 = vmul.f32 %v995, %v1345
      %v1367 = vmul.f32 %v996, %v1321
      %v1368 = vmul.f32 %v997, %v1325
      %v1369 = vmul.f32 %v998, %v1329
      %v1370 = vmul.f32 %v999, %v1333
      %v1371 = vmul.f32 %v1000, %v1337
      %v1372 = vmul.f32 %v1001, %v1341
      %v1373 = vmul.f32 %v1002, %v1345
      %v1374 = vmul.f32 %v1003, %v1321
      %v1375 = vmul.f32 %v1004, %v1325
      %v1376 = vmul.f32 %v1005, %v1329
      %v1377 = vmul.f32 %v1006, %v1333
      %v1378 = vmul.f32 %v1007, %v1337
      %v1379 = vmul.f32 %v1008, %v1341
      %v1380 = vmul.f32 %v1009, %v1345
      %v1381 = vmul.f32 %v1010, %v1321
      %v1382 = vmul.f32 %v1011, %v1325
      %v1383 = vmul.f32 %v1012, %v1329
      %v1384 = vmul.f32 %v1013, %v1333
      %v1385 = vmul.f32 %v1014, %v1337
      %v1386 = vmul.f32 %v1015, %v1341
      %v1387 = vmul.f32 %v1016, %v1345
      %v1388 = vmul.f32 %v1017, %v1321
      %v1389 = vmul.f32 %v1018, %v1325
      %v1390 = vmul.f32 %v1019, %v1329
      %v1391 = vmul.f32 %v1020, %v1333
      %v1392 = vmul.f32 %v1021, %v1337
      %v1393 = vmul.f32 %v1022, %v1341
      %v1394 = vmul.f32 %v1023, %v1345
      %v1444 = vrot.slane %v1346, 1
      %v1445 = vrot.slane %v1347, 1
      %v1446 = vrot.slane %v1348, 1
      %v1447 = vrot.slane %v1349, 1
      %v1448 = vrot.slane %v1350, 1
      %v1449 = vrot.slane %v1351, 1
      %v1450 = vrot.slane %v1352, 1
      %v1451 = vrot.slane %v1353, 1
      %v1452 = vrot.slane %v1354, 1
      %v1453 = vrot.slane %v1355, 1
      %v1454 = vrot.slane %v1356, 1
      %v1455 = vrot.slane %v1357, 1
      %v1456 = vrot.slane %v1358, 1
      %v1457 = vrot.slane %v1359, 1
      %v1458 = vrot.slane %v1360, 1
      %v1459 = vrot.slane %v1361, 1
      %v1460 = vrot.slane %v1362, 1
      %v1461 = vrot.slane %v1363, 1
      %v1462 = vrot.slane %v1364, 1
      %v1463 = vrot.slane %v1365, 1
      %v1464 = vrot.slane %v1366, 1
      %v1465 = vrot.slane %v1367, 1
      %v1466 = vrot.slane %v1368, 1
      %v1467 = vrot.slane %v1369, 1
      %v1468 = vrot.slane %v1370, 1
      %v1469 = vrot.slane %v1371, 1
      %v1470 = vrot.slane %v1372, 1
      %v1471 = vrot.slane %v1373, 1
      %v1472 = vrot.slane %v1374, 1
      %v1473 = vrot.slane %v1375, 1
      %v1474 = vrot.slane %v1376, 1
      %v1475 = vrot.slane %v1377, 1
      %v1476 = vrot.slane %v1378, 1
      %v1477 = vrot.slane %v1379, 1
      %v1478 = vrot.slane %v1380, 1
      %v1479 = vrot.slane %v1381, 1
      %v1480 = vrot.slane %v1382, 1
      %v1481 = vrot.slane %v1383, 1
      %v1482 = vrot.slane %v1384, 1
      %v1483 = vrot.slane %v1385, 1
      %v1484 = vrot.slane %v1386, 1
      %v1485 = vrot.slane %v1387, 1
      %v1486 = vrot.slane %v1388, 1
      %v1487 = vrot.slane %v1389, 1
      %v1488 = vrot.slane %v1390, 1
      %v1489 = vrot.slane %v1391, 1
      %v1490 = vrot.slane %v1392, 1
      %v1491 = vrot.slane %v1393, 1
      %v1492 = vrot.slane %v1394, 1
      %v1542 = vadd.f32 %v1269, %v1444
      %v1543 = vadd.f32 %v1270, %v1445
      %v1544 = vadd.f32 %v1271, %v1446
      %v1545 = vadd.f32 %v1272, %v1447
      %v1546 = vadd.f32 %v1273, %v1448
      %v1547 = vadd.f32 %v1274, %v1449
      %v1548 = vadd.f32 %v1275, %v1450
      %v1549 = vadd.f32 %v1276, %v1451
      %v1550 = vadd.f32 %v1277, %v1452
      %v1551 = vadd.f32 %v1278, %v1453
      %v1552 = vadd.f32 %v1279, %v1454
      %v1553 = vadd.f32 %v1280, %v1455
      %v1554 = vadd.f32 %v1281, %v1456
      %v1555 = vadd.f32 %v1282, %v1457
      %v1556 = vadd.f32 %v1283, %v1458
      %v1557 = vadd.f32 %v1284, %v1459
      %v1558 = vadd.f32 %v1285, %v1460
      %v1559 = vadd.f32 %v1286, %v1461
      %v1560 = vadd.f32 %v1287, %v1462
      %v1561 = vadd.f32 %v1288, %v1463
      %v1562 = vadd.f32 %v1289, %v1464
      %v1563 = vadd.f32 %v1290, %v1465
      %v1564 = vadd.f32 %v1291, %v1466
      %v1565 = vadd.f32 %v1292, %v1467
      %v1566 = vadd.f32 %v1293, %v1468
      %v1567 = vadd.f32 %v1294, %v1469
      %v1568 = vadd.f32 %v1295, %v1470
      %v1569 = vadd.f32 %v1296, %v1471
      %v1570 = vadd.f32 %v1297, %v1472
      %v1571 = vadd.f32 %v1298, %v1473
      %v1572 = vadd.f32 %v1299, %v1474
      %v1573 = vadd.f32 %v1300, %v1475
      %v1574 = vadd.f32 %v1301, %v1476
      %v1575 = vadd.f32 %v1302, %v1477
      %v1576 = vadd.f32 %v1303, %v1478
      %v1577 = vadd.f32 %v1304, %v1479
      %v1578 = vadd.f32 %v1305, %v1480
      %v1579 = vadd.f32 %v1306, %v1481
      %v1580 = vadd.f32 %v1307, %v1482
      %v1581 = vadd.f32 %v1308, %v1483
      %v1582 = vadd.f32 %v1309, %v1484
      %v1583 = vadd.f32 %v1310, %v1485
      %v1584 = vadd.f32 %v1311, %v1486
      %v1585 = vadd.f32 %v1312, %v1487
      %v1586 = vadd.f32 %v1313, %v1488
      %v1587 = vadd.f32 %v1314, %v1489
      %v1588 = vadd.f32 %v1315, %v1490
      %v1589 = vadd.f32 %v1316, %v1491
      %v1590 = vadd.f32 %v1317, %v1492
      %v1591 = vlaneseq
      %v1592 = vshrl.u32 %v1591, 7
      %v1593 = vsub.s32 3, %v1592
      %v1594 = vrot.slane %v240, %v1593
      %v1595 = vlaneseq
      %v1596 = vshrl.u32 %v1595, 7
      %v1597 = vsub.s32 3, %v1596
      %v1598 = vrot.slane %v241, %v1597
      %v1599 = vlaneseq
      %v1600 = vshrl.u32 %v1599, 7
      %v1601 = vsub.s32 3, %v1600
      %v1602 = vrot.slane %v242, %v1601
      %v1603 = vlaneseq
      %v1604 = vshrl.u32 %v1603, 7
      %v1605 = vsub.s32 3, %v1604
      %v1606 = vrot.slane %v243, %v1605
      %v1607 = vlaneseq
      %v1608 = vshrl.u32 %v1607, 7
      %v1609 = vsub.s32 3, %v1608
      %v1610 = vrot.slane %v244, %v1609
      %v1611 = vlaneseq
      %v1612 = vshrl.u32 %v1611, 7
      %v1613 = vsub.s32 3, %v1612
      %v1614 = vrot.slane %v245, %v1613
      %v1615 = vlaneseq
      %v1616 = vshrl.u32 %v1615, 7
      %v1617 = vsub.s32 3, %v1616
      %v1618 = vrot.slane %v246, %v1617
      %v1619 = vmul.f32 %v982, %v1594
      %v1620 = vmul.f32 %v983, %v1598
      %v1621 = vmul.f32 %v984, %v1602
      %v1622 = vmul.f32 %v985, %v1606
      %v1623 = vmul.f32 %v986, %v1610
      %v1624 = vmul.f32 %v987, %v1614
      %v1625 = vmul.f32 %v988, %v1618
      %v1626 = vmul.f32 %v989, %v1594
      %v1627 = vmul.f32 %v990, %v1598
      %v1628 = vmul.f32 %v991, %v1602
      %v1629 = vmul.f32 %v992, %v1606
      %v1630 = vmul.f32 %v993, %v1610
      %v1631 = vmul.f32 %v994, %v1614
      %v1632 = vmul.f32 %v995, %v1618
      %v1633 = vmul.f32 %v996, %v1594
      %v1634 = vmul.f32 %v997, %v1598
      %v1635 = vmul.f32 %v998, %v1602
      %v1636 = vmul.f32 %v999, %v1606
      %v1637 = vmul.f32 %v1000, %v1610
      %v1638 = vmul.f32 %v1001, %v1614
      %v1639 = vmul.f32 %v1002, %v1618
      %v1640 = vmul.f32 %v1003, %v1594
      %v1641 = vmul.f32 %v1004, %v1598
      %v1642 = vmul.f32 %v1005, %v1602
      %v1643 = vmul.f32 %v1006, %v1606
      %v1644 = vmul.f32 %v1007, %v1610
      %v1645 = vmul.f32 %v1008, %v1614
      %v1646 = vmul.f32 %v1009, %v1618
      %v1647 = vmul.f32 %v1010, %v1594
      %v1648 = vmul.f32 %v1011, %v1598
      %v1649 = vmul.f32 %v1012, %v1602
      %v1650 = vmul.f32 %v1013, %v1606
      %v1651 = vmul.f32 %v1014, %v1610
      %v1652 = vmul.f32 %v1015, %v1614
      %v1653 = vmul.f32 %v1016, %v1618
      %v1654 = vmul.f32 %v1017, %v1594
      %v1655 = vmul.f32 %v1018, %v1598
      %v1656 = vmul.f32 %v1019, %v1602
      %v1657 = vmul.f32 %v1020, %v1606
      %v1658 = vmul.f32 %v1021, %v1610
      %v1659 = vmul.f32 %v1022, %v1614
      %v1660 = vmul.f32 %v1023, %v1618
      %v1661 = vmul.f32 %v1024, %v1594
      %v1662 = vmul.f32 %v1025, %v1598
      %v1663 = vmul.f32 %v1026, %v1602
      %v1664 = vmul.f32 %v1027, %v1606
      %v1665 = vmul.f32 %v1028, %v1610
      %v1666 = vmul.f32 %v1029, %v1614
      %v1667 = vmul.f32 %v1030, %v1618
      %v1717 = vrot.slane %v1619, 1
      %v1718 = vrot.slane %v1620, 1
      %v1719 = vrot.slane %v1621, 1
      %v1720 = vrot.slane %v1622, 1
      %v1721 = vrot.slane %v1623, 1
      %v1722 = vrot.slane %v1624, 1
      %v1723 = vrot.slane %v1625, 1
      %v1724 = vrot.slane %v1626, 1
      %v1725 = vrot.slane %v1627, 1
      %v1726 = vrot.slane %v1628, 1
      %v1727 = vrot.slane %v1629, 1
      %v1728 = vrot.slane %v1630, 1
      %v1729 = vrot.slane %v1631, 1
      %v1730 = vrot.slane %v1632, 1
      %v1731 = vrot.slane %v1633, 1
      %v1732 = vrot.slane %v1634, 1
      %v1733 = vrot.slane %v1635, 1
      %v1734 = vrot.slane %v1636, 1
      %v1735 = vrot.slane %v1637, 1
      %v1736 = vrot.slane %v1638, 1
      %v1737 = vrot.slane %v1639, 1
      %v1738 = vrot.slane %v1640, 1
      %v1739 = vrot.slane %v1641, 1
      %v1740 = vrot.slane %v1642, 1
      %v1741 = vrot.slane %v1643, 1
      %v1742 = vrot.slane %v1644, 1
      %v1743 = vrot.slane %v1645, 1
      %v1744 = vrot.slane %v1646, 1
      %v1745 = vrot.slane %v1647, 1
      %v1746 = vrot.slane %v1648, 1
      %v1747 = vrot.slane %v1649, 1
      %v1748 = vrot.slane %v1650, 1
      %v1749 = vrot.slane %v1651, 1
      %v1750 = vrot.slane %v1652, 1
      %v1751 = vrot.slane %v1653, 1
      %v1752 = vrot.slane %v1654, 1
      %v1753 = vrot.slane %v1655, 1
      %v1754 = vrot.slane %v1656, 1
      %v1755 = vrot.slane %v1657, 1
      %v1756 = vrot.slane %v1658, 1
      %v1757 = vrot.slane %v1659, 1
      %v1758 = vrot.slane %v1660, 1
      %v1759 = vrot.slane %v1661, 1
      %v1760 = vrot.slane %v1662, 1
      %v1761 = vrot.slane %v1663, 1
      %v1762 = vrot.slane %v1664, 1
      %v1763 = vrot.slane %v1665, 1
      %v1764 = vrot.slane %v1666, 1
      %v1765 = vrot.slane %v1667, 1
      %v1815 = vadd.f32 %v1542, %v1717
      %v1816 = vadd.f32 %v1543, %v1718
      %v1817 = vadd.f32 %v1544, %v1719
      %v1818 = vadd.f32 %v1545, %v1720
      %v1819 = vadd.f32 %v1546, %v1721
      %v1820 = vadd.f32 %v1547, %v1722
      %v1821 = vadd.f32 %v1548, %v1723
      %v1822 = vadd.f32 %v1549, %v1724
      %v1823 = vadd.f32 %v1550, %v1725
      %v1824 = vadd.f32 %v1551, %v1726
      %v1825 = vadd.f32 %v1552, %v1727
      %v1826 = vadd.f32 %v1553, %v1728
      %v1827 = vadd.f32 %v1554, %v1729
      %v1828 = vadd.f32 %v1555, %v1730
      %v1829 = vadd.f32 %v1556, %v1731
      %v1830 = vadd.f32 %v1557, %v1732
      %v1831 = vadd.f32 %v1558, %v1733
      %v1832 = vadd.f32 %v1559, %v1734
      %v1833 = vadd.f32 %v1560, %v1735
      %v1834 = vadd.f32 %v1561, %v1736
      %v1835 = vadd.f32 %v1562, %v1737
      %v1836 = vadd.f32 %v1563, %v1738
      %v1837 = vadd.f32 %v1564, %v1739
      %v1838 = vadd.f32 %v1565, %v1740
      %v1839 = vadd.f32 %v1566, %v1741
      %v1840 = vadd.f32 %v1567, %v1742
      %v1841 = vadd.f32 %v1568, %v1743
      %v1842 = vadd.f32 %v1569, %v1744
      %v1843 = vadd.f32 %v1570, %v1745
      %v1844 = vadd.f32 %v1571, %v1746
      %v1845 = vadd.f32 %v1572, %v1747
      %v1846 = vadd.f32 %v1573, %v1748
      %v1847 = vadd.f32 %v1574, %v1749
      %v1848 = vadd.f32 %v1575, %v1750
      %v1849 = vadd.f32 %v1576, %v1751
      %v1850 = vadd.f32 %v1577, %v1752
      %v1851 = vadd.f32 %v1578, %v1753
      %v1852 = vadd.f32 %v1579, %v1754
      %v1853 = vadd.f32 %v1580, %v1755
      %v1854 = vadd.f32 %v1581, %v1756
      %v1855 = vadd.f32 %v1582, %v1757
      %v1856 = vadd.f32 %v1583, %v1758
      %v1857 = vadd.f32 %v1584, %v1759
      %v1858 = vadd.f32 %v1585, %v1760
      %v1859 = vadd.f32 %v1586, %v1761
      %v1860 = vadd.f32 %v1587, %v1762
      %v1861 = vadd.f32 %v1588, %v1763
      %v1862 = vadd.f32 %v1589, %v1764
      %v1863 = vadd.f32 %v1590, %v1765
      %v1864 = vlaneseq
      %v1865 = vshrl.u32 %v1864, 7
      %v1866 = vsub.s32 0, %v1865
      %v1867 = vrot.slane %v247, %v1866
      %v1868 = vlaneseq
      %v1869 = vshrl.u32 %v1868, 7
      %v1870 = vsub.s32 0, %v1869
      %v1871 = vrot.slane %v248, %v1870
      %v1872 = vlaneseq
      %v1873 = vshrl.u32 %v1872, 7
      %v1874 = vsub.s32 0, %v1873
      %v1875 = vrot.slane %v249, %v1874
      %v1876 = vlaneseq
      %v1877 = vshrl.u32 %v1876, 7
      %v1878 = vsub.s32 0, %v1877
      %v1879 = vrot.slane %v250, %v1878
      %v1880 = vlaneseq
      %v1881 = vshrl.u32 %v1880, 7
      %v1882 = vsub.s32 0, %v1881
      %v1883 = vrot.slane %v251, %v1882
      %v1884 = vlaneseq
      %v1885 = vshrl.u32 %v1884, 7
      %v1886 = vsub.s32 0, %v1885
      %v1887 = vrot.slane %v252, %v1886
      %v1888 = vlaneseq
      %v1889 = vshrl.u32 %v1888, 7
      %v1890 = vsub.s32 0, %v1889
      %v1891 = vrot.slane %v253, %v1890
      %v1892 = vmul.f32 %v989, %v1867
      %v1893 = vmul.f32 %v990, %v1871
      %v1894 = vmul.f32 %v991, %v1875
      %v1895 = vmul.f32 %v992, %v1879
      %v1896 = vmul.f32 %v993, %v1883
      %v1897 = vmul.f32 %v994, %v1887
      %v1898 = vmul.f32 %v995, %v1891
      %v1899 = vmul.f32 %v996, %v1867
      %v1900 = vmul.f32 %v997, %v1871
      %v1901 = vmul.f32 %v998, %v1875
      %v1902 = vmul.f32 %v999, %v1879
      %v1903 = vmul.f32 %v1000, %v1883
      %v1904 = vmul.f32 %v1001, %v1887
      %v1905 = vmul.f32 %v1002, %v1891
      %v1906 = vmul.f32 %v1003, %v1867
      %v1907 = vmul.f32 %v1004, %v1871
      %v1908 = vmul.f32 %v1005, %v1875
      %v1909 = vmul.f32 %v1006, %v1879
      %v1910 = vmul.f32 %v1007, %v1883
      %v1911 = vmul.f32 %v1008, %v1887
      %v1912 = vmul.f32 %v1009, %v1891
      %v1913 = vmul.f32 %v1010, %v1867
      %v1914 = vmul.f32 %v1011, %v1871
      %v1915 = vmul.f32 %v1012, %v1875
      %v1916 = vmul.f32 %v1013, %v1879
      %v1917 = vmul.f32 %v1014, %v1883
      %v1918 = vmul.f32 %v1015, %v1887
      %v1919 = vmul.f32 %v1016, %v1891
      %v1920 = vmul.f32 %v1017, %v1867
      %v1921 = vmul.f32 %v1018, %v1871
      %v1922 = vmul.f32 %v1019, %v1875
      %v1923 = vmul.f32 %v1020, %v1879
      %v1924 = vmul.f32 %v1021, %v1883
      %v1925 = vmul.f32 %v1022, %v1887
      %v1926 = vmul.f32 %v1023, %v1891
      %v1927 = vmul.f32 %v1024, %v1867
      %v1928 = vmul.f32 %v1025, %v1871
      %v1929 = vmul.f32 %v1026, %v1875
      %v1930 = vmul.f32 %v1027, %v1879
      %v1931 = vmul.f32 %v1028, %v1883
      %v1932 = vmul.f32 %v1029, %v1887
      %v1933 = vmul.f32 %v1030, %v1891
      %v1934 = vmul.f32 %v1031, %v1867
      %v1935 = vmul.f32 %v1032, %v1871
      %v1936 = vmul.f32 %v1033, %v1875
      %v1937 = vmul.f32 %v1034, %v1879
      %v1938 = vmul.f32 %v1035, %v1883
      %v1939 = vmul.f32 %v1036, %v1887
      %v1940 = vmul.f32 %v1037, %v1891
      %v1990 = vrot.slane %v1892, 1
      %v1991 = vrot.slane %v1893, 1
      %v1992 = vrot.slane %v1894, 1
      %v1993 = vrot.slane %v1895, 1
      %v1994 = vrot.slane %v1896, 1
      %v1995 = vrot.slane %v1897, 1
      %v1996 = vrot.slane %v1898, 1
      %v1997 = vrot.slane %v1899, 1
      %v1998 = vrot.slane %v1900, 1
      %v1999 = vrot.slane %v1901, 1
      %v2000 = vrot.slane %v1902, 1
      %v2001 = vrot.slane %v1903, 1
      %v2002 = vrot.slane %v1904, 1
      %v2003 = vrot.slane %v1905, 1
      %v2004 = vrot.slane %v1906, 1
      %v2005 = vrot.slane %v1907, 1
      %v2006 = vrot.slane %v1908, 1
      %v2007 = vrot.slane %v1909, 1
      %v2008 = vrot.slane %v1910, 1
      %v2009 = vrot.slane %v1911, 1
      %v2010 = vrot.slane %v1912, 1
      %v2011 = vrot.slane %v1913, 1
      %v2012 = vrot.slane %v1914, 1
      %v2013 = vrot.slane %v1915, 1
      %v2014 = vrot.slane %v1916, 1
      %v2015 = vrot.slane %v1917, 1
      %v2016 = vrot.slane %v1918, 1
      %v2017 = vrot.slane %v1919, 1
      %v2018 = vrot.slane %v1920, 1
      %v2019 = vrot.slane %v1921, 1
      %v2020 = vrot.slane %v1922, 1
      %v2021 = vrot.slane %v1923, 1
      %v2022 = vrot.slane %v1924, 1
      %v2023 = vrot.slane %v1925, 1
      %v2024 = vrot.slane %v1926, 1
      %v2025 = vrot.slane %v1927, 1
      %v2026 = vrot.slane %v1928, 1
      %v2027 = vrot.slane %v1929, 1
      %v2028 = vrot.slane %v1930, 1
      %v2029 = vrot.slane %v1931, 1
      %v2030 = vrot.slane %v1932, 1
      %v2031 = vrot.slane %v1933, 1
      %v2032 = vrot.slane %v1934, 1
      %v2033 = vrot.slane %v1935, 1
      %v2034 = vrot.slane %v1936, 1
      %v2035 = vrot.slane %v1937, 1
      %v2036 = vrot.slane %v1938, 1
      %v2037 = vrot.slane %v1939, 1
      %v2038 = vrot.slane %v1940, 1
      %v2088 = vadd.f32 %v1815, %v1990
      %v2089 = vadd.f32 %v1816, %v1991
      %v2090 = vadd.f32 %v1817, %v1992
      %v2091 = vadd.f32 %v1818, %v1993
      %v2092 = vadd.f32 %v1819, %v1994
      %v2093 = vadd.f32 %v1820, %v1995
      %v2094 = vadd.f32 %v1821, %v1996
      %v2095 = vadd.f32 %v1822, %v1997
      %v2096 = vadd.f32 %v1823, %v1998
      %v2097 = vadd.f32 %v1824, %v1999
      %v2098 = vadd.f32 %v1825, %v2000
      %v2099 = vadd.f32 %v1826, %v2001
      %v2100 = vadd.f32 %v1827, %v2002
      %v2101 = vadd.f32 %v1828, %v2003
      %v2102 = vadd.f32 %v1829, %v2004
      %v2103 = vadd.f32 %v1830, %v2005
      %v2104 = vadd.f32 %v1831, %v2006
      %v2105 = vadd.f32 %v1832, %v2007
      %v2106 = vadd.f32 %v1833, %v2008
      %v2107 = vadd.f32 %v1834, %v2009
      %v2108 = vadd.f32 %v1835, %v2010
      %v2109 = vadd.f32 %v1836, %v2011
      %v2110 = vadd.f32 %v1837, %v2012
      %v2111 = vadd.f32 %v1838, %v2013
      %v2112 = vadd.f32 %v1839, %v2014
      %v2113 = vadd.f32 %v1840, %v2015
      %v2114 = vadd.f32 %v1841, %v2016
      %v2115 = vadd.f32 %v1842, %v2017
      %v2116 = vadd.f32 %v1843, %v2018
      %v2117 = vadd.f32 %v1844, %v2019
      %v2118 = vadd.f32 %v1845, %v2020
      %v2119 = vadd.f32 %v1846, %v2021
      %v2120 = vadd.f32 %v1847, %v2022
      %v2121 = vadd.f32 %v1848, %v2023
      %v2122 = vadd.f32 %v1849, %v2024
      %v2123 = vadd.f32 %v1850, %v2025
      %v2124 = vadd.f32 %v1851, %v2026
      %v2125 = vadd.f32 %v1852, %v2027
      %v2126 = vadd.f32 %v1853, %v2028
      %v2127 = vadd.f32 %v1854, %v2029
      %v2128 = vadd.f32 %v1855, %v2030
      %v2129 = vadd.f32 %v1856, %v2031
      %v2130 = vadd.f32 %v1857, %v2032
      %v2131 = vadd.f32 %v1858, %v2033
      %v2132 = vadd.f32 %v1859, %v2034
      %v2133 = vadd.f32 %v1860, %v2035
      %v2134 = vadd.f32 %v1861, %v2036
      %v2135 = vadd.f32 %v1862, %v2037
      %v2136 = vadd.f32 %v1863, %v2038
      %v2137 = vlaneseq
      %v2138 = vshrl.u32 %v2137, 7
      %v2139 = vsub.s32 5, %v2138
      %v2140 = vrot.slane %v247, %v2139
      %v2141 = vlaneseq
      %v2142 = vshrl.u32 %v2141, 7
      %v2143 = vsub.s32 5, %v2142
      %v2144 = vrot.slane %v248, %v2143
      %v2145 = vlaneseq
      %v2146 = vshrl.u32 %v2145, 7
      %v2147 = vsub.s32 5, %v2146
      %v2148 = vrot.slane %v249, %v2147
      %v2149 = vlaneseq
      %v2150 = vshrl.u32 %v2149, 7
      %v2151 = vsub.s32 5, %v2150
      %v2152 = vrot.slane %v250, %v2151
      %v2153 = vlaneseq
      %v2154 = vshrl.u32 %v2153, 7
      %v2155 = vsub.s32 5, %v2154
      %v2156 = vrot.slane %v251, %v2155
      %v2157 = vlaneseq
      %v2158 = vshrl.u32 %v2157, 7
      %v2159 = vsub.s32 5, %v2158
      %v2160 = vrot.slane %v252, %v2159
      %v2161 = vlaneseq
      %v2162 = vshrl.u32 %v2161, 7
      %v2163 = vsub.s32 5, %v2162
      %v2164 = vrot.slane %v253, %v2163
      %v2165 = vmul.f32 %v996, %v2140
      %v2166 = vmul.f32 %v997, %v2144
      %v2167 = vmul.f32 %v998, %v2148
      %v2168 = vmul.f32 %v999, %v2152
      %v2169 = vmul.f32 %v1000, %v2156
      %v2170 = vmul.f32 %v1001, %v2160
      %v2171 = vmul.f32 %v1002, %v2164
      %v2172 = vmul.f32 %v1003, %v2140
      %v2173 = vmul.f32 %v1004, %v2144
      %v2174 = vmul.f32 %v1005, %v2148
      %v2175 = vmul.f32 %v1006, %v2152
      %v2176 = vmul.f32 %v1007, %v2156
      %v2177 = vmul.f32 %v1008, %v2160
      %v2178 = vmul.f32 %v1009, %v2164
      %v2179 = vmul.f32 %v1010, %v2140
      %v2180 = vmul.f32 %v1011, %v2144
      %v2181 = vmul.f32 %v1012, %v2148
      %v2182 = vmul.f32 %v1013, %v2152
      %v2183 = vmul.f32 %v1014, %v2156
      %v2184 = vmul.f32 %v1015, %v2160
      %v2185 = vmul.f32 %v1016, %v2164
      %v2186 = vmul.f32 %v1017, %v2140
      %v2187 = vmul.f32 %v1018, %v2144
      %v2188 = vmul.f32 %v1019, %v2148
      %v2189 = vmul.f32 %v1020, %v2152
      %v2190 = vmul.f32 %v1021, %v2156
      %v2191 = vmul.f32 %v1022, %v2160
      %v2192 = vmul.f32 %v1023, %v2164
      %v2193 = vmul.f32 %v1024, %v2140
      %v2194 = vmul.f32 %v1025, %v2144
      %v2195 = vmul.f32 %v1026, %v2148
      %v2196 = vmul.f32 %v1027, %v2152
      %v2197 = vmul.f32 %v1028, %v2156
      %v2198 = vmul.f32 %v1029, %v2160
      %v2199 = vmul.f32 %v1030, %v2164
      %v2200 = vmul.f32 %v1031, %v2140
      %v2201 = vmul.f32 %v1032, %v2144
      %v2202 = vmul.f32 %v1033, %v2148
      %v2203 = vmul.f32 %v1034, %v2152
      %v2204 = vmul.f32 %v1035, %v2156
      %v2205 = vmul.f32 %v1036, %v2160
      %v2206 = vmul.f32 %v1037, %v2164
      %v2207 = vmul.f32 %v1038, %v2140
      %v2208 = vmul.f32 %v1039, %v2144
      %v2209 = vmul.f32 %v1040, %v2148
      %v2210 = vmul.f32 %v1041, %v2152
      %v2211 = vmul.f32 %v1042, %v2156
      %v2212 = vmul.f32 %v1043, %v2160
      %v2213 = vmul.f32 %v1044, %v2164
      %v2263 = vrot.slane %v2165, 1
      %v2264 = vrot.slane %v2166, 1
      %v2265 = vrot.slane %v2167, 1
      %v2266 = vrot.slane %v2168, 1
      %v2267 = vrot.slane %v2169, 1
      %v2268 = vrot.slane %v2170, 1
      %v2269 = vrot.slane %v2171, 1
      %v2270 = vrot.slane %v2172, 1
      %v2271 = vrot.slane %v2173, 1
      %v2272 = vrot.slane %v2174, 1
      %v2273 = vrot.slane %v2175, 1
      %v2274 = vrot.slane %v2176, 1
      %v2275 = vrot.slane %v2177, 1
      %v2276 = vrot.slane %v2178, 1
      %v2277 = vrot.slane %v2179, 1
      %v2278 = vrot.slane %v2180, 1
      %v2279 = vrot.slane %v2181, 1
      %v2280 = vrot.slane %v2182, 1
      %v2281 = vrot.slane %v2183, 1
      %v2282 = vrot.slane %v2184, 1
      %v2283 = vrot.slane %v2185, 1
      %v2284 = vrot.slane %v2186, 1
      %v2285 = vrot.slane %v2187, 1
      %v2286 = vrot.slane %v2188, 1
      %v2287 = vrot.slane %v2189, 1
      %v2288 = vrot.slane %v2190, 1
      %v2289 = vrot.slane %v2191, 1
      %v2290 = vrot.slane %v2192, 1
      %v2291 = vrot.slane %v2193, 1
      %v2292 = vrot.slane %v2194, 1
      %v2293 = vrot.slane %v2195, 1
      %v2294 = vrot.slane %v2196, 1
      %v2295 = vrot.slane %v2197, 1
      %v2296 = vrot.slane %v2198, 1
      %v2297 = vrot.slane %v2199, 1
      %v2298 = vrot.slane %v2200, 1
      %v2299 = vrot.slane %v2201, 1
      %v2300 = vrot.slane %v2202, 1
      %v2301 = vrot.slane %v2203, 1
      %v2302 = vrot.slane %v2204, 1
      %v2303 = vrot.slane %v2205, 1
      %v2304 = vrot.slane %v2206, 1
      %v2305 = vrot.slane %v2207, 1
      %v2306 = vrot.slane %v2208, 1
      %v2307 = vrot.slane %v2209, 1
      %v2308 = vrot.slane %v2210, 1
      %v2309 = vrot.slane %v2211, 1
      %v2310 = vrot.slane %v2212, 1
      %v2311 = vrot.slane %v2213, 1
      %v2361 = vadd.f32 %v2088, %v2263
      %v2362 = vadd.f32 %v2089, %v2264
      %v2363 = vadd.f32 %v2090, %v2265
      %v2364 = vadd.f32 %v2091, %v2266
      %v2365 = vadd.f32 %v2092, %v2267
      %v2366 = vadd.f32 %v2093, %v2268
      %v2367 = vadd.f32 %v2094, %v2269
      %v2368 = vadd.f32 %v2095, %v2270
      %v2369 = vadd.f32 %v2096, %v2271
      %v2370 = vadd.f32 %v2097, %v2272
      %v2371 = vadd.f32 %v2098, %v2273
      %v2372 = vadd.f32 %v2099, %v2274
      %v2373 = vadd.f32 %v2100, %v2275
      %v2374 = vadd.f32 %v2101, %v2276
      %v2375 = vadd.f32 %v2102, %v2277
      %v2376 = vadd.f32 %v2103, %v2278
      %v2377 = vadd.f32 %v2104, %v2279
      %v2378 = vadd.f32 %v2105, %v2280
      %v2379 = vadd.f32 %v2106, %v2281
      %v2380 = vadd.f32 %v2107, %v2282
      %v2381 = vadd.f32 %v2108, %v2283
      %v2382 = vadd.f32 %v2109, %v2284
      %v2383 = vadd.f32 %v2110, %v2285
      %v2384 = vadd.f32 %v2111, %v2286
      %v2385 = vadd.f32 %v2112, %v2287
      %v2386 = vadd.f32 %v2113, %v2288
      %v2387 = vadd.f32 %v2114, %v2289
      %v2388 = vadd.f32 %v2115, %v2290
      %v2389 = vadd.f32 %v2116, %v2291
      %v2390 = vadd.f32 %v2117, %v2292
      %v2391 = vadd.f32 %v2118, %v2293
      %v2392 = vadd.f32 %v2119, %v2294
      %v2393 = vadd.f32 %v2120, %v2295
      %v2394 = vadd.f32 %v2121, %v2296
      %v2395 = vadd.f32 %v2122, %v2297
      %v2396 = vadd.f32 %v2123, %v2298
      %v2397 = vadd.f32 %v2124, %v2299
      %v2398 = vadd.f32 %v2125, %v2300
      %v2399 = vadd.f32 %v2126, %v2301
      %v2400 = vadd.f32 %v2127, %v2302
      %v2401 = vadd.f32 %v2128, %v2303
      %v2402 = vadd.f32 %v2129, %v2304
      %v2403 = vadd.f32 %v2130, %v2305
      %v2404 = vadd.f32 %v2131, %v2306
      %v2405 = vadd.f32 %v2132, %v2307
      %v2406 = vadd.f32 %v2133, %v2308
      %v2407 = vadd.f32 %v2134, %v2309
      %v2408 = vadd.f32 %v2135, %v2310
      %v2409 = vadd.f32 %v2136, %v2311
      %v2410 = vld [vmem:[%s212] sm:$0xfc]
      %v2411 = vld [vmem:[%s212 + $0x8] sm:$0xfc]
      %v2412 = vld [vmem:[%s212 + $0x10] sm:$0xfc]
      %v2413 = vld [vmem:[%s212 + $0x18] sm:$0xfc]
      %v2414 = vld [vmem:[%s212 + $0x20] sm:$0xfc]
      %v2415 = vld [vmem:[%s212 + $0x28] sm:$0xfc]
      %v2416 = vld [vmem:[%s212 + $0x30] sm:$0xfc]
      %v2417 = vld [vmem:[%s212 + $0x38] sm:$0x1]
      %v2418 = vld [vmem:[%s212 + $0x40] sm:$0x1]
      %v2419 = vld [vmem:[%s212 + $0x48] sm:$0x1]
      %v2420 = vld [vmem:[%s212 + $0x50] sm:$0x1]
      %v2421 = vld [vmem:[%s212 + $0x58] sm:$0x1]
      %v2422 = vld [vmem:[%s212 + $0x60] sm:$0x1]
      %v2423 = vld [vmem:[%s212 + $0x68] sm:$0x1]
      %v2424 = vld [vmem:[%s212 + $0x70] sm:$0xfc]
      %v2425 = vld [vmem:[%s212 + $0x78] sm:$0xfc]
      %v2426 = vld [vmem:[%s212 + $0x80] sm:$0xfc]
      %v2427 = vld [vmem:[%s212 + $0x88] sm:$0xfc]
      %v2428 = vld [vmem:[%s212 + $0x90] sm:$0xfc]
      %v2429 = vld [vmem:[%s212 + $0x98] sm:$0xfc]
      %v2430 = vld [vmem:[%s212 + $0xa0] sm:$0xfc]
      %v2431 = vld [vmem:[%s212 + $0xa8] sm:$0x1]
      %v2432 = vld [vmem:[%s212 + $0xb0] sm:$0x1]
      %v2433 = vld [vmem:[%s212 + $0xb8] sm:$0x1]
      %v2434 = vld [vmem:[%s212 + $0xc0] sm:$0x1]
      %v2435 = vld [vmem:[%s212 + $0xc8] sm:$0x1]
      %v2436 = vld [vmem:[%s212 + $0xd0] sm:$0x1]
      %v2437 = vld [vmem:[%s212 + $0xd8] sm:$0x1]
      %v2438 = vld [vmem:[%s212 + $0xe0] sm:$0xfc]
      %v2439 = vld [vmem:[%s212 + $0xe8] sm:$0xfc]
      %v2440 = vld [vmem:[%s212 + $0xf0] sm:$0xfc]
      %v2441 = vld [vmem:[%s212 + $0xf8] sm:$0xfc]
      %v2442 = vld [vmem:[%s212 + $0x100] sm:$0xfc]
      %v2443 = vld [vmem:[%s212 + $0x108] sm:$0xfc]
      %v2444 = vld [vmem:[%s212 + $0x110] sm:$0xfc]
      %v2445 = vld [vmem:[%s212 + $0x118] sm:$0x1]
      %v2446 = vld [vmem:[%s212 + $0x120] sm:$0x1]
      %v2447 = vld [vmem:[%s212 + $0x128] sm:$0x1]
      %v2448 = vld [vmem:[%s212 + $0x130] sm:$0x1]
      %v2449 = vld [vmem:[%s212 + $0x138] sm:$0x1]
      %v2450 = vld [vmem:[%s212 + $0x140] sm:$0x1]
      %v2451 = vld [vmem:[%s212 + $0x148] sm:$0x1]
      %v2452 = vld [vmem:[%s212 + $0x150] sm:$0xfc]
      %v2453 = vld [vmem:[%s212 + $0x158] sm:$0xfc]
      %v2454 = vld [vmem:[%s212 + $0x160] sm:$0xfc]
      %v2455 = vld [vmem:[%s212 + $0x168] sm:$0xfc]
      %v2456 = vld [vmem:[%s212 + $0x170] sm:$0xfc]
      %v2457 = vld [vmem:[%s212 + $0x178] sm:$0xfc]
      %v2458 = vld [vmem:[%s212 + $0x180] sm:$0xfc]
      %v2459 = vld [vmem:[%s212 + $0x188] sm:$0x1]
      %v2460 = vld [vmem:[%s212 + $0x190] sm:$0x1]
      %v2461 = vld [vmem:[%s212 + $0x198] sm:$0x1]
      %v2462 = vld [vmem:[%s212 + $0x1a0] sm:$0x1]
      %v2463 = vld [vmem:[%s212 + $0x1a8] sm:$0x1]
      %v2464 = vld [vmem:[%s212 + $0x1b0] sm:$0x1]
      %v2465 = vld [vmem:[%s212 + $0x1b8] sm:$0x1]
      %v2466 = vld [vmem:[%s212 + $0x1c0] sm:$0xfc]
      %v2467 = vld [vmem:[%s212 + $0x1c8] sm:$0xfc]
      %v2468 = vld [vmem:[%s212 + $0x1d0] sm:$0xfc]
      %v2469 = vld [vmem:[%s212 + $0x1d8] sm:$0xfc]
      %v2470 = vld [vmem:[%s212 + $0x1e0] sm:$0xfc]
      %v2471 = vld [vmem:[%s212 + $0x1e8] sm:$0xfc]
      %v2472 = vld [vmem:[%s212 + $0x1f0] sm:$0xfc]
      %v2473 = vld [vmem:[%s212 + $0x1f8] sm:$0x1]
      %v2474 = vld [vmem:[%s212 + $0x200] sm:$0x1]
      %v2475 = vld [vmem:[%s212 + $0x208] sm:$0x1]
      %v2476 = vld [vmem:[%s212 + $0x210] sm:$0x1]
      %v2477 = vld [vmem:[%s212 + $0x218] sm:$0x1]
      %v2478 = vld [vmem:[%s212 + $0x220] sm:$0x1]
      %v2479 = vld [vmem:[%s212 + $0x228] sm:$0x1]
      %v2480 = vld [vmem:[%s212 + $0x230] sm:$0xfc]
      %v2481 = vld [vmem:[%s212 + $0x238] sm:$0xfc]
      %v2482 = vld [vmem:[%s212 + $0x240] sm:$0xfc]
      %v2483 = vld [vmem:[%s212 + $0x248] sm:$0xfc]
      %v2484 = vld [vmem:[%s212 + $0x250] sm:$0xfc]
      %v2485 = vld [vmem:[%s212 + $0x258] sm:$0xfc]
      %v2486 = vld [vmem:[%s212 + $0x260] sm:$0xfc]
      %v2487 = vld [vmem:[%s212 + $0x268] sm:$0x1]
      %v2488 = vld [vmem:[%s212 + $0x270] sm:$0x1]
      %v2489 = vld [vmem:[%s212 + $0x278] sm:$0x1]
      %v2490 = vld [vmem:[%s212 + $0x280] sm:$0x1]
      %v2491 = vld [vmem:[%s212 + $0x288] sm:$0x1]
      %v2492 = vld [vmem:[%s212 + $0x290] sm:$0x1]
      %v2493 = vld [vmem:[%s212 + $0x298] sm:$0x1]
      %v2494 = vld [vmem:[%s212 + $0x2a0] sm:$0xfc]
      %v2495 = vld [vmem:[%s212 + $0x2a8] sm:$0xfc]
      %v2496 = vld [vmem:[%s212 + $0x2b0] sm:$0xfc]
      %v2497 = vld [vmem:[%s212 + $0x2b8] sm:$0xfc]
      %v2498 = vld [vmem:[%s212 + $0x2c0] sm:$0xfc]
      %v2499 = vld [vmem:[%s212 + $0x2c8] sm:$0xfc]
      %v2500 = vld [vmem:[%s212 + $0x2d0] sm:$0xfc]
      %v2501 = vld [vmem:[%s212 + $0x2d8] sm:$0x1]
      %v2502 = vld [vmem:[%s212 + $0x2e0] sm:$0x1]
      %v2503 = vld [vmem:[%s212 + $0x2e8] sm:$0x1]
      %v2504 = vld [vmem:[%s212 + $0x2f0] sm:$0x1]
      %v2505 = vld [vmem:[%s212 + $0x2f8] sm:$0x1]
      %v2506 = vld [vmem:[%s212 + $0x300] sm:$0x1]
      %v2507 = vld [vmem:[%s212 + $0x308] sm:$0x1]
      %v2508 = vld [vmem:[%s212 + $0x310] sm:$0xfc]
      %v2509 = vld [vmem:[%s212 + $0x318] sm:$0xfc]
      %v2510 = vld [vmem:[%s212 + $0x320] sm:$0xfc]
      %v2511 = vld [vmem:[%s212 + $0x328] sm:$0xfc]
      %v2512 = vld [vmem:[%s212 + $0x330] sm:$0xfc]
      %v2513 = vld [vmem:[%s212 + $0x338] sm:$0xfc]
      %v2514 = vld [vmem:[%s212 + $0x340] sm:$0xfc]
      %v2515 = vld [vmem:[%s212 + $0x348] sm:$0x1]
      %v2516 = vld [vmem:[%s212 + $0x350] sm:$0x1]
      %v2517 = vld [vmem:[%s212 + $0x358] sm:$0x1]
      %v2518 = vld [vmem:[%s212 + $0x360] sm:$0x1]
      %v2519 = vld [vmem:[%s212 + $0x368] sm:$0x1]
      %v2520 = vld [vmem:[%s212 + $0x370] sm:$0x1]
      %v2521 = vld [vmem:[%s212 + $0x378] sm:$0x1]
      %v2522 = vld [vmem:[%s212 + $0x380] sm:$0xfc]
      %v2523 = vld [vmem:[%s212 + $0x388] sm:$0xfc]
      %v2524 = vld [vmem:[%s212 + $0x390] sm:$0xfc]
      %v2525 = vld [vmem:[%s212 + $0x398] sm:$0xfc]
      %v2526 = vld [vmem:[%s212 + $0x3a0] sm:$0xfc]
      %v2527 = vld [vmem:[%s212 + $0x3a8] sm:$0xfc]
      %v2528 = vld [vmem:[%s212 + $0x3b0] sm:$0xfc]
      %v2529 = vld [vmem:[%s212 + $0x3b8] sm:$0x1]
      %v2530 = vld [vmem:[%s212 + $0x3c0] sm:$0x1]
      %v2531 = vld [vmem:[%s212 + $0x3c8] sm:$0x1]
      %v2532 = vld [vmem:[%s212 + $0x3d0] sm:$0x1]
      %v2533 = vld [vmem:[%s212 + $0x3d8] sm:$0x1]
      %v2534 = vld [vmem:[%s212 + $0x3e0] sm:$0x1]
      %v2535 = vld [vmem:[%s212 + $0x3e8] sm:$0x1]
      %v2536 = vld [vmem:[%s212 + $0x3f0] sm:$0xfc]
      %v2537 = vld [vmem:[%s212 + $0x3f8] sm:$0xfc]
      %v2538 = vld [vmem:[%s212 + $0x400] sm:$0xfc]
      %v2539 = vld [vmem:[%s212 + $0x408] sm:$0xfc]
      %v2540 = vld [vmem:[%s212 + $0x410] sm:$0xfc]
      %v2541 = vld [vmem:[%s212 + $0x418] sm:$0xfc]
      %v2542 = vld [vmem:[%s212 + $0x420] sm:$0xfc]
      %v2543 = vld [vmem:[%s212 + $0x428] sm:$0x1]
      %v2544 = vld [vmem:[%s212 + $0x430] sm:$0x1]
      %v2545 = vld [vmem:[%s212 + $0x438] sm:$0x1]
      %v2546 = vld [vmem:[%s212 + $0x440] sm:$0x1]
      %v2547 = vld [vmem:[%s212 + $0x448] sm:$0x1]
      %v2548 = vld [vmem:[%s212 + $0x450] sm:$0x1]
      %v2549 = vld [vmem:[%s212 + $0x458] sm:$0x1]
      %v2550 = vld [vmem:[%s212 + $0x460] sm:$0xfc]
      %v2551 = vld [vmem:[%s212 + $0x468] sm:$0xfc]
      %v2552 = vld [vmem:[%s212 + $0x470] sm:$0xfc]
      %v2553 = vld [vmem:[%s212 + $0x478] sm:$0xfc]
      %v2554 = vld [vmem:[%s212 + $0x480] sm:$0xfc]
      %v2555 = vld [vmem:[%s212 + $0x488] sm:$0xfc]
      %v2556 = vld [vmem:[%s212 + $0x490] sm:$0xfc]
      %v2557 = vld [vmem:[%s212 + $0x498] sm:$0x1]
      %v2558 = vld [vmem:[%s212 + $0x4a0] sm:$0x1]
      %v2559 = vld [vmem:[%s212 + $0x4a8] sm:$0x1]
      %v2560 = vld [vmem:[%s212 + $0x4b0] sm:$0x1]
      %v2561 = vld [vmem:[%s212 + $0x4b8] sm:$0x1]
      %v2562 = vld [vmem:[%s212 + $0x4c0] sm:$0x1]
      %v2563 = vld [vmem:[%s212 + $0x4c8] sm:$0x1]
      %v2564 = vlaneseq
      %v2565 = vshrl.u32 %v2564, 7
      %v2566 = vsub.s32 2, %v2565
      %v2567 = vrot.slane %v233, %v2566
      %v2568 = vlaneseq
      %v2569 = vshrl.u32 %v2568, 7
      %v2570 = vsub.s32 2, %v2569
      %v2571 = vrot.slane %v234, %v2570
      %v2572 = vlaneseq
      %v2573 = vshrl.u32 %v2572, 7
      %v2574 = vsub.s32 2, %v2573
      %v2575 = vrot.slane %v235, %v2574
      %v2576 = vlaneseq
      %v2577 = vshrl.u32 %v2576, 7
      %v2578 = vsub.s32 2, %v2577
      %v2579 = vrot.slane %v236, %v2578
      %v2580 = vlaneseq
      %v2581 = vshrl.u32 %v2580, 7
      %v2582 = vsub.s32 2, %v2581
      %v2583 = vrot.slane %v237, %v2582
      %v2584 = vlaneseq
      %v2585 = vshrl.u32 %v2584, 7
      %v2586 = vsub.s32 2, %v2585
      %v2587 = vrot.slane %v238, %v2586
      %v2588 = vlaneseq
      %v2589 = vshrl.u32 %v2588, 7
      %v2590 = vsub.s32 2, %v2589
      %v2591 = vrot.slane %v239, %v2590
      %v2592 = vmul.f32 %v2410, %v2567
      %v2593 = vmul.f32 %v2411, %v2571
      %v2594 = vmul.f32 %v2412, %v2575
      %v2595 = vmul.f32 %v2413, %v2579
      %v2596 = vmul.f32 %v2414, %v2583
      %v2597 = vmul.f32 %v2415, %v2587
      %v2598 = vmul.f32 %v2416, %v2591
      %v2599 = vmul.f32 %v2417, %v2567
      %v2600 = vmul.f32 %v2418, %v2571
      %v2601 = vmul.f32 %v2419, %v2575
      %v2602 = vmul.f32 %v2420, %v2579
      %v2603 = vmul.f32 %v2421, %v2583
      %v2604 = vmul.f32 %v2422, %v2587
      %v2605 = vmul.f32 %v2423, %v2591
      %v2606 = vmul.f32 %v2424, %v2567
      %v2607 = vmul.f32 %v2425, %v2571
      %v2608 = vmul.f32 %v2426, %v2575
      %v2609 = vmul.f32 %v2427, %v2579
      %v2610 = vmul.f32 %v2428, %v2583
      %v2611 = vmul.f32 %v2429, %v2587
      %v2612 = vmul.f32 %v2430, %v2591
      %v2613 = vmul.f32 %v2431, %v2567
      %v2614 = vmul.f32 %v2432, %v2571
      %v2615 = vmul.f32 %v2433, %v2575
      %v2616 = vmul.f32 %v2434, %v2579
      %v2617 = vmul.f32 %v2435, %v2583
      %v2618 = vmul.f32 %v2436, %v2587
      %v2619 = vmul.f32 %v2437, %v2591
      %v2620 = vmul.f32 %v2438, %v2567
      %v2621 = vmul.f32 %v2439, %v2571
      %v2622 = vmul.f32 %v2440, %v2575
      %v2623 = vmul.f32 %v2441, %v2579
      %v2624 = vmul.f32 %v2442, %v2583
      %v2625 = vmul.f32 %v2443, %v2587
      %v2626 = vmul.f32 %v2444, %v2591
      %v2627 = vmul.f32 %v2445, %v2567
      %v2628 = vmul.f32 %v2446, %v2571
      %v2629 = vmul.f32 %v2447, %v2575
      %v2630 = vmul.f32 %v2448, %v2579
      %v2631 = vmul.f32 %v2449, %v2583
      %v2632 = vmul.f32 %v2450, %v2587
      %v2633 = vmul.f32 %v2451, %v2591
      %v2634 = vmul.f32 %v2452, %v2567
      %v2635 = vmul.f32 %v2453, %v2571
      %v2636 = vmul.f32 %v2454, %v2575
      %v2637 = vmul.f32 %v2455, %v2579
      %v2638 = vmul.f32 %v2456, %v2583
      %v2639 = vmul.f32 %v2457, %v2587
      %v2640 = vmul.f32 %v2458, %v2591
      %v2641 = vmul.f32 %v2459, %v2567
      %v2642 = vmul.f32 %v2460, %v2571
      %v2643 = vmul.f32 %v2461, %v2575
      %v2644 = vmul.f32 %v2462, %v2579
      %v2645 = vmul.f32 %v2463, %v2583
      %v2646 = vmul.f32 %v2464, %v2587
      %v2647 = vmul.f32 %v2465, %v2591
      %v2648 = vmul.f32 %v2466, %v2567
      %v2649 = vmul.f32 %v2467, %v2571
      %v2650 = vmul.f32 %v2468, %v2575
      %v2651 = vmul.f32 %v2469, %v2579
      %v2652 = vmul.f32 %v2470, %v2583
      %v2653 = vmul.f32 %v2471, %v2587
      %v2654 = vmul.f32 %v2472, %v2591
      %v2655 = vmul.f32 %v2473, %v2567
      %v2656 = vmul.f32 %v2474, %v2571
      %v2657 = vmul.f32 %v2475, %v2575
      %v2658 = vmul.f32 %v2476, %v2579
      %v2659 = vmul.f32 %v2477, %v2583
      %v2660 = vmul.f32 %v2478, %v2587
      %v2661 = vmul.f32 %v2479, %v2591
      %v2662 = vmul.f32 %v2480, %v2567
      %v2663 = vmul.f32 %v2481, %v2571
      %v2664 = vmul.f32 %v2482, %v2575
      %v2665 = vmul.f32 %v2483, %v2579
      %v2666 = vmul.f32 %v2484, %v2583
      %v2667 = vmul.f32 %v2485, %v2587
      %v2668 = vmul.f32 %v2486, %v2591
      %v2669 = vmul.f32 %v2487, %v2567
      %v2670 = vmul.f32 %v2488, %v2571
      %v2671 = vmul.f32 %v2489, %v2575
      %v2672 = vmul.f32 %v2490, %v2579
      %v2673 = vmul.f32 %v2491, %v2583
      %v2674 = vmul.f32 %v2492, %v2587
      %v2675 = vmul.f32 %v2493, %v2591
      %v2676 = vmul.f32 %v2494, %v2567
      %v2677 = vmul.f32 %v2495, %v2571
      %v2678 = vmul.f32 %v2496, %v2575
      %v2679 = vmul.f32 %v2497, %v2579
      %v2680 = vmul.f32 %v2498, %v2583
      %v2681 = vmul.f32 %v2499, %v2587
      %v2682 = vmul.f32 %v2500, %v2591
      %v2683 = vmul.f32 %v2501, %v2567
      %v2684 = vmul.f32 %v2502, %v2571
      %v2685 = vmul.f32 %v2503, %v2575
      %v2686 = vmul.f32 %v2504, %v2579
      %v2687 = vmul.f32 %v2505, %v2583
      %v2688 = vmul.f32 %v2506, %v2587
      %v2689 = vmul.f32 %v2507, %v2591
      %vm2788 = vcmask 1045504
      %v2789 = vrot.slane %v2592, 2
      %v2790 = vrot.slane %v2599, 2
      %v2791 = vsel %vm2788, %v2789, %v2790
      %v2792 = vrot.slane %v2593, 2
      %v2793 = vrot.slane %v2600, 2
      %v2794 = vsel %vm2788, %v2792, %v2793
      %v2795 = vrot.slane %v2594, 2
      %v2796 = vrot.slane %v2601, 2
      %v2797 = vsel %vm2788, %v2795, %v2796
      %v2798 = vrot.slane %v2595, 2
      %v2799 = vrot.slane %v2602, 2
      %v2800 = vsel %vm2788, %v2798, %v2799
      %v2801 = vrot.slane %v2596, 2
      %v2802 = vrot.slane %v2603, 2
      %v2803 = vsel %vm2788, %v2801, %v2802
      %v2804 = vrot.slane %v2597, 2
      %v2805 = vrot.slane %v2604, 2
      %v2806 = vsel %vm2788, %v2804, %v2805
      %v2807 = vrot.slane %v2598, 2
      %v2808 = vrot.slane %v2605, 2
      %v2809 = vsel %vm2788, %v2807, %v2808
      %v2810 = vrot.slane %v2606, 2
      %v2811 = vrot.slane %v2613, 2
      %v2812 = vsel %vm2788, %v2810, %v2811
      %v2813 = vrot.slane %v2607, 2
      %v2814 = vrot.slane %v2614, 2
      %v2815 = vsel %vm2788, %v2813, %v2814
      %v2816 = vrot.slane %v2608, 2
      %v2817 = vrot.slane %v2615, 2
      %v2818 = vsel %vm2788, %v2816, %v2817
      %v2819 = vrot.slane %v2609, 2
      %v2820 = vrot.slane %v2616, 2
      %v2821 = vsel %vm2788, %v2819, %v2820
      %v2822 = vrot.slane %v2610, 2
      %v2823 = vrot.slane %v2617, 2
      %v2824 = vsel %vm2788, %v2822, %v2823
      %v2825 = vrot.slane %v2611, 2
      %v2826 = vrot.slane %v2618, 2
      %v2827 = vsel %vm2788, %v2825, %v2826
      %v2828 = vrot.slane %v2612, 2
      %v2829 = vrot.slane %v2619, 2
      %v2830 = vsel %vm2788, %v2828, %v2829
      %v2831 = vrot.slane %v2620, 2
      %v2832 = vrot.slane %v2627, 2
      %v2833 = vsel %vm2788, %v2831, %v2832
      %v2834 = vrot.slane %v2621, 2
      %v2835 = vrot.slane %v2628, 2
      %v2836 = vsel %vm2788, %v2834, %v2835
      %v2837 = vrot.slane %v2622, 2
      %v2838 = vrot.slane %v2629, 2
      %v2839 = vsel %vm2788, %v2837, %v2838
      %v2840 = vrot.slane %v2623, 2
      %v2841 = vrot.slane %v2630, 2
      %v2842 = vsel %vm2788, %v2840, %v2841
      %v2843 = vrot.slane %v2624, 2
      %v2844 = vrot.slane %v2631, 2
      %v2845 = vsel %vm2788, %v2843, %v2844
      %v2846 = vrot.slane %v2625, 2
      %v2847 = vrot.slane %v2632, 2
      %v2848 = vsel %vm2788, %v2846, %v2847
      %v2849 = vrot.slane %v2626, 2
      %v2850 = vrot.slane %v2633, 2
      %v2851 = vsel %vm2788, %v2849, %v2850
      %v2852 = vrot.slane %v2634, 2
      %v2853 = vrot.slane %v2641, 2
      %v2854 = vsel %vm2788, %v2852, %v2853
      %v2855 = vrot.slane %v2635, 2
      %v2856 = vrot.slane %v2642, 2
      %v2857 = vsel %vm2788, %v2855, %v2856
      %v2858 = vrot.slane %v2636, 2
      %v2859 = vrot.slane %v2643, 2
      %v2860 = vsel %vm2788, %v2858, %v2859
      %v2861 = vrot.slane %v2637, 2
      %v2862 = vrot.slane %v2644, 2
      %v2863 = vsel %vm2788, %v2861, %v2862
      %v2864 = vrot.slane %v2638, 2
      %v2865 = vrot.slane %v2645, 2
      %v2866 = vsel %vm2788, %v2864, %v2865
      %v2867 = vrot.slane %v2639, 2
      %v2868 = vrot.slane %v2646, 2
      %v2869 = vsel %vm2788, %v2867, %v2868
      %v2870 = vrot.slane %v2640, 2
      %v2871 = vrot.slane %v2647, 2
      %v2872 = vsel %vm2788, %v2870, %v2871
      %v2873 = vrot.slane %v2648, 2
      %v2874 = vrot.slane %v2655, 2
      %v2875 = vsel %vm2788, %v2873, %v2874
      %v2876 = vrot.slane %v2649, 2
      %v2877 = vrot.slane %v2656, 2
      %v2878 = vsel %vm2788, %v2876, %v2877
      %v2879 = vrot.slane %v2650, 2
      %v2880 = vrot.slane %v2657, 2
      %v2881 = vsel %vm2788, %v2879, %v2880
      %v2882 = vrot.slane %v2651, 2
      %v2883 = vrot.slane %v2658, 2
      %v2884 = vsel %vm2788, %v2882, %v2883
      %v2885 = vrot.slane %v2652, 2
      %v2886 = vrot.slane %v2659, 2
      %v2887 = vsel %vm2788, %v2885, %v2886
      %v2888 = vrot.slane %v2653, 2
      %v2889 = vrot.slane %v2660, 2
      %v2890 = vsel %vm2788, %v2888, %v2889
      %v2891 = vrot.slane %v2654, 2
      %v2892 = vrot.slane %v2661, 2
      %v2893 = vsel %vm2788, %v2891, %v2892
      %v2894 = vrot.slane %v2662, 2
      %v2895 = vrot.slane %v2669, 2
      %v2896 = vsel %vm2788, %v2894, %v2895
      %v2897 = vrot.slane %v2663, 2
      %v2898 = vrot.slane %v2670, 2
      %v2899 = vsel %vm2788, %v2897, %v2898
      %v2900 = vrot.slane %v2664, 2
      %v2901 = vrot.slane %v2671, 2
      %v2902 = vsel %vm2788, %v2900, %v2901
      %v2903 = vrot.slane %v2665, 2
      %v2904 = vrot.slane %v2672, 2
      %v2905 = vsel %vm2788, %v2903, %v2904
      %v2906 = vrot.slane %v2666, 2
      %v2907 = vrot.slane %v2673, 2
      %v2908 = vsel %vm2788, %v2906, %v2907
      %v2909 = vrot.slane %v2667, 2
      %v2910 = vrot.slane %v2674, 2
      %v2911 = vsel %vm2788, %v2909, %v2910
      %v2912 = vrot.slane %v2668, 2
      %v2913 = vrot.slane %v2675, 2
      %v2914 = vsel %vm2788, %v2912, %v2913
      %v2915 = vrot.slane %v2676, 2
      %v2916 = vrot.slane %v2683, 2
      %v2917 = vsel %vm2788, %v2915, %v2916
      %v2918 = vrot.slane %v2677, 2
      %v2919 = vrot.slane %v2684, 2
      %v2920 = vsel %vm2788, %v2918, %v2919
      %v2921 = vrot.slane %v2678, 2
      %v2922 = vrot.slane %v2685, 2
      %v2923 = vsel %vm2788, %v2921, %v2922
      %v2924 = vrot.slane %v2679, 2
      %v2925 = vrot.slane %v2686, 2
      %v2926 = vsel %vm2788, %v2924, %v2925
      %v2927 = vrot.slane %v2680, 2
      %v2928 = vrot.slane %v2687, 2
      %v2929 = vsel %vm2788, %v2927, %v2928
      %v2930 = vrot.slane %v2681, 2
      %v2931 = vrot.slane %v2688, 2
      %v2932 = vsel %vm2788, %v2930, %v2931
      %v2933 = vrot.slane %v2682, 2
      %v2934 = vrot.slane %v2689, 2
      %v2935 = vsel %vm2788, %v2933, %v2934
      %v2985 = vadd.f32 %v2361, %v2791
      %v2986 = vadd.f32 %v2362, %v2794
      %v2987 = vadd.f32 %v2363, %v2797
      %v2988 = vadd.f32 %v2364, %v2800
      %v2989 = vadd.f32 %v2365, %v2803
      %v2990 = vadd.f32 %v2366, %v2806
      %v2991 = vadd.f32 %v2367, %v2809
      %v2992 = vadd.f32 %v2368, %v2812
      %v2993 = vadd.f32 %v2369, %v2815
      %v2994 = vadd.f32 %v2370, %v2818
      %v2995 = vadd.f32 %v2371, %v2821
      %v2996 = vadd.f32 %v2372, %v2824
      %v2997 = vadd.f32 %v2373, %v2827
      %v2998 = vadd.f32 %v2374, %v2830
      %v2999 = vadd.f32 %v2375, %v2833
      %v3000 = vadd.f32 %v2376, %v2836
      %v3001 = vadd.f32 %v2377, %v2839
      %v3002 = vadd.f32 %v2378, %v2842
      %v3003 = vadd.f32 %v2379, %v2845
      %v3004 = vadd.f32 %v2380, %v2848
      %v3005 = vadd.f32 %v2381, %v2851
      %v3006 = vadd.f32 %v2382, %v2854
      %v3007 = vadd.f32 %v2383, %v2857
      %v3008 = vadd.f32 %v2384, %v2860
      %v3009 = vadd.f32 %v2385, %v2863
      %v3010 = vadd.f32 %v2386, %v2866
      %v3011 = vadd.f32 %v2387, %v2869
      %v3012 = vadd.f32 %v2388, %v2872
      %v3013 = vadd.f32 %v2389, %v2875
      %v3014 = vadd.f32 %v2390, %v2878
      %v3015 = vadd.f32 %v2391, %v2881
      %v3016 = vadd.f32 %v2392, %v2884
      %v3017 = vadd.f32 %v2393, %v2887
      %v3018 = vadd.f32 %v2394, %v2890
      %v3019 = vadd.f32 %v2395, %v2893
      %v3020 = vadd.f32 %v2396, %v2896
      %v3021 = vadd.f32 %v2397, %v2899
      %v3022 = vadd.f32 %v2398, %v2902
      %v3023 = vadd.f32 %v2399, %v2905
      %v3024 = vadd.f32 %v2400, %v2908
      %v3025 = vadd.f32 %v2401, %v2911
      %v3026 = vadd.f32 %v2402, %v2914
      %v3027 = vadd.f32 %v2403, %v2917
      %v3028 = vadd.f32 %v2404, %v2920
      %v3029 = vadd.f32 %v2405, %v2923
      %v3030 = vadd.f32 %v2406, %v2926
      %v3031 = vadd.f32 %v2407, %v2929
      %v3032 = vadd.f32 %v2408, %v2932
      %v3033 = vadd.f32 %v2409, %v2935
      %v3034 = vlaneseq
      %v3035 = vshrl.u32 %v3034, 7
      %v3036 = vsub.s32 7, %v3035
      %v3037 = vrot.slane %v233, %v3036
      %v3038 = vlaneseq
      %v3039 = vshrl.u32 %v3038, 7
      %v3040 = vsub.s32 7, %v3039
      %v3041 = vrot.slane %v234, %v3040
      %v3042 = vlaneseq
      %v3043 = vshrl.u32 %v3042, 7
      %v3044 = vsub.s32 7, %v3043
      %v3045 = vrot.slane %v235, %v3044
      %v3046 = vlaneseq
      %v3047 = vshrl.u32 %v3046, 7
      %v3048 = vsub.s32 7, %v3047
      %v3049 = vrot.slane %v236, %v3048
      %v3050 = vlaneseq
      %v3051 = vshrl.u32 %v3050, 7
      %v3052 = vsub.s32 7, %v3051
      %v3053 = vrot.slane %v237, %v3052
      %v3054 = vlaneseq
      %v3055 = vshrl.u32 %v3054, 7
      %v3056 = vsub.s32 7, %v3055
      %v3057 = vrot.slane %v238, %v3056
      %v3058 = vlaneseq
      %v3059 = vshrl.u32 %v3058, 7
      %v3060 = vsub.s32 7, %v3059
      %v3061 = vrot.slane %v239, %v3060
      %v3062 = vmul.f32 %v2424, %v3037
      %v3063 = vmul.f32 %v2425, %v3041
      %v3064 = vmul.f32 %v2426, %v3045
      %v3065 = vmul.f32 %v2427, %v3049
      %v3066 = vmul.f32 %v2428, %v3053
      %v3067 = vmul.f32 %v2429, %v3057
      %v3068 = vmul.f32 %v2430, %v3061
      %v3069 = vmul.f32 %v2431, %v3037
      %v3070 = vmul.f32 %v2432, %v3041
      %v3071 = vmul.f32 %v2433, %v3045
      %v3072 = vmul.f32 %v2434, %v3049
      %v3073 = vmul.f32 %v2435, %v3053
      %v3074 = vmul.f32 %v2436, %v3057
      %v3075 = vmul.f32 %v2437, %v3061
      %v3076 = vmul.f32 %v2438, %v3037
      %v3077 = vmul.f32 %v2439, %v3041
      %v3078 = vmul.f32 %v2440, %v3045
      %v3079 = vmul.f32 %v2441, %v3049
      %v3080 = vmul.f32 %v2442, %v3053
      %v3081 = vmul.f32 %v2443, %v3057
      %v3082 = vmul.f32 %v2444, %v3061
      %v3083 = vmul.f32 %v2445, %v3037
      %v3084 = vmul.f32 %v2446, %v3041
      %v3085 = vmul.f32 %v2447, %v3045
      %v3086 = vmul.f32 %v2448, %v3049
      %v3087 = vmul.f32 %v2449, %v3053
      %v3088 = vmul.f32 %v2450, %v3057
      %v3089 = vmul.f32 %v2451, %v3061
      %v3090 = vmul.f32 %v2452, %v3037
      %v3091 = vmul.f32 %v2453, %v3041
      %v3092 = vmul.f32 %v2454, %v3045
      %v3093 = vmul.f32 %v2455, %v3049
      %v3094 = vmul.f32 %v2456, %v3053
      %v3095 = vmul.f32 %v2457, %v3057
      %v3096 = vmul.f32 %v2458, %v3061
      %v3097 = vmul.f32 %v2459, %v3037
      %v3098 = vmul.f32 %v2460, %v3041
      %v3099 = vmul.f32 %v2461, %v3045
      %v3100 = vmul.f32 %v2462, %v3049
      %v3101 = vmul.f32 %v2463, %v3053
      %v3102 = vmul.f32 %v2464, %v3057
      %v3103 = vmul.f32 %v2465, %v3061
      %v3104 = vmul.f32 %v2466, %v3037
      %v3105 = vmul.f32 %v2467, %v3041
      %v3106 = vmul.f32 %v2468, %v3045
      %v3107 = vmul.f32 %v2469, %v3049
      %v3108 = vmul.f32 %v2470, %v3053
      %v3109 = vmul.f32 %v2471, %v3057
      %v3110 = vmul.f32 %v2472, %v3061
      %v3111 = vmul.f32 %v2473, %v3037
      %v3112 = vmul.f32 %v2474, %v3041
      %v3113 = vmul.f32 %v2475, %v3045
      %v3114 = vmul.f32 %v2476, %v3049
      %v3115 = vmul.f32 %v2477, %v3053
      %v3116 = vmul.f32 %v2478, %v3057
      %v3117 = vmul.f32 %v2479, %v3061
      %v3118 = vmul.f32 %v2480, %v3037
      %v3119 = vmul.f32 %v2481, %v3041
      %v3120 = vmul.f32 %v2482, %v3045
      %v3121 = vmul.f32 %v2483, %v3049
      %v3122 = vmul.f32 %v2484, %v3053
      %v3123 = vmul.f32 %v2485, %v3057
      %v3124 = vmul.f32 %v2486, %v3061
      %v3125 = vmul.f32 %v2487, %v3037
      %v3126 = vmul.f32 %v2488, %v3041
      %v3127 = vmul.f32 %v2489, %v3045
      %v3128 = vmul.f32 %v2490, %v3049
      %v3129 = vmul.f32 %v2491, %v3053
      %v3130 = vmul.f32 %v2492, %v3057
      %v3131 = vmul.f32 %v2493, %v3061
      %v3132 = vmul.f32 %v2494, %v3037
      %v3133 = vmul.f32 %v2495, %v3041
      %v3134 = vmul.f32 %v2496, %v3045
      %v3135 = vmul.f32 %v2497, %v3049
      %v3136 = vmul.f32 %v2498, %v3053
      %v3137 = vmul.f32 %v2499, %v3057
      %v3138 = vmul.f32 %v2500, %v3061
      %v3139 = vmul.f32 %v2501, %v3037
      %v3140 = vmul.f32 %v2502, %v3041
      %v3141 = vmul.f32 %v2503, %v3045
      %v3142 = vmul.f32 %v2504, %v3049
      %v3143 = vmul.f32 %v2505, %v3053
      %v3144 = vmul.f32 %v2506, %v3057
      %v3145 = vmul.f32 %v2507, %v3061
      %v3146 = vmul.f32 %v2508, %v3037
      %v3147 = vmul.f32 %v2509, %v3041
      %v3148 = vmul.f32 %v2510, %v3045
      %v3149 = vmul.f32 %v2511, %v3049
      %v3150 = vmul.f32 %v2512, %v3053
      %v3151 = vmul.f32 %v2513, %v3057
      %v3152 = vmul.f32 %v2514, %v3061
      %v3153 = vmul.f32 %v2515, %v3037
      %v3154 = vmul.f32 %v2516, %v3041
      %v3155 = vmul.f32 %v2517, %v3045
      %v3156 = vmul.f32 %v2518, %v3049
      %v3157 = vmul.f32 %v2519, %v3053
      %v3158 = vmul.f32 %v2520, %v3057
      %v3159 = vmul.f32 %v2521, %v3061
      %v3258 = vrot.slane %v3062, 2
      %v3259 = vrot.slane %v3069, 2
      %v3260 = vsel %vm2788, %v3258, %v3259
      %v3261 = vrot.slane %v3063, 2
      %v3262 = vrot.slane %v3070, 2
      %v3263 = vsel %vm2788, %v3261, %v3262
      %v3264 = vrot.slane %v3064, 2
      %v3265 = vrot.slane %v3071, 2
      %v3266 = vsel %vm2788, %v3264, %v3265
      %v3267 = vrot.slane %v3065, 2
      %v3268 = vrot.slane %v3072, 2
      %v3269 = vsel %vm2788, %v3267, %v3268
      %v3270 = vrot.slane %v3066, 2
      %v3271 = vrot.slane %v3073, 2
      %v3272 = vsel %vm2788, %v3270, %v3271
      %v3273 = vrot.slane %v3067, 2
      %v3274 = vrot.slane %v3074, 2
      %v3275 = vsel %vm2788, %v3273, %v3274
      %v3276 = vrot.slane %v3068, 2
      %v3277 = vrot.slane %v3075, 2
      %v3278 = vsel %vm2788, %v3276, %v3277
      %v3279 = vrot.slane %v3076, 2
      %v3280 = vrot.slane %v3083, 2
      %v3281 = vsel %vm2788, %v3279, %v3280
      %v3282 = vrot.slane %v3077, 2
      %v3283 = vrot.slane %v3084, 2
      %v3284 = vsel %vm2788, %v3282, %v3283
      %v3285 = vrot.slane %v3078, 2
      %v3286 = vrot.slane %v3085, 2
      %v3287 = vsel %vm2788, %v3285, %v3286
      %v3288 = vrot.slane %v3079, 2
      %v3289 = vrot.slane %v3086, 2
      %v3290 = vsel %vm2788, %v3288, %v3289
      %v3291 = vrot.slane %v3080, 2
      %v3292 = vrot.slane %v3087, 2
      %v3293 = vsel %vm2788, %v3291, %v3292
      %v3294 = vrot.slane %v3081, 2
      %v3295 = vrot.slane %v3088, 2
      %v3296 = vsel %vm2788, %v3294, %v3295
      %v3297 = vrot.slane %v3082, 2
      %v3298 = vrot.slane %v3089, 2
      %v3299 = vsel %vm2788, %v3297, %v3298
      %v3300 = vrot.slane %v3090, 2
      %v3301 = vrot.slane %v3097, 2
      %v3302 = vsel %vm2788, %v3300, %v3301
      %v3303 = vrot.slane %v3091, 2
      %v3304 = vrot.slane %v3098, 2
      %v3305 = vsel %vm2788, %v3303, %v3304
      %v3306 = vrot.slane %v3092, 2
      %v3307 = vrot.slane %v3099, 2
      %v3308 = vsel %vm2788, %v3306, %v3307
      %v3309 = vrot.slane %v3093, 2
      %v3310 = vrot.slane %v3100, 2
      %v3311 = vsel %vm2788, %v3309, %v3310
      %v3312 = vrot.slane %v3094, 2
      %v3313 = vrot.slane %v3101, 2
      %v3314 = vsel %vm2788, %v3312, %v3313
      %v3315 = vrot.slane %v3095, 2
      %v3316 = vrot.slane %v3102, 2
      %v3317 = vsel %vm2788, %v3315, %v3316
      %v3318 = vrot.slane %v3096, 2
      %v3319 = vrot.slane %v3103, 2
      %v3320 = vsel %vm2788, %v3318, %v3319
      %v3321 = vrot.slane %v3104, 2
      %v3322 = vrot.slane %v3111, 2
      %v3323 = vsel %vm2788, %v3321, %v3322
      %v3324 = vrot.slane %v3105, 2
      %v3325 = vrot.slane %v3112, 2
      %v3326 = vsel %vm2788, %v3324, %v3325
      %v3327 = vrot.slane %v3106, 2
      %v3328 = vrot.slane %v3113, 2
      %v3329 = vsel %vm2788, %v3327, %v3328
      %v3330 = vrot.slane %v3107, 2
      %v3331 = vrot.slane %v3114, 2
      %v3332 = vsel %vm2788, %v3330, %v3331
      %v3333 = vrot.slane %v3108, 2
      %v3334 = vrot.slane %v3115, 2
      %v3335 = vsel %vm2788, %v3333, %v3334
      %v3336 = vrot.slane %v3109, 2
      %v3337 = vrot.slane %v3116, 2
      %v3338 = vsel %vm2788, %v3336, %v3337
      %v3339 = vrot.slane %v3110, 2
      %v3340 = vrot.slane %v3117, 2
      %v3341 = vsel %vm2788, %v3339, %v3340
      %v3342 = vrot.slane %v3118, 2
      %v3343 = vrot.slane %v3125, 2
      %v3344 = vsel %vm2788, %v3342, %v3343
      %v3345 = vrot.slane %v3119, 2
      %v3346 = vrot.slane %v3126, 2
      %v3347 = vsel %vm2788, %v3345, %v3346
      %v3348 = vrot.slane %v3120, 2
      %v3349 = vrot.slane %v3127, 2
      %v3350 = vsel %vm2788, %v3348, %v3349
      %v3351 = vrot.slane %v3121, 2
      %v3352 = vrot.slane %v3128, 2
      %v3353 = vsel %vm2788, %v3351, %v3352
      %v3354 = vrot.slane %v3122, 2
      %v3355 = vrot.slane %v3129, 2
      %v3356 = vsel %vm2788, %v3354, %v3355
      %v3357 = vrot.slane %v3123, 2
      %v3358 = vrot.slane %v3130, 2
      %v3359 = vsel %vm2788, %v3357, %v3358
      %v3360 = vrot.slane %v3124, 2
      %v3361 = vrot.slane %v3131, 2
      %v3362 = vsel %vm2788, %v3360, %v3361
      %v3363 = vrot.slane %v3132, 2
      %v3364 = vrot.slane %v3139, 2
      %v3365 = vsel %vm2788, %v3363, %v3364
      %v3366 = vrot.slane %v3133, 2
      %v3367 = vrot.slane %v3140, 2
      %v3368 = vsel %vm2788, %v3366, %v3367
      %v3369 = vrot.slane %v3134, 2
      %v3370 = vrot.slane %v3141, 2
      %v3371 = vsel %vm2788, %v3369, %v3370
      %v3372 = vrot.slane %v3135, 2
      %v3373 = vrot.slane %v3142, 2
      %v3374 = vsel %vm2788, %v3372, %v3373
      %v3375 = vrot.slane %v3136, 2
      %v3376 = vrot.slane %v3143, 2
      %v3377 = vsel %vm2788, %v3375, %v3376
      %v3378 = vrot.slane %v3137, 2
      %v3379 = vrot.slane %v3144, 2
      %v3380 = vsel %vm2788, %v3378, %v3379
      %v3381 = vrot.slane %v3138, 2
      %v3382 = vrot.slane %v3145, 2
      %v3383 = vsel %vm2788, %v3381, %v3382
      %v3384 = vrot.slane %v3146, 2
      %v3385 = vrot.slane %v3153, 2
      %v3386 = vsel %vm2788, %v3384, %v3385
      %v3387 = vrot.slane %v3147, 2
      %v3388 = vrot.slane %v3154, 2
      %v3389 = vsel %vm2788, %v3387, %v3388
      %v3390 = vrot.slane %v3148, 2
      %v3391 = vrot.slane %v3155, 2
      %v3392 = vsel %vm2788, %v3390, %v3391
      %v3393 = vrot.slane %v3149, 2
      %v3394 = vrot.slane %v3156, 2
      %v3395 = vsel %vm2788, %v3393, %v3394
      %v3396 = vrot.slane %v3150, 2
      %v3397 = vrot.slane %v3157, 2
      %v3398 = vsel %vm2788, %v3396, %v3397
      %v3399 = vrot.slane %v3151, 2
      %v3400 = vrot.slane %v3158, 2
      %v3401 = vsel %vm2788, %v3399, %v3400
      %v3402 = vrot.slane %v3152, 2
      %v3403 = vrot.slane %v3159, 2
      %v3404 = vsel %vm2788, %v3402, %v3403
      %v3454 = vadd.f32 %v2985, %v3260
      %v3455 = vadd.f32 %v2986, %v3263
      %v3456 = vadd.f32 %v2987, %v3266
      %v3457 = vadd.f32 %v2988, %v3269
      %v3458 = vadd.f32 %v2989, %v3272
      %v3459 = vadd.f32 %v2990, %v3275
      %v3460 = vadd.f32 %v2991, %v3278
      %v3461 = vadd.f32 %v2992, %v3281
      %v3462 = vadd.f32 %v2993, %v3284
      %v3463 = vadd.f32 %v2994, %v3287
      %v3464 = vadd.f32 %v2995, %v3290
      %v3465 = vadd.f32 %v2996, %v3293
      %v3466 = vadd.f32 %v2997, %v3296
      %v3467 = vadd.f32 %v2998, %v3299
      %v3468 = vadd.f32 %v2999, %v3302
      %v3469 = vadd.f32 %v3000, %v3305
      %v3470 = vadd.f32 %v3001, %v3308
      %v3471 = vadd.f32 %v3002, %v3311
      %v3472 = vadd.f32 %v3003, %v3314
      %v3473 = vadd.f32 %v3004, %v3317
      %v3474 = vadd.f32 %v3005, %v3320
      %v3475 = vadd.f32 %v3006, %v3323
      %v3476 = vadd.f32 %v3007, %v3326
      %v3477 = vadd.f32 %v3008, %v3329
      %v3478 = vadd.f32 %v3009, %v3332
      %v3479 = vadd.f32 %v3010, %v3335
      %v3480 = vadd.f32 %v3011, %v3338
      %v3481 = vadd.f32 %v3012, %v3341
      %v3482 = vadd.f32 %v3013, %v3344
      %v3483 = vadd.f32 %v3014, %v3347
      %v3484 = vadd.f32 %v3015, %v3350
      %v3485 = vadd.f32 %v3016, %v3353
      %v3486 = vadd.f32 %v3017, %v3356
      %v3487 = vadd.f32 %v3018, %v3359
      %v3488 = vadd.f32 %v3019, %v3362
      %v3489 = vadd.f32 %v3020, %v3365
      %v3490 = vadd.f32 %v3021, %v3368
      %v3491 = vadd.f32 %v3022, %v3371
      %v3492 = vadd.f32 %v3023, %v3374
      %v3493 = vadd.f32 %v3024, %v3377
      %v3494 = vadd.f32 %v3025, %v3380
      %v3495 = vadd.f32 %v3026, %v3383
      %v3496 = vadd.f32 %v3027, %v3386
      %v3497 = vadd.f32 %v3028, %v3389
      %v3498 = vadd.f32 %v3029, %v3392
      %v3499 = vadd.f32 %v3030, %v3395
      %v3500 = vadd.f32 %v3031, %v3398
      %v3501 = vadd.f32 %v3032, %v3401
      %v3502 = vadd.f32 %v3033, %v3404
      %v3503 = vlaneseq
      %v3504 = vshrl.u32 %v3503, 7
      %v3505 = vsub.s32 4, %v3504
      %v3506 = vrot.slane %v240, %v3505
      %v3507 = vlaneseq
      %v3508 = vshrl.u32 %v3507, 7
      %v3509 = vsub.s32 4, %v3508
      %v3510 = vrot.slane %v241, %v3509
      %v3511 = vlaneseq
      %v3512 = vshrl.u32 %v3511, 7
      %v3513 = vsub.s32 4, %v3512
      %v3514 = vrot.slane %v242, %v3513
      %v3515 = vlaneseq
      %v3516 = vshrl.u32 %v3515, 7
      %v3517 = vsub.s32 4, %v3516
      %v3518 = vrot.slane %v243, %v3517
      %v3519 = vlaneseq
      %v3520 = vshrl.u32 %v3519, 7
      %v3521 = vsub.s32 4, %v3520
      %v3522 = vrot.slane %v244, %v3521
      %v3523 = vlaneseq
      %v3524 = vshrl.u32 %v3523, 7
      %v3525 = vsub.s32 4, %v3524
      %v3526 = vrot.slane %v245, %v3525
      %v3527 = vlaneseq
      %v3528 = vshrl.u32 %v3527, 7
      %v3529 = vsub.s32 4, %v3528
      %v3530 = vrot.slane %v246, %v3529
      %v3531 = vmul.f32 %v2438, %v3506
      %v3532 = vmul.f32 %v2439, %v3510
      %v3533 = vmul.f32 %v2440, %v3514
      %v3534 = vmul.f32 %v2441, %v3518
      %v3535 = vmul.f32 %v2442, %v3522
      %v3536 = vmul.f32 %v2443, %v3526
      %v3537 = vmul.f32 %v2444, %v3530
      %v3538 = vmul.f32 %v2445, %v3506
      %v3539 = vmul.f32 %v2446, %v3510
      %v3540 = vmul.f32 %v2447, %v3514
      %v3541 = vmul.f32 %v2448, %v3518
      %v3542 = vmul.f32 %v2449, %v3522
      %v3543 = vmul.f32 %v2450, %v3526
      %v3544 = vmul.f32 %v2451, %v3530
      %v3545 = vmul.f32 %v2452, %v3506
      %v3546 = vmul.f32 %v2453, %v3510
      %v3547 = vmul.f32 %v2454, %v3514
      %v3548 = vmul.f32 %v2455, %v3518
      %v3549 = vmul.f32 %v2456, %v3522
      %v3550 = vmul.f32 %v2457, %v3526
      %v3551 = vmul.f32 %v2458, %v3530
      %v3552 = vmul.f32 %v2459, %v3506
      %v3553 = vmul.f32 %v2460, %v3510
      %v3554 = vmul.f32 %v2461, %v3514
      %v3555 = vmul.f32 %v2462, %v3518
      %v3556 = vmul.f32 %v2463, %v3522
      %v3557 = vmul.f32 %v2464, %v3526
      %v3558 = vmul.f32 %v2465, %v3530
      %v3559 = vmul.f32 %v2466, %v3506
      %v3560 = vmul.f32 %v2467, %v3510
      %v3561 = vmul.f32 %v2468, %v3514
      %v3562 = vmul.f32 %v2469, %v3518
      %v3563 = vmul.f32 %v2470, %v3522
      %v3564 = vmul.f32 %v2471, %v3526
      %v3565 = vmul.f32 %v2472, %v3530
      %v3566 = vmul.f32 %v2473, %v3506
      %v3567 = vmul.f32 %v2474, %v3510
      %v3568 = vmul.f32 %v2475, %v3514
      %v3569 = vmul.f32 %v2476, %v3518
      %v3570 = vmul.f32 %v2477, %v3522
      %v3571 = vmul.f32 %v2478, %v3526
      %v3572 = vmul.f32 %v2479, %v3530
      %v3573 = vmul.f32 %v2480, %v3506
      %v3574 = vmul.f32 %v2481, %v3510
      %v3575 = vmul.f32 %v2482, %v3514
      %v3576 = vmul.f32 %v2483, %v3518
      %v3577 = vmul.f32 %v2484, %v3522
      %v3578 = vmul.f32 %v2485, %v3526
      %v3579 = vmul.f32 %v2486, %v3530
      %v3580 = vmul.f32 %v2487, %v3506
      %v3581 = vmul.f32 %v2488, %v3510
      %v3582 = vmul.f32 %v2489, %v3514
      %v3583 = vmul.f32 %v2490, %v3518
      %v3584 = vmul.f32 %v2491, %v3522
      %v3585 = vmul.f32 %v2492, %v3526
      %v3586 = vmul.f32 %v2493, %v3530
      %v3587 = vmul.f32 %v2494, %v3506
      %v3588 = vmul.f32 %v2495, %v3510
      %v3589 = vmul.f32 %v2496, %v3514
      %v3590 = vmul.f32 %v2497, %v3518
      %v3591 = vmul.f32 %v2498, %v3522
      %v3592 = vmul.f32 %v2499, %v3526
      %v3593 = vmul.f32 %v2500, %v3530
      %v3594 = vmul.f32 %v2501, %v3506
      %v3595 = vmul.f32 %v2502, %v3510
      %v3596 = vmul.f32 %v2503, %v3514
      %v3597 = vmul.f32 %v2504, %v3518
      %v3598 = vmul.f32 %v2505, %v3522
      %v3599 = vmul.f32 %v2506, %v3526
      %v3600 = vmul.f32 %v2507, %v3530
      %v3601 = vmul.f32 %v2508, %v3506
      %v3602 = vmul.f32 %v2509, %v3510
      %v3603 = vmul.f32 %v2510, %v3514
      %v3604 = vmul.f32 %v2511, %v3518
      %v3605 = vmul.f32 %v2512, %v3522
      %v3606 = vmul.f32 %v2513, %v3526
      %v3607 = vmul.f32 %v2514, %v3530
      %v3608 = vmul.f32 %v2515, %v3506
      %v3609 = vmul.f32 %v2516, %v3510
      %v3610 = vmul.f32 %v2517, %v3514
      %v3611 = vmul.f32 %v2518, %v3518
      %v3612 = vmul.f32 %v2519, %v3522
      %v3613 = vmul.f32 %v2520, %v3526
      %v3614 = vmul.f32 %v2521, %v3530
      %v3615 = vmul.f32 %v2522, %v3506
      %v3616 = vmul.f32 %v2523, %v3510
      %v3617 = vmul.f32 %v2524, %v3514
      %v3618 = vmul.f32 %v2525, %v3518
      %v3619 = vmul.f32 %v2526, %v3522
      %v3620 = vmul.f32 %v2527, %v3526
      %v3621 = vmul.f32 %v2528, %v3530
      %v3622 = vmul.f32 %v2529, %v3506
      %v3623 = vmul.f32 %v2530, %v3510
      %v3624 = vmul.f32 %v2531, %v3514
      %v3625 = vmul.f32 %v2532, %v3518
      %v3626 = vmul.f32 %v2533, %v3522
      %v3627 = vmul.f32 %v2534, %v3526
      %v3628 = vmul.f32 %v2535, %v3530
      %v3727 = vrot.slane %v3531, 2
      %v3728 = vrot.slane %v3538, 2
      %v3729 = vsel %vm2788, %v3727, %v3728
      %v3730 = vrot.slane %v3532, 2
      %v3731 = vrot.slane %v3539, 2
      %v3732 = vsel %vm2788, %v3730, %v3731
      %v3733 = vrot.slane %v3533, 2
      %v3734 = vrot.slane %v3540, 2
      %v3735 = vsel %vm2788, %v3733, %v3734
      %v3736 = vrot.slane %v3534, 2
      %v3737 = vrot.slane %v3541, 2
      %v3738 = vsel %vm2788, %v3736, %v3737
      %v3739 = vrot.slane %v3535, 2
      %v3740 = vrot.slane %v3542, 2
      %v3741 = vsel %vm2788, %v3739, %v3740
      %v3742 = vrot.slane %v3536, 2
      %v3743 = vrot.slane %v3543, 2
      %v3744 = vsel %vm2788, %v3742, %v3743
      %v3745 = vrot.slane %v3537, 2
      %v3746 = vrot.slane %v3544, 2
      %v3747 = vsel %vm2788, %v3745, %v3746
      %v3748 = vrot.slane %v3545, 2
      %v3749 = vrot.slane %v3552, 2
      %v3750 = vsel %vm2788, %v3748, %v3749
      %v3751 = vrot.slane %v3546, 2
      %v3752 = vrot.slane %v3553, 2
      %v3753 = vsel %vm2788, %v3751, %v3752
      %v3754 = vrot.slane %v3547, 2
      %v3755 = vrot.slane %v3554, 2
      %v3756 = vsel %vm2788, %v3754, %v3755
      %v3757 = vrot.slane %v3548, 2
      %v3758 = vrot.slane %v3555, 2
      %v3759 = vsel %vm2788, %v3757, %v3758
      %v3760 = vrot.slane %v3549, 2
      %v3761 = vrot.slane %v3556, 2
      %v3762 = vsel %vm2788, %v3760, %v3761
      %v3763 = vrot.slane %v3550, 2
      %v3764 = vrot.slane %v3557, 2
      %v3765 = vsel %vm2788, %v3763, %v3764
      %v3766 = vrot.slane %v3551, 2
      %v3767 = vrot.slane %v3558, 2
      %v3768 = vsel %vm2788, %v3766, %v3767
      %v3769 = vrot.slane %v3559, 2
      %v3770 = vrot.slane %v3566, 2
      %v3771 = vsel %vm2788, %v3769, %v3770
      %v3772 = vrot.slane %v3560, 2
      %v3773 = vrot.slane %v3567, 2
      %v3774 = vsel %vm2788, %v3772, %v3773
      %v3775 = vrot.slane %v3561, 2
      %v3776 = vrot.slane %v3568, 2
      %v3777 = vsel %vm2788, %v3775, %v3776
      %v3778 = vrot.slane %v3562, 2
      %v3779 = vrot.slane %v3569, 2
      %v3780 = vsel %vm2788, %v3778, %v3779
      %v3781 = vrot.slane %v3563, 2
      %v3782 = vrot.slane %v3570, 2
      %v3783 = vsel %vm2788, %v3781, %v3782
      %v3784 = vrot.slane %v3564, 2
      %v3785 = vrot.slane %v3571, 2
      %v3786 = vsel %vm2788, %v3784, %v3785
      %v3787 = vrot.slane %v3565, 2
      %v3788 = vrot.slane %v3572, 2
      %v3789 = vsel %vm2788, %v3787, %v3788
      %v3790 = vrot.slane %v3573, 2
      %v3791 = vrot.slane %v3580, 2
      %v3792 = vsel %vm2788, %v3790, %v3791
      %v3793 = vrot.slane %v3574, 2
      %v3794 = vrot.slane %v3581, 2
      %v3795 = vsel %vm2788, %v3793, %v3794
      %v3796 = vrot.slane %v3575, 2
      %v3797 = vrot.slane %v3582, 2
      %v3798 = vsel %vm2788, %v3796, %v3797
      %v3799 = vrot.slane %v3576, 2
      %v3800 = vrot.slane %v3583, 2
      %v3801 = vsel %vm2788, %v3799, %v3800
      %v3802 = vrot.slane %v3577, 2
      %v3803 = vrot.slane %v3584, 2
      %v3804 = vsel %vm2788, %v3802, %v3803
      %v3805 = vrot.slane %v3578, 2
      %v3806 = vrot.slane %v3585, 2
      %v3807 = vsel %vm2788, %v3805, %v3806
      %v3808 = vrot.slane %v3579, 2
      %v3809 = vrot.slane %v3586, 2
      %v3810 = vsel %vm2788, %v3808, %v3809
      %v3811 = vrot.slane %v3587, 2
      %v3812 = vrot.slane %v3594, 2
      %v3813 = vsel %vm2788, %v3811, %v3812
      %v3814 = vrot.slane %v3588, 2
      %v3815 = vrot.slane %v3595, 2
      %v3816 = vsel %vm2788, %v3814, %v3815
      %v3817 = vrot.slane %v3589, 2
      %v3818 = vrot.slane %v3596, 2
      %v3819 = vsel %vm2788, %v3817, %v3818
      %v3820 = vrot.slane %v3590, 2
      %v3821 = vrot.slane %v3597, 2
      %v3822 = vsel %vm2788, %v3820, %v3821
      %v3823 = vrot.slane %v3591, 2
      %v3824 = vrot.slane %v3598, 2
      %v3825 = vsel %vm2788, %v3823, %v3824
      %v3826 = vrot.slane %v3592, 2
      %v3827 = vrot.slane %v3599, 2
      %v3828 = vsel %vm2788, %v3826, %v3827
      %v3829 = vrot.slane %v3593, 2
      %v3830 = vrot.slane %v3600, 2
      %v3831 = vsel %vm2788, %v3829, %v3830
      %v3832 = vrot.slane %v3601, 2
      %v3833 = vrot.slane %v3608, 2
      %v3834 = vsel %vm2788, %v3832, %v3833
      %v3835 = vrot.slane %v3602, 2
      %v3836 = vrot.slane %v3609, 2
      %v3837 = vsel %vm2788, %v3835, %v3836
      %v3838 = vrot.slane %v3603, 2
      %v3839 = vrot.slane %v3610, 2
      %v3840 = vsel %vm2788, %v3838, %v3839
      %v3841 = vrot.slane %v3604, 2
      %v3842 = vrot.slane %v3611, 2
      %v3843 = vsel %vm2788, %v3841, %v3842
      %v3844 = vrot.slane %v3605, 2
      %v3845 = vrot.slane %v3612, 2
      %v3846 = vsel %vm2788, %v3844, %v3845
      %v3847 = vrot.slane %v3606, 2
      %v3848 = vrot.slane %v3613, 2
      %v3849 = vsel %vm2788, %v3847, %v3848
      %v3850 = vrot.slane %v3607, 2
      %v3851 = vrot.slane %v3614, 2
      %v3852 = vsel %vm2788, %v3850, %v3851
      %v3853 = vrot.slane %v3615, 2
      %v3854 = vrot.slane %v3622, 2
      %v3855 = vsel %vm2788, %v3853, %v3854
      %v3856 = vrot.slane %v3616, 2
      %v3857 = vrot.slane %v3623, 2
      %v3858 = vsel %vm2788, %v3856, %v3857
      %v3859 = vrot.slane %v3617, 2
      %v3860 = vrot.slane %v3624, 2
      %v3861 = vsel %vm2788, %v3859, %v3860
      %v3862 = vrot.slane %v3618, 2
      %v3863 = vrot.slane %v3625, 2
      %v3864 = vsel %vm2788, %v3862, %v3863
      %v3865 = vrot.slane %v3619, 2
      %v3866 = vrot.slane %v3626, 2
      %v3867 = vsel %vm2788, %v3865, %v3866
      %v3868 = vrot.slane %v3620, 2
      %v3869 = vrot.slane %v3627, 2
      %v3870 = vsel %vm2788, %v3868, %v3869
      %v3871 = vrot.slane %v3621, 2
      %v3872 = vrot.slane %v3628, 2
      %v3873 = vsel %vm2788, %v3871, %v3872
      %v3923 = vadd.f32 %v3454, %v3729
      %v3924 = vadd.f32 %v3455, %v3732
      %v3925 = vadd.f32 %v3456, %v3735
      %v3926 = vadd.f32 %v3457, %v3738
      %v3927 = vadd.f32 %v3458, %v3741
      %v3928 = vadd.f32 %v3459, %v3744
      %v3929 = vadd.f32 %v3460, %v3747
      %v3930 = vadd.f32 %v3461, %v3750
      %v3931 = vadd.f32 %v3462, %v3753
      %v3932 = vadd.f32 %v3463, %v3756
      %v3933 = vadd.f32 %v3464, %v3759
      %v3934 = vadd.f32 %v3465, %v3762
      %v3935 = vadd.f32 %v3466, %v3765
      %v3936 = vadd.f32 %v3467, %v3768
      %v3937 = vadd.f32 %v3468, %v3771
      %v3938 = vadd.f32 %v3469, %v3774
      %v3939 = vadd.f32 %v3470, %v3777
      %v3940 = vadd.f32 %v3471, %v3780
      %v3941 = vadd.f32 %v3472, %v3783
      %v3942 = vadd.f32 %v3473, %v3786
      %v3943 = vadd.f32 %v3474, %v3789
      %v3944 = vadd.f32 %v3475, %v3792
      %v3945 = vadd.f32 %v3476, %v3795
      %v3946 = vadd.f32 %v3477, %v3798
      %v3947 = vadd.f32 %v3478, %v3801
      %v3948 = vadd.f32 %v3479, %v3804
      %v3949 = vadd.f32 %v3480, %v3807
      %v3950 = vadd.f32 %v3481, %v3810
      %v3951 = vadd.f32 %v3482, %v3813
      %v3952 = vadd.f32 %v3483, %v3816
      %v3953 = vadd.f32 %v3484, %v3819
      %v3954 = vadd.f32 %v3485, %v3822
      %v3955 = vadd.f32 %v3486, %v3825
      %v3956 = vadd.f32 %v3487, %v3828
      %v3957 = vadd.f32 %v3488, %v3831
      %v3958 = vadd.f32 %v3489, %v3834
      %v3959 = vadd.f32 %v3490, %v3837
      %v3960 = vadd.f32 %v3491, %v3840
      %v3961 = vadd.f32 %v3492, %v3843
      %v3962 = vadd.f32 %v3493, %v3846
      %v3963 = vadd.f32 %v3494, %v3849
      %v3964 = vadd.f32 %v3495, %v3852
      %v3965 = vadd.f32 %v3496, %v3855
      %v3966 = vadd.f32 %v3497, %v3858
      %v3967 = vadd.f32 %v3498, %v3861
      %v3968 = vadd.f32 %v3499, %v3864
      %v3969 = vadd.f32 %v3500, %v3867
      %v3970 = vadd.f32 %v3501, %v3870
      %v3971 = vadd.f32 %v3502, %v3873
      %v3972 = vlaneseq
      %v3973 = vshrl.u32 %v3972, 7
      %v3974 = vsub.s32 1, %v3973
      %v3975 = vrot.slane %v247, %v3974
      %v3976 = vlaneseq
      %v3977 = vshrl.u32 %v3976, 7
      %v3978 = vsub.s32 1, %v3977
      %v3979 = vrot.slane %v248, %v3978
      %v3980 = vlaneseq
      %v3981 = vshrl.u32 %v3980, 7
      %v3982 = vsub.s32 1, %v3981
      %v3983 = vrot.slane %v249, %v3982
      %v3984 = vlaneseq
      %v3985 = vshrl.u32 %v3984, 7
      %v3986 = vsub.s32 1, %v3985
      %v3987 = vrot.slane %v250, %v3986
      %v3988 = vlaneseq
      %v3989 = vshrl.u32 %v3988, 7
      %v3990 = vsub.s32 1, %v3989
      %v3991 = vrot.slane %v251, %v3990
      %v3992 = vlaneseq
      %v3993 = vshrl.u32 %v3992, 7
      %v3994 = vsub.s32 1, %v3993
      %v3995 = vrot.slane %v252, %v3994
      %v3996 = vlaneseq
      %v3997 = vshrl.u32 %v3996, 7
      %v3998 = vsub.s32 1, %v3997
      %v3999 = vrot.slane %v253, %v3998
      %v4000 = vmul.f32 %v2452, %v3975
      %v4001 = vmul.f32 %v2453, %v3979
      %v4002 = vmul.f32 %v2454, %v3983
      %v4003 = vmul.f32 %v2455, %v3987
      %v4004 = vmul.f32 %v2456, %v3991
      %v4005 = vmul.f32 %v2457, %v3995
      %v4006 = vmul.f32 %v2458, %v3999
      %v4007 = vmul.f32 %v2459, %v3975
      %v4008 = vmul.f32 %v2460, %v3979
      %v4009 = vmul.f32 %v2461, %v3983
      %v4010 = vmul.f32 %v2462, %v3987
      %v4011 = vmul.f32 %v2463, %v3991
      %v4012 = vmul.f32 %v2464, %v3995
      %v4013 = vmul.f32 %v2465, %v3999
      %v4014 = vmul.f32 %v2466, %v3975
      %v4015 = vmul.f32 %v2467, %v3979
      %v4016 = vmul.f32 %v2468, %v3983
      %v4017 = vmul.f32 %v2469, %v3987
      %v4018 = vmul.f32 %v2470, %v3991
      %v4019 = vmul.f32 %v2471, %v3995
      %v4020 = vmul.f32 %v2472, %v3999
      %v4021 = vmul.f32 %v2473, %v3975
      %v4022 = vmul.f32 %v2474, %v3979
      %v4023 = vmul.f32 %v2475, %v3983
      %v4024 = vmul.f32 %v2476, %v3987
      %v4025 = vmul.f32 %v2477, %v3991
      %v4026 = vmul.f32 %v2478, %v3995
      %v4027 = vmul.f32 %v2479, %v3999
      %v4028 = vmul.f32 %v2480, %v3975
      %v4029 = vmul.f32 %v2481, %v3979
      %v4030 = vmul.f32 %v2482, %v3983
      %v4031 = vmul.f32 %v2483, %v3987
      %v4032 = vmul.f32 %v2484, %v3991
      %v4033 = vmul.f32 %v2485, %v3995
      %v4034 = vmul.f32 %v2486, %v3999
      %v4035 = vmul.f32 %v2487, %v3975
      %v4036 = vmul.f32 %v2488, %v3979
      %v4037 = vmul.f32 %v2489, %v3983
      %v4038 = vmul.f32 %v2490, %v3987
      %v4039 = vmul.f32 %v2491, %v3991
      %v4040 = vmul.f32 %v2492, %v3995
      %v4041 = vmul.f32 %v2493, %v3999
      %v4042 = vmul.f32 %v2494, %v3975
      %v4043 = vmul.f32 %v2495, %v3979
      %v4044 = vmul.f32 %v2496, %v3983
      %v4045 = vmul.f32 %v2497, %v3987
      %v4046 = vmul.f32 %v2498, %v3991
      %v4047 = vmul.f32 %v2499, %v3995
      %v4048 = vmul.f32 %v2500, %v3999
      %v4049 = vmul.f32 %v2501, %v3975
      %v4050 = vmul.f32 %v2502, %v3979
      %v4051 = vmul.f32 %v2503, %v3983
      %v4052 = vmul.f32 %v2504, %v3987
      %v4053 = vmul.f32 %v2505, %v3991
      %v4054 = vmul.f32 %v2506, %v3995
      %v4055 = vmul.f32 %v2507, %v3999
      %v4056 = vmul.f32 %v2508, %v3975
      %v4057 = vmul.f32 %v2509, %v3979
      %v4058 = vmul.f32 %v2510, %v3983
      %v4059 = vmul.f32 %v2511, %v3987
      %v4060 = vmul.f32 %v2512, %v3991
      %v4061 = vmul.f32 %v2513, %v3995
      %v4062 = vmul.f32 %v2514, %v3999
      %v4063 = vmul.f32 %v2515, %v3975
      %v4064 = vmul.f32 %v2516, %v3979
      %v4065 = vmul.f32 %v2517, %v3983
      %v4066 = vmul.f32 %v2518, %v3987
      %v4067 = vmul.f32 %v2519, %v3991
      %v4068 = vmul.f32 %v2520, %v3995
      %v4069 = vmul.f32 %v2521, %v3999
      %v4070 = vmul.f32 %v2522, %v3975
      %v4071 = vmul.f32 %v2523, %v3979
      %v4072 = vmul.f32 %v2524, %v3983
      %v4073 = vmul.f32 %v2525, %v3987
      %v4074 = vmul.f32 %v2526, %v3991
      %v4075 = vmul.f32 %v2527, %v3995
      %v4076 = vmul.f32 %v2528, %v3999
      %v4077 = vmul.f32 %v2529, %v3975
      %v4078 = vmul.f32 %v2530, %v3979
      %v4079 = vmul.f32 %v2531, %v3983
      %v4080 = vmul.f32 %v2532, %v3987
      %v4081 = vmul.f32 %v2533, %v3991
      %v4082 = vmul.f32 %v2534, %v3995
      %v4083 = vmul.f32 %v2535, %v3999
      %v4084 = vmul.f32 %v2536, %v3975
      %v4085 = vmul.f32 %v2537, %v3979
      %v4086 = vmul.f32 %v2538, %v3983
      %v4087 = vmul.f32 %v2539, %v3987
      %v4088 = vmul.f32 %v2540, %v3991
      %v4089 = vmul.f32 %v2541, %v3995
      %v4090 = vmul.f32 %v2542, %v3999
      %v4091 = vmul.f32 %v2543, %v3975
      %v4092 = vmul.f32 %v2544, %v3979
      %v4093 = vmul.f32 %v2545, %v3983
      %v4094 = vmul.f32 %v2546, %v3987
      %v4095 = vmul.f32 %v2547, %v3991
      %v4096 = vmul.f32 %v2548, %v3995
      %v4097 = vmul.f32 %v2549, %v3999
      %v4196 = vrot.slane %v4000, 2
      %v4197 = vrot.slane %v4007, 2
      %v4198 = vsel %vm2788, %v4196, %v4197
      %v4199 = vrot.slane %v4001, 2
      %v4200 = vrot.slane %v4008, 2
      %v4201 = vsel %vm2788, %v4199, %v4200
      %v4202 = vrot.slane %v4002, 2
      %v4203 = vrot.slane %v4009, 2
      %v4204 = vsel %vm2788, %v4202, %v4203
      %v4205 = vrot.slane %v4003, 2
      %v4206 = vrot.slane %v4010, 2
      %v4207 = vsel %vm2788, %v4205, %v4206
      %v4208 = vrot.slane %v4004, 2
      %v4209 = vrot.slane %v4011, 2
      %v4210 = vsel %vm2788, %v4208, %v4209
      %v4211 = vrot.slane %v4005, 2
      %v4212 = vrot.slane %v4012, 2
      %v4213 = vsel %vm2788, %v4211, %v4212
      %v4214 = vrot.slane %v4006, 2
      %v4215 = vrot.slane %v4013, 2
      %v4216 = vsel %vm2788, %v4214, %v4215
      %v4217 = vrot.slane %v4014, 2
      %v4218 = vrot.slane %v4021, 2
      %v4219 = vsel %vm2788, %v4217, %v4218
      %v4220 = vrot.slane %v4015, 2
      %v4221 = vrot.slane %v4022, 2
      %v4222 = vsel %vm2788, %v4220, %v4221
      %v4223 = vrot.slane %v4016, 2
      %v4224 = vrot.slane %v4023, 2
      %v4225 = vsel %vm2788, %v4223, %v4224
      %v4226 = vrot.slane %v4017, 2
      %v4227 = vrot.slane %v4024, 2
      %v4228 = vsel %vm2788, %v4226, %v4227
      %v4229 = vrot.slane %v4018, 2
      %v4230 = vrot.slane %v4025, 2
      %v4231 = vsel %vm2788, %v4229, %v4230
      %v4232 = vrot.slane %v4019, 2
      %v4233 = vrot.slane %v4026, 2
      %v4234 = vsel %vm2788, %v4232, %v4233
      %v4235 = vrot.slane %v4020, 2
      %v4236 = vrot.slane %v4027, 2
      %v4237 = vsel %vm2788, %v4235, %v4236
      %v4238 = vrot.slane %v4028, 2
      %v4239 = vrot.slane %v4035, 2
      %v4240 = vsel %vm2788, %v4238, %v4239
      %v4241 = vrot.slane %v4029, 2
      %v4242 = vrot.slane %v4036, 2
      %v4243 = vsel %vm2788, %v4241, %v4242
      %v4244 = vrot.slane %v4030, 2
      %v4245 = vrot.slane %v4037, 2
      %v4246 = vsel %vm2788, %v4244, %v4245
      %v4247 = vrot.slane %v4031, 2
      %v4248 = vrot.slane %v4038, 2
      %v4249 = vsel %vm2788, %v4247, %v4248
      %v4250 = vrot.slane %v4032, 2
      %v4251 = vrot.slane %v4039, 2
      %v4252 = vsel %vm2788, %v4250, %v4251
      %v4253 = vrot.slane %v4033, 2
      %v4254 = vrot.slane %v4040, 2
      %v4255 = vsel %vm2788, %v4253, %v4254
      %v4256 = vrot.slane %v4034, 2
      %v4257 = vrot.slane %v4041, 2
      %v4258 = vsel %vm2788, %v4256, %v4257
      %v4259 = vrot.slane %v4042, 2
      %v4260 = vrot.slane %v4049, 2
      %v4261 = vsel %vm2788, %v4259, %v4260
      %v4262 = vrot.slane %v4043, 2
      %v4263 = vrot.slane %v4050, 2
      %v4264 = vsel %vm2788, %v4262, %v4263
      %v4265 = vrot.slane %v4044, 2
      %v4266 = vrot.slane %v4051, 2
      %v4267 = vsel %vm2788, %v4265, %v4266
      %v4268 = vrot.slane %v4045, 2
      %v4269 = vrot.slane %v4052, 2
      %v4270 = vsel %vm2788, %v4268, %v4269
      %v4271 = vrot.slane %v4046, 2
      %v4272 = vrot.slane %v4053, 2
      %v4273 = vsel %vm2788, %v4271, %v4272
      %v4274 = vrot.slane %v4047, 2
      %v4275 = vrot.slane %v4054, 2
      %v4276 = vsel %vm2788, %v4274, %v4275
      %v4277 = vrot.slane %v4048, 2
      %v4278 = vrot.slane %v4055, 2
      %v4279 = vsel %vm2788, %v4277, %v4278
      %v4280 = vrot.slane %v4056, 2
      %v4281 = vrot.slane %v4063, 2
      %v4282 = vsel %vm2788, %v4280, %v4281
      %v4283 = vrot.slane %v4057, 2
      %v4284 = vrot.slane %v4064, 2
      %v4285 = vsel %vm2788, %v4283, %v4284
      %v4286 = vrot.slane %v4058, 2
      %v4287 = vrot.slane %v4065, 2
      %v4288 = vsel %vm2788, %v4286, %v4287
      %v4289 = vrot.slane %v4059, 2
      %v4290 = vrot.slane %v4066, 2
      %v4291 = vsel %vm2788, %v4289, %v4290
      %v4292 = vrot.slane %v4060, 2
      %v4293 = vrot.slane %v4067, 2
      %v4294 = vsel %vm2788, %v4292, %v4293
      %v4295 = vrot.slane %v4061, 2
      %v4296 = vrot.slane %v4068, 2
      %v4297 = vsel %vm2788, %v4295, %v4296
      %v4298 = vrot.slane %v4062, 2
      %v4299 = vrot.slane %v4069, 2
      %v4300 = vsel %vm2788, %v4298, %v4299
      %v4301 = vrot.slane %v4070, 2
      %v4302 = vrot.slane %v4077, 2
      %v4303 = vsel %vm2788, %v4301, %v4302
      %v4304 = vrot.slane %v4071, 2
      %v4305 = vrot.slane %v4078, 2
      %v4306 = vsel %vm2788, %v4304, %v4305
      %v4307 = vrot.slane %v4072, 2
      %v4308 = vrot.slane %v4079, 2
      %v4309 = vsel %vm2788, %v4307, %v4308
      %v4310 = vrot.slane %v4073, 2
      %v4311 = vrot.slane %v4080, 2
      %v4312 = vsel %vm2788, %v4310, %v4311
      %v4313 = vrot.slane %v4074, 2
      %v4314 = vrot.slane %v4081, 2
      %v4315 = vsel %vm2788, %v4313, %v4314
      %v4316 = vrot.slane %v4075, 2
      %v4317 = vrot.slane %v4082, 2
      %v4318 = vsel %vm2788, %v4316, %v4317
      %v4319 = vrot.slane %v4076, 2
      %v4320 = vrot.slane %v4083, 2
      %v4321 = vsel %vm2788, %v4319, %v4320
      %v4322 = vrot.slane %v4084, 2
      %v4323 = vrot.slane %v4091, 2
      %v4324 = vsel %vm2788, %v4322, %v4323
      %v4325 = vrot.slane %v4085, 2
      %v4326 = vrot.slane %v4092, 2
      %v4327 = vsel %vm2788, %v4325, %v4326
      %v4328 = vrot.slane %v4086, 2
      %v4329 = vrot.slane %v4093, 2
      %v4330 = vsel %vm2788, %v4328, %v4329
      %v4331 = vrot.slane %v4087, 2
      %v4332 = vrot.slane %v4094, 2
      %v4333 = vsel %vm2788, %v4331, %v4332
      %v4334 = vrot.slane %v4088, 2
      %v4335 = vrot.slane %v4095, 2
      %v4336 = vsel %vm2788, %v4334, %v4335
      %v4337 = vrot.slane %v4089, 2
      %v4338 = vrot.slane %v4096, 2
      %v4339 = vsel %vm2788, %v4337, %v4338
      %v4340 = vrot.slane %v4090, 2
      %v4341 = vrot.slane %v4097, 2
      %v4342 = vsel %vm2788, %v4340, %v4341
      %v4392 = vadd.f32 %v3923, %v4198
      %v4393 = vadd.f32 %v3924, %v4201
      %v4394 = vadd.f32 %v3925, %v4204
      %v4395 = vadd.f32 %v3926, %v4207
      %v4396 = vadd.f32 %v3927, %v4210
      %v4397 = vadd.f32 %v3928, %v4213
      %v4398 = vadd.f32 %v3929, %v4216
      %v4399 = vadd.f32 %v3930, %v4219
      %v4400 = vadd.f32 %v3931, %v4222
      %v4401 = vadd.f32 %v3932, %v4225
      %v4402 = vadd.f32 %v3933, %v4228
      %v4403 = vadd.f32 %v3934, %v4231
      %v4404 = vadd.f32 %v3935, %v4234
      %v4405 = vadd.f32 %v3936, %v4237
      %v4406 = vadd.f32 %v3937, %v4240
      %v4407 = vadd.f32 %v3938, %v4243
      %v4408 = vadd.f32 %v3939, %v4246
      %v4409 = vadd.f32 %v3940, %v4249
      %v4410 = vadd.f32 %v3941, %v4252
      %v4411 = vadd.f32 %v3942, %v4255
      %v4412 = vadd.f32 %v3943, %v4258
      %v4413 = vadd.f32 %v3944, %v4261
      %v4414 = vadd.f32 %v3945, %v4264
      %v4415 = vadd.f32 %v3946, %v4267
      %v4416 = vadd.f32 %v3947, %v4270
      %v4417 = vadd.f32 %v3948, %v4273
      %v4418 = vadd.f32 %v3949, %v4276
      %v4419 = vadd.f32 %v3950, %v4279
      %v4420 = vadd.f32 %v3951, %v4282
      %v4421 = vadd.f32 %v3952, %v4285
      %v4422 = vadd.f32 %v3953, %v4288
      %v4423 = vadd.f32 %v3954, %v4291
      %v4424 = vadd.f32 %v3955, %v4294
      %v4425 = vadd.f32 %v3956, %v4297
      %v4426 = vadd.f32 %v3957, %v4300
      %v4427 = vadd.f32 %v3958, %v4303
      %v4428 = vadd.f32 %v3959, %v4306
      %v4429 = vadd.f32 %v3960, %v4309
      %v4430 = vadd.f32 %v3961, %v4312
      %v4431 = vadd.f32 %v3962, %v4315
      %v4432 = vadd.f32 %v3963, %v4318
      %v4433 = vadd.f32 %v3964, %v4321
      %v4434 = vadd.f32 %v3965, %v4324
      %v4435 = vadd.f32 %v3966, %v4327
      %v4436 = vadd.f32 %v3967, %v4330
      %v4437 = vadd.f32 %v3968, %v4333
      %v4438 = vadd.f32 %v3969, %v4336
      %v4439 = vadd.f32 %v3970, %v4339
      %v4440 = vadd.f32 %v3971, %v4342
      %v4441 = vlaneseq
      %v4442 = vshrl.u32 %v4441, 7
      %v4443 = vsub.s32 6, %v4442
      %v4444 = vrot.slane %v247, %v4443
      %v4445 = vlaneseq
      %v4446 = vshrl.u32 %v4445, 7
      %v4447 = vsub.s32 6, %v4446
      %v4448 = vrot.slane %v248, %v4447
      %v4449 = vlaneseq
      %v4450 = vshrl.u32 %v4449, 7
      %v4451 = vsub.s32 6, %v4450
      %v4452 = vrot.slane %v249, %v4451
      %v4453 = vlaneseq
      %v4454 = vshrl.u32 %v4453, 7
      %v4455 = vsub.s32 6, %v4454
      %v4456 = vrot.slane %v250, %v4455
      %v4457 = vlaneseq
      %v4458 = vshrl.u32 %v4457, 7
      %v4459 = vsub.s32 6, %v4458
      %v4460 = vrot.slane %v251, %v4459
      %v4461 = vlaneseq
      %v4462 = vshrl.u32 %v4461, 7
      %v4463 = vsub.s32 6, %v4462
      %v4464 = vrot.slane %v252, %v4463
      %v4465 = vlaneseq
      %v4466 = vshrl.u32 %v4465, 7
      %v4467 = vsub.s32 6, %v4466
      %v4468 = vrot.slane %v253, %v4467
      %v4469 = vmul.f32 %v2466, %v4444
      %v4470 = vmul.f32 %v2467, %v4448
      %v4471 = vmul.f32 %v2468, %v4452
      %v4472 = vmul.f32 %v2469, %v4456
      %v4473 = vmul.f32 %v2470, %v4460
      %v4474 = vmul.f32 %v2471, %v4464
      %v4475 = vmul.f32 %v2472, %v4468
      %v4476 = vmul.f32 %v2473, %v4444
      %v4477 = vmul.f32 %v2474, %v4448
      %v4478 = vmul.f32 %v2475, %v4452
      %v4479 = vmul.f32 %v2476, %v4456
      %v4480 = vmul.f32 %v2477, %v4460
      %v4481 = vmul.f32 %v2478, %v4464
      %v4482 = vmul.f32 %v2479, %v4468
      %v4483 = vmul.f32 %v2480, %v4444
      %v4484 = vmul.f32 %v2481, %v4448
      %v4485 = vmul.f32 %v2482, %v4452
      %v4486 = vmul.f32 %v2483, %v4456
      %v4487 = vmul.f32 %v2484, %v4460
      %v4488 = vmul.f32 %v2485, %v4464
      %v4489 = vmul.f32 %v2486, %v4468
      %v4490 = vmul.f32 %v2487, %v4444
      %v4491 = vmul.f32 %v2488, %v4448
      %v4492 = vmul.f32 %v2489, %v4452
      %v4493 = vmul.f32 %v2490, %v4456
      %v4494 = vmul.f32 %v2491, %v4460
      %v4495 = vmul.f32 %v2492, %v4464
      %v4496 = vmul.f32 %v2493, %v4468
      %v4497 = vmul.f32 %v2494, %v4444
      %v4498 = vmul.f32 %v2495, %v4448
      %v4499 = vmul.f32 %v2496, %v4452
      %v4500 = vmul.f32 %v2497, %v4456
      %v4501 = vmul.f32 %v2498, %v4460
      %v4502 = vmul.f32 %v2499, %v4464
      %v4503 = vmul.f32 %v2500, %v4468
      %v4504 = vmul.f32 %v2501, %v4444
      %v4505 = vmul.f32 %v2502, %v4448
      %v4506 = vmul.f32 %v2503, %v4452
      %v4507 = vmul.f32 %v2504, %v4456
      %v4508 = vmul.f32 %v2505, %v4460
      %v4509 = vmul.f32 %v2506, %v4464
      %v4510 = vmul.f32 %v2507, %v4468
      %v4511 = vmul.f32 %v2508, %v4444
      %v4512 = vmul.f32 %v2509, %v4448
      %v4513 = vmul.f32 %v2510, %v4452
      %v4514 = vmul.f32 %v2511, %v4456
      %v4515 = vmul.f32 %v2512, %v4460
      %v4516 = vmul.f32 %v2513, %v4464
      %v4517 = vmul.f32 %v2514, %v4468
      %v4518 = vmul.f32 %v2515, %v4444
      %v4519 = vmul.f32 %v2516, %v4448
      %v4520 = vmul.f32 %v2517, %v4452
      %v4521 = vmul.f32 %v2518, %v4456
      %v4522 = vmul.f32 %v2519, %v4460
      %v4523 = vmul.f32 %v2520, %v4464
      %v4524 = vmul.f32 %v2521, %v4468
      %v4525 = vmul.f32 %v2522, %v4444
      %v4526 = vmul.f32 %v2523, %v4448
      %v4527 = vmul.f32 %v2524, %v4452
      %v4528 = vmul.f32 %v2525, %v4456
      %v4529 = vmul.f32 %v2526, %v4460
      %v4530 = vmul.f32 %v2527, %v4464
      %v4531 = vmul.f32 %v2528, %v4468
      %v4532 = vmul.f32 %v2529, %v4444
      %v4533 = vmul.f32 %v2530, %v4448
      %v4534 = vmul.f32 %v2531, %v4452
      %v4535 = vmul.f32 %v2532, %v4456
      %v4536 = vmul.f32 %v2533, %v4460
      %v4537 = vmul.f32 %v2534, %v4464
      %v4538 = vmul.f32 %v2535, %v4468
      %v4539 = vmul.f32 %v2536, %v4444
      %v4540 = vmul.f32 %v2537, %v4448
      %v4541 = vmul.f32 %v2538, %v4452
      %v4542 = vmul.f32 %v2539, %v4456
      %v4543 = vmul.f32 %v2540, %v4460
      %v4544 = vmul.f32 %v2541, %v4464
      %v4545 = vmul.f32 %v2542, %v4468
      %v4546 = vmul.f32 %v2543, %v4444
      %v4547 = vmul.f32 %v2544, %v4448
      %v4548 = vmul.f32 %v2545, %v4452
      %v4549 = vmul.f32 %v2546, %v4456
      %v4550 = vmul.f32 %v2547, %v4460
      %v4551 = vmul.f32 %v2548, %v4464
      %v4552 = vmul.f32 %v2549, %v4468
      %v4553 = vmul.f32 %v2550, %v4444
      %v4554 = vmul.f32 %v2551, %v4448
      %v4555 = vmul.f32 %v2552, %v4452
      %v4556 = vmul.f32 %v2553, %v4456
      %v4557 = vmul.f32 %v2554, %v4460
      %v4558 = vmul.f32 %v2555, %v4464
      %v4559 = vmul.f32 %v2556, %v4468
      %v4560 = vmul.f32 %v2557, %v4444
      %v4561 = vmul.f32 %v2558, %v4448
      %v4562 = vmul.f32 %v2559, %v4452
      %v4563 = vmul.f32 %v2560, %v4456
      %v4564 = vmul.f32 %v2561, %v4460
      %v4565 = vmul.f32 %v2562, %v4464
      %v4566 = vmul.f32 %v2563, %v4468
      %v4665 = vrot.slane %v4469, 2
      %v4666 = vrot.slane %v4476, 2
      %v4667 = vsel %vm2788, %v4665, %v4666
      %v4668 = vrot.slane %v4470, 2
      %v4669 = vrot.slane %v4477, 2
      %v4670 = vsel %vm2788, %v4668, %v4669
      %v4671 = vrot.slane %v4471, 2
      %v4672 = vrot.slane %v4478, 2
      %v4673 = vsel %vm2788, %v4671, %v4672
      %v4674 = vrot.slane %v4472, 2
      %v4675 = vrot.slane %v4479, 2
      %v4676 = vsel %vm2788, %v4674, %v4675
      %v4677 = vrot.slane %v4473, 2
      %v4678 = vrot.slane %v4480, 2
      %v4679 = vsel %vm2788, %v4677, %v4678
      %v4680 = vrot.slane %v4474, 2
      %v4681 = vrot.slane %v4481, 2
      %v4682 = vsel %vm2788, %v4680, %v4681
      %v4683 = vrot.slane %v4475, 2
      %v4684 = vrot.slane %v4482, 2
      %v4685 = vsel %vm2788, %v4683, %v4684
      %v4686 = vrot.slane %v4483, 2
      %v4687 = vrot.slane %v4490, 2
      %v4688 = vsel %vm2788, %v4686, %v4687
      %v4689 = vrot.slane %v4484, 2
      %v4690 = vrot.slane %v4491, 2
      %v4691 = vsel %vm2788, %v4689, %v4690
      %v4692 = vrot.slane %v4485, 2
      %v4693 = vrot.slane %v4492, 2
      %v4694 = vsel %vm2788, %v4692, %v4693
      %v4695 = vrot.slane %v4486, 2
      %v4696 = vrot.slane %v4493, 2
      %v4697 = vsel %vm2788, %v4695, %v4696
      %v4698 = vrot.slane %v4487, 2
      %v4699 = vrot.slane %v4494, 2
      %v4700 = vsel %vm2788, %v4698, %v4699
      %v4701 = vrot.slane %v4488, 2
      %v4702 = vrot.slane %v4495, 2
      %v4703 = vsel %vm2788, %v4701, %v4702
      %v4704 = vrot.slane %v4489, 2
      %v4705 = vrot.slane %v4496, 2
      %v4706 = vsel %vm2788, %v4704, %v4705
      %v4707 = vrot.slane %v4497, 2
      %v4708 = vrot.slane %v4504, 2
      %v4709 = vsel %vm2788, %v4707, %v4708
      %v4710 = vrot.slane %v4498, 2
      %v4711 = vrot.slane %v4505, 2
      %v4712 = vsel %vm2788, %v4710, %v4711
      %v4713 = vrot.slane %v4499, 2
      %v4714 = vrot.slane %v4506, 2
      %v4715 = vsel %vm2788, %v4713, %v4714
      %v4716 = vrot.slane %v4500, 2
      %v4717 = vrot.slane %v4507, 2
      %v4718 = vsel %vm2788, %v4716, %v4717
      %v4719 = vrot.slane %v4501, 2
      %v4720 = vrot.slane %v4508, 2
      %v4721 = vsel %vm2788, %v4719, %v4720
      %v4722 = vrot.slane %v4502, 2
      %v4723 = vrot.slane %v4509, 2
      %v4724 = vsel %vm2788, %v4722, %v4723
      %v4725 = vrot.slane %v4503, 2
      %v4726 = vrot.slane %v4510, 2
      %v4727 = vsel %vm2788, %v4725, %v4726
      %v4728 = vrot.slane %v4511, 2
      %v4729 = vrot.slane %v4518, 2
      %v4730 = vsel %vm2788, %v4728, %v4729
      %v4731 = vrot.slane %v4512, 2
      %v4732 = vrot.slane %v4519, 2
      %v4733 = vsel %vm2788, %v4731, %v4732
      %v4734 = vrot.slane %v4513, 2
      %v4735 = vrot.slane %v4520, 2
      %v4736 = vsel %vm2788, %v4734, %v4735
      %v4737 = vrot.slane %v4514, 2
      %v4738 = vrot.slane %v4521, 2
      %v4739 = vsel %vm2788, %v4737, %v4738
      %v4740 = vrot.slane %v4515, 2
      %v4741 = vrot.slane %v4522, 2
      %v4742 = vsel %vm2788, %v4740, %v4741
      %v4743 = vrot.slane %v4516, 2
      %v4744 = vrot.slane %v4523, 2
      %v4745 = vsel %vm2788, %v4743, %v4744
      %v4746 = vrot.slane %v4517, 2
      %v4747 = vrot.slane %v4524, 2
      %v4748 = vsel %vm2788, %v4746, %v4747
      %v4749 = vrot.slane %v4525, 2
      %v4750 = vrot.slane %v4532, 2
      %v4751 = vsel %vm2788, %v4749, %v4750
      %v4752 = vrot.slane %v4526, 2
      %v4753 = vrot.slane %v4533, 2
      %v4754 = vsel %vm2788, %v4752, %v4753
      %v4755 = vrot.slane %v4527, 2
      %v4756 = vrot.slane %v4534, 2
      %v4757 = vsel %vm2788, %v4755, %v4756
      %v4758 = vrot.slane %v4528, 2
      %v4759 = vrot.slane %v4535, 2
      %v4760 = vsel %vm2788, %v4758, %v4759
      %v4761 = vrot.slane %v4529, 2
      %v4762 = vrot.slane %v4536, 2
      %v4763 = vsel %vm2788, %v4761, %v4762
      %v4764 = vrot.slane %v4530, 2
      %v4765 = vrot.slane %v4537, 2
      %v4766 = vsel %vm2788, %v4764, %v4765
      %v4767 = vrot.slane %v4531, 2
      %v4768 = vrot.slane %v4538, 2
      %v4769 = vsel %vm2788, %v4767, %v4768
      %v4770 = vrot.slane %v4539, 2
      %v4771 = vrot.slane %v4546, 2
      %v4772 = vsel %vm2788, %v4770, %v4771
      %v4773 = vrot.slane %v4540, 2
      %v4774 = vrot.slane %v4547, 2
      %v4775 = vsel %vm2788, %v4773, %v4774
      %v4776 = vrot.slane %v4541, 2
      %v4777 = vrot.slane %v4548, 2
      %v4778 = vsel %vm2788, %v4776, %v4777
      %v4779 = vrot.slane %v4542, 2
      %v4780 = vrot.slane %v4549, 2
      %v4781 = vsel %vm2788, %v4779, %v4780
      %v4782 = vrot.slane %v4543, 2
      %v4783 = vrot.slane %v4550, 2
      %v4784 = vsel %vm2788, %v4782, %v4783
      %v4785 = vrot.slane %v4544, 2
      %v4786 = vrot.slane %v4551, 2
      %v4787 = vsel %vm2788, %v4785, %v4786
      %v4788 = vrot.slane %v4545, 2
      %v4789 = vrot.slane %v4552, 2
      %v4790 = vsel %vm2788, %v4788, %v4789
      %v4791 = vrot.slane %v4553, 2
      %v4792 = vrot.slane %v4560, 2
      %v4793 = vsel %vm2788, %v4791, %v4792
      %v4794 = vrot.slane %v4554, 2
      %v4795 = vrot.slane %v4561, 2
      %v4796 = vsel %vm2788, %v4794, %v4795
      %v4797 = vrot.slane %v4555, 2
      %v4798 = vrot.slane %v4562, 2
      %v4799 = vsel %vm2788, %v4797, %v4798
      %v4800 = vrot.slane %v4556, 2
      %v4801 = vrot.slane %v4563, 2
      %v4802 = vsel %vm2788, %v4800, %v4801
      %v4803 = vrot.slane %v4557, 2
      %v4804 = vrot.slane %v4564, 2
      %v4805 = vsel %vm2788, %v4803, %v4804
      %v4806 = vrot.slane %v4558, 2
      %v4807 = vrot.slane %v4565, 2
      %v4808 = vsel %vm2788, %v4806, %v4807
      %v4809 = vrot.slane %v4559, 2
      %v4810 = vrot.slane %v4566, 2
      %v4811 = vsel %vm2788, %v4809, %v4810
      %v4861 = vadd.f32 %v4392, %v4667
      %v4862 = vadd.f32 %v4393, %v4670
      %v4863 = vadd.f32 %v4394, %v4673
      %v4864 = vadd.f32 %v4395, %v4676
      %v4865 = vadd.f32 %v4396, %v4679
      %v4866 = vadd.f32 %v4397, %v4682
      %v4867 = vadd.f32 %v4398, %v4685
      %v4868 = vadd.f32 %v4399, %v4688
      %v4869 = vadd.f32 %v4400, %v4691
      %v4870 = vadd.f32 %v4401, %v4694
      %v4871 = vadd.f32 %v4402, %v4697
      %v4872 = vadd.f32 %v4403, %v4700
      %v4873 = vadd.f32 %v4404, %v4703
      %v4874 = vadd.f32 %v4405, %v4706
      %v4875 = vadd.f32 %v4406, %v4709
      %v4876 = vadd.f32 %v4407, %v4712
      %v4877 = vadd.f32 %v4408, %v4715
      %v4878 = vadd.f32 %v4409, %v4718
      %v4879 = vadd.f32 %v4410, %v4721
      %v4880 = vadd.f32 %v4411, %v4724
      %v4881 = vadd.f32 %v4412, %v4727
      %v4882 = vadd.f32 %v4413, %v4730
      %v4883 = vadd.f32 %v4414, %v4733
      %v4884 = vadd.f32 %v4415, %v4736
      %v4885 = vadd.f32 %v4416, %v4739
      %v4886 = vadd.f32 %v4417, %v4742
      %v4887 = vadd.f32 %v4418, %v4745
      %v4888 = vadd.f32 %v4419, %v4748
      %v4889 = vadd.f32 %v4420, %v4751
      %v4890 = vadd.f32 %v4421, %v4754
      %v4891 = vadd.f32 %v4422, %v4757
      %v4892 = vadd.f32 %v4423, %v4760
      %v4893 = vadd.f32 %v4424, %v4763
      %v4894 = vadd.f32 %v4425, %v4766
      %v4895 = vadd.f32 %v4426, %v4769
      %v4896 = vadd.f32 %v4427, %v4772
      %v4897 = vadd.f32 %v4428, %v4775
      %v4898 = vadd.f32 %v4429, %v4778
      %v4899 = vadd.f32 %v4430, %v4781
      %v4900 = vadd.f32 %v4431, %v4784
      %v4901 = vadd.f32 %v4432, %v4787
      %v4902 = vadd.f32 %v4433, %v4790
      %v4903 = vadd.f32 %v4434, %v4793
      %v4904 = vadd.f32 %v4435, %v4796
      %v4905 = vadd.f32 %v4436, %v4799
      %v4906 = vadd.f32 %v4437, %v4802
      %v4907 = vadd.f32 %v4438, %v4805
      %v4908 = vadd.f32 %v4439, %v4808
      %v4909 = vadd.f32 %v4440, %v4811
      %v4910 = vld [vmem:[%s212] sm:$0xf8]
      %v4911 = vld [vmem:[%s212 + $0x8] sm:$0xf8]
      %v4912 = vld [vmem:[%s212 + $0x10] sm:$0xf8]
      %v4913 = vld [vmem:[%s212 + $0x18] sm:$0xf8]
      %v4914 = vld [vmem:[%s212 + $0x20] sm:$0xf8]
      %v4915 = vld [vmem:[%s212 + $0x28] sm:$0xf8]
      %v4916 = vld [vmem:[%s212 + $0x30] sm:$0xf8]
      %v4917 = vld [vmem:[%s212 + $0x38] sm:$0x3]
      %v4918 = vld [vmem:[%s212 + $0x40] sm:$0x3]
      %v4919 = vld [vmem:[%s212 + $0x48] sm:$0x3]
      %v4920 = vld [vmem:[%s212 + $0x50] sm:$0x3]
      %v4921 = vld [vmem:[%s212 + $0x58] sm:$0x3]
      %v4922 = vld [vmem:[%s212 + $0x60] sm:$0x3]
      %v4923 = vld [vmem:[%s212 + $0x68] sm:$0x3]
      %v4924 = vld [vmem:[%s212 + $0x70] sm:$0xf8]
      %v4925 = vld [vmem:[%s212 + $0x78] sm:$0xf8]
      %v4926 = vld [vmem:[%s212 + $0x80] sm:$0xf8]
      %v4927 = vld [vmem:[%s212 + $0x88] sm:$0xf8]
      %v4928 = vld [vmem:[%s212 + $0x90] sm:$0xf8]
      %v4929 = vld [vmem:[%s212 + $0x98] sm:$0xf8]
      %v4930 = vld [vmem:[%s212 + $0xa0] sm:$0xf8]
      %v4931 = vld [vmem:[%s212 + $0xa8] sm:$0x3]
      %v4932 = vld [vmem:[%s212 + $0xb0] sm:$0x3]
      %v4933 = vld [vmem:[%s212 + $0xb8] sm:$0x3]
      %v4934 = vld [vmem:[%s212 + $0xc0] sm:$0x3]
      %v4935 = vld [vmem:[%s212 + $0xc8] sm:$0x3]
      %v4936 = vld [vmem:[%s212 + $0xd0] sm:$0x3]
      %v4937 = vld [vmem:[%s212 + $0xd8] sm:$0x3]
      %v4938 = vld [vmem:[%s212 + $0xe0] sm:$0xf8]
      %v4939 = vld [vmem:[%s212 + $0xe8] sm:$0xf8]
      %v4940 = vld [vmem:[%s212 + $0xf0] sm:$0xf8]
      %v4941 = vld [vmem:[%s212 + $0xf8] sm:$0xf8]
      %v4942 = vld [vmem:[%s212 + $0x100] sm:$0xf8]
      %v4943 = vld [vmem:[%s212 + $0x108] sm:$0xf8]
      %v4944 = vld [vmem:[%s212 + $0x110] sm:$0xf8]
      %v4945 = vld [vmem:[%s212 + $0x118] sm:$0x3]
      %v4946 = vld [vmem:[%s212 + $0x120] sm:$0x3]
      %v4947 = vld [vmem:[%s212 + $0x128] sm:$0x3]
      %v4948 = vld [vmem:[%s212 + $0x130] sm:$0x3]
      %v4949 = vld [vmem:[%s212 + $0x138] sm:$0x3]
      %v4950 = vld [vmem:[%s212 + $0x140] sm:$0x3]
      %v4951 = vld [vmem:[%s212 + $0x148] sm:$0x3]
      %v4952 = vld [vmem:[%s212 + $0x150] sm:$0xf8]
      %v4953 = vld [vmem:[%s212 + $0x158] sm:$0xf8]
      %v4954 = vld [vmem:[%s212 + $0x160] sm:$0xf8]
      %v4955 = vld [vmem:[%s212 + $0x168] sm:$0xf8]
      %v4956 = vld [vmem:[%s212 + $0x170] sm:$0xf8]
      %v4957 = vld [vmem:[%s212 + $0x178] sm:$0xf8]
      %v4958 = vld [vmem:[%s212 + $0x180] sm:$0xf8]
      %v4959 = vld [vmem:[%s212 + $0x188] sm:$0x3]
      %v4960 = vld [vmem:[%s212 + $0x190] sm:$0x3]
      %v4961 = vld [vmem:[%s212 + $0x198] sm:$0x3]
      %v4962 = vld [vmem:[%s212 + $0x1a0] sm:$0x3]
      %v4963 = vld [vmem:[%s212 + $0x1a8] sm:$0x3]
      %v4964 = vld [vmem:[%s212 + $0x1b0] sm:$0x3]
      %v4965 = vld [vmem:[%s212 + $0x1b8] sm:$0x3]
      %v4966 = vld [vmem:[%s212 + $0x1c0] sm:$0xf8]
      %v4967 = vld [vmem:[%s212 + $0x1c8] sm:$0xf8]
      %v4968 = vld [vmem:[%s212 + $0x1d0] sm:$0xf8]
      %v4969 = vld [vmem:[%s212 + $0x1d8] sm:$0xf8]
      %v4970 = vld [vmem:[%s212 + $0x1e0] sm:$0xf8]
      %v4971 = vld [vmem:[%s212 + $0x1e8] sm:$0xf8]
      %v4972 = vld [vmem:[%s212 + $0x1f0] sm:$0xf8]
      %v4973 = vld [vmem:[%s212 + $0x1f8] sm:$0x3]
      %v4974 = vld [vmem:[%s212 + $0x200] sm:$0x3]
      %v4975 = vld [vmem:[%s212 + $0x208] sm:$0x3]
      %v4976 = vld [vmem:[%s212 + $0x210] sm:$0x3]
      %v4977 = vld [vmem:[%s212 + $0x218] sm:$0x3]
      %v4978 = vld [vmem:[%s212 + $0x220] sm:$0x3]
      %v4979 = vld [vmem:[%s212 + $0x228] sm:$0x3]
      %v4980 = vld [vmem:[%s212 + $0x230] sm:$0xf8]
      %v4981 = vld [vmem:[%s212 + $0x238] sm:$0xf8]
      %v4982 = vld [vmem:[%s212 + $0x240] sm:$0xf8]
      %v4983 = vld [vmem:[%s212 + $0x248] sm:$0xf8]
      %v4984 = vld [vmem:[%s212 + $0x250] sm:$0xf8]
      %v4985 = vld [vmem:[%s212 + $0x258] sm:$0xf8]
      %v4986 = vld [vmem:[%s212 + $0x260] sm:$0xf8]
      %v4987 = vld [vmem:[%s212 + $0x268] sm:$0x3]
      %v4988 = vld [vmem:[%s212 + $0x270] sm:$0x3]
      %v4989 = vld [vmem:[%s212 + $0x278] sm:$0x3]
      %v4990 = vld [vmem:[%s212 + $0x280] sm:$0x3]
      %v4991 = vld [vmem:[%s212 + $0x288] sm:$0x3]
      %v4992 = vld [vmem:[%s212 + $0x290] sm:$0x3]
      %v4993 = vld [vmem:[%s212 + $0x298] sm:$0x3]
      %v4994 = vld [vmem:[%s212 + $0x2a0] sm:$0xf8]
      %v4995 = vld [vmem:[%s212 + $0x2a8] sm:$0xf8]
      %v4996 = vld [vmem:[%s212 + $0x2b0] sm:$0xf8]
      %v4997 = vld [vmem:[%s212 + $0x2b8] sm:$0xf8]
      %v4998 = vld [vmem:[%s212 + $0x2c0] sm:$0xf8]
      %v4999 = vld [vmem:[%s212 + $0x2c8] sm:$0xf8]
      %v5000 = vld [vmem:[%s212 + $0x2d0] sm:$0xf8]
      %v5001 = vld [vmem:[%s212 + $0x2d8] sm:$0x3]
      %v5002 = vld [vmem:[%s212 + $0x2e0] sm:$0x3]
      %v5003 = vld [vmem:[%s212 + $0x2e8] sm:$0x3]
      %v5004 = vld [vmem:[%s212 + $0x2f0] sm:$0x3]
      %v5005 = vld [vmem:[%s212 + $0x2f8] sm:$0x3]
      %v5006 = vld [vmem:[%s212 + $0x300] sm:$0x3]
      %v5007 = vld [vmem:[%s212 + $0x308] sm:$0x3]
      %v5008 = vld [vmem:[%s212 + $0x310] sm:$0xf8]
      %v5009 = vld [vmem:[%s212 + $0x318] sm:$0xf8]
      %v5010 = vld [vmem:[%s212 + $0x320] sm:$0xf8]
      %v5011 = vld [vmem:[%s212 + $0x328] sm:$0xf8]
      %v5012 = vld [vmem:[%s212 + $0x330] sm:$0xf8]
      %v5013 = vld [vmem:[%s212 + $0x338] sm:$0xf8]
      %v5014 = vld [vmem:[%s212 + $0x340] sm:$0xf8]
      %v5015 = vld [vmem:[%s212 + $0x348] sm:$0x3]
      %v5016 = vld [vmem:[%s212 + $0x350] sm:$0x3]
      %v5017 = vld [vmem:[%s212 + $0x358] sm:$0x3]
      %v5018 = vld [vmem:[%s212 + $0x360] sm:$0x3]
      %v5019 = vld [vmem:[%s212 + $0x368] sm:$0x3]
      %v5020 = vld [vmem:[%s212 + $0x370] sm:$0x3]
      %v5021 = vld [vmem:[%s212 + $0x378] sm:$0x3]
      %v5022 = vld [vmem:[%s212 + $0x380] sm:$0xf8]
      %v5023 = vld [vmem:[%s212 + $0x388] sm:$0xf8]
      %v5024 = vld [vmem:[%s212 + $0x390] sm:$0xf8]
      %v5025 = vld [vmem:[%s212 + $0x398] sm:$0xf8]
      %v5026 = vld [vmem:[%s212 + $0x3a0] sm:$0xf8]
      %v5027 = vld [vmem:[%s212 + $0x3a8] sm:$0xf8]
      %v5028 = vld [vmem:[%s212 + $0x3b0] sm:$0xf8]
      %v5029 = vld [vmem:[%s212 + $0x3b8] sm:$0x3]
      %v5030 = vld [vmem:[%s212 + $0x3c0] sm:$0x3]
      %v5031 = vld [vmem:[%s212 + $0x3c8] sm:$0x3]
      %v5032 = vld [vmem:[%s212 + $0x3d0] sm:$0x3]
      %v5033 = vld [vmem:[%s212 + $0x3d8] sm:$0x3]
      %v5034 = vld [vmem:[%s212 + $0x3e0] sm:$0x3]
      %v5035 = vld [vmem:[%s212 + $0x3e8] sm:$0x3]
      %v5036 = vld [vmem:[%s212 + $0x3f0] sm:$0xf8]
      %v5037 = vld [vmem:[%s212 + $0x3f8] sm:$0xf8]
      %v5038 = vld [vmem:[%s212 + $0x400] sm:$0xf8]
      %v5039 = vld [vmem:[%s212 + $0x408] sm:$0xf8]
      %v5040 = vld [vmem:[%s212 + $0x410] sm:$0xf8]
      %v5041 = vld [vmem:[%s212 + $0x418] sm:$0xf8]
      %v5042 = vld [vmem:[%s212 + $0x420] sm:$0xf8]
      %v5043 = vld [vmem:[%s212 + $0x428] sm:$0x3]
      %v5044 = vld [vmem:[%s212 + $0x430] sm:$0x3]
      %v5045 = vld [vmem:[%s212 + $0x438] sm:$0x3]
      %v5046 = vld [vmem:[%s212 + $0x440] sm:$0x3]
      %v5047 = vld [vmem:[%s212 + $0x448] sm:$0x3]
      %v5048 = vld [vmem:[%s212 + $0x450] sm:$0x3]
      %v5049 = vld [vmem:[%s212 + $0x458] sm:$0x3]
      %v5050 = vld [vmem:[%s212 + $0x460] sm:$0xf8]
      %v5051 = vld [vmem:[%s212 + $0x468] sm:$0xf8]
      %v5052 = vld [vmem:[%s212 + $0x470] sm:$0xf8]
      %v5053 = vld [vmem:[%s212 + $0x478] sm:$0xf8]
      %v5054 = vld [vmem:[%s212 + $0x480] sm:$0xf8]
      %v5055 = vld [vmem:[%s212 + $0x488] sm:$0xf8]
      %v5056 = vld [vmem:[%s212 + $0x490] sm:$0xf8]
      %v5057 = vld [vmem:[%s212 + $0x498] sm:$0x3]
      %v5058 = vld [vmem:[%s212 + $0x4a0] sm:$0x3]
      %v5059 = vld [vmem:[%s212 + $0x4a8] sm:$0x3]
      %v5060 = vld [vmem:[%s212 + $0x4b0] sm:$0x3]
      %v5061 = vld [vmem:[%s212 + $0x4b8] sm:$0x3]
      %v5062 = vld [vmem:[%s212 + $0x4c0] sm:$0x3]
      %v5063 = vld [vmem:[%s212 + $0x4c8] sm:$0x3]
      %v5064 = vlaneseq
      %v5065 = vshrl.u32 %v5064, 7
      %v5066 = vsub.s32 3, %v5065
      %v5067 = vrot.slane %v233, %v5066
      %v5068 = vlaneseq
      %v5069 = vshrl.u32 %v5068, 7
      %v5070 = vsub.s32 3, %v5069
      %v5071 = vrot.slane %v234, %v5070
      %v5072 = vlaneseq
      %v5073 = vshrl.u32 %v5072, 7
      %v5074 = vsub.s32 3, %v5073
      %v5075 = vrot.slane %v235, %v5074
      %v5076 = vlaneseq
      %v5077 = vshrl.u32 %v5076, 7
      %v5078 = vsub.s32 3, %v5077
      %v5079 = vrot.slane %v236, %v5078
      %v5080 = vlaneseq
      %v5081 = vshrl.u32 %v5080, 7
      %v5082 = vsub.s32 3, %v5081
      %v5083 = vrot.slane %v237, %v5082
      %v5084 = vlaneseq
      %v5085 = vshrl.u32 %v5084, 7
      %v5086 = vsub.s32 3, %v5085
      %v5087 = vrot.slane %v238, %v5086
      %v5088 = vlaneseq
      %v5089 = vshrl.u32 %v5088, 7
      %v5090 = vsub.s32 3, %v5089
      %v5091 = vrot.slane %v239, %v5090
      %v5092 = vmul.f32 %v4910, %v5067
      %v5093 = vmul.f32 %v4911, %v5071
      %v5094 = vmul.f32 %v4912, %v5075
      %v5095 = vmul.f32 %v4913, %v5079
      %v5096 = vmul.f32 %v4914, %v5083
      %v5097 = vmul.f32 %v4915, %v5087
      %v5098 = vmul.f32 %v4916, %v5091
      %v5099 = vmul.f32 %v4917, %v5067
      %v5100 = vmul.f32 %v4918, %v5071
      %v5101 = vmul.f32 %v4919, %v5075
      %v5102 = vmul.f32 %v4920, %v5079
      %v5103 = vmul.f32 %v4921, %v5083
      %v5104 = vmul.f32 %v4922, %v5087
      %v5105 = vmul.f32 %v4923, %v5091
      %v5106 = vmul.f32 %v4924, %v5067
      %v5107 = vmul.f32 %v4925, %v5071
      %v5108 = vmul.f32 %v4926, %v5075
      %v5109 = vmul.f32 %v4927, %v5079
      %v5110 = vmul.f32 %v4928, %v5083
      %v5111 = vmul.f32 %v4929, %v5087
      %v5112 = vmul.f32 %v4930, %v5091
      %v5113 = vmul.f32 %v4931, %v5067
      %v5114 = vmul.f32 %v4932, %v5071
      %v5115 = vmul.f32 %v4933, %v5075
      %v5116 = vmul.f32 %v4934, %v5079
      %v5117 = vmul.f32 %v4935, %v5083
      %v5118 = vmul.f32 %v4936, %v5087
      %v5119 = vmul.f32 %v4937, %v5091
      %v5120 = vmul.f32 %v4938, %v5067
      %v5121 = vmul.f32 %v4939, %v5071
      %v5122 = vmul.f32 %v4940, %v5075
      %v5123 = vmul.f32 %v4941, %v5079
      %v5124 = vmul.f32 %v4942, %v5083
      %v5125 = vmul.f32 %v4943, %v5087
      %v5126 = vmul.f32 %v4944, %v5091
      %v5127 = vmul.f32 %v4945, %v5067
      %v5128 = vmul.f32 %v4946, %v5071
      %v5129 = vmul.f32 %v4947, %v5075
      %v5130 = vmul.f32 %v4948, %v5079
      %v5131 = vmul.f32 %v4949, %v5083
      %v5132 = vmul.f32 %v4950, %v5087
      %v5133 = vmul.f32 %v4951, %v5091
      %v5134 = vmul.f32 %v4952, %v5067
      %v5135 = vmul.f32 %v4953, %v5071
      %v5136 = vmul.f32 %v4954, %v5075
      %v5137 = vmul.f32 %v4955, %v5079
      %v5138 = vmul.f32 %v4956, %v5083
      %v5139 = vmul.f32 %v4957, %v5087
      %v5140 = vmul.f32 %v4958, %v5091
      %v5141 = vmul.f32 %v4959, %v5067
      %v5142 = vmul.f32 %v4960, %v5071
      %v5143 = vmul.f32 %v4961, %v5075
      %v5144 = vmul.f32 %v4962, %v5079
      %v5145 = vmul.f32 %v4963, %v5083
      %v5146 = vmul.f32 %v4964, %v5087
      %v5147 = vmul.f32 %v4965, %v5091
      %v5148 = vmul.f32 %v4966, %v5067
      %v5149 = vmul.f32 %v4967, %v5071
      %v5150 = vmul.f32 %v4968, %v5075
      %v5151 = vmul.f32 %v4969, %v5079
      %v5152 = vmul.f32 %v4970, %v5083
      %v5153 = vmul.f32 %v4971, %v5087
      %v5154 = vmul.f32 %v4972, %v5091
      %v5155 = vmul.f32 %v4973, %v5067
      %v5156 = vmul.f32 %v4974, %v5071
      %v5157 = vmul.f32 %v4975, %v5075
      %v5158 = vmul.f32 %v4976, %v5079
      %v5159 = vmul.f32 %v4977, %v5083
      %v5160 = vmul.f32 %v4978, %v5087
      %v5161 = vmul.f32 %v4979, %v5091
      %v5162 = vmul.f32 %v4980, %v5067
      %v5163 = vmul.f32 %v4981, %v5071
      %v5164 = vmul.f32 %v4982, %v5075
      %v5165 = vmul.f32 %v4983, %v5079
      %v5166 = vmul.f32 %v4984, %v5083
      %v5167 = vmul.f32 %v4985, %v5087
      %v5168 = vmul.f32 %v4986, %v5091
      %v5169 = vmul.f32 %v4987, %v5067
      %v5170 = vmul.f32 %v4988, %v5071
      %v5171 = vmul.f32 %v4989, %v5075
      %v5172 = vmul.f32 %v4990, %v5079
      %v5173 = vmul.f32 %v4991, %v5083
      %v5174 = vmul.f32 %v4992, %v5087
      %v5175 = vmul.f32 %v4993, %v5091
      %v5176 = vmul.f32 %v4994, %v5067
      %v5177 = vmul.f32 %v4995, %v5071
      %v5178 = vmul.f32 %v4996, %v5075
      %v5179 = vmul.f32 %v4997, %v5079
      %v5180 = vmul.f32 %v4998, %v5083
      %v5181 = vmul.f32 %v4999, %v5087
      %v5182 = vmul.f32 %v5000, %v5091
      %v5183 = vmul.f32 %v5001, %v5067
      %v5184 = vmul.f32 %v5002, %v5071
      %v5185 = vmul.f32 %v5003, %v5075
      %v5186 = vmul.f32 %v5004, %v5079
      %v5187 = vmul.f32 %v5005, %v5083
      %v5188 = vmul.f32 %v5006, %v5087
      %v5189 = vmul.f32 %v5007, %v5091
      %vm5288 = vcmask 1044480
      %v5289 = vrot.slane %v5092, 3
      %v5290 = vrot.slane %v5099, 3
      %v5291 = vsel %vm5288, %v5289, %v5290
      %v5292 = vrot.slane %v5093, 3
      %v5293 = vrot.slane %v5100, 3
      %v5294 = vsel %vm5288, %v5292, %v5293
      %v5295 = vrot.slane %v5094, 3
      %v5296 = vrot.slane %v5101, 3
      %v5297 = vsel %vm5288, %v5295, %v5296
      %v5298 = vrot.slane %v5095, 3
      %v5299 = vrot.slane %v5102, 3
      %v5300 = vsel %vm5288, %v5298, %v5299
      %v5301 = vrot.slane %v5096, 3
      %v5302 = vrot.slane %v5103, 3
      %v5303 = vsel %vm5288, %v5301, %v5302
      %v5304 = vrot.slane %v5097, 3
      %v5305 = vrot.slane %v5104, 3
      %v5306 = vsel %vm5288, %v5304, %v5305
      %v5307 = vrot.slane %v5098, 3
      %v5308 = vrot.slane %v5105, 3
      %v5309 = vsel %vm5288, %v5307, %v5308
      %v5310 = vrot.slane %v5106, 3
      %v5311 = vrot.slane %v5113, 3
      %v5312 = vsel %vm5288, %v5310, %v5311
      %v5313 = vrot.slane %v5107, 3
      %v5314 = vrot.slane %v5114, 3
      %v5315 = vsel %vm5288, %v5313, %v5314
      %v5316 = vrot.slane %v5108, 3
      %v5317 = vrot.slane %v5115, 3
      %v5318 = vsel %vm5288, %v5316, %v5317
      %v5319 = vrot.slane %v5109, 3
      %v5320 = vrot.slane %v5116, 3
      %v5321 = vsel %vm5288, %v5319, %v5320
      %v5322 = vrot.slane %v5110, 3
      %v5323 = vrot.slane %v5117, 3
      %v5324 = vsel %vm5288, %v5322, %v5323
      %v5325 = vrot.slane %v5111, 3
      %v5326 = vrot.slane %v5118, 3
      %v5327 = vsel %vm5288, %v5325, %v5326
      %v5328 = vrot.slane %v5112, 3
      %v5329 = vrot.slane %v5119, 3
      %v5330 = vsel %vm5288, %v5328, %v5329
      %v5331 = vrot.slane %v5120, 3
      %v5332 = vrot.slane %v5127, 3
      %v5333 = vsel %vm5288, %v5331, %v5332
      %v5334 = vrot.slane %v5121, 3
      %v5335 = vrot.slane %v5128, 3
      %v5336 = vsel %vm5288, %v5334, %v5335
      %v5337 = vrot.slane %v5122, 3
      %v5338 = vrot.slane %v5129, 3
      %v5339 = vsel %vm5288, %v5337, %v5338
      %v5340 = vrot.slane %v5123, 3
      %v5341 = vrot.slane %v5130, 3
      %v5342 = vsel %vm5288, %v5340, %v5341
      %v5343 = vrot.slane %v5124, 3
      %v5344 = vrot.slane %v5131, 3
      %v5345 = vsel %vm5288, %v5343, %v5344
      %v5346 = vrot.slane %v5125, 3
      %v5347 = vrot.slane %v5132, 3
      %v5348 = vsel %vm5288, %v5346, %v5347
      %v5349 = vrot.slane %v5126, 3
      %v5350 = vrot.slane %v5133, 3
      %v5351 = vsel %vm5288, %v5349, %v5350
      %v5352 = vrot.slane %v5134, 3
      %v5353 = vrot.slane %v5141, 3
      %v5354 = vsel %vm5288, %v5352, %v5353
      %v5355 = vrot.slane %v5135, 3
      %v5356 = vrot.slane %v5142, 3
      %v5357 = vsel %vm5288, %v5355, %v5356
      %v5358 = vrot.slane %v5136, 3
      %v5359 = vrot.slane %v5143, 3
      %v5360 = vsel %vm5288, %v5358, %v5359
      %v5361 = vrot.slane %v5137, 3
      %v5362 = vrot.slane %v5144, 3
      %v5363 = vsel %vm5288, %v5361, %v5362
      %v5364 = vrot.slane %v5138, 3
      %v5365 = vrot.slane %v5145, 3
      %v5366 = vsel %vm5288, %v5364, %v5365
      %v5367 = vrot.slane %v5139, 3
      %v5368 = vrot.slane %v5146, 3
      %v5369 = vsel %vm5288, %v5367, %v5368
      %v5370 = vrot.slane %v5140, 3
      %v5371 = vrot.slane %v5147, 3
      %v5372 = vsel %vm5288, %v5370, %v5371
      %v5373 = vrot.slane %v5148, 3
      %v5374 = vrot.slane %v5155, 3
      %v5375 = vsel %vm5288, %v5373, %v5374
      %v5376 = vrot.slane %v5149, 3
      %v5377 = vrot.slane %v5156, 3
      %v5378 = vsel %vm5288, %v5376, %v5377
      %v5379 = vrot.slane %v5150, 3
      %v5380 = vrot.slane %v5157, 3
      %v5381 = vsel %vm5288, %v5379, %v5380
      %v5382 = vrot.slane %v5151, 3
      %v5383 = vrot.slane %v5158, 3
      %v5384 = vsel %vm5288, %v5382, %v5383
      %v5385 = vrot.slane %v5152, 3
      %v5386 = vrot.slane %v5159, 3
      %v5387 = vsel %vm5288, %v5385, %v5386
      %v5388 = vrot.slane %v5153, 3
      %v5389 = vrot.slane %v5160, 3
      %v5390 = vsel %vm5288, %v5388, %v5389
      %v5391 = vrot.slane %v5154, 3
      %v5392 = vrot.slane %v5161, 3
      %v5393 = vsel %vm5288, %v5391, %v5392
      %v5394 = vrot.slane %v5162, 3
      %v5395 = vrot.slane %v5169, 3
      %v5396 = vsel %vm5288, %v5394, %v5395
      %v5397 = vrot.slane %v5163, 3
      %v5398 = vrot.slane %v5170, 3
      %v5399 = vsel %vm5288, %v5397, %v5398
      %v5400 = vrot.slane %v5164, 3
      %v5401 = vrot.slane %v5171, 3
      %v5402 = vsel %vm5288, %v5400, %v5401
      %v5403 = vrot.slane %v5165, 3
      %v5404 = vrot.slane %v5172, 3
      %v5405 = vsel %vm5288, %v5403, %v5404
      %v5406 = vrot.slane %v5166, 3
      %v5407 = vrot.slane %v5173, 3
      %v5408 = vsel %vm5288, %v5406, %v5407
      %v5409 = vrot.slane %v5167, 3
      %v5410 = vrot.slane %v5174, 3
      %v5411 = vsel %vm5288, %v5409, %v5410
      %v5412 = vrot.slane %v5168, 3
      %v5413 = vrot.slane %v5175, 3
      %v5414 = vsel %vm5288, %v5412, %v5413
      %v5415 = vrot.slane %v5176, 3
      %v5416 = vrot.slane %v5183, 3
      %v5417 = vsel %vm5288, %v5415, %v5416
      %v5418 = vrot.slane %v5177, 3
      %v5419 = vrot.slane %v5184, 3
      %v5420 = vsel %vm5288, %v5418, %v5419
      %v5421 = vrot.slane %v5178, 3
      %v5422 = vrot.slane %v5185, 3
      %v5423 = vsel %vm5288, %v5421, %v5422
      %v5424 = vrot.slane %v5179, 3
      %v5425 = vrot.slane %v5186, 3
      %v5426 = vsel %vm5288, %v5424, %v5425
      %v5427 = vrot.slane %v5180, 3
      %v5428 = vrot.slane %v5187, 3
      %v5429 = vsel %vm5288, %v5427, %v5428
      %v5430 = vrot.slane %v5181, 3
      %v5431 = vrot.slane %v5188, 3
      %v5432 = vsel %vm5288, %v5430, %v5431
      %v5433 = vrot.slane %v5182, 3
      %v5434 = vrot.slane %v5189, 3
      %v5435 = vsel %vm5288, %v5433, %v5434
      %v5485 = vadd.f32 %v4861, %v5291
      %v5486 = vadd.f32 %v4862, %v5294
      %v5487 = vadd.f32 %v4863, %v5297
      %v5488 = vadd.f32 %v4864, %v5300
      %v5489 = vadd.f32 %v4865, %v5303
      %v5490 = vadd.f32 %v4866, %v5306
      %v5491 = vadd.f32 %v4867, %v5309
      %v5492 = vadd.f32 %v4868, %v5312
      %v5493 = vadd.f32 %v4869, %v5315
      %v5494 = vadd.f32 %v4870, %v5318
      %v5495 = vadd.f32 %v4871, %v5321
      %v5496 = vadd.f32 %v4872, %v5324
      %v5497 = vadd.f32 %v4873, %v5327
      %v5498 = vadd.f32 %v4874, %v5330
      %v5499 = vadd.f32 %v4875, %v5333
      %v5500 = vadd.f32 %v4876, %v5336
      %v5501 = vadd.f32 %v4877, %v5339
      %v5502 = vadd.f32 %v4878, %v5342
      %v5503 = vadd.f32 %v4879, %v5345
      %v5504 = vadd.f32 %v4880, %v5348
      %v5505 = vadd.f32 %v4881, %v5351
      %v5506 = vadd.f32 %v4882, %v5354
      %v5507 = vadd.f32 %v4883, %v5357
      %v5508 = vadd.f32 %v4884, %v5360
      %v5509 = vadd.f32 %v4885, %v5363
      %v5510 = vadd.f32 %v4886, %v5366
      %v5511 = vadd.f32 %v4887, %v5369
      %v5512 = vadd.f32 %v4888, %v5372
      %v5513 = vadd.f32 %v4889, %v5375
      %v5514 = vadd.f32 %v4890, %v5378
      %v5515 = vadd.f32 %v4891, %v5381
      %v5516 = vadd.f32 %v4892, %v5384
      %v5517 = vadd.f32 %v4893, %v5387
      %v5518 = vadd.f32 %v4894, %v5390
      %v5519 = vadd.f32 %v4895, %v5393
      %v5520 = vadd.f32 %v4896, %v5396
      %v5521 = vadd.f32 %v4897, %v5399
      %v5522 = vadd.f32 %v4898, %v5402
      %v5523 = vadd.f32 %v4899, %v5405
      %v5524 = vadd.f32 %v4900, %v5408
      %v5525 = vadd.f32 %v4901, %v5411
      %v5526 = vadd.f32 %v4902, %v5414
      %v5527 = vadd.f32 %v4903, %v5417
      %v5528 = vadd.f32 %v4904, %v5420
      %v5529 = vadd.f32 %v4905, %v5423
      %v5530 = vadd.f32 %v4906, %v5426
      %v5531 = vadd.f32 %v4907, %v5429
      %v5532 = vadd.f32 %v4908, %v5432
      %v5533 = vadd.f32 %v4909, %v5435
      %v5534 = vlaneseq
      %v5535 = vshrl.u32 %v5534, 7
      %v5536 = vsub.s32 0, %v5535
      %v5537 = vrot.slane %v240, %v5536
      %v5538 = vlaneseq
      %v5539 = vshrl.u32 %v5538, 7
      %v5540 = vsub.s32 0, %v5539
      %v5541 = vrot.slane %v241, %v5540
      %v5542 = vlaneseq
      %v5543 = vshrl.u32 %v5542, 7
      %v5544 = vsub.s32 0, %v5543
      %v5545 = vrot.slane %v242, %v5544
      %v5546 = vlaneseq
      %v5547 = vshrl.u32 %v5546, 7
      %v5548 = vsub.s32 0, %v5547
      %v5549 = vrot.slane %v243, %v5548
      %v5550 = vlaneseq
      %v5551 = vshrl.u32 %v5550, 7
      %v5552 = vsub.s32 0, %v5551
      %v5553 = vrot.slane %v244, %v5552
      %v5554 = vlaneseq
      %v5555 = vshrl.u32 %v5554, 7
      %v5556 = vsub.s32 0, %v5555
      %v5557 = vrot.slane %v245, %v5556
      %v5558 = vlaneseq
      %v5559 = vshrl.u32 %v5558, 7
      %v5560 = vsub.s32 0, %v5559
      %v5561 = vrot.slane %v246, %v5560
      %v5562 = vmul.f32 %v4924, %v5537
      %v5563 = vmul.f32 %v4925, %v5541
      %v5564 = vmul.f32 %v4926, %v5545
      %v5565 = vmul.f32 %v4927, %v5549
      %v5566 = vmul.f32 %v4928, %v5553
      %v5567 = vmul.f32 %v4929, %v5557
      %v5568 = vmul.f32 %v4930, %v5561
      %v5569 = vmul.f32 %v4931, %v5537
      %v5570 = vmul.f32 %v4932, %v5541
      %v5571 = vmul.f32 %v4933, %v5545
      %v5572 = vmul.f32 %v4934, %v5549
      %v5573 = vmul.f32 %v4935, %v5553
      %v5574 = vmul.f32 %v4936, %v5557
      %v5575 = vmul.f32 %v4937, %v5561
      %v5576 = vmul.f32 %v4938, %v5537
      %v5577 = vmul.f32 %v4939, %v5541
      %v5578 = vmul.f32 %v4940, %v5545
      %v5579 = vmul.f32 %v4941, %v5549
      %v5580 = vmul.f32 %v4942, %v5553
      %v5581 = vmul.f32 %v4943, %v5557
      %v5582 = vmul.f32 %v4944, %v5561
      %v5583 = vmul.f32 %v4945, %v5537
      %v5584 = vmul.f32 %v4946, %v5541
      %v5585 = vmul.f32 %v4947, %v5545
      %v5586 = vmul.f32 %v4948, %v5549
      %v5587 = vmul.f32 %v4949, %v5553
      %v5588 = vmul.f32 %v4950, %v5557
      %v5589 = vmul.f32 %v4951, %v5561
      %v5590 = vmul.f32 %v4952, %v5537
      %v5591 = vmul.f32 %v4953, %v5541
      %v5592 = vmul.f32 %v4954, %v5545
      %v5593 = vmul.f32 %v4955, %v5549
      %v5594 = vmul.f32 %v4956, %v5553
      %v5595 = vmul.f32 %v4957, %v5557
      %v5596 = vmul.f32 %v4958, %v5561
      %v5597 = vmul.f32 %v4959, %v5537
      %v5598 = vmul.f32 %v4960, %v5541
      %v5599 = vmul.f32 %v4961, %v5545
      %v5600 = vmul.f32 %v4962, %v5549
      %v5601 = vmul.f32 %v4963, %v5553
      %v5602 = vmul.f32 %v4964, %v5557
      %v5603 = vmul.f32 %v4965, %v5561
      %v5604 = vmul.f32 %v4966, %v5537
      %v5605 = vmul.f32 %v4967, %v5541
      %v5606 = vmul.f32 %v4968, %v5545
      %v5607 = vmul.f32 %v4969, %v5549
      %v5608 = vmul.f32 %v4970, %v5553
      %v5609 = vmul.f32 %v4971, %v5557
      %v5610 = vmul.f32 %v4972, %v5561
      %v5611 = vmul.f32 %v4973, %v5537
      %v5612 = vmul.f32 %v4974, %v5541
      %v5613 = vmul.f32 %v4975, %v5545
      %v5614 = vmul.f32 %v4976, %v5549
      %v5615 = vmul.f32 %v4977, %v5553
      %v5616 = vmul.f32 %v4978, %v5557
      %v5617 = vmul.f32 %v4979, %v5561
      %v5618 = vmul.f32 %v4980, %v5537
      %v5619 = vmul.f32 %v4981, %v5541
      %v5620 = vmul.f32 %v4982, %v5545
      %v5621 = vmul.f32 %v4983, %v5549
      %v5622 = vmul.f32 %v4984, %v5553
      %v5623 = vmul.f32 %v4985, %v5557
      %v5624 = vmul.f32 %v4986, %v5561
      %v5625 = vmul.f32 %v4987, %v5537
      %v5626 = vmul.f32 %v4988, %v5541
      %v5627 = vmul.f32 %v4989, %v5545
      %v5628 = vmul.f32 %v4990, %v5549
      %v5629 = vmul.f32 %v4991, %v5553
      %v5630 = vmul.f32 %v4992, %v5557
      %v5631 = vmul.f32 %v4993, %v5561
      %v5632 = vmul.f32 %v4994, %v5537
      %v5633 = vmul.f32 %v4995, %v5541
      %v5634 = vmul.f32 %v4996, %v5545
      %v5635 = vmul.f32 %v4997, %v5549
      %v5636 = vmul.f32 %v4998, %v5553
      %v5637 = vmul.f32 %v4999, %v5557
      %v5638 = vmul.f32 %v5000, %v5561
      %v5639 = vmul.f32 %v5001, %v5537
      %v5640 = vmul.f32 %v5002, %v5541
      %v5641 = vmul.f32 %v5003, %v5545
      %v5642 = vmul.f32 %v5004, %v5549
      %v5643 = vmul.f32 %v5005, %v5553
      %v5644 = vmul.f32 %v5006, %v5557
      %v5645 = vmul.f32 %v5007, %v5561
      %v5646 = vmul.f32 %v5008, %v5537
      %v5647 = vmul.f32 %v5009, %v5541
      %v5648 = vmul.f32 %v5010, %v5545
      %v5649 = vmul.f32 %v5011, %v5549
      %v5650 = vmul.f32 %v5012, %v5553
      %v5651 = vmul.f32 %v5013, %v5557
      %v5652 = vmul.f32 %v5014, %v5561
      %v5653 = vmul.f32 %v5015, %v5537
      %v5654 = vmul.f32 %v5016, %v5541
      %v5655 = vmul.f32 %v5017, %v5545
      %v5656 = vmul.f32 %v5018, %v5549
      %v5657 = vmul.f32 %v5019, %v5553
      %v5658 = vmul.f32 %v5020, %v5557
      %v5659 = vmul.f32 %v5021, %v5561
      %v5758 = vrot.slane %v5562, 3
      %v5759 = vrot.slane %v5569, 3
      %v5760 = vsel %vm5288, %v5758, %v5759
      %v5761 = vrot.slane %v5563, 3
      %v5762 = vrot.slane %v5570, 3
      %v5763 = vsel %vm5288, %v5761, %v5762
      %v5764 = vrot.slane %v5564, 3
      %v5765 = vrot.slane %v5571, 3
      %v5766 = vsel %vm5288, %v5764, %v5765
      %v5767 = vrot.slane %v5565, 3
      %v5768 = vrot.slane %v5572, 3
      %v5769 = vsel %vm5288, %v5767, %v5768
      %v5770 = vrot.slane %v5566, 3
      %v5771 = vrot.slane %v5573, 3
      %v5772 = vsel %vm5288, %v5770, %v5771
      %v5773 = vrot.slane %v5567, 3
      %v5774 = vrot.slane %v5574, 3
      %v5775 = vsel %vm5288, %v5773, %v5774
      %v5776 = vrot.slane %v5568, 3
      %v5777 = vrot.slane %v5575, 3
      %v5778 = vsel %vm5288, %v5776, %v5777
      %v5779 = vrot.slane %v5576, 3
      %v5780 = vrot.slane %v5583, 3
      %v5781 = vsel %vm5288, %v5779, %v5780
      %v5782 = vrot.slane %v5577, 3
      %v5783 = vrot.slane %v5584, 3
      %v5784 = vsel %vm5288, %v5782, %v5783
      %v5785 = vrot.slane %v5578, 3
      %v5786 = vrot.slane %v5585, 3
      %v5787 = vsel %vm5288, %v5785, %v5786
      %v5788 = vrot.slane %v5579, 3
      %v5789 = vrot.slane %v5586, 3
      %v5790 = vsel %vm5288, %v5788, %v5789
      %v5791 = vrot.slane %v5580, 3
      %v5792 = vrot.slane %v5587, 3
      %v5793 = vsel %vm5288, %v5791, %v5792
      %v5794 = vrot.slane %v5581, 3
      %v5795 = vrot.slane %v5588, 3
      %v5796 = vsel %vm5288, %v5794, %v5795
      %v5797 = vrot.slane %v5582, 3
      %v5798 = vrot.slane %v5589, 3
      %v5799 = vsel %vm5288, %v5797, %v5798
      %v5800 = vrot.slane %v5590, 3
      %v5801 = vrot.slane %v5597, 3
      %v5802 = vsel %vm5288, %v5800, %v5801
      %v5803 = vrot.slane %v5591, 3
      %v5804 = vrot.slane %v5598, 3
      %v5805 = vsel %vm5288, %v5803, %v5804
      %v5806 = vrot.slane %v5592, 3
      %v5807 = vrot.slane %v5599, 3
      %v5808 = vsel %vm5288, %v5806, %v5807
      %v5809 = vrot.slane %v5593, 3
      %v5810 = vrot.slane %v5600, 3
      %v5811 = vsel %vm5288, %v5809, %v5810
      %v5812 = vrot.slane %v5594, 3
      %v5813 = vrot.slane %v5601, 3
      %v5814 = vsel %vm5288, %v5812, %v5813
      %v5815 = vrot.slane %v5595, 3
      %v5816 = vrot.slane %v5602, 3
      %v5817 = vsel %vm5288, %v5815, %v5816
      %v5818 = vrot.slane %v5596, 3
      %v5819 = vrot.slane %v5603, 3
      %v5820 = vsel %vm5288, %v5818, %v5819
      %v5821 = vrot.slane %v5604, 3
      %v5822 = vrot.slane %v5611, 3
      %v5823 = vsel %vm5288, %v5821, %v5822
      %v5824 = vrot.slane %v5605, 3
      %v5825 = vrot.slane %v5612, 3
      %v5826 = vsel %vm5288, %v5824, %v5825
      %v5827 = vrot.slane %v5606, 3
      %v5828 = vrot.slane %v5613, 3
      %v5829 = vsel %vm5288, %v5827, %v5828
      %v5830 = vrot.slane %v5607, 3
      %v5831 = vrot.slane %v5614, 3
      %v5832 = vsel %vm5288, %v5830, %v5831
      %v5833 = vrot.slane %v5608, 3
      %v5834 = vrot.slane %v5615, 3
      %v5835 = vsel %vm5288, %v5833, %v5834
      %v5836 = vrot.slane %v5609, 3
      %v5837 = vrot.slane %v5616, 3
      %v5838 = vsel %vm5288, %v5836, %v5837
      %v5839 = vrot.slane %v5610, 3
      %v5840 = vrot.slane %v5617, 3
      %v5841 = vsel %vm5288, %v5839, %v5840
      %v5842 = vrot.slane %v5618, 3
      %v5843 = vrot.slane %v5625, 3
      %v5844 = vsel %vm5288, %v5842, %v5843
      %v5845 = vrot.slane %v5619, 3
      %v5846 = vrot.slane %v5626, 3
      %v5847 = vsel %vm5288, %v5845, %v5846
      %v5848 = vrot.slane %v5620, 3
      %v5849 = vrot.slane %v5627, 3
      %v5850 = vsel %vm5288, %v5848, %v5849
      %v5851 = vrot.slane %v5621, 3
      %v5852 = vrot.slane %v5628, 3
      %v5853 = vsel %vm5288, %v5851, %v5852
      %v5854 = vrot.slane %v5622, 3
      %v5855 = vrot.slane %v5629, 3
      %v5856 = vsel %vm5288, %v5854, %v5855
      %v5857 = vrot.slane %v5623, 3
      %v5858 = vrot.slane %v5630, 3
      %v5859 = vsel %vm5288, %v5857, %v5858
      %v5860 = vrot.slane %v5624, 3
      %v5861 = vrot.slane %v5631, 3
      %v5862 = vsel %vm5288, %v5860, %v5861
      %v5863 = vrot.slane %v5632, 3
      %v5864 = vrot.slane %v5639, 3
      %v5865 = vsel %vm5288, %v5863, %v5864
      %v5866 = vrot.slane %v5633, 3
      %v5867 = vrot.slane %v5640, 3
      %v5868 = vsel %vm5288, %v5866, %v5867
      %v5869 = vrot.slane %v5634, 3
      %v5870 = vrot.slane %v5641, 3
      %v5871 = vsel %vm5288, %v5869, %v5870
      %v5872 = vrot.slane %v5635, 3
      %v5873 = vrot.slane %v5642, 3
      %v5874 = vsel %vm5288, %v5872, %v5873
      %v5875 = vrot.slane %v5636, 3
      %v5876 = vrot.slane %v5643, 3
      %v5877 = vsel %vm5288, %v5875, %v5876
      %v5878 = vrot.slane %v5637, 3
      %v5879 = vrot.slane %v5644, 3
      %v5880 = vsel %vm5288, %v5878, %v5879
      %v5881 = vrot.slane %v5638, 3
      %v5882 = vrot.slane %v5645, 3
      %v5883 = vsel %vm5288, %v5881, %v5882
      %v5884 = vrot.slane %v5646, 3
      %v5885 = vrot.slane %v5653, 3
      %v5886 = vsel %vm5288, %v5884, %v5885
      %v5887 = vrot.slane %v5647, 3
      %v5888 = vrot.slane %v5654, 3
      %v5889 = vsel %vm5288, %v5887, %v5888
      %v5890 = vrot.slane %v5648, 3
      %v5891 = vrot.slane %v5655, 3
      %v5892 = vsel %vm5288, %v5890, %v5891
      %v5893 = vrot.slane %v5649, 3
      %v5894 = vrot.slane %v5656, 3
      %v5895 = vsel %vm5288, %v5893, %v5894
      %v5896 = vrot.slane %v5650, 3
      %v5897 = vrot.slane %v5657, 3
      %v5898 = vsel %vm5288, %v5896, %v5897
      %v5899 = vrot.slane %v5651, 3
      %v5900 = vrot.slane %v5658, 3
      %v5901 = vsel %vm5288, %v5899, %v5900
      %v5902 = vrot.slane %v5652, 3
      %v5903 = vrot.slane %v5659, 3
      %v5904 = vsel %vm5288, %v5902, %v5903
      %v5954 = vadd.f32 %v5485, %v5760
      %v5955 = vadd.f32 %v5486, %v5763
      %v5956 = vadd.f32 %v5487, %v5766
      %v5957 = vadd.f32 %v5488, %v5769
      %v5958 = vadd.f32 %v5489, %v5772
      %v5959 = vadd.f32 %v5490, %v5775
      %v5960 = vadd.f32 %v5491, %v5778
      %v5961 = vadd.f32 %v5492, %v5781
      %v5962 = vadd.f32 %v5493, %v5784
      %v5963 = vadd.f32 %v5494, %v5787
      %v5964 = vadd.f32 %v5495, %v5790
      %v5965 = vadd.f32 %v5496, %v5793
      %v5966 = vadd.f32 %v5497, %v5796
      %v5967 = vadd.f32 %v5498, %v5799
      %v5968 = vadd.f32 %v5499, %v5802
      %v5969 = vadd.f32 %v5500, %v5805
      %v5970 = vadd.f32 %v5501, %v5808
      %v5971 = vadd.f32 %v5502, %v5811
      %v5972 = vadd.f32 %v5503, %v5814
      %v5973 = vadd.f32 %v5504, %v5817
      %v5974 = vadd.f32 %v5505, %v5820
      %v5975 = vadd.f32 %v5506, %v5823
      %v5976 = vadd.f32 %v5507, %v5826
      %v5977 = vadd.f32 %v5508, %v5829
      %v5978 = vadd.f32 %v5509, %v5832
      %v5979 = vadd.f32 %v5510, %v5835
      %v5980 = vadd.f32 %v5511, %v5838
      %v5981 = vadd.f32 %v5512, %v5841
      %v5982 = vadd.f32 %v5513, %v5844
      %v5983 = vadd.f32 %v5514, %v5847
      %v5984 = vadd.f32 %v5515, %v5850
      %v5985 = vadd.f32 %v5516, %v5853
      %v5986 = vadd.f32 %v5517, %v5856
      %v5987 = vadd.f32 %v5518, %v5859
      %v5988 = vadd.f32 %v5519, %v5862
      %v5989 = vadd.f32 %v5520, %v5865
      %v5990 = vadd.f32 %v5521, %v5868
      %v5991 = vadd.f32 %v5522, %v5871
      %v5992 = vadd.f32 %v5523, %v5874
      %v5993 = vadd.f32 %v5524, %v5877
      %v5994 = vadd.f32 %v5525, %v5880
      %v5995 = vadd.f32 %v5526, %v5883
      %v5996 = vadd.f32 %v5527, %v5886
      %v5997 = vadd.f32 %v5528, %v5889
      %v5998 = vadd.f32 %v5529, %v5892
      %v5999 = vadd.f32 %v5530, %v5895
      %v6000 = vadd.f32 %v5531, %v5898
      %v6001 = vadd.f32 %v5532, %v5901
      %v6002 = vadd.f32 %v5533, %v5904
      %v6003 = vlaneseq
      %v6004 = vshrl.u32 %v6003, 7
      %v6005 = vsub.s32 5, %v6004
      %v6006 = vrot.slane %v240, %v6005
      %v6007 = vlaneseq
      %v6008 = vshrl.u32 %v6007, 7
      %v6009 = vsub.s32 5, %v6008
      %v6010 = vrot.slane %v241, %v6009
      %v6011 = vlaneseq
      %v6012 = vshrl.u32 %v6011, 7
      %v6013 = vsub.s32 5, %v6012
      %v6014 = vrot.slane %v242, %v6013
      %v6015 = vlaneseq
      %v6016 = vshrl.u32 %v6015, 7
      %v6017 = vsub.s32 5, %v6016
      %v6018 = vrot.slane %v243, %v6017
      %v6019 = vlaneseq
      %v6020 = vshrl.u32 %v6019, 7
      %v6021 = vsub.s32 5, %v6020
      %v6022 = vrot.slane %v244, %v6021
      %v6023 = vlaneseq
      %v6024 = vshrl.u32 %v6023, 7
      %v6025 = vsub.s32 5, %v6024
      %v6026 = vrot.slane %v245, %v6025
      %v6027 = vlaneseq
      %v6028 = vshrl.u32 %v6027, 7
      %v6029 = vsub.s32 5, %v6028
      %v6030 = vrot.slane %v246, %v6029
      %v6031 = vmul.f32 %v4938, %v6006
      %v6032 = vmul.f32 %v4939, %v6010
      %v6033 = vmul.f32 %v4940, %v6014
      %v6034 = vmul.f32 %v4941, %v6018
      %v6035 = vmul.f32 %v4942, %v6022
      %v6036 = vmul.f32 %v4943, %v6026
      %v6037 = vmul.f32 %v4944, %v6030
      %v6038 = vmul.f32 %v4945, %v6006
      %v6039 = vmul.f32 %v4946, %v6010
      %v6040 = vmul.f32 %v4947, %v6014
      %v6041 = vmul.f32 %v4948, %v6018
      %v6042 = vmul.f32 %v4949, %v6022
      %v6043 = vmul.f32 %v4950, %v6026
      %v6044 = vmul.f32 %v4951, %v6030
      %v6045 = vmul.f32 %v4952, %v6006
      %v6046 = vmul.f32 %v4953, %v6010
      %v6047 = vmul.f32 %v4954, %v6014
      %v6048 = vmul.f32 %v4955, %v6018
      %v6049 = vmul.f32 %v4956, %v6022
      %v6050 = vmul.f32 %v4957, %v6026
      %v6051 = vmul.f32 %v4958, %v6030
      %v6052 = vmul.f32 %v4959, %v6006
      %v6053 = vmul.f32 %v4960, %v6010
      %v6054 = vmul.f32 %v4961, %v6014
      %v6055 = vmul.f32 %v4962, %v6018
      %v6056 = vmul.f32 %v4963, %v6022
      %v6057 = vmul.f32 %v4964, %v6026
      %v6058 = vmul.f32 %v4965, %v6030
      %v6059 = vmul.f32 %v4966, %v6006
      %v6060 = vmul.f32 %v4967, %v6010
      %v6061 = vmul.f32 %v4968, %v6014
      %v6062 = vmul.f32 %v4969, %v6018
      %v6063 = vmul.f32 %v4970, %v6022
      %v6064 = vmul.f32 %v4971, %v6026
      %v6065 = vmul.f32 %v4972, %v6030
      %v6066 = vmul.f32 %v4973, %v6006
      %v6067 = vmul.f32 %v4974, %v6010
      %v6068 = vmul.f32 %v4975, %v6014
      %v6069 = vmul.f32 %v4976, %v6018
      %v6070 = vmul.f32 %v4977, %v6022
      %v6071 = vmul.f32 %v4978, %v6026
      %v6072 = vmul.f32 %v4979, %v6030
      %v6073 = vmul.f32 %v4980, %v6006
      %v6074 = vmul.f32 %v4981, %v6010
      %v6075 = vmul.f32 %v4982, %v6014
      %v6076 = vmul.f32 %v4983, %v6018
      %v6077 = vmul.f32 %v4984, %v6022
      %v6078 = vmul.f32 %v4985, %v6026
      %v6079 = vmul.f32 %v4986, %v6030
      %v6080 = vmul.f32 %v4987, %v6006
      %v6081 = vmul.f32 %v4988, %v6010
      %v6082 = vmul.f32 %v4989, %v6014
      %v6083 = vmul.f32 %v4990, %v6018
      %v6084 = vmul.f32 %v4991, %v6022
      %v6085 = vmul.f32 %v4992, %v6026
      %v6086 = vmul.f32 %v4993, %v6030
      %v6087 = vmul.f32 %v4994, %v6006
      %v6088 = vmul.f32 %v4995, %v6010
      %v6089 = vmul.f32 %v4996, %v6014
      %v6090 = vmul.f32 %v4997, %v6018
      %v6091 = vmul.f32 %v4998, %v6022
      %v6092 = vmul.f32 %v4999, %v6026
      %v6093 = vmul.f32 %v5000, %v6030
      %v6094 = vmul.f32 %v5001, %v6006
      %v6095 = vmul.f32 %v5002, %v6010
      %v6096 = vmul.f32 %v5003, %v6014
      %v6097 = vmul.f32 %v5004, %v6018
      %v6098 = vmul.f32 %v5005, %v6022
      %v6099 = vmul.f32 %v5006, %v6026
      %v6100 = vmul.f32 %v5007, %v6030
      %v6101 = vmul.f32 %v5008, %v6006
      %v6102 = vmul.f32 %v5009, %v6010
      %v6103 = vmul.f32 %v5010, %v6014
      %v6104 = vmul.f32 %v5011, %v6018
      %v6105 = vmul.f32 %v5012, %v6022
      %v6106 = vmul.f32 %v5013, %v6026
      %v6107 = vmul.f32 %v5014, %v6030
      %v6108 = vmul.f32 %v5015, %v6006
      %v6109 = vmul.f32 %v5016, %v6010
      %v6110 = vmul.f32 %v5017, %v6014
      %v6111 = vmul.f32 %v5018, %v6018
      %v6112 = vmul.f32 %v5019, %v6022
      %v6113 = vmul.f32 %v5020, %v6026
      %v6114 = vmul.f32 %v5021, %v6030
      %v6115 = vmul.f32 %v5022, %v6006
      %v6116 = vmul.f32 %v5023, %v6010
      %v6117 = vmul.f32 %v5024, %v6014
      %v6118 = vmul.f32 %v5025, %v6018
      %v6119 = vmul.f32 %v5026, %v6022
      %v6120 = vmul.f32 %v5027, %v6026
      %v6121 = vmul.f32 %v5028, %v6030
      %v6122 = vmul.f32 %v5029, %v6006
      %v6123 = vmul.f32 %v5030, %v6010
      %v6124 = vmul.f32 %v5031, %v6014
      %v6125 = vmul.f32 %v5032, %v6018
      %v6126 = vmul.f32 %v5033, %v6022
      %v6127 = vmul.f32 %v5034, %v6026
      %v6128 = vmul.f32 %v5035, %v6030
      %v6227 = vrot.slane %v6031, 3
      %v6228 = vrot.slane %v6038, 3
      %v6229 = vsel %vm5288, %v6227, %v6228
      %v6230 = vrot.slane %v6032, 3
      %v6231 = vrot.slane %v6039, 3
      %v6232 = vsel %vm5288, %v6230, %v6231
      %v6233 = vrot.slane %v6033, 3
      %v6234 = vrot.slane %v6040, 3
      %v6235 = vsel %vm5288, %v6233, %v6234
      %v6236 = vrot.slane %v6034, 3
      %v6237 = vrot.slane %v6041, 3
      %v6238 = vsel %vm5288, %v6236, %v6237
      %v6239 = vrot.slane %v6035, 3
      %v6240 = vrot.slane %v6042, 3
      %v6241 = vsel %vm5288, %v6239, %v6240
      %v6242 = vrot.slane %v6036, 3
      %v6243 = vrot.slane %v6043, 3
      %v6244 = vsel %vm5288, %v6242, %v6243
      %v6245 = vrot.slane %v6037, 3
      %v6246 = vrot.slane %v6044, 3
      %v6247 = vsel %vm5288, %v6245, %v6246
      %v6248 = vrot.slane %v6045, 3
      %v6249 = vrot.slane %v6052, 3
      %v6250 = vsel %vm5288, %v6248, %v6249
      %v6251 = vrot.slane %v6046, 3
      %v6252 = vrot.slane %v6053, 3
      %v6253 = vsel %vm5288, %v6251, %v6252
      %v6254 = vrot.slane %v6047, 3
      %v6255 = vrot.slane %v6054, 3
      %v6256 = vsel %vm5288, %v6254, %v6255
      %v6257 = vrot.slane %v6048, 3
      %v6258 = vrot.slane %v6055, 3
      %v6259 = vsel %vm5288, %v6257, %v6258
      %v6260 = vrot.slane %v6049, 3
      %v6261 = vrot.slane %v6056, 3
      %v6262 = vsel %vm5288, %v6260, %v6261
      %v6263 = vrot.slane %v6050, 3
      %v6264 = vrot.slane %v6057, 3
      %v6265 = vsel %vm5288, %v6263, %v6264
      %v6266 = vrot.slane %v6051, 3
      %v6267 = vrot.slane %v6058, 3
      %v6268 = vsel %vm5288, %v6266, %v6267
      %v6269 = vrot.slane %v6059, 3
      %v6270 = vrot.slane %v6066, 3
      %v6271 = vsel %vm5288, %v6269, %v6270
      %v6272 = vrot.slane %v6060, 3
      %v6273 = vrot.slane %v6067, 3
      %v6274 = vsel %vm5288, %v6272, %v6273
      %v6275 = vrot.slane %v6061, 3
      %v6276 = vrot.slane %v6068, 3
      %v6277 = vsel %vm5288, %v6275, %v6276
      %v6278 = vrot.slane %v6062, 3
      %v6279 = vrot.slane %v6069, 3
      %v6280 = vsel %vm5288, %v6278, %v6279
      %v6281 = vrot.slane %v6063, 3
      %v6282 = vrot.slane %v6070, 3
      %v6283 = vsel %vm5288, %v6281, %v6282
      %v6284 = vrot.slane %v6064, 3
      %v6285 = vrot.slane %v6071, 3
      %v6286 = vsel %vm5288, %v6284, %v6285
      %v6287 = vrot.slane %v6065, 3
      %v6288 = vrot.slane %v6072, 3
      %v6289 = vsel %vm5288, %v6287, %v6288
      %v6290 = vrot.slane %v6073, 3
      %v6291 = vrot.slane %v6080, 3
      %v6292 = vsel %vm5288, %v6290, %v6291
      %v6293 = vrot.slane %v6074, 3
      %v6294 = vrot.slane %v6081, 3
      %v6295 = vsel %vm5288, %v6293, %v6294
      %v6296 = vrot.slane %v6075, 3
      %v6297 = vrot.slane %v6082, 3
      %v6298 = vsel %vm5288, %v6296, %v6297
      %v6299 = vrot.slane %v6076, 3
      %v6300 = vrot.slane %v6083, 3
      %v6301 = vsel %vm5288, %v6299, %v6300
      %v6302 = vrot.slane %v6077, 3
      %v6303 = vrot.slane %v6084, 3
      %v6304 = vsel %vm5288, %v6302, %v6303
      %v6305 = vrot.slane %v6078, 3
      %v6306 = vrot.slane %v6085, 3
      %v6307 = vsel %vm5288, %v6305, %v6306
      %v6308 = vrot.slane %v6079, 3
      %v6309 = vrot.slane %v6086, 3
      %v6310 = vsel %vm5288, %v6308, %v6309
      %v6311 = vrot.slane %v6087, 3
      %v6312 = vrot.slane %v6094, 3
      %v6313 = vsel %vm5288, %v6311, %v6312
      %v6314 = vrot.slane %v6088, 3
      %v6315 = vrot.slane %v6095, 3
      %v6316 = vsel %vm5288, %v6314, %v6315
      %v6317 = vrot.slane %v6089, 3
      %v6318 = vrot.slane %v6096, 3
      %v6319 = vsel %vm5288, %v6317, %v6318
      %v6320 = vrot.slane %v6090, 3
      %v6321 = vrot.slane %v6097, 3
      %v6322 = vsel %vm5288, %v6320, %v6321
      %v6323 = vrot.slane %v6091, 3
      %v6324 = vrot.slane %v6098, 3
      %v6325 = vsel %vm5288, %v6323, %v6324
      %v6326 = vrot.slane %v6092, 3
      %v6327 = vrot.slane %v6099, 3
      %v6328 = vsel %vm5288, %v6326, %v6327
      %v6329 = vrot.slane %v6093, 3
      %v6330 = vrot.slane %v6100, 3
      %v6331 = vsel %vm5288, %v6329, %v6330
      %v6332 = vrot.slane %v6101, 3
      %v6333 = vrot.slane %v6108, 3
      %v6334 = vsel %vm5288, %v6332, %v6333
      %v6335 = vrot.slane %v6102, 3
      %v6336 = vrot.slane %v6109, 3
      %v6337 = vsel %vm5288, %v6335, %v6336
      %v6338 = vrot.slane %v6103, 3
      %v6339 = vrot.slane %v6110, 3
      %v6340 = vsel %vm5288, %v6338, %v6339
      %v6341 = vrot.slane %v6104, 3
      %v6342 = vrot.slane %v6111, 3
      %v6343 = vsel %vm5288, %v6341, %v6342
      %v6344 = vrot.slane %v6105, 3
      %v6345 = vrot.slane %v6112, 3
      %v6346 = vsel %vm5288, %v6344, %v6345
      %v6347 = vrot.slane %v6106, 3
      %v6348 = vrot.slane %v6113, 3
      %v6349 = vsel %vm5288, %v6347, %v6348
      %v6350 = vrot.slane %v6107, 3
      %v6351 = vrot.slane %v6114, 3
      %v6352 = vsel %vm5288, %v6350, %v6351
      %v6353 = vrot.slane %v6115, 3
      %v6354 = vrot.slane %v6122, 3
      %v6355 = vsel %vm5288, %v6353, %v6354
      %v6356 = vrot.slane %v6116, 3
      %v6357 = vrot.slane %v6123, 3
      %v6358 = vsel %vm5288, %v6356, %v6357
      %v6359 = vrot.slane %v6117, 3
      %v6360 = vrot.slane %v6124, 3
      %v6361 = vsel %vm5288, %v6359, %v6360
      %v6362 = vrot.slane %v6118, 3
      %v6363 = vrot.slane %v6125, 3
      %v6364 = vsel %vm5288, %v6362, %v6363
      %v6365 = vrot.slane %v6119, 3
      %v6366 = vrot.slane %v6126, 3
      %v6367 = vsel %vm5288, %v6365, %v6366
      %v6368 = vrot.slane %v6120, 3
      %v6369 = vrot.slane %v6127, 3
      %v6370 = vsel %vm5288, %v6368, %v6369
      %v6371 = vrot.slane %v6121, 3
      %v6372 = vrot.slane %v6128, 3
      %v6373 = vsel %vm5288, %v6371, %v6372
      %v6423 = vadd.f32 %v5954, %v6229
      %v6424 = vadd.f32 %v5955, %v6232
      %v6425 = vadd.f32 %v5956, %v6235
      %v6426 = vadd.f32 %v5957, %v6238
      %v6427 = vadd.f32 %v5958, %v6241
      %v6428 = vadd.f32 %v5959, %v6244
      %v6429 = vadd.f32 %v5960, %v6247
      %v6430 = vadd.f32 %v5961, %v6250
      %v6431 = vadd.f32 %v5962, %v6253
      %v6432 = vadd.f32 %v5963, %v6256
      %v6433 = vadd.f32 %v5964, %v6259
      %v6434 = vadd.f32 %v5965, %v6262
      %v6435 = vadd.f32 %v5966, %v6265
      %v6436 = vadd.f32 %v5967, %v6268
      %v6437 = vadd.f32 %v5968, %v6271
      %v6438 = vadd.f32 %v5969, %v6274
      %v6439 = vadd.f32 %v5970, %v6277
      %v6440 = vadd.f32 %v5971, %v6280
      %v6441 = vadd.f32 %v5972, %v6283
      %v6442 = vadd.f32 %v5973, %v6286
      %v6443 = vadd.f32 %v5974, %v6289
      %v6444 = vadd.f32 %v5975, %v6292
      %v6445 = vadd.f32 %v5976, %v6295
      %v6446 = vadd.f32 %v5977, %v6298
      %v6447 = vadd.f32 %v5978, %v6301
      %v6448 = vadd.f32 %v5979, %v6304
      %v6449 = vadd.f32 %v5980, %v6307
      %v6450 = vadd.f32 %v5981, %v6310
      %v6451 = vadd.f32 %v5982, %v6313
      %v6452 = vadd.f32 %v5983, %v6316
      %v6453 = vadd.f32 %v5984, %v6319
      %v6454 = vadd.f32 %v5985, %v6322
      %v6455 = vadd.f32 %v5986, %v6325
      %v6456 = vadd.f32 %v5987, %v6328
      %v6457 = vadd.f32 %v5988, %v6331
      %v6458 = vadd.f32 %v5989, %v6334
      %v6459 = vadd.f32 %v5990, %v6337
      %v6460 = vadd.f32 %v5991, %v6340
      %v6461 = vadd.f32 %v5992, %v6343
      %v6462 = vadd.f32 %v5993, %v6346
      %v6463 = vadd.f32 %v5994, %v6349
      %v6464 = vadd.f32 %v5995, %v6352
      %v6465 = vadd.f32 %v5996, %v6355
      %v6466 = vadd.f32 %v5997, %v6358
      %v6467 = vadd.f32 %v5998, %v6361
      %v6468 = vadd.f32 %v5999, %v6364
      %v6469 = vadd.f32 %v6000, %v6367
      %v6470 = vadd.f32 %v6001, %v6370
      %v6471 = vadd.f32 %v6002, %v6373
      %v6472 = vlaneseq
      %v6473 = vshrl.u32 %v6472, 7
      %v6474 = vsub.s32 2, %v6473
      %v6475 = vrot.slane %v247, %v6474
      %v6476 = vlaneseq
      %v6477 = vshrl.u32 %v6476, 7
      %v6478 = vsub.s32 2, %v6477
      %v6479 = vrot.slane %v248, %v6478
      %v6480 = vlaneseq
      %v6481 = vshrl.u32 %v6480, 7
      %v6482 = vsub.s32 2, %v6481
      %v6483 = vrot.slane %v249, %v6482
      %v6484 = vlaneseq
      %v6485 = vshrl.u32 %v6484, 7
      %v6486 = vsub.s32 2, %v6485
      %v6487 = vrot.slane %v250, %v6486
      %v6488 = vlaneseq
      %v6489 = vshrl.u32 %v6488, 7
      %v6490 = vsub.s32 2, %v6489
      %v6491 = vrot.slane %v251, %v6490
      %v6492 = vlaneseq
      %v6493 = vshrl.u32 %v6492, 7
      %v6494 = vsub.s32 2, %v6493
      %v6495 = vrot.slane %v252, %v6494
      %v6496 = vlaneseq
      %v6497 = vshrl.u32 %v6496, 7
      %v6498 = vsub.s32 2, %v6497
      %v6499 = vrot.slane %v253, %v6498
      %v6500 = vmul.f32 %v4952, %v6475
      %v6501 = vmul.f32 %v4953, %v6479
      %v6502 = vmul.f32 %v4954, %v6483
      %v6503 = vmul.f32 %v4955, %v6487
      %v6504 = vmul.f32 %v4956, %v6491
      %v6505 = vmul.f32 %v4957, %v6495
      %v6506 = vmul.f32 %v4958, %v6499
      %v6507 = vmul.f32 %v4959, %v6475
      %v6508 = vmul.f32 %v4960, %v6479
      %v6509 = vmul.f32 %v4961, %v6483
      %v6510 = vmul.f32 %v4962, %v6487
      %v6511 = vmul.f32 %v4963, %v6491
      %v6512 = vmul.f32 %v4964, %v6495
      %v6513 = vmul.f32 %v4965, %v6499
      %v6514 = vmul.f32 %v4966, %v6475
      %v6515 = vmul.f32 %v4967, %v6479
      %v6516 = vmul.f32 %v4968, %v6483
      %v6517 = vmul.f32 %v4969, %v6487
      %v6518 = vmul.f32 %v4970, %v6491
      %v6519 = vmul.f32 %v4971, %v6495
      %v6520 = vmul.f32 %v4972, %v6499
      %v6521 = vmul.f32 %v4973, %v6475
      %v6522 = vmul.f32 %v4974, %v6479
      %v6523 = vmul.f32 %v4975, %v6483
      %v6524 = vmul.f32 %v4976, %v6487
      %v6525 = vmul.f32 %v4977, %v6491
      %v6526 = vmul.f32 %v4978, %v6495
      %v6527 = vmul.f32 %v4979, %v6499
      %v6528 = vmul.f32 %v4980, %v6475
      %v6529 = vmul.f32 %v4981, %v6479
      %v6530 = vmul.f32 %v4982, %v6483
      %v6531 = vmul.f32 %v4983, %v6487
      %v6532 = vmul.f32 %v4984, %v6491
      %v6533 = vmul.f32 %v4985, %v6495
      %v6534 = vmul.f32 %v4986, %v6499
      %v6535 = vmul.f32 %v4987, %v6475
      %v6536 = vmul.f32 %v4988, %v6479
      %v6537 = vmul.f32 %v4989, %v6483
      %v6538 = vmul.f32 %v4990, %v6487
      %v6539 = vmul.f32 %v4991, %v6491
      %v6540 = vmul.f32 %v4992, %v6495
      %v6541 = vmul.f32 %v4993, %v6499
      %v6542 = vmul.f32 %v4994, %v6475
      %v6543 = vmul.f32 %v4995, %v6479
      %v6544 = vmul.f32 %v4996, %v6483
      %v6545 = vmul.f32 %v4997, %v6487
      %v6546 = vmul.f32 %v4998, %v6491
      %v6547 = vmul.f32 %v4999, %v6495
      %v6548 = vmul.f32 %v5000, %v6499
      %v6549 = vmul.f32 %v5001, %v6475
      %v6550 = vmul.f32 %v5002, %v6479
      %v6551 = vmul.f32 %v5003, %v6483
      %v6552 = vmul.f32 %v5004, %v6487
      %v6553 = vmul.f32 %v5005, %v6491
      %v6554 = vmul.f32 %v5006, %v6495
      %v6555 = vmul.f32 %v5007, %v6499
      %v6556 = vmul.f32 %v5008, %v6475
      %v6557 = vmul.f32 %v5009, %v6479
      %v6558 = vmul.f32 %v5010, %v6483
      %v6559 = vmul.f32 %v5011, %v6487
      %v6560 = vmul.f32 %v5012, %v6491
      %v6561 = vmul.f32 %v5013, %v6495
      %v6562 = vmul.f32 %v5014, %v6499
      %v6563 = vmul.f32 %v5015, %v6475
      %v6564 = vmul.f32 %v5016, %v6479
      %v6565 = vmul.f32 %v5017, %v6483
      %v6566 = vmul.f32 %v5018, %v6487
      %v6567 = vmul.f32 %v5019, %v6491
      %v6568 = vmul.f32 %v5020, %v6495
      %v6569 = vmul.f32 %v5021, %v6499
      %v6570 = vmul.f32 %v5022, %v6475
      %v6571 = vmul.f32 %v5023, %v6479
      %v6572 = vmul.f32 %v5024, %v6483
      %v6573 = vmul.f32 %v5025, %v6487
      %v6574 = vmul.f32 %v5026, %v6491
      %v6575 = vmul.f32 %v5027, %v6495
      %v6576 = vmul.f32 %v5028, %v6499
      %v6577 = vmul.f32 %v5029, %v6475
      %v6578 = vmul.f32 %v5030, %v6479
      %v6579 = vmul.f32 %v5031, %v6483
      %v6580 = vmul.f32 %v5032, %v6487
      %v6581 = vmul.f32 %v5033, %v6491
      %v6582 = vmul.f32 %v5034, %v6495
      %v6583 = vmul.f32 %v5035, %v6499
      %v6584 = vmul.f32 %v5036, %v6475
      %v6585 = vmul.f32 %v5037, %v6479
      %v6586 = vmul.f32 %v5038, %v6483
      %v6587 = vmul.f32 %v5039, %v6487
      %v6588 = vmul.f32 %v5040, %v6491
      %v6589 = vmul.f32 %v5041, %v6495
      %v6590 = vmul.f32 %v5042, %v6499
      %v6591 = vmul.f32 %v5043, %v6475
      %v6592 = vmul.f32 %v5044, %v6479
      %v6593 = vmul.f32 %v5045, %v6483
      %v6594 = vmul.f32 %v5046, %v6487
      %v6595 = vmul.f32 %v5047, %v6491
      %v6596 = vmul.f32 %v5048, %v6495
      %v6597 = vmul.f32 %v5049, %v6499
      %v6696 = vrot.slane %v6500, 3
      %v6697 = vrot.slane %v6507, 3
      %v6698 = vsel %vm5288, %v6696, %v6697
      %v6699 = vrot.slane %v6501, 3
      %v6700 = vrot.slane %v6508, 3
      %v6701 = vsel %vm5288, %v6699, %v6700
      %v6702 = vrot.slane %v6502, 3
      %v6703 = vrot.slane %v6509, 3
      %v6704 = vsel %vm5288, %v6702, %v6703
      %v6705 = vrot.slane %v6503, 3
      %v6706 = vrot.slane %v6510, 3
      %v6707 = vsel %vm5288, %v6705, %v6706
      %v6708 = vrot.slane %v6504, 3
      %v6709 = vrot.slane %v6511, 3
      %v6710 = vsel %vm5288, %v6708, %v6709
      %v6711 = vrot.slane %v6505, 3
      %v6712 = vrot.slane %v6512, 3
      %v6713 = vsel %vm5288, %v6711, %v6712
      %v6714 = vrot.slane %v6506, 3
      %v6715 = vrot.slane %v6513, 3
      %v6716 = vsel %vm5288, %v6714, %v6715
      %v6717 = vrot.slane %v6514, 3
      %v6718 = vrot.slane %v6521, 3
      %v6719 = vsel %vm5288, %v6717, %v6718
      %v6720 = vrot.slane %v6515, 3
      %v6721 = vrot.slane %v6522, 3
      %v6722 = vsel %vm5288, %v6720, %v6721
      %v6723 = vrot.slane %v6516, 3
      %v6724 = vrot.slane %v6523, 3
      %v6725 = vsel %vm5288, %v6723, %v6724
      %v6726 = vrot.slane %v6517, 3
      %v6727 = vrot.slane %v6524, 3
      %v6728 = vsel %vm5288, %v6726, %v6727
      %v6729 = vrot.slane %v6518, 3
      %v6730 = vrot.slane %v6525, 3
      %v6731 = vsel %vm5288, %v6729, %v6730
      %v6732 = vrot.slane %v6519, 3
      %v6733 = vrot.slane %v6526, 3
      %v6734 = vsel %vm5288, %v6732, %v6733
      %v6735 = vrot.slane %v6520, 3
      %v6736 = vrot.slane %v6527, 3
      %v6737 = vsel %vm5288, %v6735, %v6736
      %v6738 = vrot.slane %v6528, 3
      %v6739 = vrot.slane %v6535, 3
      %v6740 = vsel %vm5288, %v6738, %v6739
      %v6741 = vrot.slane %v6529, 3
      %v6742 = vrot.slane %v6536, 3
      %v6743 = vsel %vm5288, %v6741, %v6742
      %v6744 = vrot.slane %v6530, 3
      %v6745 = vrot.slane %v6537, 3
      %v6746 = vsel %vm5288, %v6744, %v6745
      %v6747 = vrot.slane %v6531, 3
      %v6748 = vrot.slane %v6538, 3
      %v6749 = vsel %vm5288, %v6747, %v6748
      %v6750 = vrot.slane %v6532, 3
      %v6751 = vrot.slane %v6539, 3
      %v6752 = vsel %vm5288, %v6750, %v6751
      %v6753 = vrot.slane %v6533, 3
      %v6754 = vrot.slane %v6540, 3
      %v6755 = vsel %vm5288, %v6753, %v6754
      %v6756 = vrot.slane %v6534, 3
      %v6757 = vrot.slane %v6541, 3
      %v6758 = vsel %vm5288, %v6756, %v6757
      %v6759 = vrot.slane %v6542, 3
      %v6760 = vrot.slane %v6549, 3
      %v6761 = vsel %vm5288, %v6759, %v6760
      %v6762 = vrot.slane %v6543, 3
      %v6763 = vrot.slane %v6550, 3
      %v6764 = vsel %vm5288, %v6762, %v6763
      %v6765 = vrot.slane %v6544, 3
      %v6766 = vrot.slane %v6551, 3
      %v6767 = vsel %vm5288, %v6765, %v6766
      %v6768 = vrot.slane %v6545, 3
      %v6769 = vrot.slane %v6552, 3
      %v6770 = vsel %vm5288, %v6768, %v6769
      %v6771 = vrot.slane %v6546, 3
      %v6772 = vrot.slane %v6553, 3
      %v6773 = vsel %vm5288, %v6771, %v6772
      %v6774 = vrot.slane %v6547, 3
      %v6775 = vrot.slane %v6554, 3
      %v6776 = vsel %vm5288, %v6774, %v6775
      %v6777 = vrot.slane %v6548, 3
      %v6778 = vrot.slane %v6555, 3
      %v6779 = vsel %vm5288, %v6777, %v6778
      %v6780 = vrot.slane %v6556, 3
      %v6781 = vrot.slane %v6563, 3
      %v6782 = vsel %vm5288, %v6780, %v6781
      %v6783 = vrot.slane %v6557, 3
      %v6784 = vrot.slane %v6564, 3
      %v6785 = vsel %vm5288, %v6783, %v6784
      %v6786 = vrot.slane %v6558, 3
      %v6787 = vrot.slane %v6565, 3
      %v6788 = vsel %vm5288, %v6786, %v6787
      %v6789 = vrot.slane %v6559, 3
      %v6790 = vrot.slane %v6566, 3
      %v6791 = vsel %vm5288, %v6789, %v6790
      %v6792 = vrot.slane %v6560, 3
      %v6793 = vrot.slane %v6567, 3
      %v6794 = vsel %vm5288, %v6792, %v6793
      %v6795 = vrot.slane %v6561, 3
      %v6796 = vrot.slane %v6568, 3
      %v6797 = vsel %vm5288, %v6795, %v6796
      %v6798 = vrot.slane %v6562, 3
      %v6799 = vrot.slane %v6569, 3
      %v6800 = vsel %vm5288, %v6798, %v6799
      %v6801 = vrot.slane %v6570, 3
      %v6802 = vrot.slane %v6577, 3
      %v6803 = vsel %vm5288, %v6801, %v6802
      %v6804 = vrot.slane %v6571, 3
      %v6805 = vrot.slane %v6578, 3
      %v6806 = vsel %vm5288, %v6804, %v6805
      %v6807 = vrot.slane %v6572, 3
      %v6808 = vrot.slane %v6579, 3
      %v6809 = vsel %vm5288, %v6807, %v6808
      %v6810 = vrot.slane %v6573, 3
      %v6811 = vrot.slane %v6580, 3
      %v6812 = vsel %vm5288, %v6810, %v6811
      %v6813 = vrot.slane %v6574, 3
      %v6814 = vrot.slane %v6581, 3
      %v6815 = vsel %vm5288, %v6813, %v6814
      %v6816 = vrot.slane %v6575, 3
      %v6817 = vrot.slane %v6582, 3
      %v6818 = vsel %vm5288, %v6816, %v6817
      %v6819 = vrot.slane %v6576, 3
      %v6820 = vrot.slane %v6583, 3
      %v6821 = vsel %vm5288, %v6819, %v6820
      %v6822 = vrot.slane %v6584, 3
      %v6823 = vrot.slane %v6591, 3
      %v6824 = vsel %vm5288, %v6822, %v6823
      %v6825 = vrot.slane %v6585, 3
      %v6826 = vrot.slane %v6592, 3
      %v6827 = vsel %vm5288, %v6825, %v6826
      %v6828 = vrot.slane %v6586, 3
      %v6829 = vrot.slane %v6593, 3
      %v6830 = vsel %vm5288, %v6828, %v6829
      %v6831 = vrot.slane %v6587, 3
      %v6832 = vrot.slane %v6594, 3
      %v6833 = vsel %vm5288, %v6831, %v6832
      %v6834 = vrot.slane %v6588, 3
      %v6835 = vrot.slane %v6595, 3
      %v6836 = vsel %vm5288, %v6834, %v6835
      %v6837 = vrot.slane %v6589, 3
      %v6838 = vrot.slane %v6596, 3
      %v6839 = vsel %vm5288, %v6837, %v6838
      %v6840 = vrot.slane %v6590, 3
      %v6841 = vrot.slane %v6597, 3
      %v6842 = vsel %vm5288, %v6840, %v6841
      %v6892 = vadd.f32 %v6423, %v6698
      %v6893 = vadd.f32 %v6424, %v6701
      %v6894 = vadd.f32 %v6425, %v6704
      %v6895 = vadd.f32 %v6426, %v6707
      %v6896 = vadd.f32 %v6427, %v6710
      %v6897 = vadd.f32 %v6428, %v6713
      %v6898 = vadd.f32 %v6429, %v6716
      %v6899 = vadd.f32 %v6430, %v6719
      %v6900 = vadd.f32 %v6431, %v6722
      %v6901 = vadd.f32 %v6432, %v6725
      %v6902 = vadd.f32 %v6433, %v6728
      %v6903 = vadd.f32 %v6434, %v6731
      %v6904 = vadd.f32 %v6435, %v6734
      %v6905 = vadd.f32 %v6436, %v6737
      %v6906 = vadd.f32 %v6437, %v6740
      %v6907 = vadd.f32 %v6438, %v6743
      %v6908 = vadd.f32 %v6439, %v6746
      %v6909 = vadd.f32 %v6440, %v6749
      %v6910 = vadd.f32 %v6441, %v6752
      %v6911 = vadd.f32 %v6442, %v6755
      %v6912 = vadd.f32 %v6443, %v6758
      %v6913 = vadd.f32 %v6444, %v6761
      %v6914 = vadd.f32 %v6445, %v6764
      %v6915 = vadd.f32 %v6446, %v6767
      %v6916 = vadd.f32 %v6447, %v6770
      %v6917 = vadd.f32 %v6448, %v6773
      %v6918 = vadd.f32 %v6449, %v6776
      %v6919 = vadd.f32 %v6450, %v6779
      %v6920 = vadd.f32 %v6451, %v6782
      %v6921 = vadd.f32 %v6452, %v6785
      %v6922 = vadd.f32 %v6453, %v6788
      %v6923 = vadd.f32 %v6454, %v6791
      %v6924 = vadd.f32 %v6455, %v6794
      %v6925 = vadd.f32 %v6456, %v6797
      %v6926 = vadd.f32 %v6457, %v6800
      %v6927 = vadd.f32 %v6458, %v6803
      %v6928 = vadd.f32 %v6459, %v6806
      %v6929 = vadd.f32 %v6460, %v6809
      %v6930 = vadd.f32 %v6461, %v6812
      %v6931 = vadd.f32 %v6462, %v6815
      %v6932 = vadd.f32 %v6463, %v6818
      %v6933 = vadd.f32 %v6464, %v6821
      %v6934 = vadd.f32 %v6465, %v6824
      %v6935 = vadd.f32 %v6466, %v6827
      %v6936 = vadd.f32 %v6467, %v6830
      %v6937 = vadd.f32 %v6468, %v6833
      %v6938 = vadd.f32 %v6469, %v6836
      %v6939 = vadd.f32 %v6470, %v6839
      %v6940 = vadd.f32 %v6471, %v6842
      %v6941 = vlaneseq
      %v6942 = vshrl.u32 %v6941, 7
      %v6943 = vsub.s32 7, %v6942
      %v6944 = vrot.slane %v247, %v6943
      %v6945 = vlaneseq
      %v6946 = vshrl.u32 %v6945, 7
      %v6947 = vsub.s32 7, %v6946
      %v6948 = vrot.slane %v248, %v6947
      %v6949 = vlaneseq
      %v6950 = vshrl.u32 %v6949, 7
      %v6951 = vsub.s32 7, %v6950
      %v6952 = vrot.slane %v249, %v6951
      %v6953 = vlaneseq
      %v6954 = vshrl.u32 %v6953, 7
      %v6955 = vsub.s32 7, %v6954
      %v6956 = vrot.slane %v250, %v6955
      %v6957 = vlaneseq
      %v6958 = vshrl.u32 %v6957, 7
      %v6959 = vsub.s32 7, %v6958
      %v6960 = vrot.slane %v251, %v6959
      %v6961 = vlaneseq
      %v6962 = vshrl.u32 %v6961, 7
      %v6963 = vsub.s32 7, %v6962
      %v6964 = vrot.slane %v252, %v6963
      %v6965 = vlaneseq
      %v6966 = vshrl.u32 %v6965, 7
      %v6967 = vsub.s32 7, %v6966
      %v6968 = vrot.slane %v253, %v6967
      %v6969 = vmul.f32 %v4966, %v6944
      %v6970 = vmul.f32 %v4967, %v6948
      %v6971 = vmul.f32 %v4968, %v6952
      %v6972 = vmul.f32 %v4969, %v6956
      %v6973 = vmul.f32 %v4970, %v6960
      %v6974 = vmul.f32 %v4971, %v6964
      %v6975 = vmul.f32 %v4972, %v6968
      %v6976 = vmul.f32 %v4973, %v6944
      %v6977 = vmul.f32 %v4974, %v6948
      %v6978 = vmul.f32 %v4975, %v6952
      %v6979 = vmul.f32 %v4976, %v6956
      %v6980 = vmul.f32 %v4977, %v6960
      %v6981 = vmul.f32 %v4978, %v6964
      %v6982 = vmul.f32 %v4979, %v6968
      %v6983 = vmul.f32 %v4980, %v6944
      %v6984 = vmul.f32 %v4981, %v6948
      %v6985 = vmul.f32 %v4982, %v6952
      %v6986 = vmul.f32 %v4983, %v6956
      %v6987 = vmul.f32 %v4984, %v6960
      %v6988 = vmul.f32 %v4985, %v6964
      %v6989 = vmul.f32 %v4986, %v6968
      %v6990 = vmul.f32 %v4987, %v6944
      %v6991 = vmul.f32 %v4988, %v6948
      %v6992 = vmul.f32 %v4989, %v6952
      %v6993 = vmul.f32 %v4990, %v6956
      %v6994 = vmul.f32 %v4991, %v6960
      %v6995 = vmul.f32 %v4992, %v6964
      %v6996 = vmul.f32 %v4993, %v6968
      %v6997 = vmul.f32 %v4994, %v6944
      %v6998 = vmul.f32 %v4995, %v6948
      %v6999 = vmul.f32 %v4996, %v6952
      %v7000 = vmul.f32 %v4997, %v6956
      %v7001 = vmul.f32 %v4998, %v6960
      %v7002 = vmul.f32 %v4999, %v6964
      %v7003 = vmul.f32 %v5000, %v6968
      %v7004 = vmul.f32 %v5001, %v6944
      %v7005 = vmul.f32 %v5002, %v6948
      %v7006 = vmul.f32 %v5003, %v6952
      %v7007 = vmul.f32 %v5004, %v6956
      %v7008 = vmul.f32 %v5005, %v6960
      %v7009 = vmul.f32 %v5006, %v6964
      %v7010 = vmul.f32 %v5007, %v6968
      %v7011 = vmul.f32 %v5008, %v6944
      %v7012 = vmul.f32 %v5009, %v6948
      %v7013 = vmul.f32 %v5010, %v6952
      %v7014 = vmul.f32 %v5011, %v6956
      %v7015 = vmul.f32 %v5012, %v6960
      %v7016 = vmul.f32 %v5013, %v6964
      %v7017 = vmul.f32 %v5014, %v6968
      %v7018 = vmul.f32 %v5015, %v6944
      %v7019 = vmul.f32 %v5016, %v6948
      %v7020 = vmul.f32 %v5017, %v6952
      %v7021 = vmul.f32 %v5018, %v6956
      %v7022 = vmul.f32 %v5019, %v6960
      %v7023 = vmul.f32 %v5020, %v6964
      %v7024 = vmul.f32 %v5021, %v6968
      %v7025 = vmul.f32 %v5022, %v6944
      %v7026 = vmul.f32 %v5023, %v6948
      %v7027 = vmul.f32 %v5024, %v6952
      %v7028 = vmul.f32 %v5025, %v6956
      %v7029 = vmul.f32 %v5026, %v6960
      %v7030 = vmul.f32 %v5027, %v6964
      %v7031 = vmul.f32 %v5028, %v6968
      %v7032 = vmul.f32 %v5029, %v6944
      %v7033 = vmul.f32 %v5030, %v6948
      %v7034 = vmul.f32 %v5031, %v6952
      %v7035 = vmul.f32 %v5032, %v6956
      %v7036 = vmul.f32 %v5033, %v6960
      %v7037 = vmul.f32 %v5034, %v6964
      %v7038 = vmul.f32 %v5035, %v6968
      %v7039 = vmul.f32 %v5036, %v6944
      %v7040 = vmul.f32 %v5037, %v6948
      %v7041 = vmul.f32 %v5038, %v6952
      %v7042 = vmul.f32 %v5039, %v6956
      %v7043 = vmul.f32 %v5040, %v6960
      %v7044 = vmul.f32 %v5041, %v6964
      %v7045 = vmul.f32 %v5042, %v6968
      %v7046 = vmul.f32 %v5043, %v6944
      %v7047 = vmul.f32 %v5044, %v6948
      %v7048 = vmul.f32 %v5045, %v6952
      %v7049 = vmul.f32 %v5046, %v6956
      %v7050 = vmul.f32 %v5047, %v6960
      %v7051 = vmul.f32 %v5048, %v6964
      %v7052 = vmul.f32 %v5049, %v6968
      %v7053 = vmul.f32 %v5050, %v6944
      %v7054 = vmul.f32 %v5051, %v6948
      %v7055 = vmul.f32 %v5052, %v6952
      %v7056 = vmul.f32 %v5053, %v6956
      %v7057 = vmul.f32 %v5054, %v6960
      %v7058 = vmul.f32 %v5055, %v6964
      %v7059 = vmul.f32 %v5056, %v6968
      %v7060 = vmul.f32 %v5057, %v6944
      %v7061 = vmul.f32 %v5058, %v6948
      %v7062 = vmul.f32 %v5059, %v6952
      %v7063 = vmul.f32 %v5060, %v6956
      %v7064 = vmul.f32 %v5061, %v6960
      %v7065 = vmul.f32 %v5062, %v6964
      %v7066 = vmul.f32 %v5063, %v6968
      %v7165 = vrot.slane %v6969, 3
      %v7166 = vrot.slane %v6976, 3
      %v7167 = vsel %vm5288, %v7165, %v7166
      %v7168 = vrot.slane %v6970, 3
      %v7169 = vrot.slane %v6977, 3
      %v7170 = vsel %vm5288, %v7168, %v7169
      %v7171 = vrot.slane %v6971, 3
      %v7172 = vrot.slane %v6978, 3
      %v7173 = vsel %vm5288, %v7171, %v7172
      %v7174 = vrot.slane %v6972, 3
      %v7175 = vrot.slane %v6979, 3
      %v7176 = vsel %vm5288, %v7174, %v7175
      %v7177 = vrot.slane %v6973, 3
      %v7178 = vrot.slane %v6980, 3
      %v7179 = vsel %vm5288, %v7177, %v7178
      %v7180 = vrot.slane %v6974, 3
      %v7181 = vrot.slane %v6981, 3
      %v7182 = vsel %vm5288, %v7180, %v7181
      %v7183 = vrot.slane %v6975, 3
      %v7184 = vrot.slane %v6982, 3
      %v7185 = vsel %vm5288, %v7183, %v7184
      %v7186 = vrot.slane %v6983, 3
      %v7187 = vrot.slane %v6990, 3
      %v7188 = vsel %vm5288, %v7186, %v7187
      %v7189 = vrot.slane %v6984, 3
      %v7190 = vrot.slane %v6991, 3
      %v7191 = vsel %vm5288, %v7189, %v7190
      %v7192 = vrot.slane %v6985, 3
      %v7193 = vrot.slane %v6992, 3
      %v7194 = vsel %vm5288, %v7192, %v7193
      %v7195 = vrot.slane %v6986, 3
      %v7196 = vrot.slane %v6993, 3
      %v7197 = vsel %vm5288, %v7195, %v7196
      %v7198 = vrot.slane %v6987, 3
      %v7199 = vrot.slane %v6994, 3
      %v7200 = vsel %vm5288, %v7198, %v7199
      %v7201 = vrot.slane %v6988, 3
      %v7202 = vrot.slane %v6995, 3
      %v7203 = vsel %vm5288, %v7201, %v7202
      %v7204 = vrot.slane %v6989, 3
      %v7205 = vrot.slane %v6996, 3
      %v7206 = vsel %vm5288, %v7204, %v7205
      %v7207 = vrot.slane %v6997, 3
      %v7208 = vrot.slane %v7004, 3
      %v7209 = vsel %vm5288, %v7207, %v7208
      %v7210 = vrot.slane %v6998, 3
      %v7211 = vrot.slane %v7005, 3
      %v7212 = vsel %vm5288, %v7210, %v7211
      %v7213 = vrot.slane %v6999, 3
      %v7214 = vrot.slane %v7006, 3
      %v7215 = vsel %vm5288, %v7213, %v7214
      %v7216 = vrot.slane %v7000, 3
      %v7217 = vrot.slane %v7007, 3
      %v7218 = vsel %vm5288, %v7216, %v7217
      %v7219 = vrot.slane %v7001, 3
      %v7220 = vrot.slane %v7008, 3
      %v7221 = vsel %vm5288, %v7219, %v7220
      %v7222 = vrot.slane %v7002, 3
      %v7223 = vrot.slane %v7009, 3
      %v7224 = vsel %vm5288, %v7222, %v7223
      %v7225 = vrot.slane %v7003, 3
      %v7226 = vrot.slane %v7010, 3
      %v7227 = vsel %vm5288, %v7225, %v7226
      %v7228 = vrot.slane %v7011, 3
      %v7229 = vrot.slane %v7018, 3
      %v7230 = vsel %vm5288, %v7228, %v7229
      %v7231 = vrot.slane %v7012, 3
      %v7232 = vrot.slane %v7019, 3
      %v7233 = vsel %vm5288, %v7231, %v7232
      %v7234 = vrot.slane %v7013, 3
      %v7235 = vrot.slane %v7020, 3
      %v7236 = vsel %vm5288, %v7234, %v7235
      %v7237 = vrot.slane %v7014, 3
      %v7238 = vrot.slane %v7021, 3
      %v7239 = vsel %vm5288, %v7237, %v7238
      %v7240 = vrot.slane %v7015, 3
      %v7241 = vrot.slane %v7022, 3
      %v7242 = vsel %vm5288, %v7240, %v7241
      %v7243 = vrot.slane %v7016, 3
      %v7244 = vrot.slane %v7023, 3
      %v7245 = vsel %vm5288, %v7243, %v7244
      %v7246 = vrot.slane %v7017, 3
      %v7247 = vrot.slane %v7024, 3
      %v7248 = vsel %vm5288, %v7246, %v7247
      %v7249 = vrot.slane %v7025, 3
      %v7250 = vrot.slane %v7032, 3
      %v7251 = vsel %vm5288, %v7249, %v7250
      %v7252 = vrot.slane %v7026, 3
      %v7253 = vrot.slane %v7033, 3
      %v7254 = vsel %vm5288, %v7252, %v7253
      %v7255 = vrot.slane %v7027, 3
      %v7256 = vrot.slane %v7034, 3
      %v7257 = vsel %vm5288, %v7255, %v7256
      %v7258 = vrot.slane %v7028, 3
      %v7259 = vrot.slane %v7035, 3
      %v7260 = vsel %vm5288, %v7258, %v7259
      %v7261 = vrot.slane %v7029, 3
      %v7262 = vrot.slane %v7036, 3
      %v7263 = vsel %vm5288, %v7261, %v7262
      %v7264 = vrot.slane %v7030, 3
      %v7265 = vrot.slane %v7037, 3
      %v7266 = vsel %vm5288, %v7264, %v7265
      %v7267 = vrot.slane %v7031, 3
      %v7268 = vrot.slane %v7038, 3
      %v7269 = vsel %vm5288, %v7267, %v7268
      %v7270 = vrot.slane %v7039, 3
      %v7271 = vrot.slane %v7046, 3
      %v7272 = vsel %vm5288, %v7270, %v7271
      %v7273 = vrot.slane %v7040, 3
      %v7274 = vrot.slane %v7047, 3
      %v7275 = vsel %vm5288, %v7273, %v7274
      %v7276 = vrot.slane %v7041, 3
      %v7277 = vrot.slane %v7048, 3
      %v7278 = vsel %vm5288, %v7276, %v7277
      %v7279 = vrot.slane %v7042, 3
      %v7280 = vrot.slane %v7049, 3
      %v7281 = vsel %vm5288, %v7279, %v7280
      %v7282 = vrot.slane %v7043, 3
      %v7283 = vrot.slane %v7050, 3
      %v7284 = vsel %vm5288, %v7282, %v7283
      %v7285 = vrot.slane %v7044, 3
      %v7286 = vrot.slane %v7051, 3
      %v7287 = vsel %vm5288, %v7285, %v7286
      %v7288 = vrot.slane %v7045, 3
      %v7289 = vrot.slane %v7052, 3
      %v7290 = vsel %vm5288, %v7288, %v7289
      %v7291 = vrot.slane %v7053, 3
      %v7292 = vrot.slane %v7060, 3
      %v7293 = vsel %vm5288, %v7291, %v7292
      %v7294 = vrot.slane %v7054, 3
      %v7295 = vrot.slane %v7061, 3
      %v7296 = vsel %vm5288, %v7294, %v7295
      %v7297 = vrot.slane %v7055, 3
      %v7298 = vrot.slane %v7062, 3
      %v7299 = vsel %vm5288, %v7297, %v7298
      %v7300 = vrot.slane %v7056, 3
      %v7301 = vrot.slane %v7063, 3
      %v7302 = vsel %vm5288, %v7300, %v7301
      %v7303 = vrot.slane %v7057, 3
      %v7304 = vrot.slane %v7064, 3
      %v7305 = vsel %vm5288, %v7303, %v7304
      %v7306 = vrot.slane %v7058, 3
      %v7307 = vrot.slane %v7065, 3
      %v7308 = vsel %vm5288, %v7306, %v7307
      %v7309 = vrot.slane %v7059, 3
      %v7310 = vrot.slane %v7066, 3
      %v7311 = vsel %vm5288, %v7309, %v7310
      %v7361 = vadd.f32 %v6892, %v7167
      %v7362 = vadd.f32 %v6893, %v7170
      %v7363 = vadd.f32 %v6894, %v7173
      %v7364 = vadd.f32 %v6895, %v7176
      %v7365 = vadd.f32 %v6896, %v7179
      %v7366 = vadd.f32 %v6897, %v7182
      %v7367 = vadd.f32 %v6898, %v7185
      %v7368 = vadd.f32 %v6899, %v7188
      %v7369 = vadd.f32 %v6900, %v7191
      %v7370 = vadd.f32 %v6901, %v7194
      %v7371 = vadd.f32 %v6902, %v7197
      %v7372 = vadd.f32 %v6903, %v7200
      %v7373 = vadd.f32 %v6904, %v7203
      %v7374 = vadd.f32 %v6905, %v7206
      %v7375 = vadd.f32 %v6906, %v7209
      %v7376 = vadd.f32 %v6907, %v7212
      %v7377 = vadd.f32 %v6908, %v7215
      %v7378 = vadd.f32 %v6909, %v7218
      %v7379 = vadd.f32 %v6910, %v7221
      %v7380 = vadd.f32 %v6911, %v7224
      %v7381 = vadd.f32 %v6912, %v7227
      %v7382 = vadd.f32 %v6913, %v7230
      %v7383 = vadd.f32 %v6914, %v7233
      %v7384 = vadd.f32 %v6915, %v7236
      %v7385 = vadd.f32 %v6916, %v7239
      %v7386 = vadd.f32 %v6917, %v7242
      %v7387 = vadd.f32 %v6918, %v7245
      %v7388 = vadd.f32 %v6919, %v7248
      %v7389 = vadd.f32 %v6920, %v7251
      %v7390 = vadd.f32 %v6921, %v7254
      %v7391 = vadd.f32 %v6922, %v7257
      %v7392 = vadd.f32 %v6923, %v7260
      %v7393 = vadd.f32 %v6924, %v7263
      %v7394 = vadd.f32 %v6925, %v7266
      %v7395 = vadd.f32 %v6926, %v7269
      %v7396 = vadd.f32 %v6927, %v7272
      %v7397 = vadd.f32 %v6928, %v7275
      %v7398 = vadd.f32 %v6929, %v7278
      %v7399 = vadd.f32 %v6930, %v7281
      %v7400 = vadd.f32 %v6931, %v7284
      %v7401 = vadd.f32 %v6932, %v7287
      %v7402 = vadd.f32 %v6933, %v7290
      %v7403 = vadd.f32 %v6934, %v7293
      %v7404 = vadd.f32 %v6935, %v7296
      %v7405 = vadd.f32 %v6936, %v7299
      %v7406 = vadd.f32 %v6937, %v7302
      %v7407 = vadd.f32 %v6938, %v7305
      %v7408 = vadd.f32 %v6939, %v7308
      %v7409 = vadd.f32 %v6940, %v7311
      %v7410 = vld [vmem:[%s212] sm:$0xf0]
      %v7411 = vld [vmem:[%s212 + $0x8] sm:$0xf0]
      %v7412 = vld [vmem:[%s212 + $0x10] sm:$0xf0]
      %v7413 = vld [vmem:[%s212 + $0x18] sm:$0xf0]
      %v7414 = vld [vmem:[%s212 + $0x20] sm:$0xf0]
      %v7415 = vld [vmem:[%s212 + $0x28] sm:$0xf0]
      %v7416 = vld [vmem:[%s212 + $0x30] sm:$0xf0]
      %v7417 = vld [vmem:[%s212 + $0x38] sm:$0x7]
      %v7418 = vld [vmem:[%s212 + $0x40] sm:$0x7]
      %v7419 = vld [vmem:[%s212 + $0x48] sm:$0x7]
      %v7420 = vld [vmem:[%s212 + $0x50] sm:$0x7]
      %v7421 = vld [vmem:[%s212 + $0x58] sm:$0x7]
      %v7422 = vld [vmem:[%s212 + $0x60] sm:$0x7]
      %v7423 = vld [vmem:[%s212 + $0x68] sm:$0x7]
      %v7424 = vld [vmem:[%s212 + $0x70] sm:$0xf0]
      %v7425 = vld [vmem:[%s212 + $0x78] sm:$0xf0]
      %v7426 = vld [vmem:[%s212 + $0x80] sm:$0xf0]
      %v7427 = vld [vmem:[%s212 + $0x88] sm:$0xf0]
      %v7428 = vld [vmem:[%s212 + $0x90] sm:$0xf0]
      %v7429 = vld [vmem:[%s212 + $0x98] sm:$0xf0]
      %v7430 = vld [vmem:[%s212 + $0xa0] sm:$0xf0]
      %v7431 = vld [vmem:[%s212 + $0xa8] sm:$0x7]
      %v7432 = vld [vmem:[%s212 + $0xb0] sm:$0x7]
      %v7433 = vld [vmem:[%s212 + $0xb8] sm:$0x7]
      %v7434 = vld [vmem:[%s212 + $0xc0] sm:$0x7]
      %v7435 = vld [vmem:[%s212 + $0xc8] sm:$0x7]
      %v7436 = vld [vmem:[%s212 + $0xd0] sm:$0x7]
      %v7437 = vld [vmem:[%s212 + $0xd8] sm:$0x7]
      %v7438 = vld [vmem:[%s212 + $0xe0] sm:$0xf0]
      %v7439 = vld [vmem:[%s212 + $0xe8] sm:$0xf0]
      %v7440 = vld [vmem:[%s212 + $0xf0] sm:$0xf0]
      %v7441 = vld [vmem:[%s212 + $0xf8] sm:$0xf0]
      %v7442 = vld [vmem:[%s212 + $0x100] sm:$0xf0]
      %v7443 = vld [vmem:[%s212 + $0x108] sm:$0xf0]
      %v7444 = vld [vmem:[%s212 + $0x110] sm:$0xf0]
      %v7445 = vld [vmem:[%s212 + $0x118] sm:$0x7]
      %v7446 = vld [vmem:[%s212 + $0x120] sm:$0x7]
      %v7447 = vld [vmem:[%s212 + $0x128] sm:$0x7]
      %v7448 = vld [vmem:[%s212 + $0x130] sm:$0x7]
      %v7449 = vld [vmem:[%s212 + $0x138] sm:$0x7]
      %v7450 = vld [vmem:[%s212 + $0x140] sm:$0x7]
      %v7451 = vld [vmem:[%s212 + $0x148] sm:$0x7]
      %v7452 = vld [vmem:[%s212 + $0x150] sm:$0xf0]
      %v7453 = vld [vmem:[%s212 + $0x158] sm:$0xf0]
      %v7454 = vld [vmem:[%s212 + $0x160] sm:$0xf0]
      %v7455 = vld [vmem:[%s212 + $0x168] sm:$0xf0]
      %v7456 = vld [vmem:[%s212 + $0x170] sm:$0xf0]
      %v7457 = vld [vmem:[%s212 + $0x178] sm:$0xf0]
      %v7458 = vld [vmem:[%s212 + $0x180] sm:$0xf0]
      %v7459 = vld [vmem:[%s212 + $0x188] sm:$0x7]
      %v7460 = vld [vmem:[%s212 + $0x190] sm:$0x7]
      %v7461 = vld [vmem:[%s212 + $0x198] sm:$0x7]
      %v7462 = vld [vmem:[%s212 + $0x1a0] sm:$0x7]
      %v7463 = vld [vmem:[%s212 + $0x1a8] sm:$0x7]
      %v7464 = vld [vmem:[%s212 + $0x1b0] sm:$0x7]
      %v7465 = vld [vmem:[%s212 + $0x1b8] sm:$0x7]
      %v7466 = vld [vmem:[%s212 + $0x1c0] sm:$0xf0]
      %v7467 = vld [vmem:[%s212 + $0x1c8] sm:$0xf0]
      %v7468 = vld [vmem:[%s212 + $0x1d0] sm:$0xf0]
      %v7469 = vld [vmem:[%s212 + $0x1d8] sm:$0xf0]
      %v7470 = vld [vmem:[%s212 + $0x1e0] sm:$0xf0]
      %v7471 = vld [vmem:[%s212 + $0x1e8] sm:$0xf0]
      %v7472 = vld [vmem:[%s212 + $0x1f0] sm:$0xf0]
      %v7473 = vld [vmem:[%s212 + $0x1f8] sm:$0x7]
      %v7474 = vld [vmem:[%s212 + $0x200] sm:$0x7]
      %v7475 = vld [vmem:[%s212 + $0x208] sm:$0x7]
      %v7476 = vld [vmem:[%s212 + $0x210] sm:$0x7]
      %v7477 = vld [vmem:[%s212 + $0x218] sm:$0x7]
      %v7478 = vld [vmem:[%s212 + $0x220] sm:$0x7]
      %v7479 = vld [vmem:[%s212 + $0x228] sm:$0x7]
      %v7480 = vld [vmem:[%s212 + $0x230] sm:$0xf0]
      %v7481 = vld [vmem:[%s212 + $0x238] sm:$0xf0]
      %v7482 = vld [vmem:[%s212 + $0x240] sm:$0xf0]
      %v7483 = vld [vmem:[%s212 + $0x248] sm:$0xf0]
      %v7484 = vld [vmem:[%s212 + $0x250] sm:$0xf0]
      %v7485 = vld [vmem:[%s212 + $0x258] sm:$0xf0]
      %v7486 = vld [vmem:[%s212 + $0x260] sm:$0xf0]
      %v7487 = vld [vmem:[%s212 + $0x268] sm:$0x7]
      %v7488 = vld [vmem:[%s212 + $0x270] sm:$0x7]
      %v7489 = vld [vmem:[%s212 + $0x278] sm:$0x7]
      %v7490 = vld [vmem:[%s212 + $0x280] sm:$0x7]
      %v7491 = vld [vmem:[%s212 + $0x288] sm:$0x7]
      %v7492 = vld [vmem:[%s212 + $0x290] sm:$0x7]
      %v7493 = vld [vmem:[%s212 + $0x298] sm:$0x7]
      %v7494 = vld [vmem:[%s212 + $0x2a0] sm:$0xf0]
      %v7495 = vld [vmem:[%s212 + $0x2a8] sm:$0xf0]
      %v7496 = vld [vmem:[%s212 + $0x2b0] sm:$0xf0]
      %v7497 = vld [vmem:[%s212 + $0x2b8] sm:$0xf0]
      %v7498 = vld [vmem:[%s212 + $0x2c0] sm:$0xf0]
      %v7499 = vld [vmem:[%s212 + $0x2c8] sm:$0xf0]
      %v7500 = vld [vmem:[%s212 + $0x2d0] sm:$0xf0]
      %v7501 = vld [vmem:[%s212 + $0x2d8] sm:$0x7]
      %v7502 = vld [vmem:[%s212 + $0x2e0] sm:$0x7]
      %v7503 = vld [vmem:[%s212 + $0x2e8] sm:$0x7]
      %v7504 = vld [vmem:[%s212 + $0x2f0] sm:$0x7]
      %v7505 = vld [vmem:[%s212 + $0x2f8] sm:$0x7]
      %v7506 = vld [vmem:[%s212 + $0x300] sm:$0x7]
      %v7507 = vld [vmem:[%s212 + $0x308] sm:$0x7]
      %v7508 = vld [vmem:[%s212 + $0x310] sm:$0xf0]
      %v7509 = vld [vmem:[%s212 + $0x318] sm:$0xf0]
      %v7510 = vld [vmem:[%s212 + $0x320] sm:$0xf0]
      %v7511 = vld [vmem:[%s212 + $0x328] sm:$0xf0]
      %v7512 = vld [vmem:[%s212 + $0x330] sm:$0xf0]
      %v7513 = vld [vmem:[%s212 + $0x338] sm:$0xf0]
      %v7514 = vld [vmem:[%s212 + $0x340] sm:$0xf0]
      %v7515 = vld [vmem:[%s212 + $0x348] sm:$0x7]
      %v7516 = vld [vmem:[%s212 + $0x350] sm:$0x7]
      %v7517 = vld [vmem:[%s212 + $0x358] sm:$0x7]
      %v7518 = vld [vmem:[%s212 + $0x360] sm:$0x7]
      %v7519 = vld [vmem:[%s212 + $0x368] sm:$0x7]
      %v7520 = vld [vmem:[%s212 + $0x370] sm:$0x7]
      %v7521 = vld [vmem:[%s212 + $0x378] sm:$0x7]
      %v7522 = vld [vmem:[%s212 + $0x380] sm:$0xf0]
      %v7523 = vld [vmem:[%s212 + $0x388] sm:$0xf0]
      %v7524 = vld [vmem:[%s212 + $0x390] sm:$0xf0]
      %v7525 = vld [vmem:[%s212 + $0x398] sm:$0xf0]
      %v7526 = vld [vmem:[%s212 + $0x3a0] sm:$0xf0]
      %v7527 = vld [vmem:[%s212 + $0x3a8] sm:$0xf0]
      %v7528 = vld [vmem:[%s212 + $0x3b0] sm:$0xf0]
      %v7529 = vld [vmem:[%s212 + $0x3b8] sm:$0x7]
      %v7530 = vld [vmem:[%s212 + $0x3c0] sm:$0x7]
      %v7531 = vld [vmem:[%s212 + $0x3c8] sm:$0x7]
      %v7532 = vld [vmem:[%s212 + $0x3d0] sm:$0x7]
      %v7533 = vld [vmem:[%s212 + $0x3d8] sm:$0x7]
      %v7534 = vld [vmem:[%s212 + $0x3e0] sm:$0x7]
      %v7535 = vld [vmem:[%s212 + $0x3e8] sm:$0x7]
      %v7536 = vld [vmem:[%s212 + $0x3f0] sm:$0xf0]
      %v7537 = vld [vmem:[%s212 + $0x3f8] sm:$0xf0]
      %v7538 = vld [vmem:[%s212 + $0x400] sm:$0xf0]
      %v7539 = vld [vmem:[%s212 + $0x408] sm:$0xf0]
      %v7540 = vld [vmem:[%s212 + $0x410] sm:$0xf0]
      %v7541 = vld [vmem:[%s212 + $0x418] sm:$0xf0]
      %v7542 = vld [vmem:[%s212 + $0x420] sm:$0xf0]
      %v7543 = vld [vmem:[%s212 + $0x428] sm:$0x7]
      %v7544 = vld [vmem:[%s212 + $0x430] sm:$0x7]
      %v7545 = vld [vmem:[%s212 + $0x438] sm:$0x7]
      %v7546 = vld [vmem:[%s212 + $0x440] sm:$0x7]
      %v7547 = vld [vmem:[%s212 + $0x448] sm:$0x7]
      %v7548 = vld [vmem:[%s212 + $0x450] sm:$0x7]
      %v7549 = vld [vmem:[%s212 + $0x458] sm:$0x7]
      %v7550 = vld [vmem:[%s212 + $0x460] sm:$0xf0]
      %v7551 = vld [vmem:[%s212 + $0x468] sm:$0xf0]
      %v7552 = vld [vmem:[%s212 + $0x470] sm:$0xf0]
      %v7553 = vld [vmem:[%s212 + $0x478] sm:$0xf0]
      %v7554 = vld [vmem:[%s212 + $0x480] sm:$0xf0]
      %v7555 = vld [vmem:[%s212 + $0x488] sm:$0xf0]
      %v7556 = vld [vmem:[%s212 + $0x490] sm:$0xf0]
      %v7557 = vld [vmem:[%s212 + $0x498] sm:$0x7]
      %v7558 = vld [vmem:[%s212 + $0x4a0] sm:$0x7]
      %v7559 = vld [vmem:[%s212 + $0x4a8] sm:$0x7]
      %v7560 = vld [vmem:[%s212 + $0x4b0] sm:$0x7]
      %v7561 = vld [vmem:[%s212 + $0x4b8] sm:$0x7]
      %v7562 = vld [vmem:[%s212 + $0x4c0] sm:$0x7]
      %v7563 = vld [vmem:[%s212 + $0x4c8] sm:$0x7]
      %v7564 = vlaneseq
      %v7565 = vshrl.u32 %v7564, 7
      %v7566 = vsub.s32 4, %v7565
      %v7567 = vrot.slane %v233, %v7566
      %v7568 = vlaneseq
      %v7569 = vshrl.u32 %v7568, 7
      %v7570 = vsub.s32 4, %v7569
      %v7571 = vrot.slane %v234, %v7570
      %v7572 = vlaneseq
      %v7573 = vshrl.u32 %v7572, 7
      %v7574 = vsub.s32 4, %v7573
      %v7575 = vrot.slane %v235, %v7574
      %v7576 = vlaneseq
      %v7577 = vshrl.u32 %v7576, 7
      %v7578 = vsub.s32 4, %v7577
      %v7579 = vrot.slane %v236, %v7578
      %v7580 = vlaneseq
      %v7581 = vshrl.u32 %v7580, 7
      %v7582 = vsub.s32 4, %v7581
      %v7583 = vrot.slane %v237, %v7582
      %v7584 = vlaneseq
      %v7585 = vshrl.u32 %v7584, 7
      %v7586 = vsub.s32 4, %v7585
      %v7587 = vrot.slane %v238, %v7586
      %v7588 = vlaneseq
      %v7589 = vshrl.u32 %v7588, 7
      %v7590 = vsub.s32 4, %v7589
      %v7591 = vrot.slane %v239, %v7590
      %v7592 = vmul.f32 %v7410, %v7567
      %v7593 = vmul.f32 %v7411, %v7571
      %v7594 = vmul.f32 %v7412, %v7575
      %v7595 = vmul.f32 %v7413, %v7579
      %v7596 = vmul.f32 %v7414, %v7583
      %v7597 = vmul.f32 %v7415, %v7587
      %v7598 = vmul.f32 %v7416, %v7591
      %v7599 = vmul.f32 %v7417, %v7567
      %v7600 = vmul.f32 %v7418, %v7571
      %v7601 = vmul.f32 %v7419, %v7575
      %v7602 = vmul.f32 %v7420, %v7579
      %v7603 = vmul.f32 %v7421, %v7583
      %v7604 = vmul.f32 %v7422, %v7587
      %v7605 = vmul.f32 %v7423, %v7591
      %v7606 = vmul.f32 %v7424, %v7567
      %v7607 = vmul.f32 %v7425, %v7571
      %v7608 = vmul.f32 %v7426, %v7575
      %v7609 = vmul.f32 %v7427, %v7579
      %v7610 = vmul.f32 %v7428, %v7583
      %v7611 = vmul.f32 %v7429, %v7587
      %v7612 = vmul.f32 %v7430, %v7591
      %v7613 = vmul.f32 %v7431, %v7567
      %v7614 = vmul.f32 %v7432, %v7571
      %v7615 = vmul.f32 %v7433, %v7575
      %v7616 = vmul.f32 %v7434, %v7579
      %v7617 = vmul.f32 %v7435, %v7583
      %v7618 = vmul.f32 %v7436, %v7587
      %v7619 = vmul.f32 %v7437, %v7591
      %v7620 = vmul.f32 %v7438, %v7567
      %v7621 = vmul.f32 %v7439, %v7571
      %v7622 = vmul.f32 %v7440, %v7575
      %v7623 = vmul.f32 %v7441, %v7579
      %v7624 = vmul.f32 %v7442, %v7583
      %v7625 = vmul.f32 %v7443, %v7587
      %v7626 = vmul.f32 %v7444, %v7591
      %v7627 = vmul.f32 %v7445, %v7567
      %v7628 = vmul.f32 %v7446, %v7571
      %v7629 = vmul.f32 %v7447, %v7575
      %v7630 = vmul.f32 %v7448, %v7579
      %v7631 = vmul.f32 %v7449, %v7583
      %v7632 = vmul.f32 %v7450, %v7587
      %v7633 = vmul.f32 %v7451, %v7591
      %v7634 = vmul.f32 %v7452, %v7567
      %v7635 = vmul.f32 %v7453, %v7571
      %v7636 = vmul.f32 %v7454, %v7575
      %v7637 = vmul.f32 %v7455, %v7579
      %v7638 = vmul.f32 %v7456, %v7583
      %v7639 = vmul.f32 %v7457, %v7587
      %v7640 = vmul.f32 %v7458, %v7591
      %v7641 = vmul.f32 %v7459, %v7567
      %v7642 = vmul.f32 %v7460, %v7571
      %v7643 = vmul.f32 %v7461, %v7575
      %v7644 = vmul.f32 %v7462, %v7579
      %v7645 = vmul.f32 %v7463, %v7583
      %v7646 = vmul.f32 %v7464, %v7587
      %v7647 = vmul.f32 %v7465, %v7591
      %v7648 = vmul.f32 %v7466, %v7567
      %v7649 = vmul.f32 %v7467, %v7571
      %v7650 = vmul.f32 %v7468, %v7575
      %v7651 = vmul.f32 %v7469, %v7579
      %v7652 = vmul.f32 %v7470, %v7583
      %v7653 = vmul.f32 %v7471, %v7587
      %v7654 = vmul.f32 %v7472, %v7591
      %v7655 = vmul.f32 %v7473, %v7567
      %v7656 = vmul.f32 %v7474, %v7571
      %v7657 = vmul.f32 %v7475, %v7575
      %v7658 = vmul.f32 %v7476, %v7579
      %v7659 = vmul.f32 %v7477, %v7583
      %v7660 = vmul.f32 %v7478, %v7587
      %v7661 = vmul.f32 %v7479, %v7591
      %v7662 = vmul.f32 %v7480, %v7567
      %v7663 = vmul.f32 %v7481, %v7571
      %v7664 = vmul.f32 %v7482, %v7575
      %v7665 = vmul.f32 %v7483, %v7579
      %v7666 = vmul.f32 %v7484, %v7583
      %v7667 = vmul.f32 %v7485, %v7587
      %v7668 = vmul.f32 %v7486, %v7591
      %v7669 = vmul.f32 %v7487, %v7567
      %v7670 = vmul.f32 %v7488, %v7571
      %v7671 = vmul.f32 %v7489, %v7575
      %v7672 = vmul.f32 %v7490, %v7579
      %v7673 = vmul.f32 %v7491, %v7583
      %v7674 = vmul.f32 %v7492, %v7587
      %v7675 = vmul.f32 %v7493, %v7591
      %v7676 = vmul.f32 %v7494, %v7567
      %v7677 = vmul.f32 %v7495, %v7571
      %v7678 = vmul.f32 %v7496, %v7575
      %v7679 = vmul.f32 %v7497, %v7579
      %v7680 = vmul.f32 %v7498, %v7583
      %v7681 = vmul.f32 %v7499, %v7587
      %v7682 = vmul.f32 %v7500, %v7591
      %v7683 = vmul.f32 %v7501, %v7567
      %v7684 = vmul.f32 %v7502, %v7571
      %v7685 = vmul.f32 %v7503, %v7575
      %v7686 = vmul.f32 %v7504, %v7579
      %v7687 = vmul.f32 %v7505, %v7583
      %v7688 = vmul.f32 %v7506, %v7587
      %v7689 = vmul.f32 %v7507, %v7591
      %vm7788 = vcmask 1043456
      %v7789 = vrot.slane %v7592, 4
      %v7790 = vrot.slane %v7599, 4
      %v7791 = vsel %vm7788, %v7789, %v7790
      %v7792 = vrot.slane %v7593, 4
      %v7793 = vrot.slane %v7600, 4
      %v7794 = vsel %vm7788, %v7792, %v7793
      %v7795 = vrot.slane %v7594, 4
      %v7796 = vrot.slane %v7601, 4
      %v7797 = vsel %vm7788, %v7795, %v7796
      %v7798 = vrot.slane %v7595, 4
      %v7799 = vrot.slane %v7602, 4
      %v7800 = vsel %vm7788, %v7798, %v7799
      %v7801 = vrot.slane %v7596, 4
      %v7802 = vrot.slane %v7603, 4
      %v7803 = vsel %vm7788, %v7801, %v7802
      %v7804 = vrot.slane %v7597, 4
      %v7805 = vrot.slane %v7604, 4
      %v7806 = vsel %vm7788, %v7804, %v7805
      %v7807 = vrot.slane %v7598, 4
      %v7808 = vrot.slane %v7605, 4
      %v7809 = vsel %vm7788, %v7807, %v7808
      %v7810 = vrot.slane %v7606, 4
      %v7811 = vrot.slane %v7613, 4
      %v7812 = vsel %vm7788, %v7810, %v7811
      %v7813 = vrot.slane %v7607, 4
      %v7814 = vrot.slane %v7614, 4
      %v7815 = vsel %vm7788, %v7813, %v7814
      %v7816 = vrot.slane %v7608, 4
      %v7817 = vrot.slane %v7615, 4
      %v7818 = vsel %vm7788, %v7816, %v7817
      %v7819 = vrot.slane %v7609, 4
      %v7820 = vrot.slane %v7616, 4
      %v7821 = vsel %vm7788, %v7819, %v7820
      %v7822 = vrot.slane %v7610, 4
      %v7823 = vrot.slane %v7617, 4
      %v7824 = vsel %vm7788, %v7822, %v7823
      %v7825 = vrot.slane %v7611, 4
      %v7826 = vrot.slane %v7618, 4
      %v7827 = vsel %vm7788, %v7825, %v7826
      %v7828 = vrot.slane %v7612, 4
      %v7829 = vrot.slane %v7619, 4
      %v7830 = vsel %vm7788, %v7828, %v7829
      %v7831 = vrot.slane %v7620, 4
      %v7832 = vrot.slane %v7627, 4
      %v7833 = vsel %vm7788, %v7831, %v7832
      %v7834 = vrot.slane %v7621, 4
      %v7835 = vrot.slane %v7628, 4
      %v7836 = vsel %vm7788, %v7834, %v7835
      %v7837 = vrot.slane %v7622, 4
      %v7838 = vrot.slane %v7629, 4
      %v7839 = vsel %vm7788, %v7837, %v7838
      %v7840 = vrot.slane %v7623, 4
      %v7841 = vrot.slane %v7630, 4
      %v7842 = vsel %vm7788, %v7840, %v7841
      %v7843 = vrot.slane %v7624, 4
      %v7844 = vrot.slane %v7631, 4
      %v7845 = vsel %vm7788, %v7843, %v7844
      %v7846 = vrot.slane %v7625, 4
      %v7847 = vrot.slane %v7632, 4
      %v7848 = vsel %vm7788, %v7846, %v7847
      %v7849 = vrot.slane %v7626, 4
      %v7850 = vrot.slane %v7633, 4
      %v7851 = vsel %vm7788, %v7849, %v7850
      %v7852 = vrot.slane %v7634, 4
      %v7853 = vrot.slane %v7641, 4
      %v7854 = vsel %vm7788, %v7852, %v7853
      %v7855 = vrot.slane %v7635, 4
      %v7856 = vrot.slane %v7642, 4
      %v7857 = vsel %vm7788, %v7855, %v7856
      %v7858 = vrot.slane %v7636, 4
      %v7859 = vrot.slane %v7643, 4
      %v7860 = vsel %vm7788, %v7858, %v7859
      %v7861 = vrot.slane %v7637, 4
      %v7862 = vrot.slane %v7644, 4
      %v7863 = vsel %vm7788, %v7861, %v7862
      %v7864 = vrot.slane %v7638, 4
      %v7865 = vrot.slane %v7645, 4
      %v7866 = vsel %vm7788, %v7864, %v7865
      %v7867 = vrot.slane %v7639, 4
      %v7868 = vrot.slane %v7646, 4
      %v7869 = vsel %vm7788, %v7867, %v7868
      %v7870 = vrot.slane %v7640, 4
      %v7871 = vrot.slane %v7647, 4
      %v7872 = vsel %vm7788, %v7870, %v7871
      %v7873 = vrot.slane %v7648, 4
      %v7874 = vrot.slane %v7655, 4
      %v7875 = vsel %vm7788, %v7873, %v7874
      %v7876 = vrot.slane %v7649, 4
      %v7877 = vrot.slane %v7656, 4
      %v7878 = vsel %vm7788, %v7876, %v7877
      %v7879 = vrot.slane %v7650, 4
      %v7880 = vrot.slane %v7657, 4
      %v7881 = vsel %vm7788, %v7879, %v7880
      %v7882 = vrot.slane %v7651, 4
      %v7883 = vrot.slane %v7658, 4
      %v7884 = vsel %vm7788, %v7882, %v7883
      %v7885 = vrot.slane %v7652, 4
      %v7886 = vrot.slane %v7659, 4
      %v7887 = vsel %vm7788, %v7885, %v7886
      %v7888 = vrot.slane %v7653, 4
      %v7889 = vrot.slane %v7660, 4
      %v7890 = vsel %vm7788, %v7888, %v7889
      %v7891 = vrot.slane %v7654, 4
      %v7892 = vrot.slane %v7661, 4
      %v7893 = vsel %vm7788, %v7891, %v7892
      %v7894 = vrot.slane %v7662, 4
      %v7895 = vrot.slane %v7669, 4
      %v7896 = vsel %vm7788, %v7894, %v7895
      %v7897 = vrot.slane %v7663, 4
      %v7898 = vrot.slane %v7670, 4
      %v7899 = vsel %vm7788, %v7897, %v7898
      %v7900 = vrot.slane %v7664, 4
      %v7901 = vrot.slane %v7671, 4
      %v7902 = vsel %vm7788, %v7900, %v7901
      %v7903 = vrot.slane %v7665, 4
      %v7904 = vrot.slane %v7672, 4
      %v7905 = vsel %vm7788, %v7903, %v7904
      %v7906 = vrot.slane %v7666, 4
      %v7907 = vrot.slane %v7673, 4
      %v7908 = vsel %vm7788, %v7906, %v7907
      %v7909 = vrot.slane %v7667, 4
      %v7910 = vrot.slane %v7674, 4
      %v7911 = vsel %vm7788, %v7909, %v7910
      %v7912 = vrot.slane %v7668, 4
      %v7913 = vrot.slane %v7675, 4
      %v7914 = vsel %vm7788, %v7912, %v7913
      %v7915 = vrot.slane %v7676, 4
      %v7916 = vrot.slane %v7683, 4
      %v7917 = vsel %vm7788, %v7915, %v7916
      %v7918 = vrot.slane %v7677, 4
      %v7919 = vrot.slane %v7684, 4
      %v7920 = vsel %vm7788, %v7918, %v7919
      %v7921 = vrot.slane %v7678, 4
      %v7922 = vrot.slane %v7685, 4
      %v7923 = vsel %vm7788, %v7921, %v7922
      %v7924 = vrot.slane %v7679, 4
      %v7925 = vrot.slane %v7686, 4
      %v7926 = vsel %vm7788, %v7924, %v7925
      %v7927 = vrot.slane %v7680, 4
      %v7928 = vrot.slane %v7687, 4
      %v7929 = vsel %vm7788, %v7927, %v7928
      %v7930 = vrot.slane %v7681, 4
      %v7931 = vrot.slane %v7688, 4
      %v7932 = vsel %vm7788, %v7930, %v7931
      %v7933 = vrot.slane %v7682, 4
      %v7934 = vrot.slane %v7689, 4
      %v7935 = vsel %vm7788, %v7933, %v7934
      %v7985 = vadd.f32 %v7361, %v7791
      %v7986 = vadd.f32 %v7362, %v7794
      %v7987 = vadd.f32 %v7363, %v7797
      %v7988 = vadd.f32 %v7364, %v7800
      %v7989 = vadd.f32 %v7365, %v7803
      %v7990 = vadd.f32 %v7366, %v7806
      %v7991 = vadd.f32 %v7367, %v7809
      %v7992 = vadd.f32 %v7368, %v7812
      %v7993 = vadd.f32 %v7369, %v7815
      %v7994 = vadd.f32 %v7370, %v7818
      %v7995 = vadd.f32 %v7371, %v7821
      %v7996 = vadd.f32 %v7372, %v7824
      %v7997 = vadd.f32 %v7373, %v7827
      %v7998 = vadd.f32 %v7374, %v7830
      %v7999 = vadd.f32 %v7375, %v7833
      %v8000 = vadd.f32 %v7376, %v7836
      %v8001 = vadd.f32 %v7377, %v7839
      %v8002 = vadd.f32 %v7378, %v7842
      %v8003 = vadd.f32 %v7379, %v7845
      %v8004 = vadd.f32 %v7380, %v7848
      %v8005 = vadd.f32 %v7381, %v7851
      %v8006 = vadd.f32 %v7382, %v7854
      %v8007 = vadd.f32 %v7383, %v7857
      %v8008 = vadd.f32 %v7384, %v7860
      %v8009 = vadd.f32 %v7385, %v7863
      %v8010 = vadd.f32 %v7386, %v7866
      %v8011 = vadd.f32 %v7387, %v7869
      %v8012 = vadd.f32 %v7388, %v7872
      %v8013 = vadd.f32 %v7389, %v7875
      %v8014 = vadd.f32 %v7390, %v7878
      %v8015 = vadd.f32 %v7391, %v7881
      %v8016 = vadd.f32 %v7392, %v7884
      %v8017 = vadd.f32 %v7393, %v7887
      %v8018 = vadd.f32 %v7394, %v7890
      %v8019 = vadd.f32 %v7395, %v7893
      %v8020 = vadd.f32 %v7396, %v7896
      %v8021 = vadd.f32 %v7397, %v7899
      %v8022 = vadd.f32 %v7398, %v7902
      %v8023 = vadd.f32 %v7399, %v7905
      %v8024 = vadd.f32 %v7400, %v7908
      %v8025 = vadd.f32 %v7401, %v7911
      %v8026 = vadd.f32 %v7402, %v7914
      %v8027 = vadd.f32 %v7403, %v7917
      %v8028 = vadd.f32 %v7404, %v7920
      %v8029 = vadd.f32 %v7405, %v7923
      %v8030 = vadd.f32 %v7406, %v7926
      %v8031 = vadd.f32 %v7407, %v7929
      %v8032 = vadd.f32 %v7408, %v7932
      %v8033 = vadd.f32 %v7409, %v7935
      %v8034 = vlaneseq
      %v8035 = vshrl.u32 %v8034, 7
      %v8036 = vsub.s32 1, %v8035
      %v8037 = vrot.slane %v240, %v8036
      %v8038 = vlaneseq
      %v8039 = vshrl.u32 %v8038, 7
      %v8040 = vsub.s32 1, %v8039
      %v8041 = vrot.slane %v241, %v8040
      %v8042 = vlaneseq
      %v8043 = vshrl.u32 %v8042, 7
      %v8044 = vsub.s32 1, %v8043
      %v8045 = vrot.slane %v242, %v8044
      %v8046 = vlaneseq
      %v8047 = vshrl.u32 %v8046, 7
      %v8048 = vsub.s32 1, %v8047
      %v8049 = vrot.slane %v243, %v8048
      %v8050 = vlaneseq
      %v8051 = vshrl.u32 %v8050, 7
      %v8052 = vsub.s32 1, %v8051
      %v8053 = vrot.slane %v244, %v8052
      %v8054 = vlaneseq
      %v8055 = vshrl.u32 %v8054, 7
      %v8056 = vsub.s32 1, %v8055
      %v8057 = vrot.slane %v245, %v8056
      %v8058 = vlaneseq
      %v8059 = vshrl.u32 %v8058, 7
      %v8060 = vsub.s32 1, %v8059
      %v8061 = vrot.slane %v246, %v8060
      %v8062 = vmul.f32 %v7424, %v8037
      %v8063 = vmul.f32 %v7425, %v8041
      %v8064 = vmul.f32 %v7426, %v8045
      %v8065 = vmul.f32 %v7427, %v8049
      %v8066 = vmul.f32 %v7428, %v8053
      %v8067 = vmul.f32 %v7429, %v8057
      %v8068 = vmul.f32 %v7430, %v8061
      %v8069 = vmul.f32 %v7431, %v8037
      %v8070 = vmul.f32 %v7432, %v8041
      %v8071 = vmul.f32 %v7433, %v8045
      %v8072 = vmul.f32 %v7434, %v8049
      %v8073 = vmul.f32 %v7435, %v8053
      %v8074 = vmul.f32 %v7436, %v8057
      %v8075 = vmul.f32 %v7437, %v8061
      %v8076 = vmul.f32 %v7438, %v8037
      %v8077 = vmul.f32 %v7439, %v8041
      %v8078 = vmul.f32 %v7440, %v8045
      %v8079 = vmul.f32 %v7441, %v8049
      %v8080 = vmul.f32 %v7442, %v8053
      %v8081 = vmul.f32 %v7443, %v8057
      %v8082 = vmul.f32 %v7444, %v8061
      %v8083 = vmul.f32 %v7445, %v8037
      %v8084 = vmul.f32 %v7446, %v8041
      %v8085 = vmul.f32 %v7447, %v8045
      %v8086 = vmul.f32 %v7448, %v8049
      %v8087 = vmul.f32 %v7449, %v8053
      %v8088 = vmul.f32 %v7450, %v8057
      %v8089 = vmul.f32 %v7451, %v8061
      %v8090 = vmul.f32 %v7452, %v8037
      %v8091 = vmul.f32 %v7453, %v8041
      %v8092 = vmul.f32 %v7454, %v8045
      %v8093 = vmul.f32 %v7455, %v8049
      %v8094 = vmul.f32 %v7456, %v8053
      %v8095 = vmul.f32 %v7457, %v8057
      %v8096 = vmul.f32 %v7458, %v8061
      %v8097 = vmul.f32 %v7459, %v8037
      %v8098 = vmul.f32 %v7460, %v8041
      %v8099 = vmul.f32 %v7461, %v8045
      %v8100 = vmul.f32 %v7462, %v8049
      %v8101 = vmul.f32 %v7463, %v8053
      %v8102 = vmul.f32 %v7464, %v8057
      %v8103 = vmul.f32 %v7465, %v8061
      %v8104 = vmul.f32 %v7466, %v8037
      %v8105 = vmul.f32 %v7467, %v8041
      %v8106 = vmul.f32 %v7468, %v8045
      %v8107 = vmul.f32 %v7469, %v8049
      %v8108 = vmul.f32 %v7470, %v8053
      %v8109 = vmul.f32 %v7471, %v8057
      %v8110 = vmul.f32 %v7472, %v8061
      %v8111 = vmul.f32 %v7473, %v8037
      %v8112 = vmul.f32 %v7474, %v8041
      %v8113 = vmul.f32 %v7475, %v8045
      %v8114 = vmul.f32 %v7476, %v8049
      %v8115 = vmul.f32 %v7477, %v8053
      %v8116 = vmul.f32 %v7478, %v8057
      %v8117 = vmul.f32 %v7479, %v8061
      %v8118 = vmul.f32 %v7480, %v8037
      %v8119 = vmul.f32 %v7481, %v8041
      %v8120 = vmul.f32 %v7482, %v8045
      %v8121 = vmul.f32 %v7483, %v8049
      %v8122 = vmul.f32 %v7484, %v8053
      %v8123 = vmul.f32 %v7485, %v8057
      %v8124 = vmul.f32 %v7486, %v8061
      %v8125 = vmul.f32 %v7487, %v8037
      %v8126 = vmul.f32 %v7488, %v8041
      %v8127 = vmul.f32 %v7489, %v8045
      %v8128 = vmul.f32 %v7490, %v8049
      %v8129 = vmul.f32 %v7491, %v8053
      %v8130 = vmul.f32 %v7492, %v8057
      %v8131 = vmul.f32 %v7493, %v8061
      %v8132 = vmul.f32 %v7494, %v8037
      %v8133 = vmul.f32 %v7495, %v8041
      %v8134 = vmul.f32 %v7496, %v8045
      %v8135 = vmul.f32 %v7497, %v8049
      %v8136 = vmul.f32 %v7498, %v8053
      %v8137 = vmul.f32 %v7499, %v8057
      %v8138 = vmul.f32 %v7500, %v8061
      %v8139 = vmul.f32 %v7501, %v8037
      %v8140 = vmul.f32 %v7502, %v8041
      %v8141 = vmul.f32 %v7503, %v8045
      %v8142 = vmul.f32 %v7504, %v8049
      %v8143 = vmul.f32 %v7505, %v8053
      %v8144 = vmul.f32 %v7506, %v8057
      %v8145 = vmul.f32 %v7507, %v8061
      %v8146 = vmul.f32 %v7508, %v8037
      %v8147 = vmul.f32 %v7509, %v8041
      %v8148 = vmul.f32 %v7510, %v8045
      %v8149 = vmul.f32 %v7511, %v8049
      %v8150 = vmul.f32 %v7512, %v8053
      %v8151 = vmul.f32 %v7513, %v8057
      %v8152 = vmul.f32 %v7514, %v8061
      %v8153 = vmul.f32 %v7515, %v8037
      %v8154 = vmul.f32 %v7516, %v8041
      %v8155 = vmul.f32 %v7517, %v8045
      %v8156 = vmul.f32 %v7518, %v8049
      %v8157 = vmul.f32 %v7519, %v8053
      %v8158 = vmul.f32 %v7520, %v8057
      %v8159 = vmul.f32 %v7521, %v8061
      %v8258 = vrot.slane %v8062, 4
      %v8259 = vrot.slane %v8069, 4
      %v8260 = vsel %vm7788, %v8258, %v8259
      %v8261 = vrot.slane %v8063, 4
      %v8262 = vrot.slane %v8070, 4
      %v8263 = vsel %vm7788, %v8261, %v8262
      %v8264 = vrot.slane %v8064, 4
      %v8265 = vrot.slane %v8071, 4
      %v8266 = vsel %vm7788, %v8264, %v8265
      %v8267 = vrot.slane %v8065, 4
      %v8268 = vrot.slane %v8072, 4
      %v8269 = vsel %vm7788, %v8267, %v8268
      %v8270 = vrot.slane %v8066, 4
      %v8271 = vrot.slane %v8073, 4
      %v8272 = vsel %vm7788, %v8270, %v8271
      %v8273 = vrot.slane %v8067, 4
      %v8274 = vrot.slane %v8074, 4
      %v8275 = vsel %vm7788, %v8273, %v8274
      %v8276 = vrot.slane %v8068, 4
      %v8277 = vrot.slane %v8075, 4
      %v8278 = vsel %vm7788, %v8276, %v8277
      %v8279 = vrot.slane %v8076, 4
      %v8280 = vrot.slane %v8083, 4
      %v8281 = vsel %vm7788, %v8279, %v8280
      %v8282 = vrot.slane %v8077, 4
      %v8283 = vrot.slane %v8084, 4
      %v8284 = vsel %vm7788, %v8282, %v8283
      %v8285 = vrot.slane %v8078, 4
      %v8286 = vrot.slane %v8085, 4
      %v8287 = vsel %vm7788, %v8285, %v8286
      %v8288 = vrot.slane %v8079, 4
      %v8289 = vrot.slane %v8086, 4
      %v8290 = vsel %vm7788, %v8288, %v8289
      %v8291 = vrot.slane %v8080, 4
      %v8292 = vrot.slane %v8087, 4
      %v8293 = vsel %vm7788, %v8291, %v8292
      %v8294 = vrot.slane %v8081, 4
      %v8295 = vrot.slane %v8088, 4
      %v8296 = vsel %vm7788, %v8294, %v8295
      %v8297 = vrot.slane %v8082, 4
      %v8298 = vrot.slane %v8089, 4
      %v8299 = vsel %vm7788, %v8297, %v8298
      %v8300 = vrot.slane %v8090, 4
      %v8301 = vrot.slane %v8097, 4
      %v8302 = vsel %vm7788, %v8300, %v8301
      %v8303 = vrot.slane %v8091, 4
      %v8304 = vrot.slane %v8098, 4
      %v8305 = vsel %vm7788, %v8303, %v8304
      %v8306 = vrot.slane %v8092, 4
      %v8307 = vrot.slane %v8099, 4
      %v8308 = vsel %vm7788, %v8306, %v8307
      %v8309 = vrot.slane %v8093, 4
      %v8310 = vrot.slane %v8100, 4
      %v8311 = vsel %vm7788, %v8309, %v8310
      %v8312 = vrot.slane %v8094, 4
      %v8313 = vrot.slane %v8101, 4
      %v8314 = vsel %vm7788, %v8312, %v8313
      %v8315 = vrot.slane %v8095, 4
      %v8316 = vrot.slane %v8102, 4
      %v8317 = vsel %vm7788, %v8315, %v8316
      %v8318 = vrot.slane %v8096, 4
      %v8319 = vrot.slane %v8103, 4
      %v8320 = vsel %vm7788, %v8318, %v8319
      %v8321 = vrot.slane %v8104, 4
      %v8322 = vrot.slane %v8111, 4
      %v8323 = vsel %vm7788, %v8321, %v8322
      %v8324 = vrot.slane %v8105, 4
      %v8325 = vrot.slane %v8112, 4
      %v8326 = vsel %vm7788, %v8324, %v8325
      %v8327 = vrot.slane %v8106, 4
      %v8328 = vrot.slane %v8113, 4
      %v8329 = vsel %vm7788, %v8327, %v8328
      %v8330 = vrot.slane %v8107, 4
      %v8331 = vrot.slane %v8114, 4
      %v8332 = vsel %vm7788, %v8330, %v8331
      %v8333 = vrot.slane %v8108, 4
      %v8334 = vrot.slane %v8115, 4
      %v8335 = vsel %vm7788, %v8333, %v8334
      %v8336 = vrot.slane %v8109, 4
      %v8337 = vrot.slane %v8116, 4
      %v8338 = vsel %vm7788, %v8336, %v8337
      %v8339 = vrot.slane %v8110, 4
      %v8340 = vrot.slane %v8117, 4
      %v8341 = vsel %vm7788, %v8339, %v8340
      %v8342 = vrot.slane %v8118, 4
      %v8343 = vrot.slane %v8125, 4
      %v8344 = vsel %vm7788, %v8342, %v8343
      %v8345 = vrot.slane %v8119, 4
      %v8346 = vrot.slane %v8126, 4
      %v8347 = vsel %vm7788, %v8345, %v8346
      %v8348 = vrot.slane %v8120, 4
      %v8349 = vrot.slane %v8127, 4
      %v8350 = vsel %vm7788, %v8348, %v8349
      %v8351 = vrot.slane %v8121, 4
      %v8352 = vrot.slane %v8128, 4
      %v8353 = vsel %vm7788, %v8351, %v8352
      %v8354 = vrot.slane %v8122, 4
      %v8355 = vrot.slane %v8129, 4
      %v8356 = vsel %vm7788, %v8354, %v8355
      %v8357 = vrot.slane %v8123, 4
      %v8358 = vrot.slane %v8130, 4
      %v8359 = vsel %vm7788, %v8357, %v8358
      %v8360 = vrot.slane %v8124, 4
      %v8361 = vrot.slane %v8131, 4
      %v8362 = vsel %vm7788, %v8360, %v8361
      %v8363 = vrot.slane %v8132, 4
      %v8364 = vrot.slane %v8139, 4
      %v8365 = vsel %vm7788, %v8363, %v8364
      %v8366 = vrot.slane %v8133, 4
      %v8367 = vrot.slane %v8140, 4
      %v8368 = vsel %vm7788, %v8366, %v8367
      %v8369 = vrot.slane %v8134, 4
      %v8370 = vrot.slane %v8141, 4
      %v8371 = vsel %vm7788, %v8369, %v8370
      %v8372 = vrot.slane %v8135, 4
      %v8373 = vrot.slane %v8142, 4
      %v8374 = vsel %vm7788, %v8372, %v8373
      %v8375 = vrot.slane %v8136, 4
      %v8376 = vrot.slane %v8143, 4
      %v8377 = vsel %vm7788, %v8375, %v8376
      %v8378 = vrot.slane %v8137, 4
      %v8379 = vrot.slane %v8144, 4
      %v8380 = vsel %vm7788, %v8378, %v8379
      %v8381 = vrot.slane %v8138, 4
      %v8382 = vrot.slane %v8145, 4
      %v8383 = vsel %vm7788, %v8381, %v8382
      %v8384 = vrot.slane %v8146, 4
      %v8385 = vrot.slane %v8153, 4
      %v8386 = vsel %vm7788, %v8384, %v8385
      %v8387 = vrot.slane %v8147, 4
      %v8388 = vrot.slane %v8154, 4
      %v8389 = vsel %vm7788, %v8387, %v8388
      %v8390 = vrot.slane %v8148, 4
      %v8391 = vrot.slane %v8155, 4
      %v8392 = vsel %vm7788, %v8390, %v8391
      %v8393 = vrot.slane %v8149, 4
      %v8394 = vrot.slane %v8156, 4
      %v8395 = vsel %vm7788, %v8393, %v8394
      %v8396 = vrot.slane %v8150, 4
      %v8397 = vrot.slane %v8157, 4
      %v8398 = vsel %vm7788, %v8396, %v8397
      %v8399 = vrot.slane %v8151, 4
      %v8400 = vrot.slane %v8158, 4
      %v8401 = vsel %vm7788, %v8399, %v8400
      %v8402 = vrot.slane %v8152, 4
      %v8403 = vrot.slane %v8159, 4
      %v8404 = vsel %vm7788, %v8402, %v8403
      %v8454 = vadd.f32 %v7985, %v8260
      %v8455 = vadd.f32 %v7986, %v8263
      %v8456 = vadd.f32 %v7987, %v8266
      %v8457 = vadd.f32 %v7988, %v8269
      %v8458 = vadd.f32 %v7989, %v8272
      %v8459 = vadd.f32 %v7990, %v8275
      %v8460 = vadd.f32 %v7991, %v8278
      %v8461 = vadd.f32 %v7992, %v8281
      %v8462 = vadd.f32 %v7993, %v8284
      %v8463 = vadd.f32 %v7994, %v8287
      %v8464 = vadd.f32 %v7995, %v8290
      %v8465 = vadd.f32 %v7996, %v8293
      %v8466 = vadd.f32 %v7997, %v8296
      %v8467 = vadd.f32 %v7998, %v8299
      %v8468 = vadd.f32 %v7999, %v8302
      %v8469 = vadd.f32 %v8000, %v8305
      %v8470 = vadd.f32 %v8001, %v8308
      %v8471 = vadd.f32 %v8002, %v8311
      %v8472 = vadd.f32 %v8003, %v8314
      %v8473 = vadd.f32 %v8004, %v8317
      %v8474 = vadd.f32 %v8005, %v8320
      %v8475 = vadd.f32 %v8006, %v8323
      %v8476 = vadd.f32 %v8007, %v8326
      %v8477 = vadd.f32 %v8008, %v8329
      %v8478 = vadd.f32 %v8009, %v8332
      %v8479 = vadd.f32 %v8010, %v8335
      %v8480 = vadd.f32 %v8011, %v8338
      %v8481 = vadd.f32 %v8012, %v8341
      %v8482 = vadd.f32 %v8013, %v8344
      %v8483 = vadd.f32 %v8014, %v8347
      %v8484 = vadd.f32 %v8015, %v8350
      %v8485 = vadd.f32 %v8016, %v8353
      %v8486 = vadd.f32 %v8017, %v8356
      %v8487 = vadd.f32 %v8018, %v8359
      %v8488 = vadd.f32 %v8019, %v8362
      %v8489 = vadd.f32 %v8020, %v8365
      %v8490 = vadd.f32 %v8021, %v8368
      %v8491 = vadd.f32 %v8022, %v8371
      %v8492 = vadd.f32 %v8023, %v8374
      %v8493 = vadd.f32 %v8024, %v8377
      %v8494 = vadd.f32 %v8025, %v8380
      %v8495 = vadd.f32 %v8026, %v8383
      %v8496 = vadd.f32 %v8027, %v8386
      %v8497 = vadd.f32 %v8028, %v8389
      %v8498 = vadd.f32 %v8029, %v8392
      %v8499 = vadd.f32 %v8030, %v8395
      %v8500 = vadd.f32 %v8031, %v8398
      %v8501 = vadd.f32 %v8032, %v8401
      %v8502 = vadd.f32 %v8033, %v8404
      %v8503 = vlaneseq
      %v8504 = vshrl.u32 %v8503, 7
      %v8505 = vsub.s32 6, %v8504
      %v8506 = vrot.slane %v240, %v8505
      %v8507 = vlaneseq
      %v8508 = vshrl.u32 %v8507, 7
      %v8509 = vsub.s32 6, %v8508
      %v8510 = vrot.slane %v241, %v8509
      %v8511 = vlaneseq
      %v8512 = vshrl.u32 %v8511, 7
      %v8513 = vsub.s32 6, %v8512
      %v8514 = vrot.slane %v242, %v8513
      %v8515 = vlaneseq
      %v8516 = vshrl.u32 %v8515, 7
      %v8517 = vsub.s32 6, %v8516
      %v8518 = vrot.slane %v243, %v8517
      %v8519 = vlaneseq
      %v8520 = vshrl.u32 %v8519, 7
      %v8521 = vsub.s32 6, %v8520
      %v8522 = vrot.slane %v244, %v8521
      %v8523 = vlaneseq
      %v8524 = vshrl.u32 %v8523, 7
      %v8525 = vsub.s32 6, %v8524
      %v8526 = vrot.slane %v245, %v8525
      %v8527 = vlaneseq
      %v8528 = vshrl.u32 %v8527, 7
      %v8529 = vsub.s32 6, %v8528
      %v8530 = vrot.slane %v246, %v8529
      %v8531 = vmul.f32 %v7438, %v8506
      %v8532 = vmul.f32 %v7439, %v8510
      %v8533 = vmul.f32 %v7440, %v8514
      %v8534 = vmul.f32 %v7441, %v8518
      %v8535 = vmul.f32 %v7442, %v8522
      %v8536 = vmul.f32 %v7443, %v8526
      %v8537 = vmul.f32 %v7444, %v8530
      %v8538 = vmul.f32 %v7445, %v8506
      %v8539 = vmul.f32 %v7446, %v8510
      %v8540 = vmul.f32 %v7447, %v8514
      %v8541 = vmul.f32 %v7448, %v8518
      %v8542 = vmul.f32 %v7449, %v8522
      %v8543 = vmul.f32 %v7450, %v8526
      %v8544 = vmul.f32 %v7451, %v8530
      %v8545 = vmul.f32 %v7452, %v8506
      %v8546 = vmul.f32 %v7453, %v8510
      %v8547 = vmul.f32 %v7454, %v8514
      %v8548 = vmul.f32 %v7455, %v8518
      %v8549 = vmul.f32 %v7456, %v8522
      %v8550 = vmul.f32 %v7457, %v8526
      %v8551 = vmul.f32 %v7458, %v8530
      %v8552 = vmul.f32 %v7459, %v8506
      %v8553 = vmul.f32 %v7460, %v8510
      %v8554 = vmul.f32 %v7461, %v8514
      %v8555 = vmul.f32 %v7462, %v8518
      %v8556 = vmul.f32 %v7463, %v8522
      %v8557 = vmul.f32 %v7464, %v8526
      %v8558 = vmul.f32 %v7465, %v8530
      %v8559 = vmul.f32 %v7466, %v8506
      %v8560 = vmul.f32 %v7467, %v8510
      %v8561 = vmul.f32 %v7468, %v8514
      %v8562 = vmul.f32 %v7469, %v8518
      %v8563 = vmul.f32 %v7470, %v8522
      %v8564 = vmul.f32 %v7471, %v8526
      %v8565 = vmul.f32 %v7472, %v8530
      %v8566 = vmul.f32 %v7473, %v8506
      %v8567 = vmul.f32 %v7474, %v8510
      %v8568 = vmul.f32 %v7475, %v8514
      %v8569 = vmul.f32 %v7476, %v8518
      %v8570 = vmul.f32 %v7477, %v8522
      %v8571 = vmul.f32 %v7478, %v8526
      %v8572 = vmul.f32 %v7479, %v8530
      %v8573 = vmul.f32 %v7480, %v8506
      %v8574 = vmul.f32 %v7481, %v8510
      %v8575 = vmul.f32 %v7482, %v8514
      %v8576 = vmul.f32 %v7483, %v8518
      %v8577 = vmul.f32 %v7484, %v8522
      %v8578 = vmul.f32 %v7485, %v8526
      %v8579 = vmul.f32 %v7486, %v8530
      %v8580 = vmul.f32 %v7487, %v8506
      %v8581 = vmul.f32 %v7488, %v8510
      %v8582 = vmul.f32 %v7489, %v8514
      %v8583 = vmul.f32 %v7490, %v8518
      %v8584 = vmul.f32 %v7491, %v8522
      %v8585 = vmul.f32 %v7492, %v8526
      %v8586 = vmul.f32 %v7493, %v8530
      %v8587 = vmul.f32 %v7494, %v8506
      %v8588 = vmul.f32 %v7495, %v8510
      %v8589 = vmul.f32 %v7496, %v8514
      %v8590 = vmul.f32 %v7497, %v8518
      %v8591 = vmul.f32 %v7498, %v8522
      %v8592 = vmul.f32 %v7499, %v8526
      %v8593 = vmul.f32 %v7500, %v8530
      %v8594 = vmul.f32 %v7501, %v8506
      %v8595 = vmul.f32 %v7502, %v8510
      %v8596 = vmul.f32 %v7503, %v8514
      %v8597 = vmul.f32 %v7504, %v8518
      %v8598 = vmul.f32 %v7505, %v8522
      %v8599 = vmul.f32 %v7506, %v8526
      %v8600 = vmul.f32 %v7507, %v8530
      %v8601 = vmul.f32 %v7508, %v8506
      %v8602 = vmul.f32 %v7509, %v8510
      %v8603 = vmul.f32 %v7510, %v8514
      %v8604 = vmul.f32 %v7511, %v8518
      %v8605 = vmul.f32 %v7512, %v8522
      %v8606 = vmul.f32 %v7513, %v8526
      %v8607 = vmul.f32 %v7514, %v8530
      %v8608 = vmul.f32 %v7515, %v8506
      %v8609 = vmul.f32 %v7516, %v8510
      %v8610 = vmul.f32 %v7517, %v8514
      %v8611 = vmul.f32 %v7518, %v8518
      %v8612 = vmul.f32 %v7519, %v8522
      %v8613 = vmul.f32 %v7520, %v8526
      %v8614 = vmul.f32 %v7521, %v8530
      %v8615 = vmul.f32 %v7522, %v8506
      %v8616 = vmul.f32 %v7523, %v8510
      %v8617 = vmul.f32 %v7524, %v8514
      %v8618 = vmul.f32 %v7525, %v8518
      %v8619 = vmul.f32 %v7526, %v8522
      %v8620 = vmul.f32 %v7527, %v8526
      %v8621 = vmul.f32 %v7528, %v8530
      %v8622 = vmul.f32 %v7529, %v8506
      %v8623 = vmul.f32 %v7530, %v8510
      %v8624 = vmul.f32 %v7531, %v8514
      %v8625 = vmul.f32 %v7532, %v8518
      %v8626 = vmul.f32 %v7533, %v8522
      %v8627 = vmul.f32 %v7534, %v8526
      %v8628 = vmul.f32 %v7535, %v8530
      %v8727 = vrot.slane %v8531, 4
      %v8728 = vrot.slane %v8538, 4
      %v8729 = vsel %vm7788, %v8727, %v8728
      %v8730 = vrot.slane %v8532, 4
      %v8731 = vrot.slane %v8539, 4
      %v8732 = vsel %vm7788, %v8730, %v8731
      %v8733 = vrot.slane %v8533, 4
      %v8734 = vrot.slane %v8540, 4
      %v8735 = vsel %vm7788, %v8733, %v8734
      %v8736 = vrot.slane %v8534, 4
      %v8737 = vrot.slane %v8541, 4
      %v8738 = vsel %vm7788, %v8736, %v8737
      %v8739 = vrot.slane %v8535, 4
      %v8740 = vrot.slane %v8542, 4
      %v8741 = vsel %vm7788, %v8739, %v8740
      %v8742 = vrot.slane %v8536, 4
      %v8743 = vrot.slane %v8543, 4
      %v8744 = vsel %vm7788, %v8742, %v8743
      %v8745 = vrot.slane %v8537, 4
      %v8746 = vrot.slane %v8544, 4
      %v8747 = vsel %vm7788, %v8745, %v8746
      %v8748 = vrot.slane %v8545, 4
      %v8749 = vrot.slane %v8552, 4
      %v8750 = vsel %vm7788, %v8748, %v8749
      %v8751 = vrot.slane %v8546, 4
      %v8752 = vrot.slane %v8553, 4
      %v8753 = vsel %vm7788, %v8751, %v8752
      %v8754 = vrot.slane %v8547, 4
      %v8755 = vrot.slane %v8554, 4
      %v8756 = vsel %vm7788, %v8754, %v8755
      %v8757 = vrot.slane %v8548, 4
      %v8758 = vrot.slane %v8555, 4
      %v8759 = vsel %vm7788, %v8757, %v8758
      %v8760 = vrot.slane %v8549, 4
      %v8761 = vrot.slane %v8556, 4
      %v8762 = vsel %vm7788, %v8760, %v8761
      %v8763 = vrot.slane %v8550, 4
      %v8764 = vrot.slane %v8557, 4
      %v8765 = vsel %vm7788, %v8763, %v8764
      %v8766 = vrot.slane %v8551, 4
      %v8767 = vrot.slane %v8558, 4
      %v8768 = vsel %vm7788, %v8766, %v8767
      %v8769 = vrot.slane %v8559, 4
      %v8770 = vrot.slane %v8566, 4
      %v8771 = vsel %vm7788, %v8769, %v8770
      %v8772 = vrot.slane %v8560, 4
      %v8773 = vrot.slane %v8567, 4
      %v8774 = vsel %vm7788, %v8772, %v8773
      %v8775 = vrot.slane %v8561, 4
      %v8776 = vrot.slane %v8568, 4
      %v8777 = vsel %vm7788, %v8775, %v8776
      %v8778 = vrot.slane %v8562, 4
      %v8779 = vrot.slane %v8569, 4
      %v8780 = vsel %vm7788, %v8778, %v8779
      %v8781 = vrot.slane %v8563, 4
      %v8782 = vrot.slane %v8570, 4
      %v8783 = vsel %vm7788, %v8781, %v8782
      %v8784 = vrot.slane %v8564, 4
      %v8785 = vrot.slane %v8571, 4
      %v8786 = vsel %vm7788, %v8784, %v8785
      %v8787 = vrot.slane %v8565, 4
      %v8788 = vrot.slane %v8572, 4
      %v8789 = vsel %vm7788, %v8787, %v8788
      %v8790 = vrot.slane %v8573, 4
      %v8791 = vrot.slane %v8580, 4
      %v8792 = vsel %vm7788, %v8790, %v8791
      %v8793 = vrot.slane %v8574, 4
      %v8794 = vrot.slane %v8581, 4
      %v8795 = vsel %vm7788, %v8793, %v8794
      %v8796 = vrot.slane %v8575, 4
      %v8797 = vrot.slane %v8582, 4
      %v8798 = vsel %vm7788, %v8796, %v8797
      %v8799 = vrot.slane %v8576, 4
      %v8800 = vrot.slane %v8583, 4
      %v8801 = vsel %vm7788, %v8799, %v8800
      %v8802 = vrot.slane %v8577, 4
      %v8803 = vrot.slane %v8584, 4
      %v8804 = vsel %vm7788, %v8802, %v8803
      %v8805 = vrot.slane %v8578, 4
      %v8806 = vrot.slane %v8585, 4
      %v8807 = vsel %vm7788, %v8805, %v8806
      %v8808 = vrot.slane %v8579, 4
      %v8809 = vrot.slane %v8586, 4
      %v8810 = vsel %vm7788, %v8808, %v8809
      %v8811 = vrot.slane %v8587, 4
      %v8812 = vrot.slane %v8594, 4
      %v8813 = vsel %vm7788, %v8811, %v8812
      %v8814 = vrot.slane %v8588, 4
      %v8815 = vrot.slane %v8595, 4
      %v8816 = vsel %vm7788, %v8814, %v8815
      %v8817 = vrot.slane %v8589, 4
      %v8818 = vrot.slane %v8596, 4
      %v8819 = vsel %vm7788, %v8817, %v8818
      %v8820 = vrot.slane %v8590, 4
      %v8821 = vrot.slane %v8597, 4
      %v8822 = vsel %vm7788, %v8820, %v8821
      %v8823 = vrot.slane %v8591, 4
      %v8824 = vrot.slane %v8598, 4
      %v8825 = vsel %vm7788, %v8823, %v8824
      %v8826 = vrot.slane %v8592, 4
      %v8827 = vrot.slane %v8599, 4
      %v8828 = vsel %vm7788, %v8826, %v8827
      %v8829 = vrot.slane %v8593, 4
      %v8830 = vrot.slane %v8600, 4
      %v8831 = vsel %vm7788, %v8829, %v8830
      %v8832 = vrot.slane %v8601, 4
      %v8833 = vrot.slane %v8608, 4
      %v8834 = vsel %vm7788, %v8832, %v8833
      %v8835 = vrot.slane %v8602, 4
      %v8836 = vrot.slane %v8609, 4
      %v8837 = vsel %vm7788, %v8835, %v8836
      %v8838 = vrot.slane %v8603, 4
      %v8839 = vrot.slane %v8610, 4
      %v8840 = vsel %vm7788, %v8838, %v8839
      %v8841 = vrot.slane %v8604, 4
      %v8842 = vrot.slane %v8611, 4
      %v8843 = vsel %vm7788, %v8841, %v8842
      %v8844 = vrot.slane %v8605, 4
      %v8845 = vrot.slane %v8612, 4
      %v8846 = vsel %vm7788, %v8844, %v8845
      %v8847 = vrot.slane %v8606, 4
      %v8848 = vrot.slane %v8613, 4
      %v8849 = vsel %vm7788, %v8847, %v8848
      %v8850 = vrot.slane %v8607, 4
      %v8851 = vrot.slane %v8614, 4
      %v8852 = vsel %vm7788, %v8850, %v8851
      %v8853 = vrot.slane %v8615, 4
      %v8854 = vrot.slane %v8622, 4
      %v8855 = vsel %vm7788, %v8853, %v8854
      %v8856 = vrot.slane %v8616, 4
      %v8857 = vrot.slane %v8623, 4
      %v8858 = vsel %vm7788, %v8856, %v8857
      %v8859 = vrot.slane %v8617, 4
      %v8860 = vrot.slane %v8624, 4
      %v8861 = vsel %vm7788, %v8859, %v8860
      %v8862 = vrot.slane %v8618, 4
      %v8863 = vrot.slane %v8625, 4
      %v8864 = vsel %vm7788, %v8862, %v8863
      %v8865 = vrot.slane %v8619, 4
      %v8866 = vrot.slane %v8626, 4
      %v8867 = vsel %vm7788, %v8865, %v8866
      %v8868 = vrot.slane %v8620, 4
      %v8869 = vrot.slane %v8627, 4
      %v8870 = vsel %vm7788, %v8868, %v8869
      %v8871 = vrot.slane %v8621, 4
      %v8872 = vrot.slane %v8628, 4
      %v8873 = vsel %vm7788, %v8871, %v8872
      %v8923 = vadd.f32 %v8454, %v8729
      %v8924 = vadd.f32 %v8455, %v8732
      %v8925 = vadd.f32 %v8456, %v8735
      %v8926 = vadd.f32 %v8457, %v8738
      %v8927 = vadd.f32 %v8458, %v8741
      %v8928 = vadd.f32 %v8459, %v8744
      %v8929 = vadd.f32 %v8460, %v8747
      %v8930 = vadd.f32 %v8461, %v8750
      %v8931 = vadd.f32 %v8462, %v8753
      %v8932 = vadd.f32 %v8463, %v8756
      %v8933 = vadd.f32 %v8464, %v8759
      %v8934 = vadd.f32 %v8465, %v8762
      %v8935 = vadd.f32 %v8466, %v8765
      %v8936 = vadd.f32 %v8467, %v8768
      %v8937 = vadd.f32 %v8468, %v8771
      %v8938 = vadd.f32 %v8469, %v8774
      %v8939 = vadd.f32 %v8470, %v8777
      %v8940 = vadd.f32 %v8471, %v8780
      %v8941 = vadd.f32 %v8472, %v8783
      %v8942 = vadd.f32 %v8473, %v8786
      %v8943 = vadd.f32 %v8474, %v8789
      %v8944 = vadd.f32 %v8475, %v8792
      %v8945 = vadd.f32 %v8476, %v8795
      %v8946 = vadd.f32 %v8477, %v8798
      %v8947 = vadd.f32 %v8478, %v8801
      %v8948 = vadd.f32 %v8479, %v8804
      %v8949 = vadd.f32 %v8480, %v8807
      %v8950 = vadd.f32 %v8481, %v8810
      %v8951 = vadd.f32 %v8482, %v8813
      %v8952 = vadd.f32 %v8483, %v8816
      %v8953 = vadd.f32 %v8484, %v8819
      %v8954 = vadd.f32 %v8485, %v8822
      %v8955 = vadd.f32 %v8486, %v8825
      %v8956 = vadd.f32 %v8487, %v8828
      %v8957 = vadd.f32 %v8488, %v8831
      %v8958 = vadd.f32 %v8489, %v8834
      %v8959 = vadd.f32 %v8490, %v8837
      %v8960 = vadd.f32 %v8491, %v8840
      %v8961 = vadd.f32 %v8492, %v8843
      %v8962 = vadd.f32 %v8493, %v8846
      %v8963 = vadd.f32 %v8494, %v8849
      %v8964 = vadd.f32 %v8495, %v8852
      %v8965 = vadd.f32 %v8496, %v8855
      %v8966 = vadd.f32 %v8497, %v8858
      %v8967 = vadd.f32 %v8498, %v8861
      %v8968 = vadd.f32 %v8499, %v8864
      %v8969 = vadd.f32 %v8500, %v8867
      %v8970 = vadd.f32 %v8501, %v8870
      %v8971 = vadd.f32 %v8502, %v8873
      %v8972 = vlaneseq
      %v8973 = vshrl.u32 %v8972, 7
      %v8974 = vsub.s32 3, %v8973
      %v8975 = vrot.slane %v247, %v8974
      %v8976 = vlaneseq
      %v8977 = vshrl.u32 %v8976, 7
      %v8978 = vsub.s32 3, %v8977
      %v8979 = vrot.slane %v248, %v8978
      %v8980 = vlaneseq
      %v8981 = vshrl.u32 %v8980, 7
      %v8982 = vsub.s32 3, %v8981
      %v8983 = vrot.slane %v249, %v8982
      %v8984 = vlaneseq
      %v8985 = vshrl.u32 %v8984, 7
      %v8986 = vsub.s32 3, %v8985
      %v8987 = vrot.slane %v250, %v8986
      %v8988 = vlaneseq
      %v8989 = vshrl.u32 %v8988, 7
      %v8990 = vsub.s32 3, %v8989
      %v8991 = vrot.slane %v251, %v8990
      %v8992 = vlaneseq
      %v8993 = vshrl.u32 %v8992, 7
      %v8994 = vsub.s32 3, %v8993
      %v8995 = vrot.slane %v252, %v8994
      %v8996 = vlaneseq
      %v8997 = vshrl.u32 %v8996, 7
      %v8998 = vsub.s32 3, %v8997
      %v8999 = vrot.slane %v253, %v8998
      %v9000 = vmul.f32 %v7452, %v8975
      %v9001 = vmul.f32 %v7453, %v8979
      %v9002 = vmul.f32 %v7454, %v8983
      %v9003 = vmul.f32 %v7455, %v8987
      %v9004 = vmul.f32 %v7456, %v8991
      %v9005 = vmul.f32 %v7457, %v8995
      %v9006 = vmul.f32 %v7458, %v8999
      %v9007 = vmul.f32 %v7459, %v8975
      %v9008 = vmul.f32 %v7460, %v8979
      %v9009 = vmul.f32 %v7461, %v8983
      %v9010 = vmul.f32 %v7462, %v8987
      %v9011 = vmul.f32 %v7463, %v8991
      %v9012 = vmul.f32 %v7464, %v8995
      %v9013 = vmul.f32 %v7465, %v8999
      %v9014 = vmul.f32 %v7466, %v8975
      %v9015 = vmul.f32 %v7467, %v8979
      %v9016 = vmul.f32 %v7468, %v8983
      %v9017 = vmul.f32 %v7469, %v8987
      %v9018 = vmul.f32 %v7470, %v8991
      %v9019 = vmul.f32 %v7471, %v8995
      %v9020 = vmul.f32 %v7472, %v8999
      %v9021 = vmul.f32 %v7473, %v8975
      %v9022 = vmul.f32 %v7474, %v8979
      %v9023 = vmul.f32 %v7475, %v8983
      %v9024 = vmul.f32 %v7476, %v8987
      %v9025 = vmul.f32 %v7477, %v8991
      %v9026 = vmul.f32 %v7478, %v8995
      %v9027 = vmul.f32 %v7479, %v8999
      %v9028 = vmul.f32 %v7480, %v8975
      %v9029 = vmul.f32 %v7481, %v8979
      %v9030 = vmul.f32 %v7482, %v8983
      %v9031 = vmul.f32 %v7483, %v8987
      %v9032 = vmul.f32 %v7484, %v8991
      %v9033 = vmul.f32 %v7485, %v8995
      %v9034 = vmul.f32 %v7486, %v8999
      %v9035 = vmul.f32 %v7487, %v8975
      %v9036 = vmul.f32 %v7488, %v8979
      %v9037 = vmul.f32 %v7489, %v8983
      %v9038 = vmul.f32 %v7490, %v8987
      %v9039 = vmul.f32 %v7491, %v8991
      %v9040 = vmul.f32 %v7492, %v8995
      %v9041 = vmul.f32 %v7493, %v8999
      %v9042 = vmul.f32 %v7494, %v8975
      %v9043 = vmul.f32 %v7495, %v8979
      %v9044 = vmul.f32 %v7496, %v8983
      %v9045 = vmul.f32 %v7497, %v8987
      %v9046 = vmul.f32 %v7498, %v8991
      %v9047 = vmul.f32 %v7499, %v8995
      %v9048 = vmul.f32 %v7500, %v8999
      %v9049 = vmul.f32 %v7501, %v8975
      %v9050 = vmul.f32 %v7502, %v8979
      %v9051 = vmul.f32 %v7503, %v8983
      %v9052 = vmul.f32 %v7504, %v8987
      %v9053 = vmul.f32 %v7505, %v8991
      %v9054 = vmul.f32 %v7506, %v8995
      %v9055 = vmul.f32 %v7507, %v8999
      %v9056 = vmul.f32 %v7508, %v8975
      %v9057 = vmul.f32 %v7509, %v8979
      %v9058 = vmul.f32 %v7510, %v8983
      %v9059 = vmul.f32 %v7511, %v8987
      %v9060 = vmul.f32 %v7512, %v8991
      %v9061 = vmul.f32 %v7513, %v8995
      %v9062 = vmul.f32 %v7514, %v8999
      %v9063 = vmul.f32 %v7515, %v8975
      %v9064 = vmul.f32 %v7516, %v8979
      %v9065 = vmul.f32 %v7517, %v8983
      %v9066 = vmul.f32 %v7518, %v8987
      %v9067 = vmul.f32 %v7519, %v8991
      %v9068 = vmul.f32 %v7520, %v8995
      %v9069 = vmul.f32 %v7521, %v8999
      %v9070 = vmul.f32 %v7522, %v8975
      %v9071 = vmul.f32 %v7523, %v8979
      %v9072 = vmul.f32 %v7524, %v8983
      %v9073 = vmul.f32 %v7525, %v8987
      %v9074 = vmul.f32 %v7526, %v8991
      %v9075 = vmul.f32 %v7527, %v8995
      %v9076 = vmul.f32 %v7528, %v8999
      %v9077 = vmul.f32 %v7529, %v8975
      %v9078 = vmul.f32 %v7530, %v8979
      %v9079 = vmul.f32 %v7531, %v8983
      %v9080 = vmul.f32 %v7532, %v8987
      %v9081 = vmul.f32 %v7533, %v8991
      %v9082 = vmul.f32 %v7534, %v8995
      %v9083 = vmul.f32 %v7535, %v8999
      %v9084 = vmul.f32 %v7536, %v8975
      %v9085 = vmul.f32 %v7537, %v8979
      %v9086 = vmul.f32 %v7538, %v8983
      %v9087 = vmul.f32 %v7539, %v8987
      %v9088 = vmul.f32 %v7540, %v8991
      %v9089 = vmul.f32 %v7541, %v8995
      %v9090 = vmul.f32 %v7542, %v8999
      %v9091 = vmul.f32 %v7543, %v8975
      %v9092 = vmul.f32 %v7544, %v8979
      %v9093 = vmul.f32 %v7545, %v8983
      %v9094 = vmul.f32 %v7546, %v8987
      %v9095 = vmul.f32 %v7547, %v8991
      %v9096 = vmul.f32 %v7548, %v8995
      %v9097 = vmul.f32 %v7549, %v8999
      %v9196 = vrot.slane %v9000, 4
      %v9197 = vrot.slane %v9007, 4
      %v9198 = vsel %vm7788, %v9196, %v9197
      %v9199 = vrot.slane %v9001, 4
      %v9200 = vrot.slane %v9008, 4
      %v9201 = vsel %vm7788, %v9199, %v9200
      %v9202 = vrot.slane %v9002, 4
      %v9203 = vrot.slane %v9009, 4
      %v9204 = vsel %vm7788, %v9202, %v9203
      %v9205 = vrot.slane %v9003, 4
      %v9206 = vrot.slane %v9010, 4
      %v9207 = vsel %vm7788, %v9205, %v9206
      %v9208 = vrot.slane %v9004, 4
      %v9209 = vrot.slane %v9011, 4
      %v9210 = vsel %vm7788, %v9208, %v9209
      %v9211 = vrot.slane %v9005, 4
      %v9212 = vrot.slane %v9012, 4
      %v9213 = vsel %vm7788, %v9211, %v9212
      %v9214 = vrot.slane %v9006, 4
      %v9215 = vrot.slane %v9013, 4
      %v9216 = vsel %vm7788, %v9214, %v9215
      %v9217 = vrot.slane %v9014, 4
      %v9218 = vrot.slane %v9021, 4
      %v9219 = vsel %vm7788, %v9217, %v9218
      %v9220 = vrot.slane %v9015, 4
      %v9221 = vrot.slane %v9022, 4
      %v9222 = vsel %vm7788, %v9220, %v9221
      %v9223 = vrot.slane %v9016, 4
      %v9224 = vrot.slane %v9023, 4
      %v9225 = vsel %vm7788, %v9223, %v9224
      %v9226 = vrot.slane %v9017, 4
      %v9227 = vrot.slane %v9024, 4
      %v9228 = vsel %vm7788, %v9226, %v9227
      %v9229 = vrot.slane %v9018, 4
      %v9230 = vrot.slane %v9025, 4
      %v9231 = vsel %vm7788, %v9229, %v9230
      %v9232 = vrot.slane %v9019, 4
      %v9233 = vrot.slane %v9026, 4
      %v9234 = vsel %vm7788, %v9232, %v9233
      %v9235 = vrot.slane %v9020, 4
      %v9236 = vrot.slane %v9027, 4
      %v9237 = vsel %vm7788, %v9235, %v9236
      %v9238 = vrot.slane %v9028, 4
      %v9239 = vrot.slane %v9035, 4
      %v9240 = vsel %vm7788, %v9238, %v9239
      %v9241 = vrot.slane %v9029, 4
      %v9242 = vrot.slane %v9036, 4
      %v9243 = vsel %vm7788, %v9241, %v9242
      %v9244 = vrot.slane %v9030, 4
      %v9245 = vrot.slane %v9037, 4
      %v9246 = vsel %vm7788, %v9244, %v9245
      %v9247 = vrot.slane %v9031, 4
      %v9248 = vrot.slane %v9038, 4
      %v9249 = vsel %vm7788, %v9247, %v9248
      %v9250 = vrot.slane %v9032, 4
      %v9251 = vrot.slane %v9039, 4
      %v9252 = vsel %vm7788, %v9250, %v9251
      %v9253 = vrot.slane %v9033, 4
      %v9254 = vrot.slane %v9040, 4
      %v9255 = vsel %vm7788, %v9253, %v9254
      %v9256 = vrot.slane %v9034, 4
      %v9257 = vrot.slane %v9041, 4
      %v9258 = vsel %vm7788, %v9256, %v9257
      %v9259 = vrot.slane %v9042, 4
      %v9260 = vrot.slane %v9049, 4
      %v9261 = vsel %vm7788, %v9259, %v9260
      %v9262 = vrot.slane %v9043, 4
      %v9263 = vrot.slane %v9050, 4
      %v9264 = vsel %vm7788, %v9262, %v9263
      %v9265 = vrot.slane %v9044, 4
      %v9266 = vrot.slane %v9051, 4
      %v9267 = vsel %vm7788, %v9265, %v9266
      %v9268 = vrot.slane %v9045, 4
      %v9269 = vrot.slane %v9052, 4
      %v9270 = vsel %vm7788, %v9268, %v9269
      %v9271 = vrot.slane %v9046, 4
      %v9272 = vrot.slane %v9053, 4
      %v9273 = vsel %vm7788, %v9271, %v9272
      %v9274 = vrot.slane %v9047, 4
      %v9275 = vrot.slane %v9054, 4
      %v9276 = vsel %vm7788, %v9274, %v9275
      %v9277 = vrot.slane %v9048, 4
      %v9278 = vrot.slane %v9055, 4
      %v9279 = vsel %vm7788, %v9277, %v9278
      %v9280 = vrot.slane %v9056, 4
      %v9281 = vrot.slane %v9063, 4
      %v9282 = vsel %vm7788, %v9280, %v9281
      %v9283 = vrot.slane %v9057, 4
      %v9284 = vrot.slane %v9064, 4
      %v9285 = vsel %vm7788, %v9283, %v9284
      %v9286 = vrot.slane %v9058, 4
      %v9287 = vrot.slane %v9065, 4
      %v9288 = vsel %vm7788, %v9286, %v9287
      %v9289 = vrot.slane %v9059, 4
      %v9290 = vrot.slane %v9066, 4
      %v9291 = vsel %vm7788, %v9289, %v9290
      %v9292 = vrot.slane %v9060, 4
      %v9293 = vrot.slane %v9067, 4
      %v9294 = vsel %vm7788, %v9292, %v9293
      %v9295 = vrot.slane %v9061, 4
      %v9296 = vrot.slane %v9068, 4
      %v9297 = vsel %vm7788, %v9295, %v9296
      %v9298 = vrot.slane %v9062, 4
      %v9299 = vrot.slane %v9069, 4
      %v9300 = vsel %vm7788, %v9298, %v9299
      %v9301 = vrot.slane %v9070, 4
      %v9302 = vrot.slane %v9077, 4
      %v9303 = vsel %vm7788, %v9301, %v9302
      %v9304 = vrot.slane %v9071, 4
      %v9305 = vrot.slane %v9078, 4
      %v9306 = vsel %vm7788, %v9304, %v9305
      %v9307 = vrot.slane %v9072, 4
      %v9308 = vrot.slane %v9079, 4
      %v9309 = vsel %vm7788, %v9307, %v9308
      %v9310 = vrot.slane %v9073, 4
      %v9311 = vrot.slane %v9080, 4
      %v9312 = vsel %vm7788, %v9310, %v9311
      %v9313 = vrot.slane %v9074, 4
      %v9314 = vrot.slane %v9081, 4
      %v9315 = vsel %vm7788, %v9313, %v9314
      %v9316 = vrot.slane %v9075, 4
      %v9317 = vrot.slane %v9082, 4
      %v9318 = vsel %vm7788, %v9316, %v9317
      %v9319 = vrot.slane %v9076, 4
      %v9320 = vrot.slane %v9083, 4
      %v9321 = vsel %vm7788, %v9319, %v9320
      %v9322 = vrot.slane %v9084, 4
      %v9323 = vrot.slane %v9091, 4
      %v9324 = vsel %vm7788, %v9322, %v9323
      %v9325 = vrot.slane %v9085, 4
      %v9326 = vrot.slane %v9092, 4
      %v9327 = vsel %vm7788, %v9325, %v9326
      %v9328 = vrot.slane %v9086, 4
      %v9329 = vrot.slane %v9093, 4
      %v9330 = vsel %vm7788, %v9328, %v9329
      %v9331 = vrot.slane %v9087, 4
      %v9332 = vrot.slane %v9094, 4
      %v9333 = vsel %vm7788, %v9331, %v9332
      %v9334 = vrot.slane %v9088, 4
      %v9335 = vrot.slane %v9095, 4
      %v9336 = vsel %vm7788, %v9334, %v9335
      %v9337 = vrot.slane %v9089, 4
      %v9338 = vrot.slane %v9096, 4
      %v9339 = vsel %vm7788, %v9337, %v9338
      %v9340 = vrot.slane %v9090, 4
      %v9341 = vrot.slane %v9097, 4
      %v9342 = vsel %vm7788, %v9340, %v9341
      %v9392 = vadd.f32 %v8923, %v9198
      %v9393 = vadd.f32 %v8924, %v9201
      %v9394 = vadd.f32 %v8925, %v9204
      %v9395 = vadd.f32 %v8926, %v9207
      %v9396 = vadd.f32 %v8927, %v9210
      %v9397 = vadd.f32 %v8928, %v9213
      %v9398 = vadd.f32 %v8929, %v9216
      %v9399 = vadd.f32 %v8930, %v9219
      %v9400 = vadd.f32 %v8931, %v9222
      %v9401 = vadd.f32 %v8932, %v9225
      %v9402 = vadd.f32 %v8933, %v9228
      %v9403 = vadd.f32 %v8934, %v9231
      %v9404 = vadd.f32 %v8935, %v9234
      %v9405 = vadd.f32 %v8936, %v9237
      %v9406 = vadd.f32 %v8937, %v9240
      %v9407 = vadd.f32 %v8938, %v9243
      %v9408 = vadd.f32 %v8939, %v9246
      %v9409 = vadd.f32 %v8940, %v9249
      %v9410 = vadd.f32 %v8941, %v9252
      %v9411 = vadd.f32 %v8942, %v9255
      %v9412 = vadd.f32 %v8943, %v9258
      %v9413 = vadd.f32 %v8944, %v9261
      %v9414 = vadd.f32 %v8945, %v9264
      %v9415 = vadd.f32 %v8946, %v9267
      %v9416 = vadd.f32 %v8947, %v9270
      %v9417 = vadd.f32 %v8948, %v9273
      %v9418 = vadd.f32 %v8949, %v9276
      %v9419 = vadd.f32 %v8950, %v9279
      %v9420 = vadd.f32 %v8951, %v9282
      %v9421 = vadd.f32 %v8952, %v9285
      %v9422 = vadd.f32 %v8953, %v9288
      %v9423 = vadd.f32 %v8954, %v9291
      %v9424 = vadd.f32 %v8955, %v9294
      %v9425 = vadd.f32 %v8956, %v9297
      %v9426 = vadd.f32 %v8957, %v9300
      %v9427 = vadd.f32 %v8958, %v9303
      %v9428 = vadd.f32 %v8959, %v9306
      %v9429 = vadd.f32 %v8960, %v9309
      %v9430 = vadd.f32 %v8961, %v9312
      %v9431 = vadd.f32 %v8962, %v9315
      %v9432 = vadd.f32 %v8963, %v9318
      %v9433 = vadd.f32 %v8964, %v9321
      %v9434 = vadd.f32 %v8965, %v9324
      %v9435 = vadd.f32 %v8966, %v9327
      %v9436 = vadd.f32 %v8967, %v9330
      %v9437 = vadd.f32 %v8968, %v9333
      %v9438 = vadd.f32 %v8969, %v9336
      %v9439 = vadd.f32 %v8970, %v9339
      %v9440 = vadd.f32 %v8971, %v9342
      %v9441 = vlaneseq
      %v9442 = vshrl.u32 %v9441, 7
      %v9443 = vsub.s32 0, %v9442
      %v9444 = vrot.slane %v254, %v9443
      %v9445 = vlaneseq
      %v9446 = vshrl.u32 %v9445, 7
      %v9447 = vsub.s32 0, %v9446
      %v9448 = vrot.slane %v255, %v9447
      %v9449 = vlaneseq
      %v9450 = vshrl.u32 %v9449, 7
      %v9451 = vsub.s32 0, %v9450
      %v9452 = vrot.slane %v256, %v9451
      %v9453 = vlaneseq
      %v9454 = vshrl.u32 %v9453, 7
      %v9455 = vsub.s32 0, %v9454
      %v9456 = vrot.slane %v257, %v9455
      %v9457 = vlaneseq
      %v9458 = vshrl.u32 %v9457, 7
      %v9459 = vsub.s32 0, %v9458
      %v9460 = vrot.slane %v258, %v9459
      %v9461 = vlaneseq
      %v9462 = vshrl.u32 %v9461, 7
      %v9463 = vsub.s32 0, %v9462
      %v9464 = vrot.slane %v259, %v9463
      %v9465 = vlaneseq
      %v9466 = vshrl.u32 %v9465, 7
      %v9467 = vsub.s32 0, %v9466
      %v9468 = vrot.slane %v260, %v9467
      %v9469 = vmul.f32 %v7466, %v9444
      %v9470 = vmul.f32 %v7467, %v9448
      %v9471 = vmul.f32 %v7468, %v9452
      %v9472 = vmul.f32 %v7469, %v9456
      %v9473 = vmul.f32 %v7470, %v9460
      %v9474 = vmul.f32 %v7471, %v9464
      %v9475 = vmul.f32 %v7472, %v9468
      %v9476 = vmul.f32 %v7473, %v9444
      %v9477 = vmul.f32 %v7474, %v9448
      %v9478 = vmul.f32 %v7475, %v9452
      %v9479 = vmul.f32 %v7476, %v9456
      %v9480 = vmul.f32 %v7477, %v9460
      %v9481 = vmul.f32 %v7478, %v9464
      %v9482 = vmul.f32 %v7479, %v9468
      %v9483 = vmul.f32 %v7480, %v9444
      %v9484 = vmul.f32 %v7481, %v9448
      %v9485 = vmul.f32 %v7482, %v9452
      %v9486 = vmul.f32 %v7483, %v9456
      %v9487 = vmul.f32 %v7484, %v9460
      %v9488 = vmul.f32 %v7485, %v9464
      %v9489 = vmul.f32 %v7486, %v9468
      %v9490 = vmul.f32 %v7487, %v9444
      %v9491 = vmul.f32 %v7488, %v9448
      %v9492 = vmul.f32 %v7489, %v9452
      %v9493 = vmul.f32 %v7490, %v9456
      %v9494 = vmul.f32 %v7491, %v9460
      %v9495 = vmul.f32 %v7492, %v9464
      %v9496 = vmul.f32 %v7493, %v9468
      %v9497 = vmul.f32 %v7494, %v9444
      %v9498 = vmul.f32 %v7495, %v9448
      %v9499 = vmul.f32 %v7496, %v9452
      %v9500 = vmul.f32 %v7497, %v9456
      %v9501 = vmul.f32 %v7498, %v9460
      %v9502 = vmul.f32 %v7499, %v9464
      %v9503 = vmul.f32 %v7500, %v9468
      %v9504 = vmul.f32 %v7501, %v9444
      %v9505 = vmul.f32 %v7502, %v9448
      %v9506 = vmul.f32 %v7503, %v9452
      %v9507 = vmul.f32 %v7504, %v9456
      %v9508 = vmul.f32 %v7505, %v9460
      %v9509 = vmul.f32 %v7506, %v9464
      %v9510 = vmul.f32 %v7507, %v9468
      %v9511 = vmul.f32 %v7508, %v9444
      %v9512 = vmul.f32 %v7509, %v9448
      %v9513 = vmul.f32 %v7510, %v9452
      %v9514 = vmul.f32 %v7511, %v9456
      %v9515 = vmul.f32 %v7512, %v9460
      %v9516 = vmul.f32 %v7513, %v9464
      %v9517 = vmul.f32 %v7514, %v9468
      %v9518 = vmul.f32 %v7515, %v9444
      %v9519 = vmul.f32 %v7516, %v9448
      %v9520 = vmul.f32 %v7517, %v9452
      %v9521 = vmul.f32 %v7518, %v9456
      %v9522 = vmul.f32 %v7519, %v9460
      %v9523 = vmul.f32 %v7520, %v9464
      %v9524 = vmul.f32 %v7521, %v9468
      %v9525 = vmul.f32 %v7522, %v9444
      %v9526 = vmul.f32 %v7523, %v9448
      %v9527 = vmul.f32 %v7524, %v9452
      %v9528 = vmul.f32 %v7525, %v9456
      %v9529 = vmul.f32 %v7526, %v9460
      %v9530 = vmul.f32 %v7527, %v9464
      %v9531 = vmul.f32 %v7528, %v9468
      %v9532 = vmul.f32 %v7529, %v9444
      %v9533 = vmul.f32 %v7530, %v9448
      %v9534 = vmul.f32 %v7531, %v9452
      %v9535 = vmul.f32 %v7532, %v9456
      %v9536 = vmul.f32 %v7533, %v9460
      %v9537 = vmul.f32 %v7534, %v9464
      %v9538 = vmul.f32 %v7535, %v9468
      %v9539 = vmul.f32 %v7536, %v9444
      %v9540 = vmul.f32 %v7537, %v9448
      %v9541 = vmul.f32 %v7538, %v9452
      %v9542 = vmul.f32 %v7539, %v9456
      %v9543 = vmul.f32 %v7540, %v9460
      %v9544 = vmul.f32 %v7541, %v9464
      %v9545 = vmul.f32 %v7542, %v9468
      %v9546 = vmul.f32 %v7543, %v9444
      %v9547 = vmul.f32 %v7544, %v9448
      %v9548 = vmul.f32 %v7545, %v9452
      %v9549 = vmul.f32 %v7546, %v9456
      %v9550 = vmul.f32 %v7547, %v9460
      %v9551 = vmul.f32 %v7548, %v9464
      %v9552 = vmul.f32 %v7549, %v9468
      %v9553 = vmul.f32 %v7550, %v9444
      %v9554 = vmul.f32 %v7551, %v9448
      %v9555 = vmul.f32 %v7552, %v9452
      %v9556 = vmul.f32 %v7553, %v9456
      %v9557 = vmul.f32 %v7554, %v9460
      %v9558 = vmul.f32 %v7555, %v9464
      %v9559 = vmul.f32 %v7556, %v9468
      %v9560 = vmul.f32 %v7557, %v9444
      %v9561 = vmul.f32 %v7558, %v9448
      %v9562 = vmul.f32 %v7559, %v9452
      %v9563 = vmul.f32 %v7560, %v9456
      %v9564 = vmul.f32 %v7561, %v9460
      %v9565 = vmul.f32 %v7562, %v9464
      %v9566 = vmul.f32 %v7563, %v9468
      %v9665 = vrot.slane %v9469, 4
      %v9666 = vrot.slane %v9476, 4
      %v9667 = vsel %vm7788, %v9665, %v9666
      %v9668 = vrot.slane %v9470, 4
      %v9669 = vrot.slane %v9477, 4
      %v9670 = vsel %vm7788, %v9668, %v9669
      %v9671 = vrot.slane %v9471, 4
      %v9672 = vrot.slane %v9478, 4
      %v9673 = vsel %vm7788, %v9671, %v9672
      %v9674 = vrot.slane %v9472, 4
      %v9675 = vrot.slane %v9479, 4
      %v9676 = vsel %vm7788, %v9674, %v9675
      %v9677 = vrot.slane %v9473, 4
      %v9678 = vrot.slane %v9480, 4
      %v9679 = vsel %vm7788, %v9677, %v9678
      %v9680 = vrot.slane %v9474, 4
      %v9681 = vrot.slane %v9481, 4
      %v9682 = vsel %vm7788, %v9680, %v9681
      %v9683 = vrot.slane %v9475, 4
      %v9684 = vrot.slane %v9482, 4
      %v9685 = vsel %vm7788, %v9683, %v9684
      %v9686 = vrot.slane %v9483, 4
      %v9687 = vrot.slane %v9490, 4
      %v9688 = vsel %vm7788, %v9686, %v9687
      %v9689 = vrot.slane %v9484, 4
      %v9690 = vrot.slane %v9491, 4
      %v9691 = vsel %vm7788, %v9689, %v9690
      %v9692 = vrot.slane %v9485, 4
      %v9693 = vrot.slane %v9492, 4
      %v9694 = vsel %vm7788, %v9692, %v9693
      %v9695 = vrot.slane %v9486, 4
      %v9696 = vrot.slane %v9493, 4
      %v9697 = vsel %vm7788, %v9695, %v9696
      %v9698 = vrot.slane %v9487, 4
      %v9699 = vrot.slane %v9494, 4
      %v9700 = vsel %vm7788, %v9698, %v9699
      %v9701 = vrot.slane %v9488, 4
      %v9702 = vrot.slane %v9495, 4
      %v9703 = vsel %vm7788, %v9701, %v9702
      %v9704 = vrot.slane %v9489, 4
      %v9705 = vrot.slane %v9496, 4
      %v9706 = vsel %vm7788, %v9704, %v9705
      %v9707 = vrot.slane %v9497, 4
      %v9708 = vrot.slane %v9504, 4
      %v9709 = vsel %vm7788, %v9707, %v9708
      %v9710 = vrot.slane %v9498, 4
      %v9711 = vrot.slane %v9505, 4
      %v9712 = vsel %vm7788, %v9710, %v9711
      %v9713 = vrot.slane %v9499, 4
      %v9714 = vrot.slane %v9506, 4
      %v9715 = vsel %vm7788, %v9713, %v9714
      %v9716 = vrot.slane %v9500, 4
      %v9717 = vrot.slane %v9507, 4
      %v9718 = vsel %vm7788, %v9716, %v9717
      %v9719 = vrot.slane %v9501, 4
      %v9720 = vrot.slane %v9508, 4
      %v9721 = vsel %vm7788, %v9719, %v9720
      %v9722 = vrot.slane %v9502, 4
      %v9723 = vrot.slane %v9509, 4
      %v9724 = vsel %vm7788, %v9722, %v9723
      %v9725 = vrot.slane %v9503, 4
      %v9726 = vrot.slane %v9510, 4
      %v9727 = vsel %vm7788, %v9725, %v9726
      %v9728 = vrot.slane %v9511, 4
      %v9729 = vrot.slane %v9518, 4
      %v9730 = vsel %vm7788, %v9728, %v9729
      %v9731 = vrot.slane %v9512, 4
      %v9732 = vrot.slane %v9519, 4
      %v9733 = vsel %vm7788, %v9731, %v9732
      %v9734 = vrot.slane %v9513, 4
      %v9735 = vrot.slane %v9520, 4
      %v9736 = vsel %vm7788, %v9734, %v9735
      %v9737 = vrot.slane %v9514, 4
      %v9738 = vrot.slane %v9521, 4
      %v9739 = vsel %vm7788, %v9737, %v9738
      %v9740 = vrot.slane %v9515, 4
      %v9741 = vrot.slane %v9522, 4
      %v9742 = vsel %vm7788, %v9740, %v9741
      %v9743 = vrot.slane %v9516, 4
      %v9744 = vrot.slane %v9523, 4
      %v9745 = vsel %vm7788, %v9743, %v9744
      %v9746 = vrot.slane %v9517, 4
      %v9747 = vrot.slane %v9524, 4
      %v9748 = vsel %vm7788, %v9746, %v9747
      %v9749 = vrot.slane %v9525, 4
      %v9750 = vrot.slane %v9532, 4
      %v9751 = vsel %vm7788, %v9749, %v9750
      %v9752 = vrot.slane %v9526, 4
      %v9753 = vrot.slane %v9533, 4
      %v9754 = vsel %vm7788, %v9752, %v9753
      %v9755 = vrot.slane %v9527, 4
      %v9756 = vrot.slane %v9534, 4
      %v9757 = vsel %vm7788, %v9755, %v9756
      %v9758 = vrot.slane %v9528, 4
      %v9759 = vrot.slane %v9535, 4
      %v9760 = vsel %vm7788, %v9758, %v9759
      %v9761 = vrot.slane %v9529, 4
      %v9762 = vrot.slane %v9536, 4
      %v9763 = vsel %vm7788, %v9761, %v9762
      %v9764 = vrot.slane %v9530, 4
      %v9765 = vrot.slane %v9537, 4
      %v9766 = vsel %vm7788, %v9764, %v9765
      %v9767 = vrot.slane %v9531, 4
      %v9768 = vrot.slane %v9538, 4
      %v9769 = vsel %vm7788, %v9767, %v9768
      %v9770 = vrot.slane %v9539, 4
      %v9771 = vrot.slane %v9546, 4
      %v9772 = vsel %vm7788, %v9770, %v9771
      %v9773 = vrot.slane %v9540, 4
      %v9774 = vrot.slane %v9547, 4
      %v9775 = vsel %vm7788, %v9773, %v9774
      %v9776 = vrot.slane %v9541, 4
      %v9777 = vrot.slane %v9548, 4
      %v9778 = vsel %vm7788, %v9776, %v9777
      %v9779 = vrot.slane %v9542, 4
      %v9780 = vrot.slane %v9549, 4
      %v9781 = vsel %vm7788, %v9779, %v9780
      %v9782 = vrot.slane %v9543, 4
      %v9783 = vrot.slane %v9550, 4
      %v9784 = vsel %vm7788, %v9782, %v9783
      %v9785 = vrot.slane %v9544, 4
      %v9786 = vrot.slane %v9551, 4
      %v9787 = vsel %vm7788, %v9785, %v9786
      %v9788 = vrot.slane %v9545, 4
      %v9789 = vrot.slane %v9552, 4
      %v9790 = vsel %vm7788, %v9788, %v9789
      %v9791 = vrot.slane %v9553, 4
      %v9792 = vrot.slane %v9560, 4
      %v9793 = vsel %vm7788, %v9791, %v9792
      %v9794 = vrot.slane %v9554, 4
      %v9795 = vrot.slane %v9561, 4
      %v9796 = vsel %vm7788, %v9794, %v9795
      %v9797 = vrot.slane %v9555, 4
      %v9798 = vrot.slane %v9562, 4
      %v9799 = vsel %vm7788, %v9797, %v9798
      %v9800 = vrot.slane %v9556, 4
      %v9801 = vrot.slane %v9563, 4
      %v9802 = vsel %vm7788, %v9800, %v9801
      %v9803 = vrot.slane %v9557, 4
      %v9804 = vrot.slane %v9564, 4
      %v9805 = vsel %vm7788, %v9803, %v9804
      %v9806 = vrot.slane %v9558, 4
      %v9807 = vrot.slane %v9565, 4
      %v9808 = vsel %vm7788, %v9806, %v9807
      %v9809 = vrot.slane %v9559, 4
      %v9810 = vrot.slane %v9566, 4
      %v9811 = vsel %vm7788, %v9809, %v9810
      %v9861 = vadd.f32 %v9392, %v9667
      %v9862 = vadd.f32 %v9393, %v9670
      %v9863 = vadd.f32 %v9394, %v9673
      %v9864 = vadd.f32 %v9395, %v9676
      %v9865 = vadd.f32 %v9396, %v9679
      %v9866 = vadd.f32 %v9397, %v9682
      %v9867 = vadd.f32 %v9398, %v9685
      %v9868 = vadd.f32 %v9399, %v9688
      %v9869 = vadd.f32 %v9400, %v9691
      %v9870 = vadd.f32 %v9401, %v9694
      %v9871 = vadd.f32 %v9402, %v9697
      %v9872 = vadd.f32 %v9403, %v9700
      %v9873 = vadd.f32 %v9404, %v9703
      %v9874 = vadd.f32 %v9405, %v9706
      %v9875 = vadd.f32 %v9406, %v9709
      %v9876 = vadd.f32 %v9407, %v9712
      %v9877 = vadd.f32 %v9408, %v9715
      %v9878 = vadd.f32 %v9409, %v9718
      %v9879 = vadd.f32 %v9410, %v9721
      %v9880 = vadd.f32 %v9411, %v9724
      %v9881 = vadd.f32 %v9412, %v9727
      %v9882 = vadd.f32 %v9413, %v9730
      %v9883 = vadd.f32 %v9414, %v9733
      %v9884 = vadd.f32 %v9415, %v9736
      %v9885 = vadd.f32 %v9416, %v9739
      %v9886 = vadd.f32 %v9417, %v9742
      %v9887 = vadd.f32 %v9418, %v9745
      %v9888 = vadd.f32 %v9419, %v9748
      %v9889 = vadd.f32 %v9420, %v9751
      %v9890 = vadd.f32 %v9421, %v9754
      %v9891 = vadd.f32 %v9422, %v9757
      %v9892 = vadd.f32 %v9423, %v9760
      %v9893 = vadd.f32 %v9424, %v9763
      %v9894 = vadd.f32 %v9425, %v9766
      %v9895 = vadd.f32 %v9426, %v9769
      %v9896 = vadd.f32 %v9427, %v9772
      %v9897 = vadd.f32 %v9428, %v9775
      %v9898 = vadd.f32 %v9429, %v9778
      %v9899 = vadd.f32 %v9430, %v9781
      %v9900 = vadd.f32 %v9431, %v9784
      %v9901 = vadd.f32 %v9432, %v9787
      %v9902 = vadd.f32 %v9433, %v9790
      %v9903 = vadd.f32 %v9434, %v9793
      %v9904 = vadd.f32 %v9435, %v9796
      %v9905 = vadd.f32 %v9436, %v9799
      %v9906 = vadd.f32 %v9437, %v9802
      %v9907 = vadd.f32 %v9438, %v9805
      %v9908 = vadd.f32 %v9439, %v9808
      %v9909 = vadd.f32 %v9440, %v9811
      %9910 = vst [vmem:[%s222] sm:$0x7f] %v9861
      %9911 = vst [vmem:[%s222 + $0x8] sm:$0x7f] %v9862
      %9912 = vst [vmem:[%s222 + $0x10] sm:$0x7f] %v9863
      %9913 = vst [vmem:[%s222 + $0x18] sm:$0x7f] %v9864
      %9914 = vst [vmem:[%s222 + $0x20] sm:$0x7f] %v9865
      %9915 = vst [vmem:[%s222 + $0x28] sm:$0x7f] %v9866
      %vm9916 = vcmask 784384
      %9917 = vst.msk [vmem:[%s222 + $0x30] sm:$0x7f] %vm9916, %v9867
      %9918 = vst [vmem:[%s222 + $0x38] sm:$0x7f] %v9868
      %9919 = vst [vmem:[%s222 + $0x40] sm:$0x7f] %v9869
      %9920 = vst [vmem:[%s222 + $0x48] sm:$0x7f] %v9870
      %9921 = vst [vmem:[%s222 + $0x50] sm:$0x7f] %v9871
      %9922 = vst [vmem:[%s222 + $0x58] sm:$0x7f] %v9872
      %9923 = vst [vmem:[%s222 + $0x60] sm:$0x7f] %v9873
      %9924 = vst.msk [vmem:[%s222 + $0x68] sm:$0x7f] %vm9916, %v9874
      %9925 = vst [vmem:[%s222 + $0x70] sm:$0x7f] %v9875
      %9926 = vst [vmem:[%s222 + $0x78] sm:$0x7f] %v9876
      %9927 = vst [vmem:[%s222 + $0x80] sm:$0x7f] %v9877
      %9928 = vst [vmem:[%s222 + $0x88] sm:$0x7f] %v9878
      %9929 = vst [vmem:[%s222 + $0x90] sm:$0x7f] %v9879
      %9930 = vst [vmem:[%s222 + $0x98] sm:$0x7f] %v9880
      %9931 = vst.msk [vmem:[%s222 + $0xa0] sm:$0x7f] %vm9916, %v9881
      %9932 = vst [vmem:[%s222 + $0xa8] sm:$0x7f] %v9882
      %9933 = vst [vmem:[%s222 + $0xb0] sm:$0x7f] %v9883
      %9934 = vst [vmem:[%s222 + $0xb8] sm:$0x7f] %v9884
      %9935 = vst [vmem:[%s222 + $0xc0] sm:$0x7f] %v9885
      %9936 = vst [vmem:[%s222 + $0xc8] sm:$0x7f] %v9886
      %9937 = vst [vmem:[%s222 + $0xd0] sm:$0x7f] %v9887
      %9938 = vst.msk [vmem:[%s222 + $0xd8] sm:$0x7f] %vm9916, %v9888
      %9939 = vst [vmem:[%s222 + $0xe0] sm:$0x7f] %v9889
      %9940 = vst [vmem:[%s222 + $0xe8] sm:$0x7f] %v9890
      %9941 = vst [vmem:[%s222 + $0xf0] sm:$0x7f] %v9891
      %9942 = vst [vmem:[%s222 + $0xf8] sm:$0x7f] %v9892
      %9943 = vst [vmem:[%s222 + $0x100] sm:$0x7f] %v9893
      %9944 = vst [vmem:[%s222 + $0x108] sm:$0x7f] %v9894
      %9945 = vst.msk [vmem:[%s222 + $0x110] sm:$0x7f] %vm9916, %v9895
      %9946 = vst [vmem:[%s222 + $0x118] sm:$0x7f] %v9896
      %9947 = vst [vmem:[%s222 + $0x120] sm:$0x7f] %v9897
      %9948 = vst [vmem:[%s222 + $0x128] sm:$0x7f] %v9898
      %9949 = vst [vmem:[%s222 + $0x130] sm:$0x7f] %v9899
      %9950 = vst [vmem:[%s222 + $0x138] sm:$0x7f] %v9900
      %9951 = vst [vmem:[%s222 + $0x140] sm:$0x7f] %v9901
      %9952 = vst.msk [vmem:[%s222 + $0x148] sm:$0x7f] %vm9916, %v9902
      %9953 = vst [vmem:[%s222 + $0x150] sm:$0x7f] %v9903
      %9954 = vst [vmem:[%s222 + $0x158] sm:$0x7f] %v9904
      %9955 = vst [vmem:[%s222 + $0x160] sm:$0x7f] %v9905
      %9956 = vst [vmem:[%s222 + $0x168] sm:$0x7f] %v9906
      %9957 = vst [vmem:[%s222 + $0x170] sm:$0x7f] %v9907
      %9958 = vst [vmem:[%s222 + $0x178] sm:$0x7f] %v9908
      %9959 = vst.msk [vmem:[%s222 + $0x180] sm:$0x7f] %vm9916, %v9909
      %vm9960 = vcmask 1046528
      %v9961 = vsel %vm9960, %v9861, 0.0
      %v9962 = vsel %vm9960, %v9868, 0.0
      %v9963 = vadd.f32 %v9961, %v9962
      %v9964 = vsel %vm9960, %v9875, 0.0
      %v9965 = vadd.f32 %v9963, %v9964
      %v9966 = vsel %vm9960, %v9882, 0.0
      %v9967 = vadd.f32 %v9965, %v9966
      %v9968 = vsel %vm9960, %v9889, 0.0
      %v9969 = vadd.f32 %v9967, %v9968
      %v9970 = vsel %vm9960, %v9896, 0.0
      %v9971 = vadd.f32 %v9969, %v9970
      %v9972 = vsel %vm9960, %v9903, 0.0
      %v9973 = vadd.f32 %v9971, %v9972
      %v9974 = vrot.slane %v9973, 4
      %v9975 = vadd.f32 %v9973, %v9974
      %v9976 = vrot.slane %v9975, 2
      %v9977 = vadd.f32 %v9975, %v9976
      %v9978 = vrot.slane %v9977, 1
      %v9979 = vadd.f32 %v9977, %v9978
      %v9980 = vsel %vm9960, %v9862, 0.0
      %v9981 = vsel %vm9960, %v9869, 0.0
      %v9982 = vadd.f32 %v9980, %v9981
      %v9983 = vsel %vm9960, %v9876, 0.0
      %v9984 = vadd.f32 %v9982, %v9983
      %v9985 = vsel %vm9960, %v9883, 0.0
      %v9986 = vadd.f32 %v9984, %v9985
      %v9987 = vsel %vm9960, %v9890, 0.0
      %v9988 = vadd.f32 %v9986, %v9987
      %v9989 = vsel %vm9960, %v9897, 0.0
      %v9990 = vadd.f32 %v9988, %v9989
      %v9991 = vsel %vm9960, %v9904, 0.0
      %v9992 = vadd.f32 %v9990, %v9991
      %v9993 = vrot.slane %v9992, 4
      %v9994 = vadd.f32 %v9992, %v9993
      %v9995 = vrot.slane %v9994, 2
      %v9996 = vadd.f32 %v9994, %v9995
      %v9997 = vrot.slane %v9996, 1
      %v9998 = vadd.f32 %v9996, %v9997
      %v9999 = vsel %vm9960, %v9863, 0.0
      %v10000 = vsel %vm9960, %v9870, 0.0
      %v10001 = vadd.f32 %v9999, %v10000
      %v10002 = vsel %vm9960, %v9877, 0.0
      %v10003 = vadd.f32 %v10001, %v10002
      %v10004 = vsel %vm9960, %v9884, 0.0
      %v10005 = vadd.f32 %v10003, %v10004
      %v10006 = vsel %vm9960, %v9891, 0.0
      %v10007 = vadd.f32 %v10005, %v10006
      %v10008 = vsel %vm9960, %v9898, 0.0
      %v10009 = vadd.f32 %v10007, %v10008
      %v10010 = vsel %vm9960, %v9905, 0.0
      %v10011 = vadd.f32 %v10009, %v10010
      %v10012 = vrot.slane %v10011, 4
      %v10013 = vadd.f32 %v10011, %v10012
      %v10014 = vrot.slane %v10013, 2
      %v10015 = vadd.f32 %v10013, %v10014
      %v10016 = vrot.slane %v10015, 1
      %v10017 = vadd.f32 %v10015, %v10016
      %v10018 = vsel %vm9960, %v9864, 0.0
      %v10019 = vsel %vm9960, %v9871, 0.0
      %v10020 = vadd.f32 %v10018, %v10019
      %v10021 = vsel %vm9960, %v9878, 0.0
      %v10022 = vadd.f32 %v10020, %v10021
      %v10023 = vsel %vm9960, %v9885, 0.0
      %v10024 = vadd.f32 %v10022, %v10023
      %v10025 = vsel %vm9960, %v9892, 0.0
      %v10026 = vadd.f32 %v10024, %v10025
      %v10027 = vsel %vm9960, %v9899, 0.0
      %v10028 = vadd.f32 %v10026, %v10027
      %v10029 = vsel %vm9960, %v9906, 0.0
      %v10030 = vadd.f32 %v10028, %v10029
      %v10031 = vrot.slane %v10030, 4
      %v10032 = vadd.f32 %v10030, %v10031
      %v10033 = vrot.slane %v10032, 2
      %v10034 = vadd.f32 %v10032, %v10033
      %v10035 = vrot.slane %v10034, 1
      %v10036 = vadd.f32 %v10034, %v10035
      %v10037 = vsel %vm9960, %v9865, 0.0
      %v10038 = vsel %vm9960, %v9872, 0.0
      %v10039 = vadd.f32 %v10037, %v10038
      %v10040 = vsel %vm9960, %v9879, 0.0
      %v10041 = vadd.f32 %v10039, %v10040
      %v10042 = vsel %vm9960, %v9886, 0.0
      %v10043 = vadd.f32 %v10041, %v10042
      %v10044 = vsel %vm9960, %v9893, 0.0
      %v10045 = vadd.f32 %v10043, %v10044
      %v10046 = vsel %vm9960, %v9900, 0.0
      %v10047 = vadd.f32 %v10045, %v10046
      %v10048 = vsel %vm9960, %v9907, 0.0
      %v10049 = vadd.f32 %v10047, %v10048
      %v10050 = vrot.slane %v10049, 4
      %v10051 = vadd.f32 %v10049, %v10050
      %v10052 = vrot.slane %v10051, 2
      %v10053 = vadd.f32 %v10051, %v10052
      %v10054 = vrot.slane %v10053, 1
      %v10055 = vadd.f32 %v10053, %v10054
      %v10056 = vsel %vm9960, %v9866, 0.0
      %v10057 = vsel %vm9960, %v9873, 0.0
      %v10058 = vadd.f32 %v10056, %v10057
      %v10059 = vsel %vm9960, %v9880, 0.0
      %v10060 = vadd.f32 %v10058, %v10059
      %v10061 = vsel %vm9960, %v9887, 0.0
      %v10062 = vadd.f32 %v10060, %v10061
      %v10063 = vsel %vm9960, %v9894, 0.0
      %v10064 = vadd.f32 %v10062, %v10063
      %v10065 = vsel %vm9960, %v9901, 0.0
      %v10066 = vadd.f32 %v10064, %v10065
      %v10067 = vsel %vm9960, %v9908, 0.0
      %v10068 = vadd.f32 %v10066, %v10067
      %v10069 = vrot.slane %v10068, 4
      %v10070 = vadd.f32 %v10068, %v10069
      %v10071 = vrot.slane %v10070, 2
      %v10072 = vadd.f32 %v10070, %v10071
      %v10073 = vrot.slane %v10072, 1
      %v10074 = vadd.f32 %v10072, %v10073
      %v10075 = vsel %vm9916, %v9867, 0.0
      %v10076 = vsel %vm9916, %v9874, 0.0
      %v10077 = vadd.f32 %v10075, %v10076
      %v10078 = vsel %vm9916, %v9881, 0.0
      %v10079 = vadd.f32 %v10077, %v10078
      %v10080 = vsel %vm9916, %v9888, 0.0
      %v10081 = vadd.f32 %v10079, %v10080
      %v10082 = vsel %vm9916, %v9895, 0.0
      %v10083 = vadd.f32 %v10081, %v10082
      %v10084 = vsel %vm9916, %v9902, 0.0
      %v10085 = vadd.f32 %v10083, %v10084
      %v10086 = vsel %vm9916, %v9909, 0.0
      %v10087 = vadd.f32 %v10085, %v10086
      %v10088 = vrot.slane %v10087, 4
      %v10089 = vadd.f32 %v10087, %v10088
      %v10090 = vrot.slane %v10089, 2
      %v10091 = vadd.f32 %v10089, %v10090
      %v10092 = vrot.slane %v10091, 1
      %v10093 = vadd.f32 %v10091, %v10092
      %v10094 = vmul.f32 %v9861, %v9861
      %v10095 = vmul.f32 %v9862, %v9862
      %v10096 = vmul.f32 %v9863, %v9863
      %v10097 = vmul.f32 %v9864, %v9864
      %v10098 = vmul.f32 %v9865, %v9865
      %v10099 = vmul.f32 %v9866, %v9866
      %v10100 = vmul.f32 %v9867, %v9867
      %v10101 = vmul.f32 %v9868, %v9868
      %v10102 = vmul.f32 %v9869, %v9869
      %v10103 = vmul.f32 %v9870, %v9870
      %v10104 = vmul.f32 %v9871, %v9871
      %v10105 = vmul.f32 %v9872, %v9872
      %v10106 = vmul.f32 %v9873, %v9873
      %v10107 = vmul.f32 %v9874, %v9874
      %v10108 = vmul.f32 %v9875, %v9875
      %v10109 = vmul.f32 %v9876, %v9876
      %v10110 = vmul.f32 %v9877, %v9877
      %v10111 = vmul.f32 %v9878, %v9878
      %v10112 = vmul.f32 %v9879, %v9879
      %v10113 = vmul.f32 %v9880, %v9880
      %v10114 = vmul.f32 %v9881, %v9881
      %v10115 = vmul.f32 %v9882, %v9882
      %v10116 = vmul.f32 %v9883, %v9883
      %v10117 = vmul.f32 %v9884, %v9884
      %v10118 = vmul.f32 %v9885, %v9885
      %v10119 = vmul.f32 %v9886, %v9886
      %v10120 = vmul.f32 %v9887, %v9887
      %v10121 = vmul.f32 %v9888, %v9888
      %v10122 = vmul.f32 %v9889, %v9889
      %v10123 = vmul.f32 %v9890, %v9890
      %v10124 = vmul.f32 %v9891, %v9891
      %v10125 = vmul.f32 %v9892, %v9892
      %v10126 = vmul.f32 %v9893, %v9893
      %v10127 = vmul.f32 %v9894, %v9894
      %v10128 = vmul.f32 %v9895, %v9895
      %v10129 = vmul.f32 %v9896, %v9896
      %v10130 = vmul.f32 %v9897, %v9897
      %v10131 = vmul.f32 %v9898, %v9898
      %v10132 = vmul.f32 %v9899, %v9899
      %v10133 = vmul.f32 %v9900, %v9900
      %v10134 = vmul.f32 %v9901, %v9901
      %v10135 = vmul.f32 %v9902, %v9902
      %v10136 = vmul.f32 %v9903, %v9903
      %v10137 = vmul.f32 %v9904, %v9904
      %v10138 = vmul.f32 %v9905, %v9905
      %v10139 = vmul.f32 %v9906, %v9906
      %v10140 = vmul.f32 %v9907, %v9907
      %v10141 = vmul.f32 %v9908, %v9908
      %v10142 = vmul.f32 %v9909, %v9909
      %v10143 = vsel %vm9960, %v10094, 0.0
      %v10144 = vsel %vm9960, %v10101, 0.0
      %v10145 = vadd.f32 %v10143, %v10144
      %v10146 = vsel %vm9960, %v10108, 0.0
      %v10147 = vadd.f32 %v10145, %v10146
      %v10148 = vsel %vm9960, %v10115, 0.0
      %v10149 = vadd.f32 %v10147, %v10148
      %v10150 = vsel %vm9960, %v10122, 0.0
      %v10151 = vadd.f32 %v10149, %v10150
      %v10152 = vsel %vm9960, %v10129, 0.0
      %v10153 = vadd.f32 %v10151, %v10152
      %v10154 = vsel %vm9960, %v10136, 0.0
      %v10155 = vadd.f32 %v10153, %v10154
      %v10156 = vrot.slane %v10155, 4
      %v10157 = vadd.f32 %v10155, %v10156
      %v10158 = vrot.slane %v10157, 2
      %v10159 = vadd.f32 %v10157, %v10158
      %v10160 = vrot.slane %v10159, 1
      %v10161 = vadd.f32 %v10159, %v10160
      %v10162 = vsel %vm9960, %v10095, 0.0
      %v10163 = vsel %vm9960, %v10102, 0.0
      %v10164 = vadd.f32 %v10162, %v10163
      %v10165 = vsel %vm9960, %v10109, 0.0
      %v10166 = vadd.f32 %v10164, %v10165
      %v10167 = vsel %vm9960, %v10116, 0.0
      %v10168 = vadd.f32 %v10166, %v10167
      %v10169 = vsel %vm9960, %v10123, 0.0
      %v10170 = vadd.f32 %v10168, %v10169
      %v10171 = vsel %vm9960, %v10130, 0.0
      %v10172 = vadd.f32 %v10170, %v10171
      %v10173 = vsel %vm9960, %v10137, 0.0
      %v10174 = vadd.f32 %v10172, %v10173
      %v10175 = vrot.slane %v10174, 4
      %v10176 = vadd.f32 %v10174, %v10175
      %v10177 = vrot.slane %v10176, 2
      %v10178 = vadd.f32 %v10176, %v10177
      %v10179 = vrot.slane %v10178, 1
      %v10180 = vadd.f32 %v10178, %v10179
      %v10181 = vsel %vm9960, %v10096, 0.0
      %v10182 = vsel %vm9960, %v10103, 0.0
      %v10183 = vadd.f32 %v10181, %v10182
      %v10184 = vsel %vm9960, %v10110, 0.0
      %v10185 = vadd.f32 %v10183, %v10184
      %v10186 = vsel %vm9960, %v10117, 0.0
      %v10187 = vadd.f32 %v10185, %v10186
      %v10188 = vsel %vm9960, %v10124, 0.0
      %v10189 = vadd.f32 %v10187, %v10188
      %v10190 = vsel %vm9960, %v10131, 0.0
      %v10191 = vadd.f32 %v10189, %v10190
      %v10192 = vsel %vm9960, %v10138, 0.0
      %v10193 = vadd.f32 %v10191, %v10192
      %v10194 = vrot.slane %v10193, 4
      %v10195 = vadd.f32 %v10193, %v10194
      %v10196 = vrot.slane %v10195, 2
      %v10197 = vadd.f32 %v10195, %v10196
      %v10198 = vrot.slane %v10197, 1
      %v10199 = vadd.f32 %v10197, %v10198
      %v10200 = vsel %vm9960, %v10097, 0.0
      %v10201 = vsel %vm9960, %v10104, 0.0
      %v10202 = vadd.f32 %v10200, %v10201
      %v10203 = vsel %vm9960, %v10111, 0.0
      %v10204 = vadd.f32 %v10202, %v10203
      %v10205 = vsel %vm9960, %v10118, 0.0
      %v10206 = vadd.f32 %v10204, %v10205
      %v10207 = vsel %vm9960, %v10125, 0.0
      %v10208 = vadd.f32 %v10206, %v10207
      %v10209 = vsel %vm9960, %v10132, 0.0
      %v10210 = vadd.f32 %v10208, %v10209
      %v10211 = vsel %vm9960, %v10139, 0.0
      %v10212 = vadd.f32 %v10210, %v10211
      %v10213 = vrot.slane %v10212, 4
      %v10214 = vadd.f32 %v10212, %v10213
      %v10215 = vrot.slane %v10214, 2
      %v10216 = vadd.f32 %v10214, %v10215
      %v10217 = vrot.slane %v10216, 1
      %v10218 = vadd.f32 %v10216, %v10217
      %v10219 = vsel %vm9960, %v10098, 0.0
      %v10220 = vsel %vm9960, %v10105, 0.0
      %v10221 = vadd.f32 %v10219, %v10220
      %v10222 = vsel %vm9960, %v10112, 0.0
      %v10223 = vadd.f32 %v10221, %v10222
      %v10224 = vsel %vm9960, %v10119, 0.0
      %v10225 = vadd.f32 %v10223, %v10224
      %v10226 = vsel %vm9960, %v10126, 0.0
      %v10227 = vadd.f32 %v10225, %v10226
      %v10228 = vsel %vm9960, %v10133, 0.0
      %v10229 = vadd.f32 %v10227, %v10228
      %v10230 = vsel %vm9960, %v10140, 0.0
      %v10231 = vadd.f32 %v10229, %v10230
      %v10232 = vrot.slane %v10231, 4
      %v10233 = vadd.f32 %v10231, %v10232
      %v10234 = vrot.slane %v10233, 2
      %v10235 = vadd.f32 %v10233, %v10234
      %v10236 = vrot.slane %v10235, 1
      %v10237 = vadd.f32 %v10235, %v10236
      %v10238 = vsel %vm9960, %v10099, 0.0
      %v10239 = vsel %vm9960, %v10106, 0.0
      %v10240 = vadd.f32 %v10238, %v10239
      %v10241 = vsel %vm9960, %v10113, 0.0
      %v10242 = vadd.f32 %v10240, %v10241
      %v10243 = vsel %vm9960, %v10120, 0.0
      %v10244 = vadd.f32 %v10242, %v10243
      %v10245 = vsel %vm9960, %v10127, 0.0
      %v10246 = vadd.f32 %v10244, %v10245
      %v10247 = vsel %vm9960, %v10134, 0.0
      %v10248 = vadd.f32 %v10246, %v10247
      %v10249 = vsel %vm9960, %v10141, 0.0
      %v10250 = vadd.f32 %v10248, %v10249
      %v10251 = vrot.slane %v10250, 4
      %v10252 = vadd.f32 %v10250, %v10251
      %v10253 = vrot.slane %v10252, 2
      %v10254 = vadd.f32 %v10252, %v10253
      %v10255 = vrot.slane %v10254, 1
      %v10256 = vadd.f32 %v10254, %v10255
      %v10257 = vsel %vm9916, %v10100, 0.0
      %v10258 = vsel %vm9916, %v10107, 0.0
      %v10259 = vadd.f32 %v10257, %v10258
      %v10260 = vsel %vm9916, %v10114, 0.0
      %v10261 = vadd.f32 %v10259, %v10260
      %v10262 = vsel %vm9916, %v10121, 0.0
      %v10263 = vadd.f32 %v10261, %v10262
      %v10264 = vsel %vm9916, %v10128, 0.0
      %v10265 = vadd.f32 %v10263, %v10264
      %v10266 = vsel %vm9916, %v10135, 0.0
      %v10267 = vadd.f32 %v10265, %v10266
      %v10268 = vsel %vm9916, %v10142, 0.0
      %v10269 = vadd.f32 %v10267, %v10268
      %v10270 = vrot.slane %v10269, 4
      %v10271 = vadd.f32 %v10269, %v10270
      %v10272 = vrot.slane %v10271, 2
      %v10273 = vadd.f32 %v10271, %v10272
      %v10274 = vrot.slane %v10273, 1
      %v10275 = vadd.f32 %v10273, %v10274
      %vm10276 = vcmask 1040384
      %v10277 = vsel %vm10276, %v9979, %v10161
      %v10278 = vsel %vm10276, %v9998, %v10180
      %v10279 = vsel %vm10276, %v10017, %v10199
      %v10280 = vsel %vm10276, %v10036, %v10218
      %v10281 = vsel %vm10276, %v10055, %v10237
      %v10282 = vsel %vm10276, %v10074, %v10256
      %v10283 = vsel %vm10276, %v10093, %v10275
      %v10291 = vcombine.low %v10277, %v10278
      %v10292 = vcombine.low %v10279, %v10280
      %v10294 = vunpack.c.l.s4 1983009808
      %v10295 = vunpack.c.0.s8 %v10294
      %v10296 = vlaneseq
      %v10297 = vshrl.u32 %v10296, 7
      %v10298 = vsub.s32 %v10295, %v10297
      %v10299 = vrot.slane %v10291, %v10298
      %v10301 = vunpack.c.l.s4 1983009808
      %v10302 = vunpack.c.0.s8 %v10301
      %v10303 = vlaneseq
      %v10304 = vshrl.u32 %v10303, 7
      %v10305 = vsub.s32 %v10302, %v10304
      %v10306 = vrot.slane %v10292, %v10305
      %v10307 = vcombine.low %v10299, %v10306
      %v10308 = vcombine.low %v10281, %v10282
      %v10310 = vunpack.c.l.s4 1983009808
      %v10311 = vunpack.c.0.s8 %v10310
      %v10312 = vlaneseq
      %v10313 = vshrl.u32 %v10312, 7
      %v10314 = vsub.s32 %v10311, %v10313
      %v10315 = vrot.slane %v10308, %v10314
      %v10317 = vunpack.c.l.s4 1983009808
      %v10318 = vunpack.c.0.s8 %v10317
      %v10319 = vlaneseq
      %v10320 = vshrl.u32 %v10319, 7
      %v10321 = vsub.s32 %v10318, %v10320
      %v10322 = vrot.slane %v10283, %v10321
      %v10323 = vcombine.low %v10315, %v10322
      %10326 = vst [vmem:[%s232] sm:$0xff] %v10307
      %vm10327 = vcmask 1041408
      %vm10328 = vcmask 1043458
      %vm10329 = vmor %vm10328, %vm10327
      %vm10330 = vcmask 783364
      %vm10331 = vmor %vm10330, %vm10329
      %10332 = vst.msk [vmem:[%s232 + $0x8] sm:$0x3f] %vm10331, %v10323
      %s10333 = smul.u32 7, %s20
      %p10334 = scmp.lt.s32.totalorder %s19, 1
      %s10335 = scalar_select %p10334, %s19, 1
      %p10336 = scmp.lt.s32.totalorder %s10333, 6
      %s10337 = scalar_select %p10336, %s10333, 6
      %s10338 = smul.addr %s10337, 7
      %s10339 = smul.addr %s10335, 49
      %s10340 = sadd.s32 %s10338, %s10339
      %s10341 = smul.addr %s10340, 8
      %s10342 = scalar_lea.vmem %s2, %s10341
      %p10343 = scmp.lt.s32.totalorder %s19, 1
      %s10344 = scalar_select %p10343, %s19, 1
      %p10345 = scmp.lt.s32.totalorder %s20, 0
      %s10346 = scalar_select %p10345, %s20, 0
      %s10347 = smul.addr %s10346, 7
      %s10348 = smul.addr %s10344, 7
      %s10349 = sadd.s32 %s10347, %s10348
      %s10350 = smul.addr %s10349, 2
      %s10351 = scalar_lea.vmem %s3, %s10350
      // Predicated region
      $region29: #{fused_forward.2} parent=27 // pred_check
        %p10352 = pneg %p96
      $region30: #{fused_forward.2} parent=27 // pred_check_branch
        %10354 = sbr.rel (%p10352) target = $region32
      $region31: #{fused_forward.2} parent=27 // pred_region
        %s10355 = smul.u32 7, %s20
      $region32: #{fused_forward.2} parent=27 // pred_fallthru
        _
      // Predicated region
      $region33: #{fused_forward.2} parent=27 // pred_check
        %p10356 = pneg %p124
      $region34: #{fused_forward.2} parent=27 // pred_check_branch
        %10358 = sbr.rel (%p10356) target = $region36
      $region35: #{fused_forward.2} parent=27 // pred_region
        _
      $region36: #{fused_forward.2} parent=27 // pred_fallthru
        _
    $region28: #{fused_forward.2} parent=5 // pred_fallthru
      _
    %p10359 = scmp.le.s32.totalorder 2, %s10
    // Predicated region
    $region37: #{fused_forward.2} parent=5 // pred_check
      %p10360 = pneg %p10359
    $region38: #{fused_forward.2} parent=5 // pred_check_branch
      %10362 = sbr.rel (%p10360) target = $region40
    $region39: #{fused_forward.2} parent=5 // pred_region
      %s10363 = ssub.s32 %s10, 2
      // Predicated region
      $region41: #{fused_forward.2} parent=39 // pred_check
        %p10364 = pneg %p102
      $region42: #{fused_forward.2} parent=39 // pred_check_branch
        %10366 = sbr.rel (%p10364) target = $region44
      $region43: #{fused_forward.2} parent=39 // pred_region
        %s10367 = smul.u32 7, %s22
        %p10368 = scmp.lt.s32.totalorder %s21, 1
        %s10369 = scalar_select %p10368, %s21, 1
        %p10370 = scmp.lt.s32.totalorder %s10367, 6
        %s10371 = scalar_select %p10370, %s10367, 6
        %s10372 = smul.addr %s10371, 7
        %s10373 = smul.addr %s10369, 49
        %s10374 = sadd.s32 %s10372, %s10373
        %s10375 = smul.addr %s10374, 8
        %s10376 = scalar_lea.vmem %s2, %s10375
      $region44: #{fused_forward.2} parent=39 // pred_fallthru
        _
      // Predicated region
      $region45: #{fused_forward.2} parent=39 // pred_check
        %p10377 = pneg %p130
      $region46: #{fused_forward.2} parent=39 // pred_check_branch
        %10379 = sbr.rel (%p10377) target = $region48
      $region47: #{fused_forward.2} parent=39 // pred_region
        %p10380 = scmp.lt.s32.totalorder %s21, 1
        %s10381 = scalar_select %p10380, %s21, 1
        %p10382 = scmp.lt.s32.totalorder %s22, 0
        %s10383 = scalar_select %p10382, %s22, 0
        %s10384 = smul.addr %s10383, 7
        %s10385 = smul.addr %s10381, 7
        %s10386 = sadd.s32 %s10384, %s10385
        %s10387 = smul.addr %s10386, 2
        %s10388 = scalar_lea.vmem %s3, %s10387
      $region48: #{fused_forward.2} parent=39 // pred_fallthru
        _
    $region40: #{fused_forward.2} parent=5 // pred_fallthru
      _
  $region6: #{fused_forward.2} parent=0 // loop_footer
    %s14 = sadd.s32 1, %s10
  $region7: #{fused_forward.2} parent=0 // loop_footer_branch
    %9 = sbr.rel target = $region3
  $region8: #{fused_forward.2} parent=0 // loop_exit
    _

</llo_original>
